<compile_context>
chip_gen: v7x
topology: tpu7x:2x2x1
jax: 0.10.0
libtpu: 0.0.40
codegen_flags: <defaults>
</compile_context>

<pallas_src>
import functools
import numpy as np
import jax
import jax.numpy as jnp
from jax import lax
from jax.experimental import pallas as pl
from jax.experimental.pallas import tpu as pltpu

EPS = 1e-5
NEG_SLOPE = 0.01
MODALITIES = ("t1", "t1ce", "t2", "flair")
VMEM_LIMIT = 48 * 1024 * 1024

# (modality, quarter) source per output quarter, for each missing_index 0..14.
# modalities: 0=t1, 1=t1ce, 2=t2, 3=flair
FEATURE_TABLE = np.array([
    [(0, 0), (0, 1), (0, 2), (0, 3)],
    [(1, 1), (1, 0), (1, 3), (1, 2)],
    [(2, 2), (2, 3), (2, 0), (2, 1)],
    [(3, 3), (3, 2), (3, 1), (3, 0)],
    [(0, 0), (1, 0), (0, 2), (1, 2)],
    [(0, 0), (0, 1), (2, 0), (2, 1)],
    [(0, 0), (0, 1), (3, 1), (3, 0)],
    [(1, 1), (1, 0), (2, 0), (2, 1)],
    [(1, 1), (1, 0), (3, 1), (3, 0)],
    [(2, 2), (3, 2), (2, 0), (3, 0)],
    [(0, 0), (1, 0), (2, 0), (2, 1)],
    [(0, 0), (1, 0), (3, 1), (3, 0)],
    [(0, 0), (0, 1), (2, 0), (3, 0)],
    [(1, 1), (1, 0), (2, 0), (3, 0)],
    [(0, 0), (1, 0), (2, 0), (3, 0)],
], dtype=np.int32)  # (15, 4, 2)


# ----------------------------- geometry helpers -----------------------------

def _geom(D, H, W):
    """Padded-plane flat layout.

    Each (padded) depth plane is stored as S rows x C channels, where the
    Hp*Wp padded-plane voxels sit at rows [padr, padr + Hp*Wp) and `padr`
    extra zero rows on each side make every 3x3 in-plane conv tap a static,
    in-bounds slice of length Hp*Wp.
    """
    Dp, Hp, Wp = D + 2, H + 2, W + 2
    hpwp = Hp * Wp
    padr = Wp + 1
    S = ((hpwp + 2 * padr + 7) // 8) * 8          # round up to sublane multiple
    return Dp, Hp, Wp, hpwp, padr, S


def _interior_mask_np(D, H, W):
    """(Dp, S, 1) f32 mask: 1.0 at storage rows holding real (interior) voxels."""
    Dp, Hp, Wp, hpwp, padr, S = _geom(D, H, W)
    plane = np.zeros((Hp, Wp), np.float32)
    plane[1:Hp - 1, 1:Wp - 1] = 1.0
    m = np.zeros((Dp, S, 1), np.float32)
    m[1:Dp - 1, padr:padr + hpwp, 0] = plane.reshape(-1)[None, :]
    return m


def _interior_rows_np(H, W):
    """Storage-row indices of the H*W real voxels inside one plane (raster order)."""
    Hp, Wp = H + 2, W + 2
    padr = Wp + 1
    rows = [padr + h * Wp + w for h in range(1, Hp - 1) for w in range(1, Wp - 1)]
    return np.array(rows, np.int32)


# ----------------------------- Pallas kernels -----------------------------

def _matmul_stats_kernel(x_ref, w_ref, m_ref, raw_ref, sum_ref, sq_ref):
    """raw = x @ w (bf16 operands, f32 acc); accumulate masked sum / sumsq."""
    acc = jnp.dot(x_ref[0, 0], w_ref[0], preferred_element_type=jnp.float32)
    raw_ref[0, 0] = acc
    msk = m_ref[0]                       # (S, 1) f32
    am = acc * msk

    @pl.when(pl.program_id(1) == 0)
    def _():
        sum_ref[...] = jnp.zeros_like(sum_ref)
        sq_ref[...] = jnp.zeros_like(sq_ref)

    sum_ref[0] = sum_ref[0] + jnp.sum(am, axis=0, keepdims=True)
    sq_ref[0] = sq_ref[0] + jnp.sum(acc * am, axis=0, keepdims=True)


def _make_conv27_kernel(S, hpwp, padr, Wp, C):
    """3x3x3 conv on the halo-padded flat-plane layout: 27 shifted MXU matmuls."""
    def kernel(x0_ref, x1_ref, x2_ref, w_ref, m_ref, raw_ref, sum_ref, sq_ref):
        xrefs = (x0_ref, x1_ref, x2_ref)
        acc = jnp.zeros((hpwp, C), jnp.float32)
        for kd in range(3):
            for kh in range(3):
                for kw in range(3):
                    t = kd * 9 + kh * 3 + kw
                    start = padr + (kh - 1) * Wp + (kw - 1)   # static, in-bounds
                    xs = xrefs[kd][0, 0, start:start + hpwp, :]
                    acc = acc + jnp.dot(xs, w_ref[t],
                                        preferred_element_type=jnp.float32)
        # Write the full S-row plane (halo rows zeroed -> finite everywhere).
        raw_ref[0, 0] = jnp.zeros((S, C), jnp.float32)
        raw_ref[0, 0, padr:padr + hpwp, :] = acc

        msk = m_ref[0, padr:padr + hpwp, :]
        am = acc * msk

        @pl.when(pl.program_id(1) == 0)
        def _():
            sum_ref[...] = jnp.zeros_like(sum_ref)
            sq_ref[...] = jnp.zeros_like(sq_ref)

        sum_ref[0] = sum_ref[0] + jnp.sum(am, axis=0, keepdims=True)
        sq_ref[0] = sq_ref[0] + jnp.sum(acc * am, axis=0, keepdims=True)
    return kernel


def _make_normalize_kernel(count, out_dtype, with_pool):
    """InstanceNorm (stats from pass A) + affine + LeakyReLU + interior mask."""
    inv_n = 1.0 / float(count)

    def _core(raw_ref, sum_ref, sq_ref, g_ref, b_ref, m_ref):
        raw = raw_ref[0, 0]                              # (S, C) f32
        mean = sum_ref[0] * inv_n                        # (1, C)
        var = jnp.maximum(sq_ref[0] * inv_n - mean * mean, 0.0)
        y = (raw - mean) * lax.rsqrt(var + EPS)
        y = y * g_ref[0] + b_ref[0]
        y = jnp.where(y > 0, y, NEG_SLOPE * y)           # LeakyReLU(0.01)
        return y * m_ref[0]                              # zero the halo/pad rows

    if with_pool:
        def kernel(raw_ref, sum_ref, sq_ref, g_ref, b_ref, m_ref, o_ref, pool_ref):
            y = _core(raw_ref, sum_ref, sq_ref, g_ref, b_ref, m_ref)
            o_ref[0, 0] = y.astype(out_dtype)

            @pl.when(pl.program_id(1) == 0)
            def _():
                pool_ref[...] = jnp.zeros_like(pool_ref)

            pool_ref[0] = pool_ref[0] + jnp.sum(y, axis=0, keepdims=True)
    else:
        def kernel(raw_ref, sum_ref, sq_ref, g_ref, b_ref, m_ref, o_ref):
            y = _core(raw_ref, sum_ref, sq_ref, g_ref, b_ref, m_ref)
            o_ref[0, 0] = y.astype(out_dtype)
    return kernel


# ----------------------------- pallas_call wrappers -----------------------------

def _conv_matmul_stats(x, w, mask, *, mask_offset):
    """Pass A for stage 1 (im2col conv) and stage 3 (exchange+select matmul)."""
    B, P, S, K = x.shape
    Cout = w.shape[-1]
    w_map = (lambda b, d: (0, 0, 0)) if w.shape[0] == 1 else (lambda b, d: (b, 0, 0))
    m_map = lambda b, d: (d + mask_offset, 0, 0)
    flops = 2 * B * P * S * K * Cout
    bytes_acc = x.size * 2 + w.size * 2 + B * P * S * Cout * 4
    return pl.pallas_call(
        _matmul_stats_kernel,
        out_shape=(jax.ShapeDtypeStruct((B, P, S, Cout), jnp.float32),
                   jax.ShapeDtypeStruct((B, 1, Cout), jnp.float32),
                   jax.ShapeDtypeStruct((B, 1, Cout), jnp.float32)),
        grid=(B, P),
        in_specs=[pl.BlockSpec((1, 1, S, K), lambda b, d: (b, d, 0, 0)),
                  pl.BlockSpec((1, K, Cout), w_map),
                  pl.BlockSpec((1, S, 1), m_map)],
        out_specs=(pl.BlockSpec((1, 1, S, Cout), lambda b, d: (b, d, 0, 0)),
                   pl.BlockSpec((1, 1, Cout), lambda b, d: (b, 0, 0)),
                   pl.BlockSpec((1, 1, Cout), lambda b, d: (b, 0, 0))),
        compiler_params=pltpu.CompilerParams(
            dimension_semantics=("parallel", "arbitrary"),
            vmem_limit_bytes=VMEM_LIMIT),
        cost_estimate=pl.CostEstimate(flops=int(flops), transcendentals=0,
                                      bytes_accessed=int(bytes_acc)),
    )(x, w, mask)


def _conv27_stats(y1, w27, mask, *, hpwp, padr, Wp):
    """Pass A for stage 2: in-kernel 3x3x3 conv (no HBM im2col) + stats."""
    B, Dp, S, C = y1.shape
    D = Dp - 2
    kernel = _make_conv27_kernel(S, hpwp, padr, Wp, C)
    flops = 2 * B * D * 27 * hpwp * C * C
    bytes_acc = 3 * B * D * S * C * 2 + w27.size * 2 + B * D * S * C * 4
    return pl.pallas_call(
        kernel,
        out_shape=(jax.ShapeDtypeStruct((B, D, S, C), jnp.float32),
                   jax.ShapeDtypeStruct((B, 1, C), jnp.float32),
                   jax.ShapeDtypeStruct((B, 1, C), jnp.float32)),
        grid=(B, D),
        in_specs=[pl.BlockSpec((1, 1, S, C), lambda b, d: (b, d, 0, 0)),
                  pl.BlockSpec((1, 1, S, C), lambda b, d: (b, d + 1, 0, 0)),
                  pl.BlockSpec((1, 1, S, C), lambda b, d: (b, d + 2, 0, 0)),
                  pl.BlockSpec((27, C, C), lambda b, d: (0, 0, 0)),
                  pl.BlockSpec((1, S, 1), lambda b, d: (d + 1, 0, 0))],
        out_specs=(pl.BlockSpec((1, 1, S, C), lambda b, d: (b, d, 0, 0)),
                   pl.BlockSpec((1, 1, C), lambda b, d: (b, 0, 0)),
                   pl.BlockSpec((1, 1, C), lambda b, d: (b, 0, 0))),
        compiler_params=pltpu.CompilerParams(
            dimension_semantics=("parallel", "arbitrary"),
            vmem_limit_bytes=VMEM_LIMIT),
        cost_estimate=pl.CostEstimate(flops=int(flops), transcendentals=0,
                                      bytes_accessed=int(bytes_acc)),
    )(y1, y1, y1, w27, mask)


def _normalize(raw, ssum, ssq, gamma, beta, mask, *, count, mask_offset,
               with_pool, out_dtype):
    """Pass B: per-channel normalize + affine + LeakyReLU (+ pooled-sum accum)."""
    B, P, S, C = raw.shape
    kernel = _make_normalize_kernel(count, out_dtype, with_pool)
    m_map = lambda b, d: (d + mask_offset, 0, 0)
    in_specs = [pl.BlockSpec((1, 1, S, C), lambda b, d: (b, d, 0, 0)),
                pl.BlockSpec((1, 1, C), lambda b, d: (b, 0, 0)),
                pl.BlockSpec((1, 1, C), lambda b, d: (b, 0, 0)),
                pl.BlockSpec((1, 1, C), lambda b, d: (b, 0, 0)),
                pl.BlockSpec((1, 1, C), lambda b, d: (b, 0, 0)),
                pl.BlockSpec((1, S, 1), m_map)]
    act_spec = pl.BlockSpec((1, 1, S, C), lambda b, d: (b, d, 0, 0))
    if with_pool:
        out_shape = (jax.ShapeDtypeStruct((B, P, S, C), out_dtype),
                     jax.ShapeDtypeStruct((B, 1, C), jnp.float32))
        out_specs = (act_spec, pl.BlockSpec((1, 1, C), lambda b, d: (b, 0, 0)))
        sem = ("parallel", "arbitrary")
    else:
        out_shape = jax.ShapeDtypeStruct((B, P, S, C), out_dtype)
        out_specs = act_spec
        sem = ("parallel", "parallel")   # >B parallel iterations (v7x megacore)
    return pl.pallas_call(
        kernel, out_shape=out_shape, grid=(B, P),
        in_specs=in_specs, out_specs=out_specs,
        compiler_params=pltpu.CompilerParams(
            dimension_semantics=sem, vmem_limit_bytes=VMEM_LIMIT),
    )(raw, ssum, ssq, gamma, beta, mask)


# ----------------------------- JAX glue -----------------------------

def _im2col_first_conv(x, K1):
    """First conv im2col on the padded-plane grid: (B, Dp, S, K1) bf16.

    Only 4 input channels -> K = 108 (padded to 128); comparable in size to a
    single 128-channel activation, so this one im2col is cheap.
    """
    B, D, H, W, _ = x.shape
    Dp, Hp, Wp, hpwp, padr, S = _geom(D, H, W)
    xp2 = jnp.pad(x, ((0, 0), (2, 2), (2, 2), (2, 2), (0, 0)))
    cols = []
    for kd in range(3):
        for kh in range(3):
            for kw in range(3):
                cols.append(xp2[:, kd:kd + Dp, kh:kh + Hp, kw:kw + Wp, :])
    col = jnp.stack(cols, axis=4)                       # (B, Dp, Hp, Wp, 27, 4)
    col = col.reshape(B, Dp, hpwp, 27 * 4)
    col = jnp.pad(col, ((0, 0), (0, 0), (padr, S - padr - hpwp), (0, K1 - 27 * 4)))
    return col.astype(jnp.bfloat16)


# ----------------------------- parameters -----------------------------

def init_params(key, nf):
    """Deterministic synthetic parameters.

    Conv3d weights are stored pre-flattened over the 27 taps (kd, kh, kw):
      w1: (27, nf)      -- Conv3d(1, nf, 3)
      w2: (27*nf, nf)   -- Conv3d(nf, nf, 3), row index = tap*nf + cin
    b1 / b2 are kept for structural parity but unused: a per-channel constant
    added before InstanceNorm is cancelled exactly by the mean subtraction.
    """
    mods = {}
    keys = jax.random.split(key, len(MODALITIES))
    for name, k in zip(MODALITIES, keys):
        ks = jax.random.split(k, 12)
        mods[name] = {
            "w1": 0.2 * jax.random.normal(ks[0], (27, nf), jnp.float32),
            "b1": 0.05 * jax.random.normal(ks[1], (nf,), jnp.float32),   # unused
            "g1": 1.0 + 0.1 * jax.random.normal(ks[2], (nf,), jnp.float32),
            "bt1": 0.1 * jax.random.normal(ks[3], (nf,), jnp.float32),
            "w2": jax.random.normal(ks[4], (27 * nf, nf), jnp.float32)
                  / np.sqrt(27 * nf),
            "b2": 0.05 * jax.random.normal(ks[5], (nf,), jnp.float32),   # unused
            "wa": jax.random.normal(ks[6], (nf // 4, nf), jnp.float32) / np.sqrt(nf),
            "ba": 0.05 * jax.random.normal(ks[7], (nf // 4,), jnp.float32),
            "wb": jax.random.normal(ks[8], (nf, nf // 4), jnp.float32)
                  / np.sqrt(nf // 4),
            "bb": 0.05 * jax.random.normal(ks[9], (nf,), jnp.float32),
            "g2": 1.0 + 0.1 * jax.random.normal(ks[10], (nf,), jnp.float32),
            "bt2": 0.1 * jax.random.normal(ks[11], (nf,), jnp.float32),
        }
    return mods


# ----------------------------- forward -----------------------------

@functools.partial(jax.jit, static_argnums=(3,))
def split_conv_csa_forward(params, x_ncdhw, missing_index, nf):
    B = x_ncdhw.shape[0]
    C = 4 * nf                                           # fused channel width (128)
    x = jnp.transpose(x_ncdhw, (0, 2, 3, 4, 1)).astype(jnp.float32)   # NDHWC
    D, H, W = x.shape[1:4]
    Dp, Hp, Wp, hpwp, padr, S = _geom(D, H, W)
    N = D * H * W

    mask = jnp.asarray(_interior_mask_np(D, H, W))       # (Dp, S, 1) f32

    # ---- fused (block-diagonal) weights & IN params ----
    K1 = 128
    w1f = jnp.zeros((27 * 4, C), jnp.float32)
    for m, name in enumerate(MODALITIES):
        w1f = w1f.at[m::4, m * nf:(m + 1) * nf].set(params[name]["w1"])
    w1f = jnp.pad(w1f, ((0, K1 - 27 * 4), (0, 0)))[None].astype(jnp.bfloat16)

    w2f = jnp.zeros((27, C, C), jnp.float32)
    for m, name in enumerate(MODALITIES):
        w2m = params[name]["w2"].reshape(27, nf, nf)
        w2f = w2f.at[:, m * nf:(m + 1) * nf, m * nf:(m + 1) * nf].set(w2m)
    w2f = w2f.astype(jnp.bfloat16)

    g1 = jnp.concatenate([params[n]["g1"] for n in MODALITIES])
    bt1 = jnp.concatenate([params[n]["bt1"] for n in MODALITIES])
    g2 = jnp.concatenate([params[n]["g2"] for n in MODALITIES])
    bt2 = jnp.concatenate([params[n]["bt2"] for n in MODALITIES])

    def _bcast(v):
        return jnp.tile(v.reshape(1, 1, -1), (B, 1, 1)).astype(jnp.float32)

    # ---- stage 1: fused Conv3d(1->nf)x4 + InstanceNorm(affine) + LeakyReLU ----
    xcol = _im2col_first_conv(x, K1)                                  # (B,Dp,S,128)
    raw1, s1, q1 = _conv_matmul_stats(xcol, w1f, mask, mask_offset=0)
    y1 = _normalize(raw1, s1, q1, _bcast(g1), _bcast(bt1), mask,
                    count=N, mask_offset=0, with_pool=False,
                    out_dtype=jnp.bfloat16)                           # (B,Dp,S,128)

    # ---- stage 2: fused CSA inconv (in-kernel 3x3x3) + IN + LReLU + avg-pool ----
    raw2, s2, q2 = _conv27_stats(y1, w2f, mask, hpwp=hpwp, padr=padr, Wp=Wp)
    xr, pool_sum = _normalize(raw2, s2, q2,
                              _bcast(jnp.ones((C,), jnp.float32)),
                              _bcast(jnp.zeros((C,), jnp.float32)),
                              mask, count=N, mask_offset=1, with_pool=True,
                              out_dtype=jnp.bfloat16)                 # (B,D,S,128)
    pooled = pool_sum[:, 0, :] / float(N)                             # (B, 128)

    # ---- channel attention MLP -> exchange permutation -> feature selection ----
    # (tiny per-batch matrices; plain JAX)
    A = jnp.tile(jnp.eye(C, dtype=jnp.float32)[None], (B, 1, 1))      # I + blockdiag(P)
    for m, name in enumerate(MODALITIES):
        p = params[name]
        pm = pooled[:, m * nf:(m + 1) * nf]
        h = pm @ p["wa"].T + p["ba"]
        h = jnp.where(h > 0, h, NEG_SLOPE * h)
        scores = jax.nn.sigmoid(h @ p["wb"].T + p["bb"])
        sort_small_first = (name == "t1")
        # TODO(synk): argsort has no Pallas TPU equivalent; computed in plain JAX.
        order = (jnp.argsort(scores, axis=-1) if sort_small_first
                 else jnp.argsort(-scores, axis=-1))
        Pm = jnp.swapaxes(jax.nn.one_hot(order, nf, dtype=jnp.float32), -1, -2)
        A = A.at[:, m * nf:(m + 1) * nf, m * nf:(m + 1) * nf].add(Pm)

    tab = jnp.asarray(FEATURE_TABLE)
    ent = tab[missing_index]                                          # (B, 4, 2)
    c4 = nf // 4
    base = ent[..., 0] * nf + ent[..., 1] * c4                        # (B, 4)
    src_idx = (base[:, :, None] + jnp.arange(c4)[None, None, :]).reshape(B, nf)
    # M = (I + blockdiag(P)) restricted to the selected source channels.
    M = jax.vmap(lambda a, idx: a[:, idx])(A, src_idx)                # (B, 128, nf)
    g_sel = g2[src_idx].reshape(B, 1, nf)
    b_sel = bt2[src_idx].reshape(B, 1, nf)

    # ---- stage 3: residual + exchange + selection + IN(affine) + LReLU ----
    raw3, s3, q3 = _conv_matmul_stats(xr, M.astype(jnp.bfloat16), mask,
                                      mask_offset=1)                  # (B,D,S,nf)
    out_pad = _normalize(raw3, s3, q3, g_sel, b_sel, mask,
                         count=N, mask_offset=1, with_pool=False,
                         out_dtype=jnp.float32)

    rows = jnp.asarray(_interior_rows_np(H, W))
    out = out_pad[:, :, rows, :]                                      # (B, D, HW, nf)
    out = out.reshape(B, D, H, W, nf)
    return jnp.transpose(out, (0, 4, 1, 2, 3))                        # NCDHW


# ----------------------------- main -----------------------------

if __name__ == "__main__":
    nf = 32
    B, D, H, W = 2, 8, 8, 8
    key = jax.random.PRNGKey(0)
    kx, kp = jax.random.split(key)
    x = jax.random.normal(kx, (B, 4, D, H, W), jnp.float32)           # NCDHW input
    params = init_params(kp, nf)
    missing_index = jnp.array([4, 9], dtype=jnp.int32)

    out = split_conv_csa_forward(params, x, missing_index, nf)
    out = jax.block_until_ready(out)

    assert out.shape == (B, nf, D, H, W), out.shape
    assert bool(jnp.all(jnp.isfinite(out)))
    print("KERNEL_OK")
</pallas_src>

<mosaic_0001>
module attributes {stable_mosaic.version = 11 : i64} {
  func.func @_matmul_stats_kernel(%arg0: i32, %arg1: i32, %arg2: memref<1x1x128x128xbf16, #tpu.memory_space<vmem>>, %arg3: memref<1x128x128xbf16, #tpu.memory_space<vmem>>, %arg4: memref<1x128x1xf32, #tpu.memory_space<vmem>>, %arg5: memref<1x1x128x128xf32, #tpu.memory_space<vmem>>, %arg6: memref<1x1x128xf32, #tpu.memory_space<vmem>>, %arg7: memref<1x1x128xf32, #tpu.memory_space<vmem>>) attributes {dimension_semantics = [#tpu.dimension_semantics<parallel>, #tpu.dimension_semantics<arbitrary>], iteration_bounds = array<i64: 2, 10>, scalar_prefetch = 0 : i64, scratch_operands = 0 : i64, tpu.core_type = #tpu.core_type<tc>, window_params = [{transform_indices = @transform_0, window_bounds = array<i64: 1, 1, 128, 128>}, {pipeline_mode = #tpu.pipeline_mode<synchronous>, transform_indices = @transform_1, window_bounds = array<i64: 1, 128, 128>}, {transform_indices = @transform_2, window_bounds = array<i64: 1, 128, 1>}, {transform_indices = @transform_3, window_bounds = array<i64: 1, 1, 128, 128>}, {transform_indices = @transform_4, window_bounds = array<i64: 1, 1, 128>}, {transform_indices = @transform_5, window_bounds = array<i64: 1, 1, 128>}]} {
    %c0 = arith.constant 0 : index
    %c0_0 = arith.constant 0 : index
    %c0_1 = arith.constant 0 : index
    %c0_2 = arith.constant 0 : index
    %0 = vector.load %arg2[%c0, %c0_0, %c0_1, %c0_2] : memref<1x1x128x128xbf16, #tpu.memory_space<vmem>>, vector<1x1x128x128xbf16>
    %1 = vector.shape_cast %0 : vector<1x1x128x128xbf16> to vector<128x128xbf16>
    %c0_3 = arith.constant 0 : index
    %c0_4 = arith.constant 0 : index
    %c0_5 = arith.constant 0 : index
    %2 = vector.load %arg3[%c0_3, %c0_4, %c0_5] : memref<1x128x128xbf16, #tpu.memory_space<vmem>>, vector<1x128x128xbf16>
    %3 = vector.shape_cast %2 : vector<1x128x128xbf16> to vector<128x128xbf16>
    %cst = arith.constant dense<0.000000e+00> : vector<128x128xf32>
    %4 = tpu.matmul %1, %3, %cst {dimension_numbers = #tpu.dot_dimension_numbers<[1], [0], [0], [1], [0, 0, 1, 1], [], []>} : vector<128x128xbf16>, vector<128x128xbf16>, vector<128x128xf32> -> vector<128x128xf32>
    %c0_6 = arith.constant 0 : index
    %c0_7 = arith.constant 0 : index
    %c0_8 = arith.constant 0 : index
    %c0_9 = arith.constant 0 : index
    %5 = vector.load %arg5[%c0_6, %c0_7, %c0_8, %c0_9] : memref<1x1x128x128xf32, #tpu.memory_space<vmem>>, vector<1x1x128x128xf32>
    %6 = vector.shape_cast %5 : vector<1x1x128x128xf32> to vector<128x128xf32>
    %7 = vector.shape_cast %4 : vector<128x128xf32> to vector<1x1x128x128xf32>
    tpu.vector_store %arg5[%c0_6, %c0_7, %c0_8, %c0_9], %7 {strides = array<i32>} : memref<1x1x128x128xf32, #tpu.memory_space<vmem>>, vector<1x1x128x128xf32>,
    %c0_10 = arith.constant 0 : index
    %c0_11 = arith.constant 0 : index
    %c0_12 = arith.constant 0 : index
    %8 = vector.load %arg4[%c0_10, %c0_11, %c0_12] : memref<1x128x1xf32, #tpu.memory_space<vmem>>, vector<1x128x1xf32>
    %9 = vector.shape_cast %8 : vector<1x128x1xf32> to vector<128x1xf32>
    %10 = vector.broadcast %9 : vector<128x1xf32> to vector<128x128xf32>
    %11 = arith.mulf %4, %10 : vector<128x128xf32>
    %c0_i32 = arith.constant 0 : i32
    %12 = arith.cmpi eq, %arg1, %c0_i32 : i32
    %13 = arith.extui %12 : i1 to i32
    %c0_i32_13 = arith.constant 0 : i32
    %14 = arith.cmpi ne, %13, %c0_i32_13 : i32
    scf.if %14 {
      %cst_28 = arith.constant 0.000000e+00 : f32
      %32 = vector.broadcast %cst_28 : f32 to vector<1x1x128xf32>
      %c0_29 = arith.constant 0 : index
      %c0_30 = arith.constant 0 : index
      %c0_31 = arith.constant 0 : index
      %33 = vector.load %arg6[%c0_29, %c0_30, %c0_31] : memref<1x1x128xf32, #tpu.memory_space<vmem>>, vector<1x1x128xf32>
      tpu.vector_store %arg6[%c0_29, %c0_30, %c0_31], %32 {strides = array<i32>} : memref<1x1x128xf32, #tpu.memory_space<vmem>>, vector<1x1x128xf32>,
      %cst_32 = arith.constant 0.000000e+00 : f32
      %34 = vector.broadcast %cst_32 : f32 to vector<1x1x128xf32>
      %c0_33 = arith.constant 0 : index
      %c0_34 = arith.constant 0 : index
      %c0_35 = arith.constant 0 : index
      %35 = vector.load %arg7[%c0_33, %c0_34, %c0_35] : memref<1x1x128xf32, #tpu.memory_space<vmem>>, vector<1x1x128xf32>
      tpu.vector_store %arg7[%c0_33, %c0_34, %c0_35], %34 {strides = array<i32>} : memref<1x1x128xf32, #tpu.memory_space<vmem>>, vector<1x1x128xf32>,
    } else {
    }
    %c0_14 = arith.constant 0 : index
    %c0_15 = arith.constant 0 : index
    %c0_16 = arith.constant 0 : index
    %15 = vector.load %arg6[%c0_14, %c0_15, %c0_16] : memref<1x1x128xf32, #tpu.memory_space<vmem>>, vector<1x1x128xf32>
    %16 = vector.shape_cast %15 : vector<1x1x128xf32> to vector<1x128xf32>
    %cst_17 = arith.constant dense<0.000000e+00> : vector<128xf32>
    %17 = vector.multi_reduction <add>, %11, %cst_17 [0] : vector<128x128xf32> to vector<128xf32>
    %18 = vector.shape_cast %17 : vector<128xf32> to vector<1x128xf32>
    %19 = arith.addf %16, %18 : vector<1x128xf32>
    %c0_18 = arith.constant 0 : index
    %c0_19 = arith.constant 0 : index
    %c0_20 = arith.constant 0 : index
    %20 = vector.load %arg6[%c0_18, %c0_19, %c0_20] : memref<1x1x128xf32, #tpu.memory_space<vmem>>, vector<1x1x128xf32>
    %21 = vector.shape_cast %20 : vector<1x1x128xf32> to vector<1x128xf32>
    %22 = vector.shape_cast %19 : vector<1x128xf32> to vector<1x1x128xf32>
    tpu.vector_store %arg6[%c0_18, %c0_19, %c0_20], %22 {strides = array<i32>} : memref<1x1x128xf32, #tpu.memory_space<vmem>>, vector<1x1x128xf32>,
    %c0_21 = arith.constant 0 : index
    %c0_22 = arith.constant 0 : index
    %c0_23 = arith.constant 0 : index
    %23 = vector.load %arg7[%c0_21, %c0_22, %c0_23] : memref<1x1x128xf32, #tpu.memory_space<vmem>>, vector<1x1x128xf32>
    %24 = vector.shape_cast %23 : vector<1x1x128xf32> to vector<1x128xf32>
    %25 = arith.mulf %4, %11 : vector<128x128xf32>
    %cst_24 = arith.constant dense<0.000000e+00> : vector<128xf32>
    %26 = vector.multi_reduction <add>, %25, %cst_24 [0] : vector<128x128xf32> to vector<128xf32>
    %27 = vector.shape_cast %26 : vector<128xf32> to vector<1x128xf32>
    %28 = arith.addf %24, %27 : vector<1x128xf32>
    %c0_25 = arith.constant 0 : index
    %c0_26 = arith.constant 0 : index
    %c0_27 = arith.constant 0 : index
    %29 = vector.load %arg7[%c0_25, %c0_26, %c0_27] : memref<1x1x128xf32, #tpu.memory_space<vmem>>, vector<1x1x128xf32>
    %30 = vector.shape_cast %29 : vector<1x1x128xf32> to vector<1x128xf32>
    %31 = vector.shape_cast %28 : vector<1x128xf32> to vector<1x1x128xf32>
    tpu.vector_store %arg7[%c0_25, %c0_26, %c0_27], %31 {strides = array<i32>} : memref<1x1x128xf32, #tpu.memory_space<vmem>>, vector<1x1x128xf32>,
    return
  }
  func.func @transform_0(%arg0: i32, %arg1: i32) -> (i32, i32, i32, i32) {
    %c0_i32 = arith.constant 0 : i32
    %c0_i32_0 = arith.constant 0 : i32
    %c0_i32_1 = arith.constant 0 : i32
    return %arg0, %arg1, %c0_i32, %c0_i32_0 : i32, i32, i32, i32
  }
  func.func @transform_1(%arg0: i32, %arg1: i32) -> (i32, i32, i32) {
    %c0_i32 = arith.constant 0 : i32
    %c0_i32_0 = arith.constant 0 : i32
    %c0_i32_1 = arith.constant 0 : i32
    %c0_i32_2 = arith.constant 0 : i32
    return %c0_i32, %c0_i32_0, %c0_i32_1 : i32, i32, i32
  }
  func.func @transform_2(%arg0: i32, %arg1: i32) -> (i32, i32, i32) {
    %c0_i32 = arith.constant 0 : i32
    %0 = arith.addi %arg1, %c0_i32 : i32
    %c0_i32_0 = arith.constant 0 : i32
    %c0_i32_1 = arith.constant 0 : i32
    %c0_i32_2 = arith.constant 0 : i32
    return %0, %c0_i32_0, %c0_i32_1 : i32, i32, i32
  }
  func.func @transform_3(%arg0: i32, %arg1: i32) -> (i32, i32, i32, i32) {
    %c0_i32 = arith.constant 0 : i32
    %c0_i32_0 = arith.constant 0 : i32
    %c0_i32_1 = arith.constant 0 : i32
    return %arg0, %arg1, %c0_i32, %c0_i32_0 : i32, i32, i32, i32
  }
  func.func @transform_4(%arg0: i32, %arg1: i32) -> (i32, i32, i32) {
    %c0_i32 = arith.constant 0 : i32
    %c0_i32_0 = arith.constant 0 : i32
    %c0_i32_1 = arith.constant 0 : i32
    return %arg0, %c0_i32, %c0_i32_0 : i32, i32, i32
  }
  func.func @transform_5(%arg0: i32, %arg1: i32) -> (i32, i32, i32) {
    %c0_i32 = arith.constant 0 : i32
    %c0_i32_0 = arith.constant 0 : i32
    %c0_i32_1 = arith.constant 0 : i32
    return %arg0, %c0_i32, %c0_i32_0 : i32, i32, i32
  }
}

module attributes {stable_mosaic.version = 11 : i64} {
  func.func @kernel(%arg0: i32, %arg1: i32, %arg2: memref<1x1x128x128xf32, #tpu.memory_space<vmem>>, %arg3: memref<1x1x128xf32, #tpu.memory_space<vmem>>, %arg4: memref<1x1x128xf32, #tpu.memory_space<vmem>>, %arg5: memref<1x1x128xf32, #tpu.memory_space<vmem>>, %arg6: memref<1x1x128xf32, #tpu.memory_space<vmem>>, %arg7: memref<1x128x1xf32, #tpu.memory_space<vmem>>, %arg8: memref<1x1x128x128xbf16, #tpu.memory_space<vmem>>) attributes {dimension_semantics = [#tpu.dimension_semantics<parallel>, #tpu.dimension_semantics<parallel>], iteration_bounds = array<i64: 2, 10>, scalar_prefetch = 0 : i64, scratch_operands = 0 : i64, tpu.core_type = #tpu.core_type<tc>, window_params = [{transform_indices = @transform_0, window_bounds = array<i64: 1, 1, 128, 128>}, {transform_indices = @transform_1, window_bounds = array<i64: 1, 1, 128>}, {transform_indices = @transform_2, window_bounds = array<i64: 1, 1, 128>}, {transform_indices = @transform_3, window_bounds = array<i64: 1, 1, 128>}, {transform_indices = @transform_4, window_bounds = array<i64: 1, 1, 128>}, {transform_indices = @transform_5, window_bounds = array<i64: 1, 128, 1>}, {transform_indices = @transform_6, window_bounds = array<i64: 1, 1, 128, 128>}]} {
    %c0 = arith.constant 0 : index
    %c0_0 = arith.constant 0 : index
    %c0_1 = arith.constant 0 : index
    %c0_2 = arith.constant 0 : index
    %0 = vector.load %arg2[%c0, %c0_0, %c0_1, %c0_2] : memref<1x1x128x128xf32, #tpu.memory_space<vmem>>, vector<1x1x128x128xf32>
    %1 = vector.shape_cast %0 : vector<1x1x128x128xf32> to vector<128x128xf32>
    %c0_3 = arith.constant 0 : index
    %c0_4 = arith.constant 0 : index
    %c0_5 = arith.constant 0 : index
    %2 = vector.load %arg3[%c0_3, %c0_4, %c0_5] : memref<1x1x128xf32, #tpu.memory_space<vmem>>, vector<1x1x128xf32>
    %3 = vector.shape_cast %2 : vector<1x1x128xf32> to vector<1x128xf32>
    %cst = arith.constant 0.001953125 : f32
    %4 = vector.broadcast %cst : f32 to vector<1x128xf32>
    %5 = arith.mulf %3, %4 : vector<1x128xf32>
    %c0_6 = arith.constant 0 : index
    %c0_7 = arith.constant 0 : index
    %c0_8 = arith.constant 0 : index
    %6 = vector.load %arg4[%c0_6, %c0_7, %c0_8] : memref<1x1x128xf32, #tpu.memory_space<vmem>>, vector<1x1x128xf32>
    %7 = vector.shape_cast %6 : vector<1x1x128xf32> to vector<1x128xf32>
    %cst_9 = arith.constant 0.001953125 : f32
    %8 = vector.broadcast %cst_9 : f32 to vector<1x128xf32>
    %9 = arith.mulf %7, %8 : vector<1x128xf32>
    %10 = arith.mulf %5, %5 : vector<1x128xf32>
    %11 = arith.subf %9, %10 : vector<1x128xf32>
    %cst_10 = arith.constant 0.000000e+00 : f32
    %12 = vector.broadcast %cst_10 : f32 to vector<1x128xf32>
    %13 = arith.maximumf %11, %12 : vector<1x128xf32>
    %14 = vector.broadcast %5 : vector<1x128xf32> to vector<128x128xf32>
    %15 = arith.subf %1, %14 : vector<128x128xf32>
    %cst_11 = arith.constant 9.99999974E-6 : f32
    %16 = vector.broadcast %cst_11 : f32 to vector<1x128xf32>
    %17 = arith.addf %13, %16 : vector<1x128xf32>
    %18 = math.rsqrt %17 : vector<1x128xf32>
    %19 = vector.broadcast %18 : vector<1x128xf32> to vector<128x128xf32>
    %20 = arith.mulf %15, %19 : vector<128x128xf32>
    %c0_12 = arith.constant 0 : index
    %c0_13 = arith.constant 0 : index
    %c0_14 = arith.constant 0 : index
    %21 = vector.load %arg5[%c0_12, %c0_13, %c0_14] : memref<1x1x128xf32, #tpu.memory_space<vmem>>, vector<1x1x128xf32>
    %22 = vector.shape_cast %21 : vector<1x1x128xf32> to vector<1x128xf32>
    %23 = vector.broadcast %22 : vector<1x128xf32> to vector<128x128xf32>
    %24 = arith.mulf %20, %23 : vector<128x128xf32>
    %c0_15 = arith.constant 0 : index
    %c0_16 = arith.constant 0 : index
    %c0_17 = arith.constant 0 : index
    %25 = vector.load %arg6[%c0_15, %c0_16, %c0_17] : memref<1x1x128xf32, #tpu.memory_space<vmem>>, vector<1x1x128xf32>
    %26 = vector.shape_cast %25 : vector<1x1x128xf32> to vector<1x128xf32>
    %27 = vector.broadcast %26 : vector<1x128xf32> to vector<128x128xf32>
    %28 = arith.addf %24, %27 : vector<128x128xf32>
    %cst_18 = arith.constant 0.000000e+00 : f32
    %29 = vector.broadcast %cst_18 : f32 to vector<128x128xf32>
    %30 = arith.cmpf ogt, %28, %29 : vector<128x128xf32>
    %cst_19 = arith.constant 0.00999999977 : f32
    %31 = vector.broadcast %cst_19 : f32 to vector<128x128xf32>
    %32 = arith.mulf %31, %28 : vector<128x128xf32>
    %33 = arith.select %30, %28, %32 : vector<128x128xi1>, vector<128x128xf32>
    %c0_20 = arith.constant 0 : index
    %c0_21 = arith.constant 0 : index
    %c0_22 = arith.constant 0 : index
    %34 = vector.load %arg7[%c0_20, %c0_21, %c0_22] : memref<1x128x1xf32, #tpu.memory_space<vmem>>, vector<1x128x1xf32>
    %35 = vector.shape_cast %34 : vector<1x128x1xf32> to vector<128x1xf32>
    %36 = vector.broadcast %35 : vector<128x1xf32> to vector<128x128xf32>
    %37 = arith.mulf %33, %36 : vector<128x128xf32>
    %38 = arith.truncf %37 : vector<128x128xf32> to vector<128x128xbf16>
    %c0_23 = arith.constant 0 : index
    %c0_24 = arith.constant 0 : index
    %c0_25 = arith.constant 0 : index
    %c0_26 = arith.constant 0 : index
    %39 = vector.load %arg8[%c0_23, %c0_24, %c0_25, %c0_26] : memref<1x1x128x128xbf16, #tpu.memory_space<vmem>>, vector<1x1x128x128xbf16>
    %40 = vector.shape_cast %39 : vector<1x1x128x128xbf16> to vector<128x128xbf16>
    %41 = vector.shape_cast %38 : vector<128x128xbf16> to vector<1x1x128x128xbf16>
    tpu.vector_store %arg8[%c0_23, %c0_24, %c0_25, %c0_26], %41 {strides = array<i32>} : memref<1x1x128x128xbf16, #tpu.memory_space<vmem>>, vector<1x1x128x128xbf16>,
    return
  }
  func.func @transform_0(%arg0: i32, %arg1: i32) -> (i32, i32, i32, i32) {
    %c0_i32 = arith.constant 0 : i32
    %c0_i32_0 = arith.constant 0 : i32
    %c0_i32_1 = arith.constant 0 : i32
    return %arg0, %arg1, %c0_i32, %c0_i32_0 : i32, i32, i32, i32
  }
  func.func @transform_1(%arg0: i32, %arg1: i32) -> (i32, i32, i32) {
    %c0_i32 = arith.constant 0 : i32
    %c0_i32_0 = arith.constant 0 : i32
    %c0_i32_1 = arith.constant 0 : i32
    return %arg0, %c0_i32, %c0_i32_0 : i32, i32, i32
  }
  func.func @transform_2(%arg0: i32, %arg1: i32) -> (i32, i32, i32) {
    %c0_i32 = arith.constant 0 : i32
    %c0_i32_0 = arith.constant 0 : i32
    %c0_i32_1 = arith.constant 0 : i32
    return %arg0, %c0_i32, %c0_i32_0 : i32, i32, i32
  }
  func.func @transform_3(%arg0: i32, %arg1: i32) -> (i32, i32, i32) {
    %c0_i32 = arith.constant 0 : i32
    %c0_i32_0 = arith.constant 0 : i32
    %c0_i32_1 = arith.constant 0 : i32
    return %arg0, %c0_i32, %c0_i32_0 : i32, i32, i32
  }
  func.func @transform_4(%arg0: i32, %arg1: i32) -> (i32, i32, i32) {
    %c0_i32 = arith.constant 0 : i32
    %c0_i32_0 = arith.constant 0 : i32
    %c0_i32_1 = arith.constant 0 : i32
    return %arg0, %c0_i32, %c0_i32_0 : i32, i32, i32
  }
  func.func @transform_5(%arg0: i32, %arg1: i32) -> (i32, i32, i32) {
    %c0_i32 = arith.constant 0 : i32
    %0 = arith.addi %arg1, %c0_i32 : i32
    %c0_i32_0 = arith.constant 0 : i32
    %c0_i32_1 = arith.constant 0 : i32
    %c0_i32_2 = arith.constant 0 : i32
    return %0, %c0_i32_0, %c0_i32_1 : i32, i32, i32
  }
  func.func @transform_6(%arg0: i32, %arg1: i32) -> (i32, i32, i32, i32) {
    %c0_i32 = arith.constant 0 : i32
    %c0_i32_0 = arith.constant 0 : i32
    %c0_i32_1 = arith.constant 0 : i32
    return %arg0, %arg1, %c0_i32, %c0_i32_0 : i32, i32, i32, i32
  }
}

module attributes {stable_mosaic.version = 11 : i64} {
  func.func @kernel(%arg0: i32, %arg1: i32, %arg2: memref<1x1x128x128xf32, #tpu.memory_space<vmem>>, %arg3: memref<1x1x128xf32, #tpu.memory_space<vmem>>, %arg4: memref<1x1x128xf32, #tpu.memory_space<vmem>>, %arg5: memref<1x1x128xf32, #tpu.memory_space<vmem>>, %arg6: memref<1x1x128xf32, #tpu.memory_space<vmem>>, %arg7: memref<1x128x1xf32, #tpu.memory_space<vmem>>, %arg8: memref<1x1x128x128xbf16, #tpu.memory_space<vmem>>, %arg9: memref<1x1x128xf32, #tpu.memory_space<vmem>>) attributes {dimension_semantics = [#tpu.dimension_semantics<parallel>, #tpu.dimension_semantics<arbitrary>], iteration_bounds = array<i64: 2, 8>, scalar_prefetch = 0 : i64, scratch_operands = 0 : i64, tpu.core_type = #tpu.core_type<tc>, window_params = [{transform_indices = @transform_0, window_bounds = array<i64: 1, 1, 128, 128>}, {transform_indices = @transform_1, window_bounds = array<i64: 1, 1, 128>}, {transform_indices = @transform_2, window_bounds = array<i64: 1, 1, 128>}, {transform_indices = @transform_3, window_bounds = array<i64: 1, 1, 128>}, {transform_indices = @transform_4, window_bounds = array<i64: 1, 1, 128>}, {transform_indices = @transform_5, window_bounds = array<i64: 1, 128, 1>}, {transform_indices = @transform_6, window_bounds = array<i64: 1, 1, 128, 128>}, {transform_indices = @transform_7, window_bounds = array<i64: 1, 1, 128>}]} {
    %c0 = arith.constant 0 : index
    %c0_0 = arith.constant 0 : index
    %c0_1 = arith.constant 0 : index
    %c0_2 = arith.constant 0 : index
    %0 = vector.load %arg2[%c0, %c0_0, %c0_1, %c0_2] : memref<1x1x128x128xf32, #tpu.memory_space<vmem>>, vector<1x1x128x128xf32>
    %1 = vector.shape_cast %0 : vector<1x1x128x128xf32> to vector<128x128xf32>
    %c0_3 = arith.constant 0 : index
    %c0_4 = arith.constant 0 : index
    %c0_5 = arith.constant 0 : index
    %2 = vector.load %arg3[%c0_3, %c0_4, %c0_5] : memref<1x1x128xf32, #tpu.memory_space<vmem>>, vector<1x1x128xf32>
    %3 = vector.shape_cast %2 : vector<1x1x128xf32> to vector<1x128xf32>
    %cst = arith.constant 0.001953125 : f32
    %4 = vector.broadcast %cst : f32 to vector<1x128xf32>
    %5 = arith.mulf %3, %4 : vector<1x128xf32>
    %c0_6 = arith.constant 0 : index
    %c0_7 = arith.constant 0 : index
    %c0_8 = arith.constant 0 : index
    %6 = vector.load %arg4[%c0_6, %c0_7, %c0_8] : memref<1x1x128xf32, #tpu.memory_space<vmem>>, vector<1x1x128xf32>
    %7 = vector.shape_cast %6 : vector<1x1x128xf32> to vector<1x128xf32>
    %cst_9 = arith.constant 0.001953125 : f32
    %8 = vector.broadcast %cst_9 : f32 to vector<1x128xf32>
    %9 = arith.mulf %7, %8 : vector<1x128xf32>
    %10 = arith.mulf %5, %5 : vector<1x128xf32>
    %11 = arith.subf %9, %10 : vector<1x128xf32>
    %cst_10 = arith.constant 0.000000e+00 : f32
    %12 = vector.broadcast %cst_10 : f32 to vector<1x128xf32>
    %13 = arith.maximumf %11, %12 : vector<1x128xf32>
    %14 = vector.broadcast %5 : vector<1x128xf32> to vector<128x128xf32>
    %15 = arith.subf %1, %14 : vector<128x128xf32>
    %cst_11 = arith.constant 9.99999974E-6 : f32
    %16 = vector.broadcast %cst_11 : f32 to vector<1x128xf32>
    %17 = arith.addf %13, %16 : vector<1x128xf32>
    %18 = math.rsqrt %17 : vector<1x128xf32>
    %19 = vector.broadcast %18 : vector<1x128xf32> to vector<128x128xf32>
    %20 = arith.mulf %15, %19 : vector<128x128xf32>
    %c0_12 = arith.constant 0 : index
    %c0_13 = arith.constant 0 : index
    %c0_14 = arith.constant 0 : index
    %21 = vector.load %arg5[%c0_12, %c0_13, %c0_14] : memref<1x1x128xf32, #tpu.memory_space<vmem>>, vector<1x1x128xf32>
    %22 = vector.shape_cast %21 : vector<1x1x128xf32> to vector<1x128xf32>
    %23 = vector.broadcast %22 : vector<1x128xf32> to vector<128x128xf32>
    %24 = arith.mulf %20, %23 : vector<128x128xf32>
    %c0_15 = arith.constant 0 : index
    %c0_16 = arith.constant 0 : index
    %c0_17 = arith.constant 0 : index
    %25 = vector.load %arg6[%c0_15, %c0_16, %c0_17] : memref<1x1x128xf32, #tpu.memory_space<vmem>>, vector<1x1x128xf32>
    %26 = vector.shape_cast %25 : vector<1x1x128xf32> to vector<1x128xf32>
    %27 = vector.broadcast %26 : vector<1x128xf32> to vector<128x128xf32>
    %28 = arith.addf %24, %27 : vector<128x128xf32>
    %cst_18 = arith.constant 0.000000e+00 : f32
    %29 = vector.broadcast %cst_18 : f32 to vector<128x128xf32>
    %30 = arith.cmpf ogt, %28, %29 : vector<128x128xf32>
    %cst_19 = arith.constant 0.00999999977 : f32
    %31 = vector.broadcast %cst_19 : f32 to vector<128x128xf32>
    %32 = arith.mulf %31, %28 : vector<128x128xf32>
    %33 = arith.select %30, %28, %32 : vector<128x128xi1>, vector<128x128xf32>
    %c0_20 = arith.constant 0 : index
    %c0_21 = arith.constant 0 : index
    %c0_22 = arith.constant 0 : index
    %34 = vector.load %arg7[%c0_20, %c0_21, %c0_22] : memref<1x128x1xf32, #tpu.memory_space<vmem>>, vector<1x128x1xf32>
    %35 = vector.shape_cast %34 : vector<1x128x1xf32> to vector<128x1xf32>
    %36 = vector.broadcast %35 : vector<128x1xf32> to vector<128x128xf32>
    %37 = arith.mulf %33, %36 : vector<128x128xf32>
    %38 = arith.truncf %37 : vector<128x128xf32> to vector<128x128xbf16>
    %c0_23 = arith.constant 0 : index
    %c0_24 = arith.constant 0 : index
    %c0_25 = arith.constant 0 : index
    %c0_26 = arith.constant 0 : index
    %39 = vector.load %arg8[%c0_23, %c0_24, %c0_25, %c0_26] : memref<1x1x128x128xbf16, #tpu.memory_space<vmem>>, vector<1x1x128x128xbf16>
    %40 = vector.shape_cast %39 : vector<1x1x128x128xbf16> to vector<128x128xbf16>
    %41 = vector.shape_cast %38 : vector<128x128xbf16> to vector<1x1x128x128xbf16>
    tpu.vector_store %arg8[%c0_23, %c0_24, %c0_25, %c0_26], %41 {strides = array<i32>} : memref<1x1x128x128xbf16, #tpu.memory_space<vmem>>, vector<1x1x128x128xbf16>,
    %c0_i32 = arith.constant 0 : i32
    %42 = arith.cmpi eq, %arg1, %c0_i32 : i32
    %43 = arith.extui %42 : i1 to i32
    %c0_i32_27 = arith.constant 0 : i32
    %44 = arith.cmpi ne, %43, %c0_i32_27 : i32
    scf.if %44 {
      %cst_35 = arith.constant 0.000000e+00 : f32
      %53 = vector.broadcast %cst_35 : f32 to vector<1x1x128xf32>
      %c0_36 = arith.constant 0 : index
      %c0_37 = arith.constant 0 : index
      %c0_38 = arith.constant 0 : index
      %54 = vector.load %arg9[%c0_36, %c0_37, %c0_38] : memref<1x1x128xf32, #tpu.memory_space<vmem>>, vector<1x1x128xf32>
      tpu.vector_store %arg9[%c0_36, %c0_37, %c0_38], %53 {strides = array<i32>} : memref<1x1x128xf32, #tpu.memory_space<vmem>>, vector<1x1x128xf32>,
    } else {
    }
    %c0_28 = arith.constant 0 : index
    %c0_29 = arith.constant 0 : index
    %c0_30 = arith.constant 0 : index
    %45 = vector.load %arg9[%c0_28, %c0_29, %c0_30] : memref<1x1x128xf32, #tpu.memory_space<vmem>>, vector<1x1x128xf32>
    %46 = vector.shape_cast %45 : vector<1x1x128xf32> to vector<1x128xf32>
    %cst_31 = arith.constant dense<0.000000e+00> : vector<128xf32>
    %47 = vector.multi_reduction <add>, %37, %cst_31 [0] : vector<128x128xf32> to vector<128xf32>
    %48 = vector.shape_cast %47 : vector<128xf32> to vector<1x128xf32>
    %49 = arith.addf %46, %48 : vector<1x128xf32>
    %c0_32 = arith.constant 0 : index
    %c0_33 = arith.constant 0 : index
    %c0_34 = arith.constant 0 : index
    %50 = vector.load %arg9[%c0_32, %c0_33, %c0_34] : memref<1x1x128xf32, #tpu.memory_space<vmem>>, vector<1x1x128xf32>
    %51 = vector.shape_cast %50 : vector<1x1x128xf32> to vector<1x128xf32>
    %52 = vector.shape_cast %49 : vector<1x128xf32> to vector<1x1x128xf32>
    tpu.vector_store %arg9[%c0_32, %c0_33, %c0_34], %52 {strides = array<i32>} : memref<1x1x128xf32, #tpu.memory_space<vmem>>, vector<1x1x128xf32>,
    return
  }
  func.func @transform_0(%arg0: i32, %arg1: i32) -> (i32, i32, i32, i32) {
    %c0_i32 = arith.constant 0 : i32
    %c0_i32_0 = arith.constant 0 : i32
    %c0_i32_1 = arith.constant 0 : i32
    return %arg0, %arg1, %c0_i32, %c0_i32_0 : i32, i32, i32, i32
  }
  func.func @transform_1(%arg0: i32, %arg1: i32) -> (i32, i32, i32) {
    %c0_i32 = arith.constant 0 : i32
    %c0_i32_0 = arith.constant 0 : i32
    %c0_i32_1 = arith.constant 0 : i32
    return %arg0, %c0_i32, %c0_i32_0 : i32, i32, i32
  }
  func.func @transform_2(%arg0: i32, %arg1: i32) -> (i32, i32, i32) {
    %c0_i32 = arith.constant 0 : i32
    %c0_i32_0 = arith.constant 0 : i32
    %c0_i32_1 = arith.constant 0 : i32
    return %arg0, %c0_i32, %c0_i32_0 : i32, i32, i32
  }
  func.func @transform_3(%arg0: i32, %arg1: i32) -> (i32, i32, i32) {
    %c0_i32 = arith.constant 0 : i32
    %c0_i32_0 = arith.constant 0 : i32
    %c0_i32_1 = arith.constant 0 : i32
    return %arg0, %c0_i32, %c0_i32_0 : i32, i32, i32
  }
  func.func @transform_4(%arg0: i32, %arg1: i32) -> (i32, i32, i32) {
    %c0_i32 = arith.constant 0 : i32
    %c0_i32_0 = arith.constant 0 : i32
    %c0_i32_1 = arith.constant 0 : i32
    return %arg0, %c0_i32, %c0_i32_0 : i32, i32, i32
  }
  func.func @transform_5(%arg0: i32, %arg1: i32) -> (i32, i32, i32) {
    %c1_i32 = arith.constant 1 : i32
    %0 = arith.addi %arg1, %c1_i32 : i32
    %c0_i32 = arith.constant 0 : i32
    %c0_i32_0 = arith.constant 0 : i32
    %c0_i32_1 = arith.constant 0 : i32
    return %0, %c0_i32, %c0_i32_0 : i32, i32, i32
  }
  func.func @transform_6(%arg0: i32, %arg1: i32) -> (i32, i32, i32, i32) {
    %c0_i32 = arith.constant 0 : i32
    %c0_i32_0 = arith.constant 0 : i32
    %c0_i32_1 = arith.constant 0 : i32
    return %arg0, %arg1, %c0_i32, %c0_i32_0 : i32, i32, i32, i32
  }
  func.func @transform_7(%arg0: i32, %arg1: i32) -> (i32, i32, i32) {
    %c0_i32 = arith.constant 0 : i32
    %c0_i32_0 = arith.constant 0 : i32
    %c0_i32_1 = arith.constant 0 : i32
    return %arg0, %c0_i32, %c0_i32_0 : i32, i32, i32
  }
}

module attributes {stable_mosaic.version = 11 : i64} {
  func.func @kernel(%arg0: i32, %arg1: i32, %arg2: memref<1x1x128x128xbf16, #tpu.memory_space<vmem>>, %arg3: memref<1x1x128x128xbf16, #tpu.memory_space<vmem>>, %arg4: memref<1x1x128x128xbf16, #tpu.memory_space<vmem>>, %arg5: memref<27x128x128xbf16, #tpu.memory_space<vmem>>, %arg6: memref<1x128x1xf32, #tpu.memory_space<vmem>>, %arg7: memref<1x1x128x128xf32, #tpu.memory_space<vmem>>, %arg8: memref<1x1x128xf32, #tpu.memory_space<vmem>>, %arg9: memref<1x1x128xf32, #tpu.memory_space<vmem>>) attributes {dimension_semantics = [#tpu.dimension_semantics<parallel>, #tpu.dimension_semantics<arbitrary>], iteration_bounds = array<i64: 2, 8>, scalar_prefetch = 0 : i64, scratch_operands = 0 : i64, tpu.core_type = #tpu.core_type<tc>, window_params = [{transform_indices = @transform_0, window_bounds = array<i64: 1, 1, 128, 128>}, {transform_indices = @transform_1, window_bounds = array<i64: 1, 1, 128, 128>}, {transform_indices = @transform_2, window_bounds = array<i64: 1, 1, 128, 128>}, {pipeline_mode = #tpu.pipeline_mode<synchronous>, transform_indices = @transform_3, window_bounds = array<i64: 27, 128, 128>}, {transform_indices = @transform_4, window_bounds = array<i64: 1, 128, 1>}, {transform_indices = @transform_5, window_bounds = array<i64: 1, 1, 128, 128>}, {transform_indices = @transform_6, window_bounds = array<i64: 1, 1, 128>}, {transform_indices = @transform_7, window_bounds = array<i64: 1, 1, 128>}]} {
    %cst = arith.constant 0.000000e+00 : f32
    %0 = vector.broadcast %cst : f32 to vector<100x128xf32>
    %c0 = arith.constant 0 : index
    %c0_0 = arith.constant 0 : index
    %c0_1 = arith.constant 0 : index
    %c0_2 = arith.constant 0 : index
    %1 = vector.load %arg2[%c0, %c0_0, %c0_1, %c0_2] : memref<1x1x128x128xbf16, #tpu.memory_space<vmem>>, vector<1x1x100x128xbf16>
    %2 = vector.shape_cast %1 : vector<1x1x100x128xbf16> to vector<100x128xbf16>
    %c0_3 = arith.constant 0 : index
    %c0_4 = arith.constant 0 : index
    %c0_5 = arith.constant 0 : index
    %3 = vector.load %arg5[%c0_3, %c0_4, %c0_5] : memref<27x128x128xbf16, #tpu.memory_space<vmem>>, vector<1x128x128xbf16>
    %4 = vector.shape_cast %3 : vector<1x128x128xbf16> to vector<128x128xbf16>
    %cst_6 = arith.constant dense<0.000000e+00> : vector<100x128xf32>
    %5 = tpu.matmul %2, %4, %cst_6 {dimension_numbers = #tpu.dot_dimension_numbers<[1], [0], [0], [1], [0, 0, 1, 1], [], []>} : vector<100x128xbf16>, vector<128x128xbf16>, vector<100x128xf32> -> vector<100x128xf32>
    %6 = arith.addf %0, %5 : vector<100x128xf32>
    %c0_7 = arith.constant 0 : index
    %c0_8 = arith.constant 0 : index
    %c1 = arith.constant 1 : index
    %c0_9 = arith.constant 0 : index
    %7 = vector.load %arg2[%c0_7, %c0_8, %c1, %c0_9] : memref<1x1x128x128xbf16, #tpu.memory_space<vmem>>, vector<1x1x100x128xbf16>
    %8 = vector.shape_cast %7 : vector<1x1x100x128xbf16> to vector<100x128xbf16>
    %c1_10 = arith.constant 1 : index
    %c0_11 = arith.constant 0 : index
    %c0_12 = arith.constant 0 : index
    %9 = vector.load %arg5[%c1_10, %c0_11, %c0_12] : memref<27x128x128xbf16, #tpu.memory_space<vmem>>, vector<1x128x128xbf16>
    %10 = vector.shape_cast %9 : vector<1x128x128xbf16> to vector<128x128xbf16>
    %cst_13 = arith.constant dense<0.000000e+00> : vector<100x128xf32>
    %11 = tpu.matmul %8, %10, %cst_13 {dimension_numbers = #tpu.dot_dimension_numbers<[1], [0], [0], [1], [0, 0, 1, 1], [], []>} : vector<100x128xbf16>, vector<128x128xbf16>, vector<100x128xf32> -> vector<100x128xf32>
    %12 = arith.addf %6, %11 : vector<100x128xf32>
    %c0_14 = arith.constant 0 : index
    %c0_15 = arith.constant 0 : index
    %c2 = arith.constant 2 : index
    %c0_16 = arith.constant 0 : index
    %13 = vector.load %arg2[%c0_14, %c0_15, %c2, %c0_16] : memref<1x1x128x128xbf16, #tpu.memory_space<vmem>>, vector<1x1x100x128xbf16>
    %14 = vector.shape_cast %13 : vector<1x1x100x128xbf16> to vector<100x128xbf16>
    %c2_17 = arith.constant 2 : index
    %c0_18 = arith.constant 0 : index
    %c0_19 = arith.constant 0 : index
    %15 = vector.load %arg5[%c2_17, %c0_18, %c0_19] : memref<27x128x128xbf16, #tpu.memory_space<vmem>>, vector<1x128x128xbf16>
    %16 = vector.shape_cast %15 : vector<1x128x128xbf16> to vector<128x128xbf16>
    %cst_20 = arith.constant dense<0.000000e+00> : vector<100x128xf32>
    %17 = tpu.matmul %14, %16, %cst_20 {dimension_numbers = #tpu.dot_dimension_numbers<[1], [0], [0], [1], [0, 0, 1, 1], [], []>} : vector<100x128xbf16>, vector<128x128xbf16>, vector<100x128xf32> -> vector<100x128xf32>
    %18 = arith.addf %12, %17 : vector<100x128xf32>
    %c0_21 = arith.constant 0 : index
    %c0_22 = arith.constant 0 : index
    %c10 = arith.constant 10 : index
    %c0_23 = arith.constant 0 : index
    %19 = vector.load %arg2[%c0_21, %c0_22, %c10, %c0_23] : memref<1x1x128x128xbf16, #tpu.memory_space<vmem>>, vector<1x1x100x128xbf16>
    %20 = vector.shape_cast %19 : vector<1x1x100x128xbf16> to vector<100x128xbf16>
    %c3 = arith.constant 3 : index
    %c0_24 = arith.constant 0 : index
    %c0_25 = arith.constant 0 : index
    %21 = vector.load %arg5[%c3, %c0_24, %c0_25] : memref<27x128x128xbf16, #tpu.memory_space<vmem>>, vector<1x128x128xbf16>
    %22 = vector.shape_cast %21 : vector<1x128x128xbf16> to vector<128x128xbf16>
    %cst_26 = arith.constant dense<0.000000e+00> : vector<100x128xf32>
    %23 = tpu.matmul %20, %22, %cst_26 {dimension_numbers = #tpu.dot_dimension_numbers<[1], [0], [0], [1], [0, 0, 1, 1], [], []>} : vector<100x128xbf16>, vector<128x128xbf16>, vector<100x128xf32> -> vector<100x128xf32>
    %24 = arith.addf %18, %23 : vector<100x128xf32>
    %c0_27 = arith.constant 0 : index
    %c0_28 = arith.constant 0 : index
    %c11 = arith.constant 11 : index
    %c0_29 = arith.constant 0 : index
    %25 = vector.load %arg2[%c0_27, %c0_28, %c11, %c0_29] : memref<1x1x128x128xbf16, #tpu.memory_space<vmem>>, vector<1x1x100x128xbf16>
    %26 = vector.shape_cast %25 : vector<1x1x100x128xbf16> to vector<100x128xbf16>
    %c4 = arith.constant 4 : index
    %c0_30 = arith.constant 0 : index
    %c0_31 = arith.constant 0 : index
    %27 = vector.load %arg5[%c4, %c0_30, %c0_31] : memref<27x128x128xbf16, #tpu.memory_space<vmem>>, vector<1x128x128xbf16>
    %28 = vector.shape_cast %27 : vector<1x128x128xbf16> to vector<128x128xbf16>
    %cst_32 = arith.constant dense<0.000000e+00> : vector<100x128xf32>
    %29 = tpu.matmul %26, %28, %cst_32 {dimension_numbers = #tpu.dot_dimension_numbers<[1], [0], [0], [1], [0, 0, 1, 1], [], []>} : vector<100x128xbf16>, vector<128x128xbf16>, vector<100x128xf32> -> vector<100x128xf32>
    %30 = arith.addf %24, %29 : vector<100x128xf32>
    %c0_33 = arith.constant 0 : index
    %c0_34 = arith.constant 0 : index
    %c12 = arith.constant 12 : index
    %c0_35 = arith.constant 0 : index
    %31 = vector.load %arg2[%c0_33, %c0_34, %c12, %c0_35] : memref<1x1x128x128xbf16, #tpu.memory_space<vmem>>, vector<1x1x100x128xbf16>
    %32 = vector.shape_cast %31 : vector<1x1x100x128xbf16> to vector<100x128xbf16>
    %c5 = arith.constant 5 : index
    %c0_36 = arith.constant 0 : index
    %c0_37 = arith.constant 0 : index
    %33 = vector.load %arg5[%c5, %c0_36, %c0_37] : memref<27x128x128xbf16, #tpu.memory_space<vmem>>, vector<1x128x128xbf16>
    %34 = vector.shape_cast %33 : vector<1x128x128xbf16> to vector<128x128xbf16>
    %cst_38 = arith.constant dense<0.000000e+00> : vector<100x128xf32>
    %35 = tpu.matmul %32, %34, %cst_38 {dimension_numbers = #tpu.dot_dimension_numbers<[1], [0], [0], [1], [0, 0, 1, 1], [], []>} : vector<100x128xbf16>, vector<128x128xbf16>, vector<100x128xf32> -> vector<100x128xf32>
    %36 = arith.addf %30, %35 : vector<100x128xf32>
    %c0_39 = arith.constant 0 : index
    %c0_40 = arith.constant 0 : index
    %c20 = arith.constant 20 : index
    %c0_41 = arith.constant 0 : index
    %37 = vector.load %arg2[%c0_39, %c0_40, %c20, %c0_41] : memref<1x1x128x128xbf16, #tpu.memory_space<vmem>>, vector<1x1x100x128xbf16>
    %38 = vector.shape_cast %37 : vector<1x1x100x128xbf16> to vector<100x128xbf16>
    %c6 = arith.constant 6 : index
    %c0_42 = arith.constant 0 : index
    %c0_43 = arith.constant 0 : index
    %39 = vector.load %arg5[%c6, %c0_42, %c0_43] : memref<27x128x128xbf16, #tpu.memory_space<vmem>>, vector<1x128x128xbf16>
    %40 = vector.shape_cast %39 : vector<1x128x128xbf16> to vector<128x128xbf16>
    %cst_44 = arith.constant dense<0.000000e+00> : vector<100x128xf32>
    %41 = tpu.matmul %38, %40, %cst_44 {dimension_numbers = #tpu.dot_dimension_numbers<[1], [0], [0], [1], [0, 0, 1, 1], [], []>} : vector<100x128xbf16>, vector<128x128xbf16>, vector<100x128xf32> -> vector<100x128xf32>
    %42 = arith.addf %36, %41 : vector<100x128xf32>
    %c0_45 = arith.constant 0 : index
    %c0_46 = arith.constant 0 : index
    %c21 = arith.constant 21 : index
    %c0_47 = arith.constant 0 : index
    %43 = vector.load %arg2[%c0_45, %c0_46, %c21, %c0_47] : memref<1x1x128x128xbf16, #tpu.memory_space<vmem>>, vector<1x1x100x128xbf16>
    %44 = vector.shape_cast %43 : vector<1x1x100x128xbf16> to vector<100x128xbf16>
    %c7 = arith.constant 7 : index
    %c0_48 = arith.constant 0 : index
    %c0_49 = arith.constant 0 : index
    %45 = vector.load %arg5[%c7, %c0_48, %c0_49] : memref<27x128x128xbf16, #tpu.memory_space<vmem>>, vector<1x128x128xbf16>
    %46 = vector.shape_cast %45 : vector<1x128x128xbf16> to vector<128x128xbf16>
    %cst_50 = arith.constant dense<0.000000e+00> : vector<100x128xf32>
    %47 = tpu.matmul %44, %46, %cst_50 {dimension_numbers = #tpu.dot_dimension_numbers<[1], [0], [0], [1], [0, 0, 1, 1], [], []>} : vector<100x128xbf16>, vector<128x128xbf16>, vector<100x128xf32> -> vector<100x128xf32>
    %48 = arith.addf %42, %47 : vector<100x128xf32>
    %c0_51 = arith.constant 0 : index
    %c0_52 = arith.constant 0 : index
    %c22 = arith.constant 22 : index
    %c0_53 = arith.constant 0 : index
    %49 = vector.load %arg2[%c0_51, %c0_52, %c22, %c0_53] : memref<1x1x128x128xbf16, #tpu.memory_space<vmem>>, vector<1x1x100x128xbf16>
    %50 = vector.shape_cast %49 : vector<1x1x100x128xbf16> to vector<100x128xbf16>
    %c8 = arith.constant 8 : index
    %c0_54 = arith.constant 0 : index
    %c0_55 = arith.constant 0 : index
    %51 = vector.load %arg5[%c8, %c0_54, %c0_55] : memref<27x128x128xbf16, #tpu.memory_space<vmem>>, vector<1x128x128xbf16>
    %52 = vector.shape_cast %51 : vector<1x128x128xbf16> to vector<128x128xbf16>
    %cst_56 = arith.constant dense<0.000000e+00> : vector<100x128xf32>
    %53 = tpu.matmul %50, %52, %cst_56 {dimension_numbers = #tpu.dot_dimension_numbers<[1], [0], [0], [1], [0, 0, 1, 1], [], []>} : vector<100x128xbf16>, vector<128x128xbf16>, vector<100x128xf32> -> vector<100x128xf32>
    %54 = arith.addf %48, %53 : vector<100x128xf32>
    %c0_57 = arith.constant 0 : index
    %c0_58 = arith.constant 0 : index
    %c0_59 = arith.constant 0 : index
    %c0_60 = arith.constant 0 : index
    %55 = vector.load %arg3[%c0_57, %c0_58, %c0_59, %c0_60] : memref<1x1x128x128xbf16, #tpu.memory_space<vmem>>, vector<1x1x100x128xbf16>
    %56 = vector.shape_cast %55 : vector<1x1x100x128xbf16> to vector<100x128xbf16>
    %c9 = arith.constant 9 : index
    %c0_61 = arith.constant 0 : index
    %c0_62 = arith.constant 0 : index
    %57 = vector.load %arg5[%c9, %c0_61, %c0_62] : memref<27x128x128xbf16, #tpu.memory_space<vmem>>, vector<1x128x128xbf16>
    %58 = vector.shape_cast %57 : vector<1x128x128xbf16> to vector<128x128xbf16>
    %cst_63 = arith.constant dense<0.000000e+00> : vector<100x128xf32>
    %59 = tpu.matmul %56, %58, %cst_63 {dimension_numbers = #tpu.dot_dimension_numbers<[1], [0], [0], [1], [0, 0, 1, 1], [], []>} : vector<100x128xbf16>, vector<128x128xbf16>, vector<100x128xf32> -> vector<100x128xf32>
    %60 = arith.addf %54, %59 : vector<100x128xf32>
    %c0_64 = arith.constant 0 : index
    %c0_65 = arith.constant 0 : index
    %c1_66 = arith.constant 1 : index
    %c0_67 = arith.constant 0 : index
    %61 = vector.load %arg3[%c0_64, %c0_65, %c1_66, %c0_67] : memref<1x1x128x128xbf16, #tpu.memory_space<vmem>>, vector<1x1x100x128xbf16>
    %62 = vector.shape_cast %61 : vector<1x1x100x128xbf16> to vector<100x128xbf16>
    %c10_68 = arith.constant 10 : index
    %c0_69 = arith.constant 0 : index
    %c0_70 = arith.constant 0 : index
    %63 = vector.load %arg5[%c10_68, %c0_69, %c0_70] : memref<27x128x128xbf16, #tpu.memory_space<vmem>>, vector<1x128x128xbf16>
    %64 = vector.shape_cast %63 : vector<1x128x128xbf16> to vector<128x128xbf16>
    %cst_71 = arith.constant dense<0.000000e+00> : vector<100x128xf32>
    %65 = tpu.matmul %62, %64, %cst_71 {dimension_numbers = #tpu.dot_dimension_numbers<[1], [0], [0], [1], [0, 0, 1, 1], [], []>} : vector<100x128xbf16>, vector<128x128xbf16>, vector<100x128xf32> -> vector<100x128xf32>
    %66 = arith.addf %60, %65 : vector<100x128xf32>
    %c0_72 = arith.constant 0 : index
    %c0_73 = arith.constant 0 : index
    %c2_74 = arith.constant 2 : index
    %c0_75 = arith.constant 0 : index
    %67 = vector.load %arg3[%c0_72, %c0_73, %c2_74, %c0_75] : memref<1x1x128x128xbf16, #tpu.memory_space<vmem>>, vector<1x1x100x128xbf16>
    %68 = vector.shape_cast %67 : vector<1x1x100x128xbf16> to vector<100x128xbf16>
    %c11_76 = arith.constant 11 : index
    %c0_77 = arith.constant 0 : index
    %c0_78 = arith.constant 0 : index
    %69 = vector.load %arg5[%c11_76, %c0_77, %c0_78] : memref<27x128x128xbf16, #tpu.memory_space<vmem>>, vector<1x128x128xbf16>
    %70 = vector.shape_cast %69 : vector<1x128x128xbf16> to vector<128x128xbf16>
    %cst_79 = arith.constant dense<0.000000e+00> : vector<100x128xf32>
    %71 = tpu.matmul %68, %70, %cst_79 {dimension_numbers = #tpu.dot_dimension_numbers<[1], [0], [0], [1], [0, 0, 1, 1], [], []>} : vector<100x128xbf16>, vector<128x128xbf16>, vector<100x128xf32> -> vector<100x128xf32>
    %72 = arith.addf %66, %71 : vector<100x128xf32>
    %c0_80 = arith.constant 0 : index
    %c0_81 = arith.constant 0 : index
    %c10_82 = arith.constant 10 : index
    %c0_83 = arith.constant 0 : index
    %73 = vector.load %arg3[%c0_80, %c0_81, %c10_82, %c0_83] : memref<1x1x128x128xbf16, #tpu.memory_space<vmem>>, vector<1x1x100x128xbf16>
    %74 = vector.shape_cast %73 : vector<1x1x100x128xbf16> to vector<100x128xbf16>
    %c12_84 = arith.constant 12 : index
    %c0_85 = arith.constant 0 : index
    %c0_86 = arith.constant 0 : index
    %75 = vector.load %arg5[%c12_84, %c0_85, %c0_86] : memref<27x128x128xbf16, #tpu.memory_space<vmem>>, vector<1x128x128xbf16>
    %76 = vector.shape_cast %75 : vector<1x128x128xbf16> to vector<128x128xbf16>
    %cst_87 = arith.constant dense<0.000000e+00> : vector<100x128xf32>
    %77 = tpu.matmul %74, %76, %cst_87 {dimension_numbers = #tpu.dot_dimension_numbers<[1], [0], [0], [1], [0, 0, 1, 1], [], []>} : vector<100x128xbf16>, vector<128x128xbf16>, vector<100x128xf32> -> vector<100x128xf32>
    %78 = arith.addf %72, %77 : vector<100x128xf32>
    %c0_88 = arith.constant 0 : index
    %c0_89 = arith.constant 0 : index
    %c11_90 = arith.constant 11 : index
    %c0_91 = arith.constant 0 : index
    %79 = vector.load %arg3[%c0_88, %c0_89, %c11_90, %c0_91] : memref<1x1x128x128xbf16, #tpu.memory_space<vmem>>, vector<1x1x100x128xbf16>
    %80 = vector.shape_cast %79 : vector<1x1x100x128xbf16> to vector<100x128xbf16>
    %c13 = arith.constant 13 : index
    %c0_92 = arith.constant 0 : index
    %c0_93 = arith.constant 0 : index
    %81 = vector.load %arg5[%c13, %c0_92, %c0_93] : memref<27x128x128xbf16, #tpu.memory_space<vmem>>, vector<1x128x128xbf16>
    %82 = vector.shape_cast %81 : vector<1x128x128xbf16> to vector<128x128xbf16>
    %cst_94 = arith.constant dense<0.000000e+00> : vector<100x128xf32>
    %83 = tpu.matmul %80, %82, %cst_94 {dimension_numbers = #tpu.dot_dimension_numbers<[1], [0], [0], [1], [0, 0, 1, 1], [], []>} : vector<100x128xbf16>, vector<128x128xbf16>, vector<100x128xf32> -> vector<100x128xf32>
    %84 = arith.addf %78, %83 : vector<100x128xf32>
    %c0_95 = arith.constant 0 : index
    %c0_96 = arith.constant 0 : index
    %c12_97 = arith.constant 12 : index
    %c0_98 = arith.constant 0 : index
    %85 = vector.load %arg3[%c0_95, %c0_96, %c12_97, %c0_98] : memref<1x1x128x128xbf16, #tpu.memory_space<vmem>>, vector<1x1x100x128xbf16>
    %86 = vector.shape_cast %85 : vector<1x1x100x128xbf16> to vector<100x128xbf16>
    %c14 = arith.constant 14 : index
    %c0_99 = arith.constant 0 : index
    %c0_100 = arith.constant 0 : index
    %87 = vector.load %arg5[%c14, %c0_99, %c0_100] : memref<27x128x128xbf16, #tpu.memory_space<vmem>>, vector<1x128x128xbf16>
    %88 = vector.shape_cast %87 : vector<1x128x128xbf16> to vector<128x128xbf16>
    %cst_101 = arith.constant dense<0.000000e+00> : vector<100x128xf32>
    %89 = tpu.matmul %86, %88, %cst_101 {dimension_numbers = #tpu.dot_dimension_numbers<[1], [0], [0], [1], [0, 0, 1, 1], [], []>} : vector<100x128xbf16>, vector<128x128xbf16>, vector<100x128xf32> -> vector<100x128xf32>
    %90 = arith.addf %84, %89 : vector<100x128xf32>
    %c0_102 = arith.constant 0 : index
    %c0_103 = arith.constant 0 : index
    %c20_104 = arith.constant 20 : index
    %c0_105 = arith.constant 0 : index
    %91 = vector.load %arg3[%c0_102, %c0_103, %c20_104, %c0_105] : memref<1x1x128x128xbf16, #tpu.memory_space<vmem>>, vector<1x1x100x128xbf16>
    %92 = vector.shape_cast %91 : vector<1x1x100x128xbf16> to vector<100x128xbf16>
    %c15 = arith.constant 15 : index
    %c0_106 = arith.constant 0 : index
    %c0_107 = arith.constant 0 : index
    %93 = vector.load %arg5[%c15, %c0_106, %c0_107] : memref<27x128x128xbf16, #tpu.memory_space<vmem>>, vector<1x128x128xbf16>
    %94 = vector.shape_cast %93 : vector<1x128x128xbf16> to vector<128x128xbf16>
    %cst_108 = arith.constant dense<0.000000e+00> : vector<100x128xf32>
    %95 = tpu.matmul %92, %94, %cst_108 {dimension_numbers = #tpu.dot_dimension_numbers<[1], [0], [0], [1], [0, 0, 1, 1], [], []>} : vector<100x128xbf16>, vector<128x128xbf16>, vector<100x128xf32> -> vector<100x128xf32>
    %96 = arith.addf %90, %95 : vector<100x128xf32>
    %c0_109 = arith.constant 0 : index
    %c0_110 = arith.constant 0 : index
    %c21_111 = arith.constant 21 : index
    %c0_112 = arith.constant 0 : index
    %97 = vector.load %arg3[%c0_109, %c0_110, %c21_111, %c0_112] : memref<1x1x128x128xbf16, #tpu.memory_space<vmem>>, vector<1x1x100x128xbf16>
    %98 = vector.shape_cast %97 : vector<1x1x100x128xbf16> to vector<100x128xbf16>
    %c16 = arith.constant 16 : index
    %c0_113 = arith.constant 0 : index
    %c0_114 = arith.constant 0 : index
    %99 = vector.load %arg5[%c16, %c0_113, %c0_114] : memref<27x128x128xbf16, #tpu.memory_space<vmem>>, vector<1x128x128xbf16>
    %100 = vector.shape_cast %99 : vector<1x128x128xbf16> to vector<128x128xbf16>
    %cst_115 = arith.constant dense<0.000000e+00> : vector<100x128xf32>
    %101 = tpu.matmul %98, %100, %cst_115 {dimension_numbers = #tpu.dot_dimension_numbers<[1], [0], [0], [1], [0, 0, 1, 1], [], []>} : vector<100x128xbf16>, vector<128x128xbf16>, vector<100x128xf32> -> vector<100x128xf32>
    %102 = arith.addf %96, %101 : vector<100x128xf32>
    %c0_116 = arith.constant 0 : index
    %c0_117 = arith.constant 0 : index
    %c22_118 = arith.constant 22 : index
    %c0_119 = arith.constant 0 : index
    %103 = vector.load %arg3[%c0_116, %c0_117, %c22_118, %c0_119] : memref<1x1x128x128xbf16, #tpu.memory_space<vmem>>, vector<1x1x100x128xbf16>
    %104 = vector.shape_cast %103 : vector<1x1x100x128xbf16> to vector<100x128xbf16>
    %c17 = arith.constant 17 : index
    %c0_120 = arith.constant 0 : index
    %c0_121 = arith.constant 0 : index
    %105 = vector.load %arg5[%c17, %c0_120, %c0_121] : memref<27x128x128xbf16, #tpu.memory_space<vmem>>, vector<1x128x128xbf16>
    %106 = vector.shape_cast %105 : vector<1x128x128xbf16> to vector<128x128xbf16>
    %cst_122 = arith.constant dense<0.000000e+00> : vector<100x128xf32>
    %107 = tpu.matmul %104, %106, %cst_122 {dimension_numbers = #tpu.dot_dimension_numbers<[1], [0], [0], [1], [0, 0, 1, 1], [], []>} : vector<100x128xbf16>, vector<128x128xbf16>, vector<100x128xf32> -> vector<100x128xf32>
    %108 = arith.addf %102, %107 : vector<100x128xf32>
    %c0_123 = arith.constant 0 : index
    %c0_124 = arith.constant 0 : index
    %c0_125 = arith.constant 0 : index
    %c0_126 = arith.constant 0 : index
    %109 = vector.load %arg4[%c0_123, %c0_124, %c0_125, %c0_126] : memref<1x1x128x128xbf16, #tpu.memory_space<vmem>>, vector<1x1x100x128xbf16>
    %110 = vector.shape_cast %109 : vector<1x1x100x128xbf16> to vector<100x128xbf16>
    %c18 = arith.constant 18 : index
    %c0_127 = arith.constant 0 : index
    %c0_128 = arith.constant 0 : index
    %111 = vector.load %arg5[%c18, %c0_127, %c0_128] : memref<27x128x128xbf16, #tpu.memory_space<vmem>>, vector<1x128x128xbf16>
    %112 = vector.shape_cast %111 : vector<1x128x128xbf16> to vector<128x128xbf16>
    %cst_129 = arith.constant dense<0.000000e+00> : vector<100x128xf32>
    %113 = tpu.matmul %110, %112, %cst_129 {dimension_numbers = #tpu.dot_dimension_numbers<[1], [0], [0], [1], [0, 0, 1, 1], [], []>} : vector<100x128xbf16>, vector<128x128xbf16>, vector<100x128xf32> -> vector<100x128xf32>
    %114 = arith.addf %108, %113 : vector<100x128xf32>
    %c0_130 = arith.constant 0 : index
    %c0_131 = arith.constant 0 : index
    %c1_132 = arith.constant 1 : index
    %c0_133 = arith.constant 0 : index
    %115 = vector.load %arg4[%c0_130, %c0_131, %c1_132, %c0_133] : memref<1x1x128x128xbf16, #tpu.memory_space<vmem>>, vector<1x1x100x128xbf16>
    %116 = vector.shape_cast %115 : vector<1x1x100x128xbf16> to vector<100x128xbf16>
    %c19 = arith.constant 19 : index
    %c0_134 = arith.constant 0 : index
    %c0_135 = arith.constant 0 : index
    %117 = vector.load %arg5[%c19, %c0_134, %c0_135] : memref<27x128x128xbf16, #tpu.memory_space<vmem>>, vector<1x128x128xbf16>
    %118 = vector.shape_cast %117 : vector<1x128x128xbf16> to vector<128x128xbf16>
    %cst_136 = arith.constant dense<0.000000e+00> : vector<100x128xf32>
    %119 = tpu.matmul %116, %118, %cst_136 {dimension_numbers = #tpu.dot_dimension_numbers<[1], [0], [0], [1], [0, 0, 1, 1], [], []>} : vector<100x128xbf16>, vector<128x128xbf16>, vector<100x128xf32> -> vector<100x128xf32>
    %120 = arith.addf %114, %119 : vector<100x128xf32>
    %c0_137 = arith.constant 0 : index
    %c0_138 = arith.constant 0 : index
    %c2_139 = arith.constant 2 : index
    %c0_140 = arith.constant 0 : index
    %121 = vector.load %arg4[%c0_137, %c0_138, %c2_139, %c0_140] : memref<1x1x128x128xbf16, #tpu.memory_space<vmem>>, vector<1x1x100x128xbf16>
    %122 = vector.shape_cast %121 : vector<1x1x100x128xbf16> to vector<100x128xbf16>
    %c20_141 = arith.constant 20 : index
    %c0_142 = arith.constant 0 : index
    %c0_143 = arith.constant 0 : index
    %123 = vector.load %arg5[%c20_141, %c0_142, %c0_143] : memref<27x128x128xbf16, #tpu.memory_space<vmem>>, vector<1x128x128xbf16>
    %124 = vector.shape_cast %123 : vector<1x128x128xbf16> to vector<128x128xbf16>
    %cst_144 = arith.constant dense<0.000000e+00> : vector<100x128xf32>
    %125 = tpu.matmul %122, %124, %cst_144 {dimension_numbers = #tpu.dot_dimension_numbers<[1], [0], [0], [1], [0, 0, 1, 1], [], []>} : vector<100x128xbf16>, vector<128x128xbf16>, vector<100x128xf32> -> vector<100x128xf32>
    %126 = arith.addf %120, %125 : vector<100x128xf32>
    %c0_145 = arith.constant 0 : index
    %c0_146 = arith.constant 0 : index
    %c10_147 = arith.constant 10 : index
    %c0_148 = arith.constant 0 : index
    %127 = vector.load %arg4[%c0_145, %c0_146, %c10_147, %c0_148] : memref<1x1x128x128xbf16, #tpu.memory_space<vmem>>, vector<1x1x100x128xbf16>
    %128 = vector.shape_cast %127 : vector<1x1x100x128xbf16> to vector<100x128xbf16>
    %c21_149 = arith.constant 21 : index
    %c0_150 = arith.constant 0 : index
    %c0_151 = arith.constant 0 : index
    %129 = vector.load %arg5[%c21_149, %c0_150, %c0_151] : memref<27x128x128xbf16, #tpu.memory_space<vmem>>, vector<1x128x128xbf16>
    %130 = vector.shape_cast %129 : vector<1x128x128xbf16> to vector<128x128xbf16>
    %cst_152 = arith.constant dense<0.000000e+00> : vector<100x128xf32>
    %131 = tpu.matmul %128, %130, %cst_152 {dimension_numbers = #tpu.dot_dimension_numbers<[1], [0], [0], [1], [0, 0, 1, 1], [], []>} : vector<100x128xbf16>, vector<128x128xbf16>, vector<100x128xf32> -> vector<100x128xf32>
    %132 = arith.addf %126, %131 : vector<100x128xf32>
    %c0_153 = arith.constant 0 : index
    %c0_154 = arith.constant 0 : index
    %c11_155 = arith.constant 11 : index
    %c0_156 = arith.constant 0 : index
    %133 = vector.load %arg4[%c0_153, %c0_154, %c11_155, %c0_156] : memref<1x1x128x128xbf16, #tpu.memory_space<vmem>>, vector<1x1x100x128xbf16>
    %134 = vector.shape_cast %133 : vector<1x1x100x128xbf16> to vector<100x128xbf16>
    %c22_157 = arith.constant 22 : index
    %c0_158 = arith.constant 0 : index
    %c0_159 = arith.constant 0 : index
    %135 = vector.load %arg5[%c22_157, %c0_158, %c0_159] : memref<27x128x128xbf16, #tpu.memory_space<vmem>>, vector<1x128x128xbf16>
    %136 = vector.shape_cast %135 : vector<1x128x128xbf16> to vector<128x128xbf16>
    %cst_160 = arith.constant dense<0.000000e+00> : vector<100x128xf32>
    %137 = tpu.matmul %134, %136, %cst_160 {dimension_numbers = #tpu.dot_dimension_numbers<[1], [0], [0], [1], [0, 0, 1, 1], [], []>} : vector<100x128xbf16>, vector<128x128xbf16>, vector<100x128xf32> -> vector<100x128xf32>
    %138 = arith.addf %132, %137 : vector<100x128xf32>
    %c0_161 = arith.constant 0 : index
    %c0_162 = arith.constant 0 : index
    %c12_163 = arith.constant 12 : index
    %c0_164 = arith.constant 0 : index
    %139 = vector.load %arg4[%c0_161, %c0_162, %c12_163, %c0_164] : memref<1x1x128x128xbf16, #tpu.memory_space<vmem>>, vector<1x1x100x128xbf16>
    %140 = vector.shape_cast %139 : vector<1x1x100x128xbf16> to vector<100x128xbf16>
    %c23 = arith.constant 23 : index
    %c0_165 = arith.constant 0 : index
    %c0_166 = arith.constant 0 : index
    %141 = vector.load %arg5[%c23, %c0_165, %c0_166] : memref<27x128x128xbf16, #tpu.memory_space<vmem>>, vector<1x128x128xbf16>
    %142 = vector.shape_cast %141 : vector<1x128x128xbf16> to vector<128x128xbf16>
    %cst_167 = arith.constant dense<0.000000e+00> : vector<100x128xf32>
    %143 = tpu.matmul %140, %142, %cst_167 {dimension_numbers = #tpu.dot_dimension_numbers<[1], [0], [0], [1], [0, 0, 1, 1], [], []>} : vector<100x128xbf16>, vector<128x128xbf16>, vector<100x128xf32> -> vector<100x128xf32>
    %144 = arith.addf %138, %143 : vector<100x128xf32>
    %c0_168 = arith.constant 0 : index
    %c0_169 = arith.constant 0 : index
    %c20_170 = arith.constant 20 : index
    %c0_171 = arith.constant 0 : index
    %145 = vector.load %arg4[%c0_168, %c0_169, %c20_170, %c0_171] : memref<1x1x128x128xbf16, #tpu.memory_space<vmem>>, vector<1x1x100x128xbf16>
    %146 = vector.shape_cast %145 : vector<1x1x100x128xbf16> to vector<100x128xbf16>
    %c24 = arith.constant 24 : index
    %c0_172 = arith.constant 0 : index
    %c0_173 = arith.constant 0 : index
    %147 = vector.load %arg5[%c24, %c0_172, %c0_173] : memref<27x128x128xbf16, #tpu.memory_space<vmem>>, vector<1x128x128xbf16>
    %148 = vector.shape_cast %147 : vector<1x128x128xbf16> to vector<128x128xbf16>
    %cst_174 = arith.constant dense<0.000000e+00> : vector<100x128xf32>
    %149 = tpu.matmul %146, %148, %cst_174 {dimension_numbers = #tpu.dot_dimension_numbers<[1], [0], [0], [1], [0, 0, 1, 1], [], []>} : vector<100x128xbf16>, vector<128x128xbf16>, vector<100x128xf32> -> vector<100x128xf32>
    %150 = arith.addf %144, %149 : vector<100x128xf32>
    %c0_175 = arith.constant 0 : index
    %c0_176 = arith.constant 0 : index
    %c21_177 = arith.constant 21 : index
    %c0_178 = arith.constant 0 : index
    %151 = vector.load %arg4[%c0_175, %c0_176, %c21_177, %c0_178] : memref<1x1x128x128xbf16, #tpu.memory_space<vmem>>, vector<1x1x100x128xbf16>
    %152 = vector.shape_cast %151 : vector<1x1x100x128xbf16> to vector<100x128xbf16>
    %c25 = arith.constant 25 : index
    %c0_179 = arith.constant 0 : index
    %c0_180 = arith.constant 0 : index
    %153 = vector.load %arg5[%c25, %c0_179, %c0_180] : memref<27x128x128xbf16, #tpu.memory_space<vmem>>, vector<1x128x128xbf16>
    %154 = vector.shape_cast %153 : vector<1x128x128xbf16> to vector<128x128xbf16>
    %cst_181 = arith.constant dense<0.000000e+00> : vector<100x128xf32>
    %155 = tpu.matmul %152, %154, %cst_181 {dimension_numbers = #tpu.dot_dimension_numbers<[1], [0], [0], [1], [0, 0, 1, 1], [], []>} : vector<100x128xbf16>, vector<128x128xbf16>, vector<100x128xf32> -> vector<100x128xf32>
    %156 = arith.addf %150, %155 : vector<100x128xf32>
    %c0_182 = arith.constant 0 : index
    %c0_183 = arith.constant 0 : index
    %c22_184 = arith.constant 22 : index
    %c0_185 = arith.constant 0 : index
    %157 = vector.load %arg4[%c0_182, %c0_183, %c22_184, %c0_185] : memref<1x1x128x128xbf16, #tpu.memory_space<vmem>>, vector<1x1x100x128xbf16>
    %158 = vector.shape_cast %157 : vector<1x1x100x128xbf16> to vector<100x128xbf16>
    %c26 = arith.constant 26 : index
    %c0_186 = arith.constant 0 : index
    %c0_187 = arith.constant 0 : index
    %159 = vector.load %arg5[%c26, %c0_186, %c0_187] : memref<27x128x128xbf16, #tpu.memory_space<vmem>>, vector<1x128x128xbf16>
    %160 = vector.shape_cast %159 : vector<1x128x128xbf16> to vector<128x128xbf16>
    %cst_188 = arith.constant dense<0.000000e+00> : vector<100x128xf32>
    %161 = tpu.matmul %158, %160, %cst_188 {dimension_numbers = #tpu.dot_dimension_numbers<[1], [0], [0], [1], [0, 0, 1, 1], [], []>} : vector<100x128xbf16>, vector<128x128xbf16>, vector<100x128xf32> -> vector<100x128xf32>
    %162 = arith.addf %156, %161 : vector<100x128xf32>
    %cst_189 = arith.constant 0.000000e+00 : f32
    %163 = vector.broadcast %cst_189 : f32 to vector<128x128xf32>
    %c0_190 = arith.constant 0 : index
    %c0_191 = arith.constant 0 : index
    %c0_192 = arith.constant 0 : index
    %c0_193 = arith.constant 0 : index
    %164 = vector.load %arg7[%c0_190, %c0_191, %c0_192, %c0_193] : memref<1x1x128x128xf32, #tpu.memory_space<vmem>>, vector<1x1x128x128xf32>
    %165 = vector.shape_cast %164 : vector<1x1x128x128xf32> to vector<128x128xf32>
    %166 = vector.shape_cast %163 : vector<128x128xf32> to vector<1x1x128x128xf32>
    tpu.vector_store %arg7[%c0_190, %c0_191, %c0_192, %c0_193], %166 {strides = array<i32>} : memref<1x1x128x128xf32, #tpu.memory_space<vmem>>, vector<1x1x128x128xf32>,
    %c0_194 = arith.constant 0 : index
    %c0_195 = arith.constant 0 : index
    %c11_196 = arith.constant 11 : index
    %c0_197 = arith.constant 0 : index
    %167 = vector.load %arg7[%c0_194, %c0_195, %c11_196, %c0_197] : memref<1x1x128x128xf32, #tpu.memory_space<vmem>>, vector<1x1x100x128xf32>
    %168 = vector.shape_cast %167 : vector<1x1x100x128xf32> to vector<100x128xf32>
    %169 = vector.shape_cast %162 : vector<100x128xf32> to vector<1x1x100x128xf32>
    tpu.vector_store %arg7[%c0_194, %c0_195, %c11_196, %c0_197], %169 {strides = array<i32>} : memref<1x1x128x128xf32, #tpu.memory_space<vmem>>, vector<1x1x100x128xf32>,
    %c0_198 = arith.constant 0 : index
    %c11_199 = arith.constant 11 : index
    %c0_200 = arith.constant 0 : index
    %170 = vector.load %arg6[%c0_198, %c11_199, %c0_200] : memref<1x128x1xf32, #tpu.memory_space<vmem>>, vector<1x100x1xf32>
    %171 = vector.shape_cast %170 : vector<1x100x1xf32> to vector<100x1xf32>
    %172 = vector.broadcast %171 : vector<100x1xf32> to vector<100x128xf32>
    %173 = arith.mulf %162, %172 : vector<100x128xf32>
    %c0_i32 = arith.constant 0 : i32
    %174 = arith.cmpi eq, %arg1, %c0_i32 : i32
    %175 = arith.extui %174 : i1 to i32
    %c0_i32_201 = arith.constant 0 : i32
    %176 = arith.cmpi ne, %175, %c0_i32_201 : i32
    scf.if %176 {
      %cst_216 = arith.constant 0.000000e+00 : f32
      %194 = vector.broadcast %cst_216 : f32 to vector<1x1x128xf32>
      %c0_217 = arith.constant 0 : index
      %c0_218 = arith.constant 0 : index
      %c0_219 = arith.constant 0 : index
      %195 = vector.load %arg8[%c0_217, %c0_218, %c0_219] : memref<1x1x128xf32, #tpu.memory_space<vmem>>, vector<1x1x128xf32>
      tpu.vector_store %arg8[%c0_217, %c0_218, %c0_219], %194 {strides = array<i32>} : memref<1x1x128xf32, #tpu.memory_space<vmem>>, vector<1x1x128xf32>,
      %cst_220 = arith.constant 0.000000e+00 : f32
      %196 = vector.broadcast %cst_220 : f32 to vector<1x1x128xf32>
      %c0_221 = arith.constant 0 : index
      %c0_222 = arith.constant 0 : index
      %c0_223 = arith.constant 0 : index
      %197 = vector.load %arg9[%c0_221, %c0_222, %c0_223] : memref<1x1x128xf32, #tpu.memory_space<vmem>>, vector<1x1x128xf32>
      tpu.vector_store %arg9[%c0_221, %c0_222, %c0_223], %196 {strides = array<i32>} : memref<1x1x128xf32, #tpu.memory_space<vmem>>, vector<1x1x128xf32>,
    } else {
    }
    %c0_202 = arith.constant 0 : index
    %c0_203 = arith.constant 0 : index
    %c0_204 = arith.constant 0 : index
    %177 = vector.load %arg8[%c0_202, %c0_203, %c0_204] : memref<1x1x128xf32, #tpu.memory_space<vmem>>, vector<1x1x128xf32>
    %178 = vector.shape_cast %177 : vector<1x1x128xf32> to vector<1x128xf32>
    %cst_205 = arith.constant dense<0.000000e+00> : vector<128xf32>
    %179 = vector.multi_reduction <add>, %173, %cst_205 [0] : vector<100x128xf32> to vector<128xf32>
    %180 = vector.shape_cast %179 : vector<128xf32> to vector<1x128xf32>
    %181 = arith.addf %178, %180 : vector<1x128xf32>
    %c0_206 = arith.constant 0 : index
    %c0_207 = arith.constant 0 : index
    %c0_208 = arith.constant 0 : index
    %182 = vector.load %arg8[%c0_206, %c0_207, %c0_208] : memref<1x1x128xf32, #tpu.memory_space<vmem>>, vector<1x1x128xf32>
    %183 = vector.shape_cast %182 : vector<1x1x128xf32> to vector<1x128xf32>
    %184 = vector.shape_cast %181 : vector<1x128xf32> to vector<1x1x128xf32>
    tpu.vector_store %arg8[%c0_206, %c0_207, %c0_208], %184 {strides = array<i32>} : memref<1x1x128xf32, #tpu.memory_space<vmem>>, vector<1x1x128xf32>,
    %c0_209 = arith.constant 0 : index
    %c0_210 = arith.constant 0 : index
    %c0_211 = arith.constant 0 : index
    %185 = vector.load %arg9[%c0_209, %c0_210, %c0_211] : memref<1x1x128xf32, #tpu.memory_space<vmem>>, vector<1x1x128xf32>
    %186 = vector.shape_cast %185 : vector<1x1x128xf32> to vector<1x128xf32>
    %187 = arith.mulf %162, %173 : vector<100x128xf32>
    %cst_212 = arith.constant dense<0.000000e+00> : vector<128xf32>
    %188 = vector.multi_reduction <add>, %187, %cst_212 [0] : vector<100x128xf32> to vector<128xf32>
    %189 = vector.shape_cast %188 : vector<128xf32> to vector<1x128xf32>
    %190 = arith.addf %186, %189 : vector<1x128xf32>
    %c0_213 = arith.constant 0 : index
    %c0_214 = arith.constant 0 : index
    %c0_215 = arith.constant 0 : index
    %191 = vector.load %arg9[%c0_213, %c0_214, %c0_215] : memref<1x1x128xf32, #tpu.memory_space<vmem>>, vector<1x1x128xf32>
    %192 = vector.shape_cast %191 : vector<1x1x128xf32> to vector<1x128xf32>
    %193 = vector.shape_cast %190 : vector<1x128xf32> to vector<1x1x128xf32>
    tpu.vector_store %arg9[%c0_213, %c0_214, %c0_215], %193 {strides = array<i32>} : memref<1x1x128xf32, #tpu.memory_space<vmem>>, vector<1x1x128xf32>,
    return
  }
  func.func @transform_0(%arg0: i32, %arg1: i32) -> (i32, i32, i32, i32) {
    %c0_i32 = arith.constant 0 : i32
    %c0_i32_0 = arith.constant 0 : i32
    %c0_i32_1 = arith.constant 0 : i32
    return %arg0, %arg1, %c0_i32, %c0_i32_0 : i32, i32, i32, i32
  }
  func.func @transform_1(%arg0: i32, %arg1: i32) -> (i32, i32, i32, i32) {
    %c1_i32 = arith.constant 1 : i32
    %0 = arith.addi %arg1, %c1_i32 : i32
    %c0_i32 = arith.constant 0 : i32
    %c0_i32_0 = arith.constant 0 : i32
    %c0_i32_1 = arith.constant 0 : i32
    return %arg0, %0, %c0_i32, %c0_i32_0 : i32, i32, i32, i32
  }
  func.func @transform_2(%arg0: i32, %arg1: i32) -> (i32, i32, i32, i32) {
    %c2_i32 = arith.constant 2 : i32
    %0 = arith.addi %arg1, %c2_i32 : i32
    %c0_i32 = arith.constant 0 : i32
    %c0_i32_0 = arith.constant 0 : i32
    %c0_i32_1 = arith.constant 0 : i32
    return %arg0, %0, %c0_i32, %c0_i32_0 : i32, i32, i32, i32
  }
  func.func @transform_3(%arg0: i32, %arg1: i32) -> (i32, i32, i32) {
    %c0_i32 = arith.constant 0 : i32
    %c0_i32_0 = arith.constant 0 : i32
    %c0_i32_1 = arith.constant 0 : i32
    %c0_i32_2 = arith.constant 0 : i32
    return %c0_i32, %c0_i32_0, %c0_i32_1 : i32, i32, i32
  }
  func.func @transform_4(%arg0: i32, %arg1: i32) -> (i32, i32, i32) {
    %c1_i32 = arith.constant 1 : i32
    %0 = arith.addi %arg1, %c1_i32 : i32
    %c0_i32 = arith.constant 0 : i32
    %c0_i32_0 = arith.constant 0 : i32
    %c0_i32_1 = arith.constant 0 : i32
    return %0, %c0_i32, %c0_i32_0 : i32, i32, i32
  }
  func.func @transform_5(%arg0: i32, %arg1: i32) -> (i32, i32, i32, i32) {
    %c0_i32 = arith.constant 0 : i32
    %c0_i32_0 = arith.constant 0 : i32
    %c0_i32_1 = arith.constant 0 : i32
    return %arg0, %arg1, %c0_i32, %c0_i32_0 : i32, i32, i32, i32
  }
  func.func @transform_6(%arg0: i32, %arg1: i32) -> (i32, i32, i32) {
    %c0_i32 = arith.constant 0 : i32
    %c0_i32_0 = arith.constant 0 : i32
    %c0_i32_1 = arith.constant 0 : i32
    return %arg0, %c0_i32, %c0_i32_0 : i32, i32, i32
  }
  func.func @transform_7(%arg0: i32, %arg1: i32) -> (i32, i32, i32) {
    %c0_i32 = arith.constant 0 : i32
    %c0_i32_0 = arith.constant 0 : i32
    %c0_i32_1 = arith.constant 0 : i32
    return %arg0, %c0_i32, %c0_i32_0 : i32, i32, i32
  }
}

module attributes {stable_mosaic.version = 11 : i64} {
  func.func @_matmul_stats_kernel(%arg0: i32, %arg1: i32, %arg2: memref<1x1x128x128xbf16, #tpu.memory_space<vmem>>, %arg3: memref<1x128x32xbf16, #tpu.memory_space<vmem>>, %arg4: memref<1x128x1xf32, #tpu.memory_space<vmem>>, %arg5: memref<1x1x128x32xf32, #tpu.memory_space<vmem>>, %arg6: memref<1x1x32xf32, #tpu.memory_space<vmem>>, %arg7: memref<1x1x32xf32, #tpu.memory_space<vmem>>) attributes {dimension_semantics = [#tpu.dimension_semantics<parallel>, #tpu.dimension_semantics<arbitrary>], iteration_bounds = array<i64: 2, 8>, scalar_prefetch = 0 : i64, scratch_operands = 0 : i64, tpu.core_type = #tpu.core_type<tc>, window_params = [{transform_indices = @transform_0, window_bounds = array<i64: 1, 1, 128, 128>}, {transform_indices = @transform_1, window_bounds = array<i64: 1, 128, 32>}, {transform_indices = @transform_2, window_bounds = array<i64: 1, 128, 1>}, {transform_indices = @transform_3, window_bounds = array<i64: 1, 1, 128, 32>}, {transform_indices = @transform_4, window_bounds = array<i64: 1, 1, 32>}, {transform_indices = @transform_5, window_bounds = array<i64: 1, 1, 32>}]} {
    %c0 = arith.constant 0 : index
    %c0_0 = arith.constant 0 : index
    %c0_1 = arith.constant 0 : index
    %c0_2 = arith.constant 0 : index
    %0 = vector.load %arg2[%c0, %c0_0, %c0_1, %c0_2] : memref<1x1x128x128xbf16, #tpu.memory_space<vmem>>, vector<1x1x128x128xbf16>
    %1 = vector.shape_cast %0 : vector<1x1x128x128xbf16> to vector<128x128xbf16>
    %c0_3 = arith.constant 0 : index
    %c0_4 = arith.constant 0 : index
    %c0_5 = arith.constant 0 : index
    %2 = vector.load %arg3[%c0_3, %c0_4, %c0_5] : memref<1x128x32xbf16, #tpu.memory_space<vmem>>, vector<1x128x32xbf16>
    %3 = vector.shape_cast %2 : vector<1x128x32xbf16> to vector<128x32xbf16>
    %cst = arith.constant dense<0.000000e+00> : vector<128x32xf32>
    %4 = tpu.matmul %1, %3, %cst {dimension_numbers = #tpu.dot_dimension_numbers<[1], [0], [0], [1], [0, 0, 1, 1], [], []>} : vector<128x128xbf16>, vector<128x32xbf16>, vector<128x32xf32> -> vector<128x32xf32>
    %c0_6 = arith.constant 0 : index
    %c0_7 = arith.constant 0 : index
    %c0_8 = arith.constant 0 : index
    %c0_9 = arith.constant 0 : index
    %5 = vector.load %arg5[%c0_6, %c0_7, %c0_8, %c0_9] : memref<1x1x128x32xf32, #tpu.memory_space<vmem>>, vector<1x1x128x32xf32>
    %6 = vector.shape_cast %5 : vector<1x1x128x32xf32> to vector<128x32xf32>
    %7 = vector.shape_cast %4 : vector<128x32xf32> to vector<1x1x128x32xf32>
    tpu.vector_store %arg5[%c0_6, %c0_7, %c0_8, %c0_9], %7 {strides = array<i32>} : memref<1x1x128x32xf32, #tpu.memory_space<vmem>>, vector<1x1x128x32xf32>,
    %c0_10 = arith.constant 0 : index
    %c0_11 = arith.constant 0 : index
    %c0_12 = arith.constant 0 : index
    %8 = vector.load %arg4[%c0_10, %c0_11, %c0_12] : memref<1x128x1xf32, #tpu.memory_space<vmem>>, vector<1x128x1xf32>
    %9 = vector.shape_cast %8 : vector<1x128x1xf32> to vector<128x1xf32>
    %10 = vector.broadcast %9 : vector<128x1xf32> to vector<128x32xf32>
    %11 = arith.mulf %4, %10 : vector<128x32xf32>
    %c0_i32 = arith.constant 0 : i32
    %12 = arith.cmpi eq, %arg1, %c0_i32 : i32
    %13 = arith.extui %12 : i1 to i32
    %c0_i32_13 = arith.constant 0 : i32
    %14 = arith.cmpi ne, %13, %c0_i32_13 : i32
    scf.if %14 {
      %cst_28 = arith.constant 0.000000e+00 : f32
      %32 = vector.broadcast %cst_28 : f32 to vector<1x1x32xf32>
      %c0_29 = arith.constant 0 : index
      %c0_30 = arith.constant 0 : index
      %c0_31 = arith.constant 0 : index
      %33 = vector.load %arg6[%c0_29, %c0_30, %c0_31] : memref<1x1x32xf32, #tpu.memory_space<vmem>>, vector<1x1x32xf32>
      tpu.vector_store %arg6[%c0_29, %c0_30, %c0_31], %32 {strides = array<i32>} : memref<1x1x32xf32, #tpu.memory_space<vmem>>, vector<1x1x32xf32>,
      %cst_32 = arith.constant 0.000000e+00 : f32
      %34 = vector.broadcast %cst_32 : f32 to vector<1x1x32xf32>
      %c0_33 = arith.constant 0 : index
      %c0_34 = arith.constant 0 : index
      %c0_35 = arith.constant 0 : index
      %35 = vector.load %arg7[%c0_33, %c0_34, %c0_35] : memref<1x1x32xf32, #tpu.memory_space<vmem>>, vector<1x1x32xf32>
      tpu.vector_store %arg7[%c0_33, %c0_34, %c0_35], %34 {strides = array<i32>} : memref<1x1x32xf32, #tpu.memory_space<vmem>>, vector<1x1x32xf32>,
    } else {
    }
    %c0_14 = arith.constant 0 : index
    %c0_15 = arith.constant 0 : index
    %c0_16 = arith.constant 0 : index
    %15 = vector.load %arg6[%c0_14, %c0_15, %c0_16] : memref<1x1x32xf32, #tpu.memory_space<vmem>>, vector<1x1x32xf32>
    %16 = vector.shape_cast %15 : vector<1x1x32xf32> to vector<1x32xf32>
    %cst_17 = arith.constant dense<0.000000e+00> : vector<32xf32>
    %17 = vector.multi_reduction <add>, %11, %cst_17 [0] : vector<128x32xf32> to vector<32xf32>
    %18 = vector.shape_cast %17 : vector<32xf32> to vector<1x32xf32>
    %19 = arith.addf %16, %18 : vector<1x32xf32>
    %c0_18 = arith.constant 0 : index
    %c0_19 = arith.constant 0 : index
    %c0_20 = arith.constant 0 : index
    %20 = vector.load %arg6[%c0_18, %c0_19, %c0_20] : memref<1x1x32xf32, #tpu.memory_space<vmem>>, vector<1x1x32xf32>
    %21 = vector.shape_cast %20 : vector<1x1x32xf32> to vector<1x32xf32>
    %22 = vector.shape_cast %19 : vector<1x32xf32> to vector<1x1x32xf32>
    tpu.vector_store %arg6[%c0_18, %c0_19, %c0_20], %22 {strides = array<i32>} : memref<1x1x32xf32, #tpu.memory_space<vmem>>, vector<1x1x32xf32>,
    %c0_21 = arith.constant 0 : index
    %c0_22 = arith.constant 0 : index
    %c0_23 = arith.constant 0 : index
    %23 = vector.load %arg7[%c0_21, %c0_22, %c0_23] : memref<1x1x32xf32, #tpu.memory_space<vmem>>, vector<1x1x32xf32>
    %24 = vector.shape_cast %23 : vector<1x1x32xf32> to vector<1x32xf32>
    %25 = arith.mulf %4, %11 : vector<128x32xf32>
    %cst_24 = arith.constant dense<0.000000e+00> : vector<32xf32>
    %26 = vector.multi_reduction <add>, %25, %cst_24 [0] : vector<128x32xf32> to vector<32xf32>
    %27 = vector.shape_cast %26 : vector<32xf32> to vector<1x32xf32>
    %28 = arith.addf %24, %27 : vector<1x32xf32>
    %c0_25 = arith.constant 0 : index
    %c0_26 = arith.constant 0 : index
    %c0_27 = arith.constant 0 : index
    %29 = vector.load %arg7[%c0_25, %c0_26, %c0_27] : memref<1x1x32xf32, #tpu.memory_space<vmem>>, vector<1x1x32xf32>
    %30 = vector.shape_cast %29 : vector<1x1x32xf32> to vector<1x32xf32>
    %31 = vector.shape_cast %28 : vector<1x32xf32> to vector<1x1x32xf32>
    tpu.vector_store %arg7[%c0_25, %c0_26, %c0_27], %31 {strides = array<i32>} : memref<1x1x32xf32, #tpu.memory_space<vmem>>, vector<1x1x32xf32>,
    return
  }
  func.func @transform_0(%arg0: i32, %arg1: i32) -> (i32, i32, i32, i32) {
    %c0_i32 = arith.constant 0 : i32
    %c0_i32_0 = arith.constant 0 : i32
    %c0_i32_1 = arith.constant 0 : i32
    return %arg0, %arg1, %c0_i32, %c0_i32_0 : i32, i32, i32, i32
  }
  func.func @transform_1(%arg0: i32, %arg1: i32) -> (i32, i32, i32) {
    %c0_i32 = arith.constant 0 : i32
    %c0_i32_0 = arith.constant 0 : i32
    %c0_i32_1 = arith.constant 0 : i32
    return %arg0, %c0_i32, %c0_i32_0 : i32, i32, i32
  }
  func.func @transform_2(%arg0: i32, %arg1: i32) -> (i32, i32, i32) {
    %c1_i32 = arith.constant 1 : i32
    %0 = arith.addi %arg1, %c1_i32 : i32
    %c0_i32 = arith.constant 0 : i32
    %c0_i32_0 = arith.constant 0 : i32
    %c0_i32_1 = arith.constant 0 : i32
    return %0, %c0_i32, %c0_i32_0 : i32, i32, i32
  }
  func.func @transform_3(%arg0: i32, %arg1: i32) -> (i32, i32, i32, i32) {
    %c0_i32 = arith.constant 0 : i32
    %c0_i32_0 = arith.constant 0 : i32
    %c0_i32_1 = arith.constant 0 : i32
    return %arg0, %arg1, %c0_i32, %c0_i32_0 : i32, i32, i32, i32
  }
  func.func @transform_4(%arg0: i32, %arg1: i32) -> (i32, i32, i32) {
    %c0_i32 = arith.constant 0 : i32
    %c0_i32_0 = arith.constant 0 : i32
    %c0_i32_1 = arith.constant 0 : i32
    return %arg0, %c0_i32, %c0_i32_0 : i32, i32, i32
  }
  func.func @transform_5(%arg0: i32, %arg1: i32) -> (i32, i32, i32) {
    %c0_i32 = arith.constant 0 : i32
    %c0_i32_0 = arith.constant 0 : i32
    %c0_i32_1 = arith.constant 0 : i32
    return %arg0, %c0_i32, %c0_i32_0 : i32, i32, i32
  }
}

module attributes {stable_mosaic.version = 11 : i64} {
  func.func @kernel(%arg0: i32, %arg1: i32, %arg2: memref<1x1x128x32xf32, #tpu.memory_space<vmem>>, %arg3: memref<1x1x32xf32, #tpu.memory_space<vmem>>, %arg4: memref<1x1x32xf32, #tpu.memory_space<vmem>>, %arg5: memref<1x1x32xf32, #tpu.memory_space<vmem>>, %arg6: memref<1x1x32xf32, #tpu.memory_space<vmem>>, %arg7: memref<1x128x1xf32, #tpu.memory_space<vmem>>, %arg8: memref<1x1x128x32xf32, #tpu.memory_space<vmem>>) attributes {dimension_semantics = [#tpu.dimension_semantics<parallel>, #tpu.dimension_semantics<parallel>], iteration_bounds = array<i64: 2, 8>, scalar_prefetch = 0 : i64, scratch_operands = 0 : i64, tpu.core_type = #tpu.core_type<tc>, window_params = [{transform_indices = @transform_0, window_bounds = array<i64: 1, 1, 128, 32>}, {transform_indices = @transform_1, window_bounds = array<i64: 1, 1, 32>}, {transform_indices = @transform_2, window_bounds = array<i64: 1, 1, 32>}, {transform_indices = @transform_3, window_bounds = array<i64: 1, 1, 32>}, {transform_indices = @transform_4, window_bounds = array<i64: 1, 1, 32>}, {transform_indices = @transform_5, window_bounds = array<i64: 1, 128, 1>}, {transform_indices = @transform_6, window_bounds = array<i64: 1, 1, 128, 32>}]} {
    %c0 = arith.constant 0 : index
    %c0_0 = arith.constant 0 : index
    %c0_1 = arith.constant 0 : index
    %c0_2 = arith.constant 0 : index
    %0 = vector.load %arg2[%c0, %c0_0, %c0_1, %c0_2] : memref<1x1x128x32xf32, #tpu.memory_space<vmem>>, vector<1x1x128x32xf32>
    %1 = vector.shape_cast %0 : vector<1x1x128x32xf32> to vector<128x32xf32>
    %c0_3 = arith.constant 0 : index
    %c0_4 = arith.constant 0 : index
    %c0_5 = arith.constant 0 : index
    %2 = vector.load %arg3[%c0_3, %c0_4, %c0_5] : memref<1x1x32xf32, #tpu.memory_space<vmem>>, vector<1x1x32xf32>
    %3 = vector.shape_cast %2 : vector<1x1x32xf32> to vector<1x32xf32>
    %cst = arith.constant 0.001953125 : f32
    %4 = vector.broadcast %cst : f32 to vector<1x32xf32>
    %5 = arith.mulf %3, %4 : vector<1x32xf32>
    %c0_6 = arith.constant 0 : index
    %c0_7 = arith.constant 0 : index
    %c0_8 = arith.constant 0 : index
    %6 = vector.load %arg4[%c0_6, %c0_7, %c0_8] : memref<1x1x32xf32, #tpu.memory_space<vmem>>, vector<1x1x32xf32>
    %7 = vector.shape_cast %6 : vector<1x1x32xf32> to vector<1x32xf32>
    %cst_9 = arith.constant 0.001953125 : f32
    %8 = vector.broadcast %cst_9 : f32 to vector<1x32xf32>
    %9 = arith.mulf %7, %8 : vector<1x32xf32>
    %10 = arith.mulf %5, %5 : vector<1x32xf32>
    %11 = arith.subf %9, %10 : vector<1x32xf32>
    %cst_10 = arith.constant 0.000000e+00 : f32
    %12 = vector.broadcast %cst_10 : f32 to vector<1x32xf32>
    %13 = arith.maximumf %11, %12 : vector<1x32xf32>
    %14 = vector.broadcast %5 : vector<1x32xf32> to vector<128x32xf32>
    %15 = arith.subf %1, %14 : vector<128x32xf32>
    %cst_11 = arith.constant 9.99999974E-6 : f32
    %16 = vector.broadcast %cst_11 : f32 to vector<1x32xf32>
    %17 = arith.addf %13, %16 : vector<1x32xf32>
    %18 = math.rsqrt %17 : vector<1x32xf32>
    %19 = vector.broadcast %18 : vector<1x32xf32> to vector<128x32xf32>
    %20 = arith.mulf %15, %19 : vector<128x32xf32>
    %c0_12 = arith.constant 0 : index
    %c0_13 = arith.constant 0 : index
    %c0_14 = arith.constant 0 : index
    %21 = vector.load %arg5[%c0_12, %c0_13, %c0_14] : memref<1x1x32xf32, #tpu.memory_space<vmem>>, vector<1x1x32xf32>
    %22 = vector.shape_cast %21 : vector<1x1x32xf32> to vector<1x32xf32>
    %23 = vector.broadcast %22 : vector<1x32xf32> to vector<128x32xf32>
    %24 = arith.mulf %20, %23 : vector<128x32xf32>
    %c0_15 = arith.constant 0 : index
    %c0_16 = arith.constant 0 : index
    %c0_17 = arith.constant 0 : index
    %25 = vector.load %arg6[%c0_15, %c0_16, %c0_17] : memref<1x1x32xf32, #tpu.memory_space<vmem>>, vector<1x1x32xf32>
    %26 = vector.shape_cast %25 : vector<1x1x32xf32> to vector<1x32xf32>
    %27 = vector.broadcast %26 : vector<1x32xf32> to vector<128x32xf32>
    %28 = arith.addf %24, %27 : vector<128x32xf32>
    %cst_18 = arith.constant 0.000000e+00 : f32
    %29 = vector.broadcast %cst_18 : f32 to vector<128x32xf32>
    %30 = arith.cmpf ogt, %28, %29 : vector<128x32xf32>
    %cst_19 = arith.constant 0.00999999977 : f32
    %31 = vector.broadcast %cst_19 : f32 to vector<128x32xf32>
    %32 = arith.mulf %31, %28 : vector<128x32xf32>
    %33 = arith.select %30, %28, %32 : vector<128x32xi1>, vector<128x32xf32>
    %c0_20 = arith.constant 0 : index
    %c0_21 = arith.constant 0 : index
    %c0_22 = arith.constant 0 : index
    %34 = vector.load %arg7[%c0_20, %c0_21, %c0_22] : memref<1x128x1xf32, #tpu.memory_space<vmem>>, vector<1x128x1xf32>
    %35 = vector.shape_cast %34 : vector<1x128x1xf32> to vector<128x1xf32>
    %36 = vector.broadcast %35 : vector<128x1xf32> to vector<128x32xf32>
    %37 = arith.mulf %33, %36 : vector<128x32xf32>
    %c0_23 = arith.constant 0 : index
    %c0_24 = arith.constant 0 : index
    %c0_25 = arith.constant 0 : index
    %c0_26 = arith.constant 0 : index
    %38 = vector.load %arg8[%c0_23, %c0_24, %c0_25, %c0_26] : memref<1x1x128x32xf32, #tpu.memory_space<vmem>>, vector<1x1x128x32xf32>
    %39 = vector.shape_cast %38 : vector<1x1x128x32xf32> to vector<128x32xf32>
    %40 = vector.shape_cast %37 : vector<128x32xf32> to vector<1x1x128x32xf32>
    tpu.vector_store %arg8[%c0_23, %c0_24, %c0_25, %c0_26], %40 {strides = array<i32>} : memref<1x1x128x32xf32, #tpu.memory_space<vmem>>, vector<1x1x128x32xf32>,
    return
  }
  func.func @transform_0(%arg0: i32, %arg1: i32) -> (i32, i32, i32, i32) {
    %c0_i32 = arith.constant 0 : i32
    %c0_i32_0 = arith.constant 0 : i32
    %c0_i32_1 = arith.constant 0 : i32
    return %arg0, %arg1, %c0_i32, %c0_i32_0 : i32, i32, i32, i32
  }
  func.func @transform_1(%arg0: i32, %arg1: i32) -> (i32, i32, i32) {
    %c0_i32 = arith.constant 0 : i32
    %c0_i32_0 = arith.constant 0 : i32
    %c0_i32_1 = arith.constant 0 : i32
    return %arg0, %c0_i32, %c0_i32_0 : i32, i32, i32
  }
  func.func @transform_2(%arg0: i32, %arg1: i32) -> (i32, i32, i32) {
    %c0_i32 = arith.constant 0 : i32
    %c0_i32_0 = arith.constant 0 : i32
    %c0_i32_1 = arith.constant 0 : i32
    return %arg0, %c0_i32, %c0_i32_0 : i32, i32, i32
  }
  func.func @transform_3(%arg0: i32, %arg1: i32) -> (i32, i32, i32) {
    %c0_i32 = arith.constant 0 : i32
    %c0_i32_0 = arith.constant 0 : i32
    %c0_i32_1 = arith.constant 0 : i32
    return %arg0, %c0_i32, %c0_i32_0 : i32, i32, i32
  }
  func.func @transform_4(%arg0: i32, %arg1: i32) -> (i32, i32, i32) {
    %c0_i32 = arith.constant 0 : i32
    %c0_i32_0 = arith.constant 0 : i32
    %c0_i32_1 = arith.constant 0 : i32
    return %arg0, %c0_i32, %c0_i32_0 : i32, i32, i32
  }
  func.func @transform_5(%arg0: i32, %arg1: i32) -> (i32, i32, i32) {
    %c1_i32 = arith.constant 1 : i32
    %0 = arith.addi %arg1, %c1_i32 : i32
    %c0_i32 = arith.constant 0 : i32
    %c0_i32_0 = arith.constant 0 : i32
    %c0_i32_1 = arith.constant 0 : i32
    return %0, %c0_i32, %c0_i32_0 : i32, i32, i32
  }
  func.func @transform_6(%arg0: i32, %arg1: i32) -> (i32, i32, i32, i32) {
    %c0_i32 = arith.constant 0 : i32
    %c0_i32_0 = arith.constant 0 : i32
    %c0_i32_1 = arith.constant 0 : i32
    return %arg0, %arg1, %c0_i32, %c0_i32_0 : i32, i32, i32, i32
  }
}

</mosaic_0001>

<llo_original>
// kernel: split_conv_csa_forward.7
$region0: #{split_conv_csa_forward.7}
  #allocation0 [shape = 'u32[]', space=smem, size = 0x4, offset = 0x4, fixed_abs, tag = 'smem constant byte address 0x4 - core index']
  #allocation1 [shape = 'u32[144,128]{1,0:T(1,128)}', space=vmem, size = 0x12000, scoped, tag = 'internal scratch']
  %s0 = inlined_call_operand.vmem [shape: f32[2,10,128,128], index: 0, kind: input, shape index: {}]
  %s1 = inlined_call_operand.vmem [shape: f32[2,1,128], index: 1, kind: input, shape index: {}]
  %s2 = inlined_call_operand.vmem [shape: f32[2,1,128], index: 2, kind: input, shape index: {}]
  %s3 = inlined_call_operand.vmem [shape: f32[2,1,128], index: 3, kind: input, shape index: {}]
  %s4 = inlined_call_operand.vmem [shape: f32[2,1,128], index: 4, kind: input, shape index: {}]
  %s5 = inlined_call_operand.vmem [shape: f32[10,128,1], index: 5, kind: input, shape index: {}]
  %s6 = inlined_call_operand.vmem [shape: bf16[2,10,128,128], index: 6, kind: output, shape index: {}]
  %s7 = sld [smem:[#allocation0]]
  $region57: #{split_conv_csa_forward.7} parent=0
    _
  %s9 = ssub.s32 1, %s7
  %s10 = scalar_select 0, %s9, %s7
  loop: start=0, step=1, limit=22
  $region2: #{split_conv_csa_forward.7} parent=0 // loop_pre_header
    _
  $region3: #{split_conv_csa_forward.7} parent=0 // loop_header
    %s12 = sphi 0, %s16
    %p13 = scmp.ge.s32.totalorder %s12, 22
    %s19 = sphi 0, %s31
    %s20 = sphi 0, %s27
    %s21 = sphi 0, %s19
    %s22 = sphi 0, %s20
    %s23 = sphi 0, %s21
    %s24 = sphi 0, %s22
    %s36 = sphi 0, %s38
    %s39 = sphi 0, %s36
    %s40 = sphi 0, %s39
    %s56 = sphi 0, %s40
    %s62 = sphi 0, %s64
    %s65 = sphi 0, %s62
    %s66 = sphi 0, %s65
    %s82 = sphi 0, %s66
    %s88 = sphi 0, %s90
    %s91 = sphi 0, %s88
    %s92 = sphi 0, %s91
    %s108 = sphi 0, %s92
    %s114 = sphi 0, %s116
    %s117 = sphi 0, %s114
    %s118 = sphi 0, %s117
    %s134 = sphi 0, %s118
    %s140 = sphi 0, %s142
    %s143 = sphi 0, %s140
    %s144 = sphi 0, %s143
    %s160 = sphi 0, %s144
    %s166 = sphi 0, %s168
    %s169 = sphi 0, %s166
    %s170 = sphi 0, %s169
    %s186 = sphi 0, %s170
    %s194 = sphi 0, %s196
    %s197 = sphi 0, %s194
    %s198 = sphi 0, %s197
    %s214 = sphi 0, %s198
  $region4: #{split_conv_csa_forward.7} parent=0 // loop_header_branch
    %15 = sbr.rel (%p13) target = $region8
  $region5: #{split_conv_csa_forward.7} parent=0 // loop_body
    %s17 = ssub.s32 %s12, 1
    %s18 = ssub.s32 %s12, 2
    %s25 = sadd.s32 1, %s20
    %p26 = scmp.ge.s32.totalorder %s25, 10
    %s27 = scalar_select %p26, 0, %s25
    %s28 = sadd.s32 1, %s19
    %s29 = scalar_select %p26, %s28, %s19
    %p30 = scmp.ge.s32.totalorder %s29, 2
    %s31 = scalar_select %p30, 0, %s29
    %s32 = ssub.s32 %s19, %s31
    %s33 = ssub.s32 %s20, %s27
    %s34 = sor.u32 %s32, %s33
    %p35 = scmp.eq.s32.totalorder %s34, 0
    %s37 = sadd.s32 %s36, 1
    %s38 = scalar_select %p35, %s36, %s37
    %p41 = pneg %p35
    %p42 = scmp.eq.s32.totalorder %s12, 19
    %p43 = por %p41, %p42
    %p44 = scmp.ne.s32.totalorder %s36, %s39
    %p45 = scmp.eq.s32.totalorder %s12, 0
    %p46 = por %p44, %p45
    %p47 = scmp.ne.s32.totalorder %s36, %s39
    %p48 = scmp.eq.s32.totalorder %s17, 19
    %p49 = por %p47, %p48
    %p50 = scmp.ne.s32.totalorder %s39, %s40
    %p51 = scmp.eq.s32.totalorder %s17, 0
    %p52 = por %p50, %p51
    %p53 = scmp.ne.s32.totalorder %s39, %s40
    %p54 = scmp.eq.s32.totalorder %s18, 19
    %p55 = por %p53, %p54
    %p57 = scmp.ne.s32.totalorder %s40, %s56
    %p58 = scmp.eq.s32.totalorder %s18, 0
    %p59 = por %p57, %p58
    %s60 = ssub.s32 %s19, %s31
    %p61 = scmp.eq.s32.totalorder %s60, 0
    %s63 = sadd.s32 %s62, 1
    %s64 = scalar_select %p61, %s62, %s63
    %p67 = pneg %p61
    %p68 = scmp.eq.s32.totalorder %s12, 19
    %p69 = por %p67, %p68
    %p70 = scmp.ne.s32.totalorder %s62, %s65
    %p71 = scmp.eq.s32.totalorder %s12, 0
    %p72 = por %p70, %p71
    %p73 = scmp.ne.s32.totalorder %s62, %s65
    %p74 = scmp.eq.s32.totalorder %s17, 19
    %p75 = por %p73, %p74
    %p76 = scmp.ne.s32.totalorder %s65, %s66
    %p77 = scmp.eq.s32.totalorder %s17, 0
    %p78 = por %p76, %p77
    %p79 = scmp.ne.s32.totalorder %s65, %s66
    %p80 = scmp.eq.s32.totalorder %s18, 19
    %p81 = por %p79, %p80
    %p83 = scmp.ne.s32.totalorder %s66, %s82
    %p84 = scmp.eq.s32.totalorder %s18, 0
    %p85 = por %p83, %p84
    %s86 = ssub.s32 %s19, %s31
    %p87 = scmp.eq.s32.totalorder %s86, 0
    %s89 = sadd.s32 %s88, 1
    %s90 = scalar_select %p87, %s88, %s89
    %p93 = pneg %p87
    %p94 = scmp.eq.s32.totalorder %s12, 19
    %p95 = por %p93, %p94
    %p96 = scmp.ne.s32.totalorder %s88, %s91
    %p97 = scmp.eq.s32.totalorder %s12, 0
    %p98 = por %p96, %p97
    %p99 = scmp.ne.s32.totalorder %s88, %s91
    %p100 = scmp.eq.s32.totalorder %s17, 19
    %p101 = por %p99, %p100
    %p102 = scmp.ne.s32.totalorder %s91, %s92
    %p103 = scmp.eq.s32.totalorder %s17, 0
    %p104 = por %p102, %p103
    %p105 = scmp.ne.s32.totalorder %s91, %s92
    %p106 = scmp.eq.s32.totalorder %s18, 19
    %p107 = por %p105, %p106
    %p109 = scmp.ne.s32.totalorder %s92, %s108
    %p110 = scmp.eq.s32.totalorder %s18, 0
    %p111 = por %p109, %p110
    %s112 = ssub.s32 %s19, %s31
    %p113 = scmp.eq.s32.totalorder %s112, 0
    %s115 = sadd.s32 %s114, 1
    %s116 = scalar_select %p113, %s114, %s115
    %p119 = pneg %p113
    %p120 = scmp.eq.s32.totalorder %s12, 19
    %p121 = por %p119, %p120
    %p122 = scmp.ne.s32.totalorder %s114, %s117
    %p123 = scmp.eq.s32.totalorder %s12, 0
    %p124 = por %p122, %p123
    %p125 = scmp.ne.s32.totalorder %s114, %s117
    %p126 = scmp.eq.s32.totalorder %s17, 19
    %p127 = por %p125, %p126
    %p128 = scmp.ne.s32.totalorder %s117, %s118
    %p129 = scmp.eq.s32.totalorder %s17, 0
    %p130 = por %p128, %p129
    %p131 = scmp.ne.s32.totalorder %s117, %s118
    %p132 = scmp.eq.s32.totalorder %s18, 19
    %p133 = por %p131, %p132
    %p135 = scmp.ne.s32.totalorder %s118, %s134
    %p136 = scmp.eq.s32.totalorder %s18, 0
    %p137 = por %p135, %p136
    %s138 = ssub.s32 %s19, %s31
    %p139 = scmp.eq.s32.totalorder %s138, 0
    %s141 = sadd.s32 %s140, 1
    %s142 = scalar_select %p139, %s140, %s141
    %p145 = pneg %p139
    %p146 = scmp.eq.s32.totalorder %s12, 19
    %p147 = por %p145, %p146
    %p148 = scmp.ne.s32.totalorder %s140, %s143
    %p149 = scmp.eq.s32.totalorder %s12, 0
    %p150 = por %p148, %p149
    %p151 = scmp.ne.s32.totalorder %s140, %s143
    %p152 = scmp.eq.s32.totalorder %s17, 19
    %p153 = por %p151, %p152
    %p154 = scmp.ne.s32.totalorder %s143, %s144
    %p155 = scmp.eq.s32.totalorder %s17, 0
    %p156 = por %p154, %p155
    %p157 = scmp.ne.s32.totalorder %s143, %s144
    %p158 = scmp.eq.s32.totalorder %s18, 19
    %p159 = por %p157, %p158
    %p161 = scmp.ne.s32.totalorder %s144, %s160
    %p162 = scmp.eq.s32.totalorder %s18, 0
    %p163 = por %p161, %p162
    %s164 = ssub.s32 %s20, %s27
    %p165 = scmp.eq.s32.totalorder %s164, 0
    %s167 = sadd.s32 %s166, 1
    %s168 = scalar_select %p165, %s166, %s167
    %p171 = pneg %p165
    %p172 = scmp.eq.s32.totalorder %s12, 19
    %p173 = por %p171, %p172
    %p174 = scmp.ne.s32.totalorder %s166, %s169
    %p175 = scmp.eq.s32.totalorder %s12, 0
    %p176 = por %p174, %p175
    %p177 = scmp.ne.s32.totalorder %s166, %s169
    %p178 = scmp.eq.s32.totalorder %s17, 19
    %p179 = por %p177, %p178
    %p180 = scmp.ne.s32.totalorder %s169, %s170
    %p181 = scmp.eq.s32.totalorder %s17, 0
    %p182 = por %p180, %p181
    %p183 = scmp.ne.s32.totalorder %s169, %s170
    %p184 = scmp.eq.s32.totalorder %s18, 19
    %p185 = por %p183, %p184
    %p187 = scmp.ne.s32.totalorder %s170, %s186
    %p188 = scmp.eq.s32.totalorder %s18, 0
    %p189 = por %p187, %p188
    %s190 = ssub.s32 %s19, %s31
    %s191 = ssub.s32 %s20, %s27
    %s192 = sor.u32 %s190, %s191
    %p193 = scmp.eq.s32.totalorder %s192, 0
    %s195 = sadd.s32 %s194, 1
    %s196 = scalar_select %p193, %s194, %s195
    %p199 = pneg %p193
    %p200 = scmp.eq.s32.totalorder %s12, 19
    %p201 = por %p199, %p200
    %p202 = scmp.ne.s32.totalorder %s194, %s197
    %p203 = scmp.eq.s32.totalorder %s12, 0
    %p204 = por %p202, %p203
    %p205 = scmp.ne.s32.totalorder %s194, %s197
    %p206 = scmp.eq.s32.totalorder %s17, 19
    %p207 = por %p205, %p206
    %p208 = scmp.ne.s32.totalorder %s197, %s198
    %p209 = scmp.eq.s32.totalorder %s17, 0
    %p210 = por %p208, %p209
    %p211 = scmp.ne.s32.totalorder %s197, %s198
    %p212 = scmp.eq.s32.totalorder %s18, 19
    %p213 = por %p211, %p212
    %p215 = scmp.ne.s32.totalorder %s198, %s214
    %p216 = scmp.eq.s32.totalorder %s18, 0
    %p217 = por %p215, %p216
    %p218 = scmp.le.s32.totalorder 1, %s12
    %p219 = scmp.lt.s32.totalorder %s12, 21
    %p220 = pnand %p218, %p219
    %p221 = pneg %p220
    // Predicated region
    $region9: #{split_conv_csa_forward.7} parent=5 // pred_check
      _
    $region10: #{split_conv_csa_forward.7} parent=5 // pred_check_branch
      %223 = sbr.rel (%p220) target = $region12
    $region11: #{split_conv_csa_forward.7} parent=5 // pred_region
      %s224 = ssub.s32 %s12, 1
    $region12: #{split_conv_csa_forward.7} parent=5 // pred_fallthru
      _
    %p225 = scmp.lt.s32.totalorder %s12, 20
    // Predicated region
    $region13: #{split_conv_csa_forward.7} parent=5 // pred_check
      %p226 = pneg %p225
    $region14: #{split_conv_csa_forward.7} parent=5 // pred_check_branch
      %228 = sbr.rel (%p226) target = $region16
    $region15: #{split_conv_csa_forward.7} parent=5 // pred_region
      // Predicated region
      $region17: #{split_conv_csa_forward.7} parent=15 // pred_check
        %p229 = pneg %p46
      $region18: #{split_conv_csa_forward.7} parent=15 // pred_check_branch
        %231 = sbr.rel (%p229) target = $region20
      $region19: #{split_conv_csa_forward.7} parent=15 // pred_region
        %p232 = scmp.lt.s32.totalorder %s19, 1
        %s233 = scalar_select %p232, %s19, 1
        %p234 = scmp.lt.s32.totalorder %s20, 9
        %s235 = scalar_select %p234, %s20, 9
        %s236 = smul.addr %s235, 16
        %s237 = smul.addr %s233, 160
        %s238 = sadd.s32 %s236, %s237
        %s239 = smul.addr %s238, 8
        %s240 = scalar_lea.vmem %s0, %s239
      $region20: #{split_conv_csa_forward.7} parent=15 // pred_fallthru
        _
      // Predicated region
      $region21: #{split_conv_csa_forward.7} parent=15 // pred_check
        %p241 = pneg %p72
      $region22: #{split_conv_csa_forward.7} parent=15 // pred_check_branch
        %243 = sbr.rel (%p241) target = $region24
      $region23: #{split_conv_csa_forward.7} parent=15 // pred_region
        %p244 = scmp.lt.s32.totalorder %s19, 1
        %s245 = scalar_select %p244, %s19, 1
        %s246 = scalar_lea.vmem %s1, %s245
      $region24: #{split_conv_csa_forward.7} parent=15 // pred_fallthru
        _
      // Predicated region
      $region25: #{split_conv_csa_forward.7} parent=15 // pred_check
        %p247 = pneg %p98
      $region26: #{split_conv_csa_forward.7} parent=15 // pred_check_branch
        %249 = sbr.rel (%p247) target = $region28
      $region27: #{split_conv_csa_forward.7} parent=15 // pred_region
        %p250 = scmp.lt.s32.totalorder %s19, 1
        %s251 = scalar_select %p250, %s19, 1
        %s252 = scalar_lea.vmem %s2, %s251
      $region28: #{split_conv_csa_forward.7} parent=15 // pred_fallthru
        _
      // Predicated region
      $region29: #{split_conv_csa_forward.7} parent=15 // pred_check
        %p253 = pneg %p124
      $region30: #{split_conv_csa_forward.7} parent=15 // pred_check_branch
        %255 = sbr.rel (%p253) target = $region32
      $region31: #{split_conv_csa_forward.7} parent=15 // pred_region
        %p256 = scmp.lt.s32.totalorder %s19, 1
        %s257 = scalar_select %p256, %s19, 1
        %s258 = scalar_lea.vmem %s3, %s257
      $region32: #{split_conv_csa_forward.7} parent=15 // pred_fallthru
        _
      // Predicated region
      $region33: #{split_conv_csa_forward.7} parent=15 // pred_check
        %p259 = pneg %p150
      $region34: #{split_conv_csa_forward.7} parent=15 // pred_check_branch
        %261 = sbr.rel (%p259) target = $region36
      $region35: #{split_conv_csa_forward.7} parent=15 // pred_region
        %p262 = scmp.lt.s32.totalorder %s19, 1
        %s263 = scalar_select %p262, %s19, 1
        %s264 = scalar_lea.vmem %s4, %s263
      $region36: #{split_conv_csa_forward.7} parent=15 // pred_fallthru
        _
      // Predicated region
      $region37: #{split_conv_csa_forward.7} parent=15 // pred_check
        %p265 = pneg %p176
      $region38: #{split_conv_csa_forward.7} parent=15 // pred_check_branch
        %267 = sbr.rel (%p265) target = $region40
      $region39: #{split_conv_csa_forward.7} parent=15 // pred_region
        %p268 = scmp.lt.s32.totalorder %s20, 9
        %s269 = scalar_select %p268, %s20, 9
        %s270 = smul.addr %s269, 16
        %s271 = smul.addr %s270, 8
        %s272 = scalar_lea.vmem %s5, %s271
      $region40: #{split_conv_csa_forward.7} parent=15 // pred_fallthru
        _
    $region16: #{split_conv_csa_forward.7} parent=5 // pred_fallthru
      _
    %p273 = scmp.le.s32.totalorder 1, %s12
    %p274 = scmp.lt.s32.totalorder %s12, 21
    %p275 = pnand %p273, %p274
    %p276 = pneg %p275
    // Predicated region
    $region41: #{split_conv_csa_forward.7} parent=5 // pred_check
      _
    $region42: #{split_conv_csa_forward.7} parent=5 // pred_check_branch
      %278 = sbr.rel (%p275) target = $region44
    $region43: #{split_conv_csa_forward.7} parent=5 // pred_region
      %s279 = ssub.s32 %s12, 1
      %p280 = scmp.lt.s32.totalorder %s21, 1
      %s281 = scalar_select %p280, %s21, 1
      %p282 = scmp.lt.s32.totalorder %s22, 9
      %s283 = scalar_select %p282, %s22, 9
      %s284 = smul.addr %s283, 16
      %s285 = smul.addr %s281, 160
      %s286 = sadd.s32 %s284, %s285
      %s287 = smul.addr %s286, 8
      %s288 = scalar_lea.vmem %s0, %s287
      %p289 = pneg %p52
      %p290 = pneg %p49
      %p291 = scmp.lt.s32.totalorder %s21, 1
      %s292 = scalar_select %p291, %s21, 1
      %s293 = scalar_lea.vmem %s1, %s292
      %p294 = pneg %p78
      %p295 = pneg %p75
      %p296 = scmp.lt.s32.totalorder %s21, 1
      %s297 = scalar_select %p296, %s21, 1
      %s298 = scalar_lea.vmem %s2, %s297
      %p299 = pneg %p104
      %p300 = pneg %p101
      %p301 = scmp.lt.s32.totalorder %s21, 1
      %s302 = scalar_select %p301, %s21, 1
      %s303 = scalar_lea.vmem %s3, %s302
      %p304 = pneg %p130
      %p305 = pneg %p127
      %p306 = scmp.lt.s32.totalorder %s21, 1
      %s307 = scalar_select %p306, %s21, 1
      %s308 = scalar_lea.vmem %s4, %s307
      %p309 = pneg %p156
      %p310 = pneg %p153
      %p311 = scmp.lt.s32.totalorder %s22, 9
      %s312 = scalar_select %p311, %s22, 9
      %s313 = smul.addr %s312, 16
      %s314 = smul.addr %s313, 8
      %s315 = scalar_lea.vmem %s5, %s314
      %p316 = pneg %p182
      %p317 = pneg %p179
      %p318 = pneg %p210
      %p319 = pneg %p207
      %p320 = scmp.lt.s32.totalorder %s21, 1
      %s321 = scalar_select %p320, %s21, 1
      %p322 = scmp.lt.s32.totalorder %s22, 9
      %s323 = scalar_select %p322, %s22, 9
      %s324 = smul.addr %s323, 16
      %s325 = smul.addr %s321, 160
      %s326 = sadd.s32 %s324, %s325
      %s327 = smul.addr %s326, 4
      %s328 = scalar_lea.vmem %s6, %s327
      %p329 = scmp.lt.s32.totalorder %s21, 1
      %s330 = scalar_select %p329, %s21, 1
      %p331 = scmp.lt.s32.totalorder %s22, 9
      %s332 = scalar_select %p331, %s22, 9
      %s333 = smul.addr %s332, 16
      %s334 = smul.addr %s330, 160
      %s335 = sadd.s32 %s333, %s334
      %s336 = smul.addr %s335, 8
      %s337 = scalar_lea.vmem %s0, %s336
      %p338 = scmp.lt.s32.totalorder %s21, 1
      %s339 = scalar_select %p338, %s21, 1
      %s340 = scalar_lea.vmem %s1, %s339
      %p341 = scmp.lt.s32.totalorder %s21, 1
      %s342 = scalar_select %p341, %s21, 1
      %s343 = scalar_lea.vmem %s2, %s342
      %p344 = scmp.lt.s32.totalorder %s21, 1
      %s345 = scalar_select %p344, %s21, 1
      %s346 = scalar_lea.vmem %s3, %s345
      %p347 = scmp.lt.s32.totalorder %s21, 1
      %s348 = scalar_select %p347, %s21, 1
      %s349 = scalar_lea.vmem %s4, %s348
      %p350 = scmp.lt.s32.totalorder %s22, 9
      %s351 = scalar_select %p350, %s22, 9
      %s352 = smul.addr %s351, 16
      %s353 = smul.addr %s352, 8
      %s354 = scalar_lea.vmem %s5, %s353
      %p355 = scmp.lt.s32.totalorder %s21, 1
      %s356 = scalar_select %p355, %s21, 1
      %p357 = scmp.lt.s32.totalorder %s22, 9
      %s358 = scalar_select %p357, %s22, 9
      %s359 = smul.addr %s358, 16
      %s360 = smul.addr %s356, 160
      %s361 = sadd.s32 %s359, %s360
      %s362 = smul.addr %s361, 4
      %s363 = scalar_lea.vmem %s6, %s362
      %v364 = vld [vmem:[%s337] sm:$0xff]
      %v365 = vld [vmem:[%s337 + $0x8] sm:$0xff]
      %v366 = vld [vmem:[%s337 + $0x10] sm:$0xff]
      %v367 = vld [vmem:[%s337 + $0x18] sm:$0xff]
      %v368 = vld [vmem:[%s337 + $0x20] sm:$0xff]
      %v369 = vld [vmem:[%s337 + $0x28] sm:$0xff]
      %v370 = vld [vmem:[%s337 + $0x30] sm:$0xff]
      %v371 = vld [vmem:[%s337 + $0x38] sm:$0xff]
      %v372 = vld [vmem:[%s337 + $0x40] sm:$0xff]
      %v373 = vld [vmem:[%s337 + $0x48] sm:$0xff]
      %v374 = vld [vmem:[%s337 + $0x50] sm:$0xff]
      %v375 = vld [vmem:[%s337 + $0x58] sm:$0xff]
      %v376 = vld [vmem:[%s337 + $0x60] sm:$0xff]
      %v377 = vld [vmem:[%s337 + $0x68] sm:$0xff]
      %v378 = vld [vmem:[%s337 + $0x70] sm:$0xff]
      %v379 = vld [vmem:[%s337 + $0x78] sm:$0xff]
      %v380 = vld [vmem:[%s340] sm:$0x1]
      %v381 = vmul.f32 %v380, 0.001953125
      %v382 = vld [vmem:[%s343] sm:$0x1]
      %v383 = vmul.f32 %v382, 0.001953125
      %v384 = vmul.f32 %v381, %v381
      %v385 = vsub.f32 %v383, %v384
      %v386 = vmax.f32 %v385, 0.0
      %v388 = vlaneseq
      %v389 = vshrl.u32 %v388, 7
      %v390 = vsub.s32 0, %v389
      %v391 = vrot.slane %v381, %v390
      %v393 = vsub.f32 %v364, %v391
      %v394 = vsub.f32 %v365, %v391
      %v395 = vsub.f32 %v366, %v391
      %v396 = vsub.f32 %v367, %v391
      %v397 = vsub.f32 %v368, %v391
      %v398 = vsub.f32 %v369, %v391
      %v399 = vsub.f32 %v370, %v391
      %v400 = vsub.f32 %v371, %v391
      %v401 = vsub.f32 %v372, %v391
      %v402 = vsub.f32 %v373, %v391
      %v403 = vsub.f32 %v374, %v391
      %v404 = vsub.f32 %v375, %v391
      %v405 = vsub.f32 %v376, %v391
      %v406 = vsub.f32 %v377, %v391
      %v407 = vsub.f32 %v378, %v391
      %v408 = vsub.f32 %v379, %v391
      %v409 = vadd.f32 %v386, 1e-05
      %v410 = vrsqrt.pop %v409
      %v412 = vlaneseq
      %v413 = vshrl.u32 %v412, 7
      %v414 = vsub.s32 0, %v413
      %v415 = vrot.slane %v410, %v414
      %v417 = vmul.f32 %v393, %v415
      %v418 = vmul.f32 %v394, %v415
      %v419 = vmul.f32 %v395, %v415
      %v420 = vmul.f32 %v396, %v415
      %v421 = vmul.f32 %v397, %v415
      %v422 = vmul.f32 %v398, %v415
      %v423 = vmul.f32 %v399, %v415
      %v424 = vmul.f32 %v400, %v415
      %v425 = vmul.f32 %v401, %v415
      %v426 = vmul.f32 %v402, %v415
      %v427 = vmul.f32 %v403, %v415
      %v428 = vmul.f32 %v404, %v415
      %v429 = vmul.f32 %v405, %v415
      %v430 = vmul.f32 %v406, %v415
      %v431 = vmul.f32 %v407, %v415
      %v432 = vmul.f32 %v408, %v415
      %v433 = vld [vmem:[%s346] sm:$0x1]
      %v435 = vlaneseq
      %v436 = vshrl.u32 %v435, 7
      %v437 = vsub.s32 0, %v436
      %v438 = vrot.slane %v433, %v437
      %v440 = vmul.f32 %v417, %v438
      %v441 = vmul.f32 %v418, %v438
      %v442 = vmul.f32 %v419, %v438
      %v443 = vmul.f32 %v420, %v438
      %v444 = vmul.f32 %v421, %v438
      %v445 = vmul.f32 %v422, %v438
      %v446 = vmul.f32 %v423, %v438
      %v447 = vmul.f32 %v424, %v438
      %v448 = vmul.f32 %v425, %v438
      %v449 = vmul.f32 %v426, %v438
      %v450 = vmul.f32 %v427, %v438
      %v451 = vmul.f32 %v428, %v438
      %v452 = vmul.f32 %v429, %v438
      %v453 = vmul.f32 %v430, %v438
      %v454 = vmul.f32 %v431, %v438
      %v455 = vmul.f32 %v432, %v438
      %v456 = vld [vmem:[%s349] sm:$0x1]
      %v458 = vlaneseq
      %v459 = vshrl.u32 %v458, 7
      %v460 = vsub.s32 0, %v459
      %v461 = vrot.slane %v456, %v460
      %v463 = vadd.f32 %v440, %v461
      %v464 = vadd.f32 %v441, %v461
      %v465 = vadd.f32 %v442, %v461
      %v466 = vadd.f32 %v443, %v461
      %v467 = vadd.f32 %v444, %v461
      %v468 = vadd.f32 %v445, %v461
      %v469 = vadd.f32 %v446, %v461
      %v470 = vadd.f32 %v447, %v461
      %v471 = vadd.f32 %v448, %v461
      %v472 = vadd.f32 %v449, %v461
      %v473 = vadd.f32 %v450, %v461
      %v474 = vadd.f32 %v451, %v461
      %v475 = vadd.f32 %v452, %v461
      %v476 = vadd.f32 %v453, %v461
      %v477 = vadd.f32 %v454, %v461
      %v478 = vadd.f32 %v455, %v461
      %vm479 = vcmp.gt.f32.partialorder %v463, 0.0
      %vm480 = vcmp.gt.f32.partialorder %v464, 0.0
      %vm481 = vcmp.gt.f32.partialorder %v465, 0.0
      %vm482 = vcmp.gt.f32.partialorder %v466, 0.0
      %vm483 = vcmp.gt.f32.partialorder %v467, 0.0
      %vm484 = vcmp.gt.f32.partialorder %v468, 0.0
      %vm485 = vcmp.gt.f32.partialorder %v469, 0.0
      %vm486 = vcmp.gt.f32.partialorder %v470, 0.0
      %vm487 = vcmp.gt.f32.partialorder %v471, 0.0
      %vm488 = vcmp.gt.f32.partialorder %v472, 0.0
      %vm489 = vcmp.gt.f32.partialorder %v473, 0.0
      %vm490 = vcmp.gt.f32.partialorder %v474, 0.0
      %vm491 = vcmp.gt.f32.partialorder %v475, 0.0
      %vm492 = vcmp.gt.f32.partialorder %v476, 0.0
      %vm493 = vcmp.gt.f32.partialorder %v477, 0.0
      %vm494 = vcmp.gt.f32.partialorder %v478, 0.0
      %v495 = vmul.f32 %v463, 0.01
      %v496 = vmul.f32 %v464, 0.01
      %v497 = vmul.f32 %v465, 0.01
      %v498 = vmul.f32 %v466, 0.01
      %v499 = vmul.f32 %v467, 0.01
      %v500 = vmul.f32 %v468, 0.01
      %v501 = vmul.f32 %v469, 0.01
      %v502 = vmul.f32 %v470, 0.01
      %v503 = vmul.f32 %v471, 0.01
      %v504 = vmul.f32 %v472, 0.01
      %v505 = vmul.f32 %v473, 0.01
      %v506 = vmul.f32 %v474, 0.01
      %v507 = vmul.f32 %v475, 0.01
      %v508 = vmul.f32 %v476, 0.01
      %v509 = vmul.f32 %v477, 0.01
      %v510 = vmul.f32 %v478, 0.01
      %v511 = vsel %vm479, %v463, %v495
      %v512 = vsel %vm480, %v464, %v496
      %v513 = vsel %vm481, %v465, %v497
      %v514 = vsel %vm482, %v466, %v498
      %v515 = vsel %vm483, %v467, %v499
      %v516 = vsel %vm484, %v468, %v500
      %v517 = vsel %vm485, %v469, %v501
      %v518 = vsel %vm486, %v470, %v502
      %v519 = vsel %vm487, %v471, %v503
      %v520 = vsel %vm488, %v472, %v504
      %v521 = vsel %vm489, %v473, %v505
      %v522 = vsel %vm490, %v474, %v506
      %v523 = vsel %vm491, %v475, %v507
      %v524 = vsel %vm492, %v476, %v508
      %v525 = vsel %vm493, %v477, %v509
      %v526 = vsel %vm494, %v478, %v510
      %v527 = vld [vmem:[%s354] sm:$0xff]
      %v528 = vld [vmem:[%s354 + $0x8] sm:$0xff]
      %v529 = vld [vmem:[%s354 + $0x10] sm:$0xff]
      %v530 = vld [vmem:[%s354 + $0x18] sm:$0xff]
      %v531 = vld [vmem:[%s354 + $0x20] sm:$0xff]
      %v532 = vld [vmem:[%s354 + $0x28] sm:$0xff]
      %v533 = vld [vmem:[%s354 + $0x30] sm:$0xff]
      %v534 = vld [vmem:[%s354 + $0x38] sm:$0xff]
      %v535 = vld [vmem:[%s354 + $0x40] sm:$0xff]
      %v536 = vld [vmem:[%s354 + $0x48] sm:$0xff]
      %v537 = vld [vmem:[%s354 + $0x50] sm:$0xff]
      %v538 = vld [vmem:[%s354 + $0x58] sm:$0xff]
      %v539 = vld [vmem:[%s354 + $0x60] sm:$0xff]
      %v540 = vld [vmem:[%s354 + $0x68] sm:$0xff]
      %v541 = vld [vmem:[%s354 + $0x70] sm:$0xff]
      %v542 = vld [vmem:[%s354 + $0x78] sm:$0xff]
      %544 = vset.pattern.permute.xlu0 0
      %545 = vperm.xlu0 %544, %v527
      %v546 = vpop.permute.xlu0 %545
      %549 = vset.pattern.permute.xlu0 0
      %550 = vperm.xlu0 %549, %v528
      %v551 = vpop.permute.xlu0 %550
      %554 = vset.pattern.permute.xlu0 0
      %555 = vperm.xlu0 %554, %v529
      %v556 = vpop.permute.xlu0 %555
      %559 = vset.pattern.permute.xlu0 0
      %560 = vperm.xlu0 %559, %v530
      %v561 = vpop.permute.xlu0 %560
      %564 = vset.pattern.permute.xlu0 0
      %565 = vperm.xlu0 %564, %v531
      %v566 = vpop.permute.xlu0 %565
      %569 = vset.pattern.permute.xlu0 0
      %570 = vperm.xlu0 %569, %v532
      %v571 = vpop.permute.xlu0 %570
      %574 = vset.pattern.permute.xlu0 0
      %575 = vperm.xlu0 %574, %v533
      %v576 = vpop.permute.xlu0 %575
      %579 = vset.pattern.permute.xlu0 0
      %580 = vperm.xlu0 %579, %v534
      %v581 = vpop.permute.xlu0 %580
      %584 = vset.pattern.permute.xlu0 0
      %585 = vperm.xlu0 %584, %v535
      %v586 = vpop.permute.xlu0 %585
      %589 = vset.pattern.permute.xlu0 0
      %590 = vperm.xlu0 %589, %v536
      %v591 = vpop.permute.xlu0 %590
      %594 = vset.pattern.permute.xlu0 0
      %595 = vperm.xlu0 %594, %v537
      %v596 = vpop.permute.xlu0 %595
      %599 = vset.pattern.permute.xlu0 0
      %600 = vperm.xlu0 %599, %v538
      %v601 = vpop.permute.xlu0 %600
      %604 = vset.pattern.permute.xlu0 0
      %605 = vperm.xlu0 %604, %v539
      %v606 = vpop.permute.xlu0 %605
      %609 = vset.pattern.permute.xlu0 0
      %610 = vperm.xlu0 %609, %v540
      %v611 = vpop.permute.xlu0 %610
      %614 = vset.pattern.permute.xlu0 0
      %615 = vperm.xlu0 %614, %v541
      %v616 = vpop.permute.xlu0 %615
      %619 = vset.pattern.permute.xlu0 0
      %620 = vperm.xlu0 %619, %v542
      %v621 = vpop.permute.xlu0 %620
      %v623 = vmul.f32 %v511, %v546
      %v624 = vmul.f32 %v512, %v551
      %v625 = vmul.f32 %v513, %v556
      %v626 = vmul.f32 %v514, %v561
      %v627 = vmul.f32 %v515, %v566
      %v628 = vmul.f32 %v516, %v571
      %v629 = vmul.f32 %v517, %v576
      %v630 = vmul.f32 %v518, %v581
      %v631 = vmul.f32 %v519, %v586
      %v632 = vmul.f32 %v520, %v591
      %v633 = vmul.f32 %v521, %v596
      %v634 = vmul.f32 %v522, %v601
      %v635 = vmul.f32 %v523, %v606
      %v636 = vmul.f32 %v524, %v611
      %v637 = vmul.f32 %v525, %v616
      %v638 = vmul.f32 %v526, %v621
      %v639 = vpack.c.bf16 %v624, %v623
      %v640 = vpack.c.bf16 %v626, %v625
      %v641 = vpack.c.bf16 %v628, %v627
      %v642 = vpack.c.bf16 %v630, %v629
      %v643 = vpack.c.bf16 %v632, %v631
      %v644 = vpack.c.bf16 %v634, %v633
      %v645 = vpack.c.bf16 %v636, %v635
      %v646 = vpack.c.bf16 %v638, %v637
      %v655 = vunpack.c.l.b16 %v639
      %v656 = vunpack.c.h.b16 %v639
      %v657 = vunpack.c.l.b16 %v640
      %v658 = vunpack.c.h.b16 %v640
      %v659 = vunpack.c.l.b16 %v641
      %v660 = vunpack.c.h.b16 %v641
      %v661 = vunpack.c.l.b16 %v642
      %v662 = vunpack.c.h.b16 %v642
      %v663 = vunpack.c.l.b16 %v643
      %v664 = vunpack.c.h.b16 %v643
      %v665 = vunpack.c.l.b16 %v644
      %v666 = vunpack.c.h.b16 %v644
      %v667 = vunpack.c.l.b16 %v645
      %v668 = vunpack.c.h.b16 %v645
      %v669 = vunpack.c.l.b16 %v646
      %v670 = vunpack.c.h.b16 %v646
      %v671 = vpack.c.b16 %v655, %v655
      %v672 = vpack.c.b16 %v656, %v656
      %v673 = vpack.c.b16 %v657, %v657
      %v674 = vpack.c.b16 %v658, %v658
      %v675 = vpack.c.b16 %v659, %v659
      %v676 = vpack.c.b16 %v660, %v660
      %v677 = vpack.c.b16 %v661, %v661
      %v678 = vpack.c.b16 %v662, %v662
      %v679 = vpack.c.b16 %v663, %v663
      %v680 = vpack.c.b16 %v664, %v664
      %v681 = vpack.c.b16 %v665, %v665
      %v682 = vpack.c.b16 %v666, %v666
      %v683 = vpack.c.b16 %v667, %v667
      %v684 = vpack.c.b16 %v668, %v668
      %v685 = vpack.c.b16 %v669, %v669
      %v686 = vpack.c.b16 %v670, %v670
      %703 = vst [vmem:[%s363] sm:$0xf] %v671
      %704 = vst [vmem:[%s363 + $0x4] sm:$0xf] %v672
      %705 = vst [vmem:[%s363 + $0x8] sm:$0xf] %v673
      %706 = vst [vmem:[%s363 + $0xc] sm:$0xf] %v674
      %707 = vst [vmem:[%s363 + $0x10] sm:$0xf] %v675
      %708 = vst [vmem:[%s363 + $0x14] sm:$0xf] %v676
      %709 = vst [vmem:[%s363 + $0x18] sm:$0xf] %v677
      %710 = vst [vmem:[%s363 + $0x1c] sm:$0xf] %v678
      %711 = vst [vmem:[%s363 + $0x20] sm:$0xf] %v679
      %712 = vst [vmem:[%s363 + $0x24] sm:$0xf] %v680
      %713 = vst [vmem:[%s363 + $0x28] sm:$0xf] %v681
      %714 = vst [vmem:[%s363 + $0x2c] sm:$0xf] %v682
      %715 = vst [vmem:[%s363 + $0x30] sm:$0xf] %v683
      %716 = vst [vmem:[%s363 + $0x34] sm:$0xf] %v684
      %717 = vst [vmem:[%s363 + $0x38] sm:$0xf] %v685
      %718 = vst [vmem:[%s363 + $0x3c] sm:$0xf] %v686
      %p719 = scmp.lt.s32.totalorder %s21, 1
      %s720 = scalar_select %p719, %s21, 1
      %p721 = scmp.lt.s32.totalorder %s22, 9
      %s722 = scalar_select %p721, %s22, 9
      %s723 = smul.addr %s722, 16
      %s724 = smul.addr %s720, 160
      %s725 = sadd.s32 %s723, %s724
      %s726 = smul.addr %s725, 4
      %s727 = scalar_lea.vmem %s6, %s726
      // Predicated region
      $region45: #{split_conv_csa_forward.7} parent=43 // pred_check
        %p728 = pneg %p207
      $region46: #{split_conv_csa_forward.7} parent=43 // pred_check_branch
        %730 = sbr.rel (%p728) target = $region48
      $region47: #{split_conv_csa_forward.7} parent=43 // pred_region
        _
      $region48: #{split_conv_csa_forward.7} parent=43 // pred_fallthru
        _
    $region44: #{split_conv_csa_forward.7} parent=5 // pred_fallthru
      _
    %p731 = scmp.le.s32.totalorder 2, %s12
    // Predicated region
    $region49: #{split_conv_csa_forward.7} parent=5 // pred_check
      %p732 = pneg %p731
    $region50: #{split_conv_csa_forward.7} parent=5 // pred_check_branch
      %734 = sbr.rel (%p732) target = $region52
    $region51: #{split_conv_csa_forward.7} parent=5 // pred_region
      %s735 = ssub.s32 %s12, 2
      // Predicated region
      $region53: #{split_conv_csa_forward.7} parent=51 // pred_check
        %p736 = pneg %p213
      $region54: #{split_conv_csa_forward.7} parent=51 // pred_check_branch
        %738 = sbr.rel (%p736) target = $region56
      $region55: #{split_conv_csa_forward.7} parent=51 // pred_region
        %p739 = scmp.lt.s32.totalorder %s23, 1
        %s740 = scalar_select %p739, %s23, 1
        %p741 = scmp.lt.s32.totalorder %s24, 9
        %s742 = scalar_select %p741, %s24, 9
        %s743 = smul.addr %s742, 16
        %s744 = smul.addr %s740, 160
        %s745 = sadd.s32 %s743, %s744
        %s746 = smul.addr %s745, 4
        %s747 = scalar_lea.vmem %s6, %s746
      $region56: #{split_conv_csa_forward.7} parent=51 // pred_fallthru
        _
    $region52: #{split_conv_csa_forward.7} parent=5 // pred_fallthru
      _
  $region6: #{split_conv_csa_forward.7} parent=0 // loop_footer
    %s16 = sadd.s32 1, %s12
  $region7: #{split_conv_csa_forward.7} parent=0 // loop_footer_branch
    %11 = sbr.rel target = $region3
  $region8: #{split_conv_csa_forward.7} parent=0 // loop_exit
    _

// kernel: split_conv_csa_forward.6
$region0: #{split_conv_csa_forward.6}
  #allocation0 [shape = 'u32[]', space=smem, size = 0x4, offset = 0x4, fixed_abs, tag = 'smem constant byte address 0x4 - core index']
  #allocation1 [shape = 'u32[144,128]{1,0:T(1,128)}', space=vmem, size = 0x12000, scoped, tag = 'internal scratch']
  %s0 = inlined_call_operand.vmem [shape: bf16[2,10,128,128], index: 0, kind: input, shape index: {}]
  %s1 = inlined_call_operand.vmem [shape: bf16[1,128,128], index: 1, kind: input, shape index: {}]
  %s2 = inlined_call_operand.vmem [shape: f32[10,128,1], index: 2, kind: input, shape index: {}]
  %s3 = inlined_call_operand.vmem [shape: f32[2,10,128,128], index: 3, kind: output, shape index: {0}]
  %s4 = inlined_call_operand.vmem [shape: f32[2,1,128], index: 4, kind: output, shape index: {1}]
  %s5 = inlined_call_operand.vmem [shape: f32[2,1,128], index: 5, kind: output, shape index: {2}]
  %6 = xla_tuple %s3, %s4, %s5
  %s7 = sld [smem:[#allocation0]]
  $region65: #{split_conv_csa_forward.6} parent=0
    _
  %s9 = ssub.s32 1, %s7
  %s10 = scalar_select 0, %s9, %s7
  loop: start=0, step=1, limit=22
  $region2: #{split_conv_csa_forward.6} parent=0 // loop_pre_header
    _
  $region3: #{split_conv_csa_forward.6} parent=0 // loop_header
    %s12 = sphi 0, %s16
    %p13 = scmp.ge.s32.totalorder %s12, 22
    %s19 = sphi 0, %s31
    %s20 = sphi 0, %s27
    %s21 = sphi 0, %s19
    %s22 = sphi 0, %s20
    %s23 = sphi 0, %s21
    %s24 = sphi 0, %s22
    %s36 = sphi 0, %s38
    %s39 = sphi 0, %s36
    %s40 = sphi 0, %s39
    %s56 = sphi 0, %s40
    %s60 = sphi 0, %s60
    %s62 = sphi 0, %s60
    %s63 = sphi 0, %s62
    %s77 = sphi 0, %s63
    %s83 = sphi 0, %s85
    %s86 = sphi 0, %s83
    %s87 = sphi 0, %s86
    %s103 = sphi 0, %s87
    %s111 = sphi 0, %s113
    %s114 = sphi 0, %s111
    %s115 = sphi 0, %s114
    %s131 = sphi 0, %s115
    %s137 = sphi 0, %s139
    %s140 = sphi 0, %s137
    %s141 = sphi 0, %s140
    %s157 = sphi 0, %s141
    %s163 = sphi 0, %s165
    %s166 = sphi 0, %s163
    %s167 = sphi 0, %s166
    %s183 = sphi 0, %s167
  $region4: #{split_conv_csa_forward.6} parent=0 // loop_header_branch
    %15 = sbr.rel (%p13) target = $region8
  $region5: #{split_conv_csa_forward.6} parent=0 // loop_body
    %s17 = ssub.s32 %s12, 1
    %s18 = ssub.s32 %s12, 2
    %s25 = sadd.s32 1, %s20
    %p26 = scmp.ge.s32.totalorder %s25, 10
    %s27 = scalar_select %p26, 0, %s25
    %s28 = sadd.s32 1, %s19
    %s29 = scalar_select %p26, %s28, %s19
    %p30 = scmp.ge.s32.totalorder %s29, 2
    %s31 = scalar_select %p30, 0, %s29
    %s32 = ssub.s32 %s19, %s31
    %s33 = ssub.s32 %s20, %s27
    %s34 = sor.u32 %s32, %s33
    %p35 = scmp.eq.s32.totalorder %s34, 0
    %s37 = sadd.s32 %s36, 1
    %s38 = scalar_select %p35, %s36, %s37
    %p41 = pneg %p35
    %p42 = scmp.eq.s32.totalorder %s12, 19
    %p43 = por %p41, %p42
    %p44 = scmp.ne.s32.totalorder %s36, %s39
    %p45 = scmp.eq.s32.totalorder %s12, 0
    %p46 = por %p44, %p45
    %p47 = scmp.ne.s32.totalorder %s36, %s39
    %p48 = scmp.eq.s32.totalorder %s17, 19
    %p49 = por %p47, %p48
    %p50 = scmp.ne.s32.totalorder %s39, %s40
    %p51 = scmp.eq.s32.totalorder %s17, 0
    %p52 = por %p50, %p51
    %p53 = scmp.ne.s32.totalorder %s39, %s40
    %p54 = scmp.eq.s32.totalorder %s18, 19
    %p55 = por %p53, %p54
    %p57 = scmp.ne.s32.totalorder %s40, %s56
    %p58 = scmp.eq.s32.totalorder %s18, 0
    %p59 = por %p57, %p58
    %s61 = sadd.s32 %s60, 1
    %p64 = scmp.eq.s32.totalorder %s12, 19
    %p65 = scmp.ne.s32.totalorder %s60, %s62
    %p66 = scmp.eq.s32.totalorder %s12, 0
    %p67 = por %p65, %p66
    %p68 = scmp.ne.s32.totalorder %s60, %s62
    %p69 = scmp.eq.s32.totalorder %s17, 19
    %p70 = por %p68, %p69
    %p71 = scmp.ne.s32.totalorder %s62, %s63
    %p72 = scmp.eq.s32.totalorder %s17, 0
    %p73 = por %p71, %p72
    %p74 = scmp.ne.s32.totalorder %s62, %s63
    %p75 = scmp.eq.s32.totalorder %s18, 19
    %p76 = por %p74, %p75
    %p78 = scmp.ne.s32.totalorder %s63, %s77
    %p79 = scmp.eq.s32.totalorder %s18, 0
    %p80 = por %p78, %p79
    %s81 = ssub.s32 %s20, %s27
    %p82 = scmp.eq.s32.totalorder %s81, 0
    %s84 = sadd.s32 %s83, 1
    %s85 = scalar_select %p82, %s83, %s84
    %p88 = pneg %p82
    %p89 = scmp.eq.s32.totalorder %s12, 19
    %p90 = por %p88, %p89
    %p91 = scmp.ne.s32.totalorder %s83, %s86
    %p92 = scmp.eq.s32.totalorder %s12, 0
    %p93 = por %p91, %p92
    %p94 = scmp.ne.s32.totalorder %s83, %s86
    %p95 = scmp.eq.s32.totalorder %s17, 19
    %p96 = por %p94, %p95
    %p97 = scmp.ne.s32.totalorder %s86, %s87
    %p98 = scmp.eq.s32.totalorder %s17, 0
    %p99 = por %p97, %p98
    %p100 = scmp.ne.s32.totalorder %s86, %s87
    %p101 = scmp.eq.s32.totalorder %s18, 19
    %p102 = por %p100, %p101
    %p104 = scmp.ne.s32.totalorder %s87, %s103
    %p105 = scmp.eq.s32.totalorder %s18, 0
    %p106 = por %p104, %p105
    %s107 = ssub.s32 %s19, %s31
    %s108 = ssub.s32 %s20, %s27
    %s109 = sor.u32 %s107, %s108
    %p110 = scmp.eq.s32.totalorder %s109, 0
    %s112 = sadd.s32 %s111, 1
    %s113 = scalar_select %p110, %s111, %s112
    %p116 = pneg %p110
    %p117 = scmp.eq.s32.totalorder %s12, 19
    %p118 = por %p116, %p117
    %p119 = scmp.ne.s32.totalorder %s111, %s114
    %p120 = scmp.eq.s32.totalorder %s12, 0
    %p121 = por %p119, %p120
    %p122 = scmp.ne.s32.totalorder %s111, %s114
    %p123 = scmp.eq.s32.totalorder %s17, 19
    %p124 = por %p122, %p123
    %p125 = scmp.ne.s32.totalorder %s114, %s115
    %p126 = scmp.eq.s32.totalorder %s17, 0
    %p127 = por %p125, %p126
    %p128 = scmp.ne.s32.totalorder %s114, %s115
    %p129 = scmp.eq.s32.totalorder %s18, 19
    %p130 = por %p128, %p129
    %p132 = scmp.ne.s32.totalorder %s115, %s131
    %p133 = scmp.eq.s32.totalorder %s18, 0
    %p134 = por %p132, %p133
    %s135 = ssub.s32 %s19, %s31
    %p136 = scmp.eq.s32.totalorder %s135, 0
    %s138 = sadd.s32 %s137, 1
    %s139 = scalar_select %p136, %s137, %s138
    %p142 = pneg %p136
    %p143 = scmp.eq.s32.totalorder %s12, 19
    %p144 = por %p142, %p143
    %p145 = scmp.ne.s32.totalorder %s137, %s140
    %p146 = scmp.eq.s32.totalorder %s12, 0
    %p147 = por %p145, %p146
    %p148 = scmp.ne.s32.totalorder %s137, %s140
    %p149 = scmp.eq.s32.totalorder %s17, 19
    %p150 = por %p148, %p149
    %p151 = scmp.ne.s32.totalorder %s140, %s141
    %p152 = scmp.eq.s32.totalorder %s17, 0
    %p153 = por %p151, %p152
    %p154 = scmp.ne.s32.totalorder %s140, %s141
    %p155 = scmp.eq.s32.totalorder %s18, 19
    %p156 = por %p154, %p155
    %p158 = scmp.ne.s32.totalorder %s141, %s157
    %p159 = scmp.eq.s32.totalorder %s18, 0
    %p160 = por %p158, %p159
    %s161 = ssub.s32 %s19, %s31
    %p162 = scmp.eq.s32.totalorder %s161, 0
    %s164 = sadd.s32 %s163, 1
    %s165 = scalar_select %p162, %s163, %s164
    %p168 = pneg %p162
    %p169 = scmp.eq.s32.totalorder %s12, 19
    %p170 = por %p168, %p169
    %p171 = scmp.ne.s32.totalorder %s163, %s166
    %p172 = scmp.eq.s32.totalorder %s12, 0
    %p173 = por %p171, %p172
    %p174 = scmp.ne.s32.totalorder %s163, %s166
    %p175 = scmp.eq.s32.totalorder %s17, 19
    %p176 = por %p174, %p175
    %p177 = scmp.ne.s32.totalorder %s166, %s167
    %p178 = scmp.eq.s32.totalorder %s17, 0
    %p179 = por %p177, %p178
    %p180 = scmp.ne.s32.totalorder %s166, %s167
    %p181 = scmp.eq.s32.totalorder %s18, 19
    %p182 = por %p180, %p181
    %p184 = scmp.ne.s32.totalorder %s167, %s183
    %p185 = scmp.eq.s32.totalorder %s18, 0
    %p186 = por %p184, %p185
    %p187 = scmp.le.s32.totalorder 1, %s12
    %p188 = scmp.lt.s32.totalorder %s12, 21
    %p189 = pnand %p187, %p188
    %p190 = pneg %p189
    // Predicated region
    $region9: #{split_conv_csa_forward.6} parent=5 // pred_check
      _
    $region10: #{split_conv_csa_forward.6} parent=5 // pred_check_branch
      %192 = sbr.rel (%p189) target = $region12
    $region11: #{split_conv_csa_forward.6} parent=5 // pred_region
      %s193 = ssub.s32 %s12, 1
      // Predicated region
      $region13: #{split_conv_csa_forward.6} parent=11 // pred_check
        %p194 = pneg %p73
      $region14: #{split_conv_csa_forward.6} parent=11 // pred_check_branch
        %196 = sbr.rel (%p194) target = $region16
      $region15: #{split_conv_csa_forward.6} parent=11 // pred_region
        _
      $region16: #{split_conv_csa_forward.6} parent=11 // pred_fallthru
        _
    $region12: #{split_conv_csa_forward.6} parent=5 // pred_fallthru
      _
    %p197 = scmp.lt.s32.totalorder %s12, 20
    // Predicated region
    $region17: #{split_conv_csa_forward.6} parent=5 // pred_check
      %p198 = pneg %p197
    $region18: #{split_conv_csa_forward.6} parent=5 // pred_check_branch
      %200 = sbr.rel (%p198) target = $region20
    $region19: #{split_conv_csa_forward.6} parent=5 // pred_region
      // Predicated region
      $region21: #{split_conv_csa_forward.6} parent=19 // pred_check
        %p201 = pneg %p46
      $region22: #{split_conv_csa_forward.6} parent=19 // pred_check_branch
        %203 = sbr.rel (%p201) target = $region24
      $region23: #{split_conv_csa_forward.6} parent=19 // pred_region
        %p204 = scmp.lt.s32.totalorder %s19, 1
        %s205 = scalar_select %p204, %s19, 1
        %p206 = scmp.lt.s32.totalorder %s20, 9
        %s207 = scalar_select %p206, %s20, 9
        %s208 = smul.addr %s207, 16
        %s209 = smul.addr %s205, 160
        %s210 = sadd.s32 %s208, %s209
        %s211 = smul.addr %s210, 4
        %s212 = scalar_lea.vmem %s0, %s211
      $region24: #{split_conv_csa_forward.6} parent=19 // pred_fallthru
        _
      // Predicated region
      $region25: #{split_conv_csa_forward.6} parent=19 // pred_check
        %p213 = pneg %p93
      $region26: #{split_conv_csa_forward.6} parent=19 // pred_check_branch
        %215 = sbr.rel (%p213) target = $region28
      $region27: #{split_conv_csa_forward.6} parent=19 // pred_region
        %p216 = scmp.lt.s32.totalorder %s20, 9
        %s217 = scalar_select %p216, %s20, 9
        %s218 = smul.addr %s217, 16
        %s219 = smul.addr %s218, 8
        %s220 = scalar_lea.vmem %s2, %s219
      $region28: #{split_conv_csa_forward.6} parent=19 // pred_fallthru
        _
    $region20: #{split_conv_csa_forward.6} parent=5 // pred_fallthru
      _
    %p221 = scmp.le.s32.totalorder 1, %s12
    %p222 = scmp.lt.s32.totalorder %s12, 21
    %p223 = pnand %p221, %p222
    %p224 = pneg %p223
    // Predicated region
    $region29: #{split_conv_csa_forward.6} parent=5 // pred_check
      _
    $region30: #{split_conv_csa_forward.6} parent=5 // pred_check_branch
      %226 = sbr.rel (%p223) target = $region32
    $region31: #{split_conv_csa_forward.6} parent=5 // pred_region
      %s227 = ssub.s32 %s12, 1
      %p228 = scmp.lt.s32.totalorder %s21, 1
      %s229 = scalar_select %p228, %s21, 1
      %p230 = scmp.lt.s32.totalorder %s22, 9
      %s231 = scalar_select %p230, %s22, 9
      %s232 = smul.addr %s231, 16
      %s233 = smul.addr %s229, 160
      %s234 = sadd.s32 %s232, %s233
      %s235 = smul.addr %s234, 4
      %s236 = scalar_lea.vmem %s0, %s235
      %p237 = pneg %p52
      %p238 = pneg %p49
      %p239 = pneg %p73
      %p240 = pneg %p70
      %p241 = scmp.lt.s32.totalorder %s22, 9
      %s242 = scalar_select %p241, %s22, 9
      %s243 = smul.addr %s242, 16
      %s244 = smul.addr %s243, 8
      %s245 = scalar_lea.vmem %s2, %s244
      %p246 = pneg %p99
      %p247 = pneg %p96
      %p248 = pneg %p127
      %p249 = pneg %p124
      %p250 = scmp.lt.s32.totalorder %s21, 1
      %s251 = scalar_select %p250, %s21, 1
      %p252 = scmp.lt.s32.totalorder %s22, 9
      %s253 = scalar_select %p252, %s22, 9
      %s254 = smul.addr %s253, 16
      %s255 = smul.addr %s251, 160
      %s256 = sadd.s32 %s254, %s255
      %s257 = smul.addr %s256, 8
      %s258 = scalar_lea.vmem %s3, %s257
      %p259 = pneg %p153
      %p260 = pneg %p150
      %p261 = scmp.lt.s32.totalorder %s21, 1
      %s262 = scalar_select %p261, %s21, 1
      %s263 = scalar_lea.vmem %s4, %s262
      %p264 = pneg %p179
      %p265 = pneg %p176
      %p266 = scmp.lt.s32.totalorder %s21, 1
      %s267 = scalar_select %p266, %s21, 1
      %s268 = scalar_lea.vmem %s5, %s267
      %p269 = scmp.lt.s32.totalorder %s21, 1
      %s270 = scalar_select %p269, %s21, 1
      %p271 = scmp.lt.s32.totalorder %s22, 9
      %s272 = scalar_select %p271, %s22, 9
      %s273 = smul.addr %s272, 16
      %s274 = smul.addr %s270, 160
      %s275 = sadd.s32 %s273, %s274
      %s276 = smul.addr %s275, 4
      %s277 = scalar_lea.vmem %s0, %s276
      %p278 = scmp.lt.s32.totalorder %s22, 9
      %s279 = scalar_select %p278, %s22, 9
      %s280 = smul.addr %s279, 16
      %s281 = smul.addr %s280, 8
      %s282 = scalar_lea.vmem %s2, %s281
      %p283 = scmp.lt.s32.totalorder %s21, 1
      %s284 = scalar_select %p283, %s21, 1
      %p285 = scmp.lt.s32.totalorder %s22, 9
      %s286 = scalar_select %p285, %s22, 9
      %s287 = smul.addr %s286, 16
      %s288 = smul.addr %s284, 160
      %s289 = sadd.s32 %s287, %s288
      %s290 = smul.addr %s289, 8
      %s291 = scalar_lea.vmem %s3, %s290
      %p292 = scmp.lt.s32.totalorder %s21, 1
      %s293 = scalar_select %p292, %s21, 1
      %s294 = scalar_lea.vmem %s4, %s293
      %p295 = scmp.lt.s32.totalorder %s21, 1
      %s296 = scalar_select %p295, %s21, 1
      %s297 = scalar_lea.vmem %s5, %s296
      %v299 = vld [vmem:[%s277] sm:$0xf]
      %v300 = vld [vmem:[%s277 + $0x4] sm:$0xf]
      %v301 = vld [vmem:[%s277 + $0x8] sm:$0xf]
      %v302 = vld [vmem:[%s277 + $0xc] sm:$0xf]
      %v303 = vld [vmem:[%s277 + $0x10] sm:$0xf]
      %v304 = vld [vmem:[%s277 + $0x14] sm:$0xf]
      %v305 = vld [vmem:[%s277 + $0x18] sm:$0xf]
      %v306 = vld [vmem:[%s277 + $0x1c] sm:$0xf]
      %v307 = vld [vmem:[%s277 + $0x20] sm:$0xf]
      %v308 = vld [vmem:[%s277 + $0x24] sm:$0xf]
      %v309 = vld [vmem:[%s277 + $0x28] sm:$0xf]
      %v310 = vld [vmem:[%s277 + $0x2c] sm:$0xf]
      %v311 = vld [vmem:[%s277 + $0x30] sm:$0xf]
      %v312 = vld [vmem:[%s277 + $0x34] sm:$0xf]
      %v313 = vld [vmem:[%s277 + $0x38] sm:$0xf]
      %v314 = vld [vmem:[%s277 + $0x3c] sm:$0xf]
      %v315 = vld [vmem:[%s1] sm:$0xf]
      %v316 = vld [vmem:[%s1 + $0x4] sm:$0xf]
      %v317 = vld [vmem:[%s1 + $0x8] sm:$0xf]
      %v318 = vld [vmem:[%s1 + $0xc] sm:$0xf]
      %v319 = vld [vmem:[%s1 + $0x10] sm:$0xf]
      %v320 = vld [vmem:[%s1 + $0x14] sm:$0xf]
      %v321 = vld [vmem:[%s1 + $0x18] sm:$0xf]
      %v322 = vld [vmem:[%s1 + $0x1c] sm:$0xf]
      %v323 = vld [vmem:[%s1 + $0x20] sm:$0xf]
      %v324 = vld [vmem:[%s1 + $0x24] sm:$0xf]
      %v325 = vld [vmem:[%s1 + $0x28] sm:$0xf]
      %v326 = vld [vmem:[%s1 + $0x2c] sm:$0xf]
      %v327 = vld [vmem:[%s1 + $0x30] sm:$0xf]
      %v328 = vld [vmem:[%s1 + $0x34] sm:$0xf]
      %v329 = vld [vmem:[%s1 + $0x38] sm:$0xf]
      %v330 = vld [vmem:[%s1 + $0x3c] sm:$0xf]
      %v347 = vunpack.c.l.b16 %v299
      %v348 = vunpack.c.l.b16 %v300
      %v349 = vunpack.c.l.b16 %v301
      %v350 = vunpack.c.l.b16 %v302
      %v351 = vunpack.c.l.b16 %v303
      %v352 = vunpack.c.l.b16 %v304
      %v353 = vunpack.c.l.b16 %v305
      %v354 = vunpack.c.l.b16 %v306
      %v355 = vunpack.c.l.b16 %v307
      %v356 = vunpack.c.l.b16 %v308
      %v357 = vunpack.c.l.b16 %v309
      %v358 = vunpack.c.l.b16 %v310
      %v359 = vunpack.c.l.b16 %v311
      %v360 = vunpack.c.l.b16 %v312
      %v361 = vunpack.c.l.b16 %v313
      %v362 = vunpack.c.l.b16 %v314
      %v363 = vpack.c.b16 %v348, %v347
      %v364 = vpack.c.b16 %v350, %v349
      %v365 = vpack.c.b16 %v352, %v351
      %v366 = vpack.c.b16 %v354, %v353
      %v367 = vpack.c.b16 %v356, %v355
      %v368 = vpack.c.b16 %v358, %v357
      %v369 = vpack.c.b16 %v360, %v359
      %v370 = vpack.c.b16 %v362, %v361
      %v395 = vunpack.c.l.b16 %v315
      %v396 = vunpack.c.l.b16 %v316
      %v397 = vunpack.c.l.b16 %v317
      %v398 = vunpack.c.l.b16 %v318
      %v399 = vunpack.c.l.b16 %v319
      %v400 = vunpack.c.l.b16 %v320
      %v401 = vunpack.c.l.b16 %v321
      %v402 = vunpack.c.l.b16 %v322
      %v403 = vunpack.c.l.b16 %v323
      %v404 = vunpack.c.l.b16 %v324
      %v405 = vunpack.c.l.b16 %v325
      %v406 = vunpack.c.l.b16 %v326
      %v407 = vunpack.c.l.b16 %v327
      %v408 = vunpack.c.l.b16 %v328
      %v409 = vunpack.c.l.b16 %v329
      %v410 = vunpack.c.l.b16 %v330
      %v411 = vpack.c.b16 %v396, %v395
      %v412 = vpack.c.b16 %v398, %v397
      %v413 = vpack.c.b16 %v400, %v399
      %v414 = vpack.c.b16 %v402, %v401
      %v415 = vpack.c.b16 %v404, %v403
      %v416 = vpack.c.b16 %v406, %v405
      %v417 = vpack.c.b16 %v408, %v407
      %v418 = vpack.c.b16 %v410, %v409
      %427 = vmatprep.subr.bf16.mxu0 0
      %428 = vmatpush1.bf16.msra.mxu0 %v411
      %429 = vmatprep.subr.bf16.mxu0 0
      %430 = vmatpush1.bf16.msra.mxu0 %v412
      %431 = vmatprep.subr.bf16.mxu0 0
      %432 = vmatpush1.bf16.msra.mxu0 %v413
      %433 = vmatprep.subr.bf16.mxu0 0
      %434 = vmatpush1.bf16.msra.mxu0 %v414
      %435 = vmatprep.subr.bf16.mxu0 0
      %436 = vmatpush1.bf16.msra.mxu0 %v415
      %437 = vmatprep.subr.bf16.mxu0 0
      %438 = vmatpush1.bf16.msra.mxu0 %v416
      %439 = vmatprep.subr.bf16.mxu0 0
      %440 = vmatpush1.bf16.msra.mxu0 %v417
      %441 = vmatprep.subr.bf16.mxu0 0
      %442 = vmatpush1.bf16.msra.mxu0 %v418
      %443 = vmatprep.subr.bf16.mxu0 0
      %444 = vmatpush1.bf16.msra.mxu0 0
      %445 = vmatprep.subr.bf16.mxu0 0
      %446 = vmatpush1.bf16.msra.mxu0 0
      %447 = vmatprep.subr.bf16.mxu0 0
      %448 = vmatpush1.bf16.msra.mxu0 0
      %449 = vmatprep.subr.bf16.mxu0 0
      %450 = vmatpush1.bf16.msra.mxu0 0
      %451 = vmatprep.subr.bf16.mxu0 0
      %452 = vmatpush1.bf16.msra.mxu0 0
      %453 = vmatprep.subr.bf16.mxu0 0
      %454 = vmatpush1.bf16.msra.mxu0 0
      %455 = vmatprep.subr.bf16.mxu0 0
      %456 = vmatpush1.bf16.msra.mxu0 0
      %457 = vmatprep.subr.bf16.mxu0 0
      %458 = vmatpush1.bf16.msra.mxu0 0
      %459 = vmatprep.mubr.bf16.mxu0 0
      %460 = vmatmul.mubr.bf16.gmra.mrb[0].mxu0 %v363
      %v461 = vpop.f32.mrb[0].mxu0
      %v462 = vadd.f32 0.0, %v461
      %v463 = vpop.f32.mrb[0].mxu0
      %v464 = vpop.f32.mrb[0].mxu0
      %v465 = vadd.f32 0.0, %v464
      %v466 = vpop.f32.mrb[0].mxu0
      %467 = vmatprep.mubr.bf16.mxu0 0
      %468 = vmatmul.mubr.bf16.gmra.mrb[0].mxu0 %v364
      %v469 = vpop.f32.mrb[0].mxu0
      %v470 = vadd.f32 0.0, %v469
      %v471 = vpop.f32.mrb[0].mxu0
      %v472 = vpop.f32.mrb[0].mxu0
      %v473 = vadd.f32 0.0, %v472
      %v474 = vpop.f32.mrb[0].mxu0
      %475 = vmatprep.mubr.bf16.mxu0 0
      %476 = vmatmul.mubr.bf16.gmra.mrb[0].mxu0 %v365
      %v477 = vpop.f32.mrb[0].mxu0
      %v478 = vadd.f32 0.0, %v477
      %v479 = vpop.f32.mrb[0].mxu0
      %v480 = vpop.f32.mrb[0].mxu0
      %v481 = vadd.f32 0.0, %v480
      %v482 = vpop.f32.mrb[0].mxu0
      %483 = vmatprep.mubr.bf16.mxu0 0
      %484 = vmatmul.mubr.bf16.gmra.mrb[0].mxu0 %v366
      %v485 = vpop.f32.mrb[0].mxu0
      %v486 = vadd.f32 0.0, %v485
      %v487 = vpop.f32.mrb[0].mxu0
      %v488 = vpop.f32.mrb[0].mxu0
      %v489 = vadd.f32 0.0, %v488
      %v490 = vpop.f32.mrb[0].mxu0
      %491 = vmatprep.mubr.bf16.mxu0 0
      %492 = vmatmul.mubr.bf16.gmra.mrb[0].mxu0 %v367
      %v493 = vpop.f32.mrb[0].mxu0
      %v494 = vadd.f32 0.0, %v493
      %v495 = vpop.f32.mrb[0].mxu0
      %v496 = vpop.f32.mrb[0].mxu0
      %v497 = vadd.f32 0.0, %v496
      %v498 = vpop.f32.mrb[0].mxu0
      %499 = vmatprep.mubr.bf16.mxu0 0
      %500 = vmatmul.mubr.bf16.gmra.mrb[0].mxu0 %v368
      %v501 = vpop.f32.mrb[0].mxu0
      %v502 = vadd.f32 0.0, %v501
      %v503 = vpop.f32.mrb[0].mxu0
      %v504 = vpop.f32.mrb[0].mxu0
      %v505 = vadd.f32 0.0, %v504
      %v506 = vpop.f32.mrb[0].mxu0
      %507 = vmatprep.mubr.bf16.mxu0 0
      %508 = vmatmul.mubr.bf16.gmra.mrb[0].mxu0 %v369
      %v509 = vpop.f32.mrb[0].mxu0
      %v510 = vadd.f32 0.0, %v509
      %v511 = vpop.f32.mrb[0].mxu0
      %v512 = vpop.f32.mrb[0].mxu0
      %v513 = vadd.f32 0.0, %v512
      %v514 = vpop.f32.mrb[0].mxu0
      %515 = vmatprep.mubr.bf16.mxu0 0
      %516 = vmatmul.mubr.bf16.gmra.mrb[0].mxu0 %v370
      %v517 = vpop.f32.mrb[0].mxu0
      %v518 = vadd.f32 0.0, %v517
      %v519 = vpop.f32.mrb[0].mxu0
      %v520 = vpop.f32.mrb[0].mxu0
      %v521 = vadd.f32 0.0, %v520
      %v522 = vpop.f32.mrb[0].mxu0
      %523 = vdwg.mxu0
      %524 = vst [vmem:[%s291] sm:$0xff] %v462
      %525 = vst [vmem:[%s291 + $0x8] sm:$0xff] %v465
      %526 = vst [vmem:[%s291 + $0x10] sm:$0xff] %v470
      %527 = vst [vmem:[%s291 + $0x18] sm:$0xff] %v473
      %528 = vst [vmem:[%s291 + $0x20] sm:$0xff] %v478
      %529 = vst [vmem:[%s291 + $0x28] sm:$0xff] %v481
      %530 = vst [vmem:[%s291 + $0x30] sm:$0xff] %v486
      %531 = vst [vmem:[%s291 + $0x38] sm:$0xff] %v489
      %532 = vst [vmem:[%s291 + $0x40] sm:$0xff] %v494
      %533 = vst [vmem:[%s291 + $0x48] sm:$0xff] %v497
      %534 = vst [vmem:[%s291 + $0x50] sm:$0xff] %v502
      %535 = vst [vmem:[%s291 + $0x58] sm:$0xff] %v505
      %536 = vst [vmem:[%s291 + $0x60] sm:$0xff] %v510
      %537 = vst [vmem:[%s291 + $0x68] sm:$0xff] %v513
      %538 = vst [vmem:[%s291 + $0x70] sm:$0xff] %v518
      %539 = vst [vmem:[%s291 + $0x78] sm:$0xff] %v521
      %v540 = vld [vmem:[%s282] sm:$0xff]
      %v541 = vld [vmem:[%s282 + $0x8] sm:$0xff]
      %v542 = vld [vmem:[%s282 + $0x10] sm:$0xff]
      %v543 = vld [vmem:[%s282 + $0x18] sm:$0xff]
      %v544 = vld [vmem:[%s282 + $0x20] sm:$0xff]
      %v545 = vld [vmem:[%s282 + $0x28] sm:$0xff]
      %v546 = vld [vmem:[%s282 + $0x30] sm:$0xff]
      %v547 = vld [vmem:[%s282 + $0x38] sm:$0xff]
      %v548 = vld [vmem:[%s282 + $0x40] sm:$0xff]
      %v549 = vld [vmem:[%s282 + $0x48] sm:$0xff]
      %v550 = vld [vmem:[%s282 + $0x50] sm:$0xff]
      %v551 = vld [vmem:[%s282 + $0x58] sm:$0xff]
      %v552 = vld [vmem:[%s282 + $0x60] sm:$0xff]
      %v553 = vld [vmem:[%s282 + $0x68] sm:$0xff]
      %v554 = vld [vmem:[%s282 + $0x70] sm:$0xff]
      %v555 = vld [vmem:[%s282 + $0x78] sm:$0xff]
      %557 = vset.pattern.permute.xlu0 0
      %558 = vperm.xlu0 %557, %v540
      %v559 = vpop.permute.xlu0 %558
      %562 = vset.pattern.permute.xlu0 0
      %563 = vperm.xlu0 %562, %v541
      %v564 = vpop.permute.xlu0 %563
      %567 = vset.pattern.permute.xlu0 0
      %568 = vperm.xlu0 %567, %v542
      %v569 = vpop.permute.xlu0 %568
      %572 = vset.pattern.permute.xlu0 0
      %573 = vperm.xlu0 %572, %v543
      %v574 = vpop.permute.xlu0 %573
      %577 = vset.pattern.permute.xlu0 0
      %578 = vperm.xlu0 %577, %v544
      %v579 = vpop.permute.xlu0 %578
      %582 = vset.pattern.permute.xlu0 0
      %583 = vperm.xlu0 %582, %v545
      %v584 = vpop.permute.xlu0 %583
      %587 = vset.pattern.permute.xlu0 0
      %588 = vperm.xlu0 %587, %v546
      %v589 = vpop.permute.xlu0 %588
      %592 = vset.pattern.permute.xlu0 0
      %593 = vperm.xlu0 %592, %v547
      %v594 = vpop.permute.xlu0 %593
      %597 = vset.pattern.permute.xlu0 0
      %598 = vperm.xlu0 %597, %v548
      %v599 = vpop.permute.xlu0 %598
      %602 = vset.pattern.permute.xlu0 0
      %603 = vperm.xlu0 %602, %v549
      %v604 = vpop.permute.xlu0 %603
      %607 = vset.pattern.permute.xlu0 0
      %608 = vperm.xlu0 %607, %v550
      %v609 = vpop.permute.xlu0 %608
      %612 = vset.pattern.permute.xlu0 0
      %613 = vperm.xlu0 %612, %v551
      %v614 = vpop.permute.xlu0 %613
      %617 = vset.pattern.permute.xlu0 0
      %618 = vperm.xlu0 %617, %v552
      %v619 = vpop.permute.xlu0 %618
      %622 = vset.pattern.permute.xlu0 0
      %623 = vperm.xlu0 %622, %v553
      %v624 = vpop.permute.xlu0 %623
      %627 = vset.pattern.permute.xlu0 0
      %628 = vperm.xlu0 %627, %v554
      %v629 = vpop.permute.xlu0 %628
      %632 = vset.pattern.permute.xlu0 0
      %633 = vperm.xlu0 %632, %v555
      %v634 = vpop.permute.xlu0 %633
      %v636 = vmul.f32 %v462, %v559
      %v637 = vmul.f32 %v465, %v564
      %v638 = vmul.f32 %v470, %v569
      %v639 = vmul.f32 %v473, %v574
      %v640 = vmul.f32 %v478, %v579
      %v641 = vmul.f32 %v481, %v584
      %v642 = vmul.f32 %v486, %v589
      %v643 = vmul.f32 %v489, %v594
      %v644 = vmul.f32 %v494, %v599
      %v645 = vmul.f32 %v497, %v604
      %v646 = vmul.f32 %v502, %v609
      %v647 = vmul.f32 %v505, %v614
      %v648 = vmul.f32 %v510, %v619
      %v649 = vmul.f32 %v513, %v624
      %v650 = vmul.f32 %v518, %v629
      %v651 = vmul.f32 %v521, %v634
      %p652 = scmp.eq.s32.totalorder %s22, 0
      // Predicated region
      $region33: #{split_conv_csa_forward.6} parent=31 // pred_check
        %p653 = pneg %p652
      $region34: #{split_conv_csa_forward.6} parent=31 // pred_check_branch
        %655 = sbr.rel (%p653) target = $region36
      $region35: #{split_conv_csa_forward.6} parent=31 // pred_region
        %656 = vst [vmem:[%s294] sm:$0x1] 0.0
        %657 = vst [vmem:[%s297] sm:$0x1] 0.0
      $region36: #{split_conv_csa_forward.6} parent=31 // pred_fallthru
        _
      %v658 = vld [vmem:[%s294] sm:$0x1]
      %v659 = vadd.f32 %v636, %v637
      %v660 = vadd.f32 %v659, %v638
      %v661 = vadd.f32 %v660, %v639
      %v662 = vadd.f32 %v661, %v640
      %v663 = vadd.f32 %v662, %v641
      %v664 = vadd.f32 %v663, %v642
      %v665 = vadd.f32 %v664, %v643
      %v666 = vadd.f32 %v665, %v644
      %v667 = vadd.f32 %v666, %v645
      %v668 = vadd.f32 %v667, %v646
      %v669 = vadd.f32 %v668, %v647
      %v670 = vadd.f32 %v669, %v648
      %v671 = vadd.f32 %v670, %v649
      %v672 = vadd.f32 %v671, %v650
      %v673 = vadd.f32 %v672, %v651
      %v674 = vrot.slane %v673, 4
      %v675 = vadd.f32 %v673, %v674
      %v676 = vrot.slane %v675, 2
      %v677 = vadd.f32 %v675, %v676
      %v678 = vrot.slane %v677, 1
      %v679 = vadd.f32 %v677, %v678
      %v680 = vadd.f32 %v658, %v679
      %681 = vst [vmem:[%s294] sm:$0x1] %v680
      %v682 = vld [vmem:[%s297] sm:$0x1]
      %v683 = vmul.f32 %v462, %v636
      %v684 = vmul.f32 %v465, %v637
      %v685 = vmul.f32 %v470, %v638
      %v686 = vmul.f32 %v473, %v639
      %v687 = vmul.f32 %v478, %v640
      %v688 = vmul.f32 %v481, %v641
      %v689 = vmul.f32 %v486, %v642
      %v690 = vmul.f32 %v489, %v643
      %v691 = vmul.f32 %v494, %v644
      %v692 = vmul.f32 %v497, %v645
      %v693 = vmul.f32 %v502, %v646
      %v694 = vmul.f32 %v505, %v647
      %v695 = vmul.f32 %v510, %v648
      %v696 = vmul.f32 %v513, %v649
      %v697 = vmul.f32 %v518, %v650
      %v698 = vmul.f32 %v521, %v651
      %v699 = vadd.f32 %v683, %v684
      %v700 = vadd.f32 %v699, %v685
      %v701 = vadd.f32 %v700, %v686
      %v702 = vadd.f32 %v701, %v687
      %v703 = vadd.f32 %v702, %v688
      %v704 = vadd.f32 %v703, %v689
      %v705 = vadd.f32 %v704, %v690
      %v706 = vadd.f32 %v705, %v691
      %v707 = vadd.f32 %v706, %v692
      %v708 = vadd.f32 %v707, %v693
      %v709 = vadd.f32 %v708, %v694
      %v710 = vadd.f32 %v709, %v695
      %v711 = vadd.f32 %v710, %v696
      %v712 = vadd.f32 %v711, %v697
      %v713 = vadd.f32 %v712, %v698
      %v714 = vrot.slane %v713, 4
      %v715 = vadd.f32 %v713, %v714
      %v716 = vrot.slane %v715, 2
      %v717 = vadd.f32 %v715, %v716
      %v718 = vrot.slane %v717, 1
      %v719 = vadd.f32 %v717, %v718
      %v720 = vadd.f32 %v682, %v719
      %721 = vst [vmem:[%s297] sm:$0x1] %v720
      %p722 = scmp.lt.s32.totalorder %s21, 1
      %s723 = scalar_select %p722, %s21, 1
      %p724 = scmp.lt.s32.totalorder %s22, 9
      %s725 = scalar_select %p724, %s22, 9
      %s726 = smul.addr %s725, 16
      %s727 = smul.addr %s723, 160
      %s728 = sadd.s32 %s726, %s727
      %s729 = smul.addr %s728, 8
      %s730 = scalar_lea.vmem %s3, %s729
      %p731 = scmp.lt.s32.totalorder %s21, 1
      %s732 = scalar_select %p731, %s21, 1
      %s733 = scalar_lea.vmem %s4, %s732
      %p734 = scmp.lt.s32.totalorder %s21, 1
      %s735 = scalar_select %p734, %s21, 1
      %s736 = scalar_lea.vmem %s5, %s735
      // Predicated region
      $region37: #{split_conv_csa_forward.6} parent=31 // pred_check
        %p737 = pneg %p124
      $region38: #{split_conv_csa_forward.6} parent=31 // pred_check_branch
        %739 = sbr.rel (%p737) target = $region40
      $region39: #{split_conv_csa_forward.6} parent=31 // pred_region
        _
      $region40: #{split_conv_csa_forward.6} parent=31 // pred_fallthru
        _
      // Predicated region
      $region41: #{split_conv_csa_forward.6} parent=31 // pred_check
        %p740 = pneg %p150
      $region42: #{split_conv_csa_forward.6} parent=31 // pred_check_branch
        %742 = sbr.rel (%p740) target = $region44
      $region43: #{split_conv_csa_forward.6} parent=31 // pred_region
        _
      $region44: #{split_conv_csa_forward.6} parent=31 // pred_fallthru
        _
      // Predicated region
      $region45: #{split_conv_csa_forward.6} parent=31 // pred_check
        %p743 = pneg %p176
      $region46: #{split_conv_csa_forward.6} parent=31 // pred_check_branch
        %745 = sbr.rel (%p743) target = $region48
      $region47: #{split_conv_csa_forward.6} parent=31 // pred_region
        _
      $region48: #{split_conv_csa_forward.6} parent=31 // pred_fallthru
        _
    $region32: #{split_conv_csa_forward.6} parent=5 // pred_fallthru
      _
    %p746 = scmp.le.s32.totalorder 2, %s12
    // Predicated region
    $region49: #{split_conv_csa_forward.6} parent=5 // pred_check
      %p747 = pneg %p746
    $region50: #{split_conv_csa_forward.6} parent=5 // pred_check_branch
      %749 = sbr.rel (%p747) target = $region52
    $region51: #{split_conv_csa_forward.6} parent=5 // pred_region
      %s750 = ssub.s32 %s12, 2
      // Predicated region
      $region53: #{split_conv_csa_forward.6} parent=51 // pred_check
        %p751 = pneg %p130
      $region54: #{split_conv_csa_forward.6} parent=51 // pred_check_branch
        %753 = sbr.rel (%p751) target = $region56
      $region55: #{split_conv_csa_forward.6} parent=51 // pred_region
        %p754 = scmp.lt.s32.totalorder %s23, 1
        %s755 = scalar_select %p754, %s23, 1
        %p756 = scmp.lt.s32.totalorder %s24, 9
        %s757 = scalar_select %p756, %s24, 9
        %s758 = smul.addr %s757, 16
        %s759 = smul.addr %s755, 160
        %s760 = sadd.s32 %s758, %s759
        %s761 = smul.addr %s760, 8
        %s762 = scalar_lea.vmem %s3, %s761
      $region56: #{split_conv_csa_forward.6} parent=51 // pred_fallthru
        _
      // Predicated region
      $region57: #{split_conv_csa_forward.6} parent=51 // pred_check
        %p763 = pneg %p156
      $region58: #{split_conv_csa_forward.6} parent=51 // pred_check_branch
        %765 = sbr.rel (%p763) target = $region60
      $region59: #{split_conv_csa_forward.6} parent=51 // pred_region
        %p766 = scmp.lt.s32.totalorder %s23, 1
        %s767 = scalar_select %p766, %s23, 1
        %s768 = scalar_lea.vmem %s4, %s767
      $region60: #{split_conv_csa_forward.6} parent=51 // pred_fallthru
        _
      // Predicated region
      $region61: #{split_conv_csa_forward.6} parent=51 // pred_check
        %p769 = pneg %p182
      $region62: #{split_conv_csa_forward.6} parent=51 // pred_check_branch
        %771 = sbr.rel (%p769) target = $region64
      $region63: #{split_conv_csa_forward.6} parent=51 // pred_region
        %p772 = scmp.lt.s32.totalorder %s23, 1
        %s773 = scalar_select %p772, %s23, 1
        %s774 = scalar_lea.vmem %s5, %s773
      $region64: #{split_conv_csa_forward.6} parent=51 // pred_fallthru
        _
    $region52: #{split_conv_csa_forward.6} parent=5 // pred_fallthru
      _
  $region6: #{split_conv_csa_forward.6} parent=0 // loop_footer
    %s16 = sadd.s32 1, %s12
  $region7: #{split_conv_csa_forward.6} parent=0 // loop_footer_branch
    %11 = sbr.rel target = $region3
  $region8: #{split_conv_csa_forward.6} parent=0 // loop_exit
    _

// kernel: tile.14
$region0: #{tile.14}
  #allocation0 [shape = 's32[1]{0}', space=sflag, size = 0x4, scoped, tag = 'scoped memory for tile.14']
  %s0 = inlined_call_operand.<no memory space> [shape: f32[], index: 0, kind: input, shape index: {}]
  %s1 = inlined_call_operand.vmem [shape: f32[2,1,128], index: 1, kind: output, shape index: {}]
  %v2 = vstv %s0
  %3 = vst [vmem:[%s1] sm:$0x1] %v2
  %s4 = scalar_lea.vmem %s1, 1
  %5 = vst [vmem:[%s4] sm:$0x1] %v2

// kernel: split_conv_csa_forward.9
$region0: #{split_conv_csa_forward.9}
  #allocation0 [shape = 'u32[]', space=smem, size = 0x4, offset = 0x4, fixed_abs, tag = 'smem constant byte address 0x4 - core index']
  #allocation1 [shape = 'u32[144,128]{1,0:T(1,128)}', space=vmem, size = 0x12000, scoped, tag = 'internal scratch']
  %s0 = inlined_call_operand.vmem [shape: f32[2,8,128,128], index: 0, kind: input, shape index: {}]
  %s1 = inlined_call_operand.vmem [shape: f32[2,1,128], index: 1, kind: input, shape index: {}]
  %s2 = inlined_call_operand.vmem [shape: f32[2,1,128], index: 2, kind: input, shape index: {}]
  %s3 = inlined_call_operand.vmem [shape: f32[2,1,128], index: 3, kind: input, shape index: {}]
  %s4 = inlined_call_operand.vmem [shape: f32[2,1,128], index: 4, kind: input, shape index: {}]
  %s5 = inlined_call_operand.vmem [shape: f32[10,128,1], index: 5, kind: input, shape index: {}]
  %s6 = inlined_call_operand.vmem [shape: bf16[2,8,128,128], index: 6, kind: output, shape index: {0}]
  %s7 = inlined_call_operand.vmem [shape: f32[2,1,128], index: 7, kind: output, shape index: {1}]
  %8 = xla_tuple %s6, %s7
  %s9 = sld [smem:[#allocation0]]
  $region69: #{split_conv_csa_forward.9} parent=0
    _
  %s11 = ssub.s32 1, %s9
  %s12 = scalar_select 0, %s11, %s9
  loop: start=0, step=1, limit=18
  $region2: #{split_conv_csa_forward.9} parent=0 // loop_pre_header
    _
  $region3: #{split_conv_csa_forward.9} parent=0 // loop_header
    %s14 = sphi 0, %s18
    %p15 = scmp.ge.s32.totalorder %s14, 18
    %s21 = sphi 0, %s33
    %s22 = sphi 0, %s29
    %s23 = sphi 0, %s21
    %s24 = sphi 0, %s22
    %s25 = sphi 0, %s23
    %s26 = sphi 0, %s24
    %s38 = sphi 0, %s40
    %s41 = sphi 0, %s38
    %s42 = sphi 0, %s41
    %s58 = sphi 0, %s42
    %s64 = sphi 0, %s66
    %s67 = sphi 0, %s64
    %s68 = sphi 0, %s67
    %s84 = sphi 0, %s68
    %s90 = sphi 0, %s92
    %s93 = sphi 0, %s90
    %s94 = sphi 0, %s93
    %s110 = sphi 0, %s94
    %s116 = sphi 0, %s118
    %s119 = sphi 0, %s116
    %s120 = sphi 0, %s119
    %s136 = sphi 0, %s120
    %s142 = sphi 0, %s144
    %s145 = sphi 0, %s142
    %s146 = sphi 0, %s145
    %s162 = sphi 0, %s146
    %s170 = sphi 0, %s172
    %s173 = sphi 0, %s170
    %s174 = sphi 0, %s173
    %s190 = sphi 0, %s174
    %s198 = sphi 0, %s200
    %s201 = sphi 0, %s198
    %s202 = sphi 0, %s201
    %s218 = sphi 0, %s202
    %s224 = sphi 0, %s226
    %s227 = sphi 0, %s224
    %s228 = sphi 0, %s227
    %s244 = sphi 0, %s228
  $region4: #{split_conv_csa_forward.9} parent=0 // loop_header_branch
    %17 = sbr.rel (%p15) target = $region8
  $region5: #{split_conv_csa_forward.9} parent=0 // loop_body
    %s19 = ssub.s32 %s14, 1
    %s20 = ssub.s32 %s14, 2
    %s27 = sadd.s32 1, %s22
    %p28 = scmp.ge.s32.totalorder %s27, 8
    %s29 = scalar_select %p28, 0, %s27
    %s30 = sadd.s32 1, %s21
    %s31 = scalar_select %p28, %s30, %s21
    %p32 = scmp.ge.s32.totalorder %s31, 2
    %s33 = scalar_select %p32, 0, %s31
    %s34 = ssub.s32 %s21, %s33
    %s35 = ssub.s32 %s22, %s29
    %s36 = sor.u32 %s34, %s35
    %p37 = scmp.eq.s32.totalorder %s36, 0
    %s39 = sadd.s32 %s38, 1
    %s40 = scalar_select %p37, %s38, %s39
    %p43 = pneg %p37
    %p44 = scmp.eq.s32.totalorder %s14, 15
    %p45 = por %p43, %p44
    %p46 = scmp.ne.s32.totalorder %s38, %s41
    %p47 = scmp.eq.s32.totalorder %s14, 0
    %p48 = por %p46, %p47
    %p49 = scmp.ne.s32.totalorder %s38, %s41
    %p50 = scmp.eq.s32.totalorder %s19, 15
    %p51 = por %p49, %p50
    %p52 = scmp.ne.s32.totalorder %s41, %s42
    %p53 = scmp.eq.s32.totalorder %s19, 0
    %p54 = por %p52, %p53
    %p55 = scmp.ne.s32.totalorder %s41, %s42
    %p56 = scmp.eq.s32.totalorder %s20, 15
    %p57 = por %p55, %p56
    %p59 = scmp.ne.s32.totalorder %s42, %s58
    %p60 = scmp.eq.s32.totalorder %s20, 0
    %p61 = por %p59, %p60
    %s62 = ssub.s32 %s21, %s33
    %p63 = scmp.eq.s32.totalorder %s62, 0
    %s65 = sadd.s32 %s64, 1
    %s66 = scalar_select %p63, %s64, %s65
    %p69 = pneg %p63
    %p70 = scmp.eq.s32.totalorder %s14, 15
    %p71 = por %p69, %p70
    %p72 = scmp.ne.s32.totalorder %s64, %s67
    %p73 = scmp.eq.s32.totalorder %s14, 0
    %p74 = por %p72, %p73
    %p75 = scmp.ne.s32.totalorder %s64, %s67
    %p76 = scmp.eq.s32.totalorder %s19, 15
    %p77 = por %p75, %p76
    %p78 = scmp.ne.s32.totalorder %s67, %s68
    %p79 = scmp.eq.s32.totalorder %s19, 0
    %p80 = por %p78, %p79
    %p81 = scmp.ne.s32.totalorder %s67, %s68
    %p82 = scmp.eq.s32.totalorder %s20, 15
    %p83 = por %p81, %p82
    %p85 = scmp.ne.s32.totalorder %s68, %s84
    %p86 = scmp.eq.s32.totalorder %s20, 0
    %p87 = por %p85, %p86
    %s88 = ssub.s32 %s21, %s33
    %p89 = scmp.eq.s32.totalorder %s88, 0
    %s91 = sadd.s32 %s90, 1
    %s92 = scalar_select %p89, %s90, %s91
    %p95 = pneg %p89
    %p96 = scmp.eq.s32.totalorder %s14, 15
    %p97 = por %p95, %p96
    %p98 = scmp.ne.s32.totalorder %s90, %s93
    %p99 = scmp.eq.s32.totalorder %s14, 0
    %p100 = por %p98, %p99
    %p101 = scmp.ne.s32.totalorder %s90, %s93
    %p102 = scmp.eq.s32.totalorder %s19, 15
    %p103 = por %p101, %p102
    %p104 = scmp.ne.s32.totalorder %s93, %s94
    %p105 = scmp.eq.s32.totalorder %s19, 0
    %p106 = por %p104, %p105
    %p107 = scmp.ne.s32.totalorder %s93, %s94
    %p108 = scmp.eq.s32.totalorder %s20, 15
    %p109 = por %p107, %p108
    %p111 = scmp.ne.s32.totalorder %s94, %s110
    %p112 = scmp.eq.s32.totalorder %s20, 0
    %p113 = por %p111, %p112
    %s114 = ssub.s32 %s21, %s33
    %p115 = scmp.eq.s32.totalorder %s114, 0
    %s117 = sadd.s32 %s116, 1
    %s118 = scalar_select %p115, %s116, %s117
    %p121 = pneg %p115
    %p122 = scmp.eq.s32.totalorder %s14, 15
    %p123 = por %p121, %p122
    %p124 = scmp.ne.s32.totalorder %s116, %s119
    %p125 = scmp.eq.s32.totalorder %s14, 0
    %p126 = por %p124, %p125
    %p127 = scmp.ne.s32.totalorder %s116, %s119
    %p128 = scmp.eq.s32.totalorder %s19, 15
    %p129 = por %p127, %p128
    %p130 = scmp.ne.s32.totalorder %s119, %s120
    %p131 = scmp.eq.s32.totalorder %s19, 0
    %p132 = por %p130, %p131
    %p133 = scmp.ne.s32.totalorder %s119, %s120
    %p134 = scmp.eq.s32.totalorder %s20, 15
    %p135 = por %p133, %p134
    %p137 = scmp.ne.s32.totalorder %s120, %s136
    %p138 = scmp.eq.s32.totalorder %s20, 0
    %p139 = por %p137, %p138
    %s140 = ssub.s32 %s21, %s33
    %p141 = scmp.eq.s32.totalorder %s140, 0
    %s143 = sadd.s32 %s142, 1
    %s144 = scalar_select %p141, %s142, %s143
    %p147 = pneg %p141
    %p148 = scmp.eq.s32.totalorder %s14, 15
    %p149 = por %p147, %p148
    %p150 = scmp.ne.s32.totalorder %s142, %s145
    %p151 = scmp.eq.s32.totalorder %s14, 0
    %p152 = por %p150, %p151
    %p153 = scmp.ne.s32.totalorder %s142, %s145
    %p154 = scmp.eq.s32.totalorder %s19, 15
    %p155 = por %p153, %p154
    %p156 = scmp.ne.s32.totalorder %s145, %s146
    %p157 = scmp.eq.s32.totalorder %s19, 0
    %p158 = por %p156, %p157
    %p159 = scmp.ne.s32.totalorder %s145, %s146
    %p160 = scmp.eq.s32.totalorder %s20, 15
    %p161 = por %p159, %p160
    %p163 = scmp.ne.s32.totalorder %s146, %s162
    %p164 = scmp.eq.s32.totalorder %s20, 0
    %p165 = por %p163, %p164
    %s166 = sadd.s32 %s22, 1
    %s167 = sadd.s32 %s29, 1
    %s168 = ssub.s32 %s166, %s167
    %p169 = scmp.eq.s32.totalorder %s168, 0
    %s171 = sadd.s32 %s170, 1
    %s172 = scalar_select %p169, %s170, %s171
    %p175 = pneg %p169
    %p176 = scmp.eq.s32.totalorder %s14, 15
    %p177 = por %p175, %p176
    %p178 = scmp.ne.s32.totalorder %s170, %s173
    %p179 = scmp.eq.s32.totalorder %s14, 0
    %p180 = por %p178, %p179
    %p181 = scmp.ne.s32.totalorder %s170, %s173
    %p182 = scmp.eq.s32.totalorder %s19, 15
    %p183 = por %p181, %p182
    %p184 = scmp.ne.s32.totalorder %s173, %s174
    %p185 = scmp.eq.s32.totalorder %s19, 0
    %p186 = por %p184, %p185
    %p187 = scmp.ne.s32.totalorder %s173, %s174
    %p188 = scmp.eq.s32.totalorder %s20, 15
    %p189 = por %p187, %p188
    %p191 = scmp.ne.s32.totalorder %s174, %s190
    %p192 = scmp.eq.s32.totalorder %s20, 0
    %p193 = por %p191, %p192
    %s194 = ssub.s32 %s21, %s33
    %s195 = ssub.s32 %s22, %s29
    %s196 = sor.u32 %s194, %s195
    %p197 = scmp.eq.s32.totalorder %s196, 0
    %s199 = sadd.s32 %s198, 1
    %s200 = scalar_select %p197, %s198, %s199
    %p203 = pneg %p197
    %p204 = scmp.eq.s32.totalorder %s14, 15
    %p205 = por %p203, %p204
    %p206 = scmp.ne.s32.totalorder %s198, %s201
    %p207 = scmp.eq.s32.totalorder %s14, 0
    %p208 = por %p206, %p207
    %p209 = scmp.ne.s32.totalorder %s198, %s201
    %p210 = scmp.eq.s32.totalorder %s19, 15
    %p211 = por %p209, %p210
    %p212 = scmp.ne.s32.totalorder %s201, %s202
    %p213 = scmp.eq.s32.totalorder %s19, 0
    %p214 = por %p212, %p213
    %p215 = scmp.ne.s32.totalorder %s201, %s202
    %p216 = scmp.eq.s32.totalorder %s20, 15
    %p217 = por %p215, %p216
    %p219 = scmp.ne.s32.totalorder %s202, %s218
    %p220 = scmp.eq.s32.totalorder %s20, 0
    %p221 = por %p219, %p220
    %s222 = ssub.s32 %s21, %s33
    %p223 = scmp.eq.s32.totalorder %s222, 0
    %s225 = sadd.s32 %s224, 1
    %s226 = scalar_select %p223, %s224, %s225
    %p229 = pneg %p223
    %p230 = scmp.eq.s32.totalorder %s14, 15
    %p231 = por %p229, %p230
    %p232 = scmp.ne.s32.totalorder %s224, %s227
    %p233 = scmp.eq.s32.totalorder %s14, 0
    %p234 = por %p232, %p233
    %p235 = scmp.ne.s32.totalorder %s224, %s227
    %p236 = scmp.eq.s32.totalorder %s19, 15
    %p237 = por %p235, %p236
    %p238 = scmp.ne.s32.totalorder %s227, %s228
    %p239 = scmp.eq.s32.totalorder %s19, 0
    %p240 = por %p238, %p239
    %p241 = scmp.ne.s32.totalorder %s227, %s228
    %p242 = scmp.eq.s32.totalorder %s20, 15
    %p243 = por %p241, %p242
    %p245 = scmp.ne.s32.totalorder %s228, %s244
    %p246 = scmp.eq.s32.totalorder %s20, 0
    %p247 = por %p245, %p246
    %p248 = scmp.le.s32.totalorder 1, %s14
    %p249 = scmp.lt.s32.totalorder %s14, 17
    %p250 = pnand %p248, %p249
    %p251 = pneg %p250
    // Predicated region
    $region9: #{split_conv_csa_forward.9} parent=5 // pred_check
      _
    $region10: #{split_conv_csa_forward.9} parent=5 // pred_check_branch
      %253 = sbr.rel (%p250) target = $region12
    $region11: #{split_conv_csa_forward.9} parent=5 // pred_region
      %s254 = ssub.s32 %s14, 1
    $region12: #{split_conv_csa_forward.9} parent=5 // pred_fallthru
      _
    %p255 = scmp.lt.s32.totalorder %s14, 16
    // Predicated region
    $region13: #{split_conv_csa_forward.9} parent=5 // pred_check
      %p256 = pneg %p255
    $region14: #{split_conv_csa_forward.9} parent=5 // pred_check_branch
      %258 = sbr.rel (%p256) target = $region16
    $region15: #{split_conv_csa_forward.9} parent=5 // pred_region
      // Predicated region
      $region17: #{split_conv_csa_forward.9} parent=15 // pred_check
        %p259 = pneg %p48
      $region18: #{split_conv_csa_forward.9} parent=15 // pred_check_branch
        %261 = sbr.rel (%p259) target = $region20
      $region19: #{split_conv_csa_forward.9} parent=15 // pred_region
        %p262 = scmp.lt.s32.totalorder %s21, 1
        %s263 = scalar_select %p262, %s21, 1
        %p264 = scmp.lt.s32.totalorder %s22, 7
        %s265 = scalar_select %p264, %s22, 7
        %s266 = smul.addr %s265, 16
        %s267 = smul.addr %s263, 128
        %s268 = sadd.s32 %s266, %s267
        %s269 = smul.addr %s268, 8
        %s270 = scalar_lea.vmem %s0, %s269
      $region20: #{split_conv_csa_forward.9} parent=15 // pred_fallthru
        _
      // Predicated region
      $region21: #{split_conv_csa_forward.9} parent=15 // pred_check
        %p271 = pneg %p74
      $region22: #{split_conv_csa_forward.9} parent=15 // pred_check_branch
        %273 = sbr.rel (%p271) target = $region24
      $region23: #{split_conv_csa_forward.9} parent=15 // pred_region
        %p274 = scmp.lt.s32.totalorder %s21, 1
        %s275 = scalar_select %p274, %s21, 1
        %s276 = scalar_lea.vmem %s1, %s275
      $region24: #{split_conv_csa_forward.9} parent=15 // pred_fallthru
        _
      // Predicated region
      $region25: #{split_conv_csa_forward.9} parent=15 // pred_check
        %p277 = pneg %p100
      $region26: #{split_conv_csa_forward.9} parent=15 // pred_check_branch
        %279 = sbr.rel (%p277) target = $region28
      $region27: #{split_conv_csa_forward.9} parent=15 // pred_region
        %p280 = scmp.lt.s32.totalorder %s21, 1
        %s281 = scalar_select %p280, %s21, 1
        %s282 = scalar_lea.vmem %s2, %s281
      $region28: #{split_conv_csa_forward.9} parent=15 // pred_fallthru
        _
      // Predicated region
      $region29: #{split_conv_csa_forward.9} parent=15 // pred_check
        %p283 = pneg %p126
      $region30: #{split_conv_csa_forward.9} parent=15 // pred_check_branch
        %285 = sbr.rel (%p283) target = $region32
      $region31: #{split_conv_csa_forward.9} parent=15 // pred_region
        %p286 = scmp.lt.s32.totalorder %s21, 1
        %s287 = scalar_select %p286, %s21, 1
        %s288 = scalar_lea.vmem %s3, %s287
      $region32: #{split_conv_csa_forward.9} parent=15 // pred_fallthru
        _
      // Predicated region
      $region33: #{split_conv_csa_forward.9} parent=15 // pred_check
        %p289 = pneg %p152
      $region34: #{split_conv_csa_forward.9} parent=15 // pred_check_branch
        %291 = sbr.rel (%p289) target = $region36
      $region35: #{split_conv_csa_forward.9} parent=15 // pred_region
        %p292 = scmp.lt.s32.totalorder %s21, 1
        %s293 = scalar_select %p292, %s21, 1
        %s294 = scalar_lea.vmem %s4, %s293
      $region36: #{split_conv_csa_forward.9} parent=15 // pred_fallthru
        _
      // Predicated region
      $region37: #{split_conv_csa_forward.9} parent=15 // pred_check
        %p295 = pneg %p180
      $region38: #{split_conv_csa_forward.9} parent=15 // pred_check_branch
        %297 = sbr.rel (%p295) target = $region40
      $region39: #{split_conv_csa_forward.9} parent=15 // pred_region
        %s298 = sadd.s32 %s22, 1
        %p299 = scmp.lt.s32.totalorder %s298, 9
        %s300 = scalar_select %p299, %s298, 9
        %s301 = smul.addr %s300, 16
        %s302 = smul.addr %s301, 8
        %s303 = scalar_lea.vmem %s5, %s302
        %s304 = sadd.s32 %s22, 1
      $region40: #{split_conv_csa_forward.9} parent=15 // pred_fallthru
        _
    $region16: #{split_conv_csa_forward.9} parent=5 // pred_fallthru
      _
    %p305 = scmp.le.s32.totalorder 1, %s14
    %p306 = scmp.lt.s32.totalorder %s14, 17
    %p307 = pnand %p305, %p306
    %p308 = pneg %p307
    // Predicated region
    $region41: #{split_conv_csa_forward.9} parent=5 // pred_check
      _
    $region42: #{split_conv_csa_forward.9} parent=5 // pred_check_branch
      %310 = sbr.rel (%p307) target = $region44
    $region43: #{split_conv_csa_forward.9} parent=5 // pred_region
      %s311 = ssub.s32 %s14, 1
      %p312 = scmp.lt.s32.totalorder %s23, 1
      %s313 = scalar_select %p312, %s23, 1
      %p314 = scmp.lt.s32.totalorder %s24, 7
      %s315 = scalar_select %p314, %s24, 7
      %s316 = smul.addr %s315, 16
      %s317 = smul.addr %s313, 128
      %s318 = sadd.s32 %s316, %s317
      %s319 = smul.addr %s318, 8
      %s320 = scalar_lea.vmem %s0, %s319
      %p321 = pneg %p54
      %p322 = pneg %p51
      %p323 = scmp.lt.s32.totalorder %s23, 1
      %s324 = scalar_select %p323, %s23, 1
      %s325 = scalar_lea.vmem %s1, %s324
      %p326 = pneg %p80
      %p327 = pneg %p77
      %p328 = scmp.lt.s32.totalorder %s23, 1
      %s329 = scalar_select %p328, %s23, 1
      %s330 = scalar_lea.vmem %s2, %s329
      %p331 = pneg %p106
      %p332 = pneg %p103
      %p333 = scmp.lt.s32.totalorder %s23, 1
      %s334 = scalar_select %p333, %s23, 1
      %s335 = scalar_lea.vmem %s3, %s334
      %p336 = pneg %p132
      %p337 = pneg %p129
      %p338 = scmp.lt.s32.totalorder %s23, 1
      %s339 = scalar_select %p338, %s23, 1
      %s340 = scalar_lea.vmem %s4, %s339
      %p341 = pneg %p158
      %p342 = pneg %p155
      %s343 = sadd.s32 %s24, 1
      %p344 = scmp.lt.s32.totalorder %s343, 9
      %s345 = scalar_select %p344, %s343, 9
      %s346 = smul.addr %s345, 16
      %s347 = smul.addr %s346, 8
      %s348 = scalar_lea.vmem %s5, %s347
      %p349 = pneg %p186
      %p350 = pneg %p183
      %p351 = pneg %p214
      %p352 = pneg %p211
      %p353 = scmp.lt.s32.totalorder %s23, 1
      %s354 = scalar_select %p353, %s23, 1
      %p355 = scmp.lt.s32.totalorder %s24, 7
      %s356 = scalar_select %p355, %s24, 7
      %s357 = smul.addr %s356, 16
      %s358 = smul.addr %s354, 128
      %s359 = sadd.s32 %s357, %s358
      %s360 = smul.addr %s359, 4
      %s361 = scalar_lea.vmem %s6, %s360
      %p362 = pneg %p240
      %p363 = pneg %p237
      %p364 = scmp.lt.s32.totalorder %s23, 1
      %s365 = scalar_select %p364, %s23, 1
      %s366 = scalar_lea.vmem %s7, %s365
      %p367 = scmp.lt.s32.totalorder %s23, 1
      %s368 = scalar_select %p367, %s23, 1
      %p369 = scmp.lt.s32.totalorder %s24, 7
      %s370 = scalar_select %p369, %s24, 7
      %s371 = smul.addr %s370, 16
      %s372 = smul.addr %s368, 128
      %s373 = sadd.s32 %s371, %s372
      %s374 = smul.addr %s373, 8
      %s375 = scalar_lea.vmem %s0, %s374
      %p376 = scmp.lt.s32.totalorder %s23, 1
      %s377 = scalar_select %p376, %s23, 1
      %s378 = scalar_lea.vmem %s1, %s377
      %p379 = scmp.lt.s32.totalorder %s23, 1
      %s380 = scalar_select %p379, %s23, 1
      %s381 = scalar_lea.vmem %s2, %s380
      %p382 = scmp.lt.s32.totalorder %s23, 1
      %s383 = scalar_select %p382, %s23, 1
      %s384 = scalar_lea.vmem %s3, %s383
      %p385 = scmp.lt.s32.totalorder %s23, 1
      %s386 = scalar_select %p385, %s23, 1
      %s387 = scalar_lea.vmem %s4, %s386
      %s388 = sadd.s32 %s24, 1
      %p389 = scmp.lt.s32.totalorder %s388, 9
      %s390 = scalar_select %p389, %s388, 9
      %s391 = smul.addr %s390, 16
      %s392 = smul.addr %s391, 8
      %s393 = scalar_lea.vmem %s5, %s392
      %s394 = sadd.s32 %s24, 1
      %p395 = scmp.lt.s32.totalorder %s23, 1
      %s396 = scalar_select %p395, %s23, 1
      %p397 = scmp.lt.s32.totalorder %s24, 7
      %s398 = scalar_select %p397, %s24, 7
      %s399 = smul.addr %s398, 16
      %s400 = smul.addr %s396, 128
      %s401 = sadd.s32 %s399, %s400
      %s402 = smul.addr %s401, 4
      %s403 = scalar_lea.vmem %s6, %s402
      %p404 = scmp.lt.s32.totalorder %s23, 1
      %s405 = scalar_select %p404, %s23, 1
      %s406 = scalar_lea.vmem %s7, %s405
      %v407 = vld [vmem:[%s375] sm:$0xff]
      %v408 = vld [vmem:[%s375 + $0x8] sm:$0xff]
      %v409 = vld [vmem:[%s375 + $0x10] sm:$0xff]
      %v410 = vld [vmem:[%s375 + $0x18] sm:$0xff]
      %v411 = vld [vmem:[%s375 + $0x20] sm:$0xff]
      %v412 = vld [vmem:[%s375 + $0x28] sm:$0xff]
      %v413 = vld [vmem:[%s375 + $0x30] sm:$0xff]
      %v414 = vld [vmem:[%s375 + $0x38] sm:$0xff]
      %v415 = vld [vmem:[%s375 + $0x40] sm:$0xff]
      %v416 = vld [vmem:[%s375 + $0x48] sm:$0xff]
      %v417 = vld [vmem:[%s375 + $0x50] sm:$0xff]
      %v418 = vld [vmem:[%s375 + $0x58] sm:$0xff]
      %v419 = vld [vmem:[%s375 + $0x60] sm:$0xff]
      %v420 = vld [vmem:[%s375 + $0x68] sm:$0xff]
      %v421 = vld [vmem:[%s375 + $0x70] sm:$0xff]
      %v422 = vld [vmem:[%s375 + $0x78] sm:$0xff]
      %v423 = vld [vmem:[%s378] sm:$0x1]
      %v424 = vmul.f32 %v423, 0.001953125
      %v425 = vld [vmem:[%s381] sm:$0x1]
      %v426 = vmul.f32 %v425, 0.001953125
      %v427 = vmul.f32 %v424, %v424
      %v428 = vsub.f32 %v426, %v427
      %v429 = vmax.f32 %v428, 0.0
      %v431 = vlaneseq
      %v432 = vshrl.u32 %v431, 7
      %v433 = vsub.s32 0, %v432
      %v434 = vrot.slane %v424, %v433
      %v436 = vsub.f32 %v407, %v434
      %v437 = vsub.f32 %v408, %v434
      %v438 = vsub.f32 %v409, %v434
      %v439 = vsub.f32 %v410, %v434
      %v440 = vsub.f32 %v411, %v434
      %v441 = vsub.f32 %v412, %v434
      %v442 = vsub.f32 %v413, %v434
      %v443 = vsub.f32 %v414, %v434
      %v444 = vsub.f32 %v415, %v434
      %v445 = vsub.f32 %v416, %v434
      %v446 = vsub.f32 %v417, %v434
      %v447 = vsub.f32 %v418, %v434
      %v448 = vsub.f32 %v419, %v434
      %v449 = vsub.f32 %v420, %v434
      %v450 = vsub.f32 %v421, %v434
      %v451 = vsub.f32 %v422, %v434
      %v452 = vadd.f32 %v429, 1e-05
      %v453 = vrsqrt.pop %v452
      %v455 = vlaneseq
      %v456 = vshrl.u32 %v455, 7
      %v457 = vsub.s32 0, %v456
      %v458 = vrot.slane %v453, %v457
      %v460 = vmul.f32 %v436, %v458
      %v461 = vmul.f32 %v437, %v458
      %v462 = vmul.f32 %v438, %v458
      %v463 = vmul.f32 %v439, %v458
      %v464 = vmul.f32 %v440, %v458
      %v465 = vmul.f32 %v441, %v458
      %v466 = vmul.f32 %v442, %v458
      %v467 = vmul.f32 %v443, %v458
      %v468 = vmul.f32 %v444, %v458
      %v469 = vmul.f32 %v445, %v458
      %v470 = vmul.f32 %v446, %v458
      %v471 = vmul.f32 %v447, %v458
      %v472 = vmul.f32 %v448, %v458
      %v473 = vmul.f32 %v449, %v458
      %v474 = vmul.f32 %v450, %v458
      %v475 = vmul.f32 %v451, %v458
      %v476 = vld [vmem:[%s384] sm:$0x1]
      %v478 = vlaneseq
      %v479 = vshrl.u32 %v478, 7
      %v480 = vsub.s32 0, %v479
      %v481 = vrot.slane %v476, %v480
      %v483 = vmul.f32 %v460, %v481
      %v484 = vmul.f32 %v461, %v481
      %v485 = vmul.f32 %v462, %v481
      %v486 = vmul.f32 %v463, %v481
      %v487 = vmul.f32 %v464, %v481
      %v488 = vmul.f32 %v465, %v481
      %v489 = vmul.f32 %v466, %v481
      %v490 = vmul.f32 %v467, %v481
      %v491 = vmul.f32 %v468, %v481
      %v492 = vmul.f32 %v469, %v481
      %v493 = vmul.f32 %v470, %v481
      %v494 = vmul.f32 %v471, %v481
      %v495 = vmul.f32 %v472, %v481
      %v496 = vmul.f32 %v473, %v481
      %v497 = vmul.f32 %v474, %v481
      %v498 = vmul.f32 %v475, %v481
      %v499 = vld [vmem:[%s387] sm:$0x1]
      %v501 = vlaneseq
      %v502 = vshrl.u32 %v501, 7
      %v503 = vsub.s32 0, %v502
      %v504 = vrot.slane %v499, %v503
      %v506 = vadd.f32 %v483, %v504
      %v507 = vadd.f32 %v484, %v504
      %v508 = vadd.f32 %v485, %v504
      %v509 = vadd.f32 %v486, %v504
      %v510 = vadd.f32 %v487, %v504
      %v511 = vadd.f32 %v488, %v504
      %v512 = vadd.f32 %v489, %v504
      %v513 = vadd.f32 %v490, %v504
      %v514 = vadd.f32 %v491, %v504
      %v515 = vadd.f32 %v492, %v504
      %v516 = vadd.f32 %v493, %v504
      %v517 = vadd.f32 %v494, %v504
      %v518 = vadd.f32 %v495, %v504
      %v519 = vadd.f32 %v496, %v504
      %v520 = vadd.f32 %v497, %v504
      %v521 = vadd.f32 %v498, %v504
      %vm522 = vcmp.gt.f32.partialorder %v506, 0.0
      %vm523 = vcmp.gt.f32.partialorder %v507, 0.0
      %vm524 = vcmp.gt.f32.partialorder %v508, 0.0
      %vm525 = vcmp.gt.f32.partialorder %v509, 0.0
      %vm526 = vcmp.gt.f32.partialorder %v510, 0.0
      %vm527 = vcmp.gt.f32.partialorder %v511, 0.0
      %vm528 = vcmp.gt.f32.partialorder %v512, 0.0
      %vm529 = vcmp.gt.f32.partialorder %v513, 0.0
      %vm530 = vcmp.gt.f32.partialorder %v514, 0.0
      %vm531 = vcmp.gt.f32.partialorder %v515, 0.0
      %vm532 = vcmp.gt.f32.partialorder %v516, 0.0
      %vm533 = vcmp.gt.f32.partialorder %v517, 0.0
      %vm534 = vcmp.gt.f32.partialorder %v518, 0.0
      %vm535 = vcmp.gt.f32.partialorder %v519, 0.0
      %vm536 = vcmp.gt.f32.partialorder %v520, 0.0
      %vm537 = vcmp.gt.f32.partialorder %v521, 0.0
      %v538 = vmul.f32 %v506, 0.01
      %v539 = vmul.f32 %v507, 0.01
      %v540 = vmul.f32 %v508, 0.01
      %v541 = vmul.f32 %v509, 0.01
      %v542 = vmul.f32 %v510, 0.01
      %v543 = vmul.f32 %v511, 0.01
      %v544 = vmul.f32 %v512, 0.01
      %v545 = vmul.f32 %v513, 0.01
      %v546 = vmul.f32 %v514, 0.01
      %v547 = vmul.f32 %v515, 0.01
      %v548 = vmul.f32 %v516, 0.01
      %v549 = vmul.f32 %v517, 0.01
      %v550 = vmul.f32 %v518, 0.01
      %v551 = vmul.f32 %v519, 0.01
      %v552 = vmul.f32 %v520, 0.01
      %v553 = vmul.f32 %v521, 0.01
      %v554 = vsel %vm522, %v506, %v538
      %v555 = vsel %vm523, %v507, %v539
      %v556 = vsel %vm524, %v508, %v540
      %v557 = vsel %vm525, %v509, %v541
      %v558 = vsel %vm526, %v510, %v542
      %v559 = vsel %vm527, %v511, %v543
      %v560 = vsel %vm528, %v512, %v544
      %v561 = vsel %vm529, %v513, %v545
      %v562 = vsel %vm530, %v514, %v546
      %v563 = vsel %vm531, %v515, %v547
      %v564 = vsel %vm532, %v516, %v548
      %v565 = vsel %vm533, %v517, %v549
      %v566 = vsel %vm534, %v518, %v550
      %v567 = vsel %vm535, %v519, %v551
      %v568 = vsel %vm536, %v520, %v552
      %v569 = vsel %vm537, %v521, %v553
      %v570 = vld [vmem:[%s393] sm:$0xff]
      %v571 = vld [vmem:[%s393 + $0x8] sm:$0xff]
      %v572 = vld [vmem:[%s393 + $0x10] sm:$0xff]
      %v573 = vld [vmem:[%s393 + $0x18] sm:$0xff]
      %v574 = vld [vmem:[%s393 + $0x20] sm:$0xff]
      %v575 = vld [vmem:[%s393 + $0x28] sm:$0xff]
      %v576 = vld [vmem:[%s393 + $0x30] sm:$0xff]
      %v577 = vld [vmem:[%s393 + $0x38] sm:$0xff]
      %v578 = vld [vmem:[%s393 + $0x40] sm:$0xff]
      %v579 = vld [vmem:[%s393 + $0x48] sm:$0xff]
      %v580 = vld [vmem:[%s393 + $0x50] sm:$0xff]
      %v581 = vld [vmem:[%s393 + $0x58] sm:$0xff]
      %v582 = vld [vmem:[%s393 + $0x60] sm:$0xff]
      %v583 = vld [vmem:[%s393 + $0x68] sm:$0xff]
      %v584 = vld [vmem:[%s393 + $0x70] sm:$0xff]
      %v585 = vld [vmem:[%s393 + $0x78] sm:$0xff]
      %587 = vset.pattern.permute.xlu0 0
      %588 = vperm.xlu0 %587, %v570
      %v589 = vpop.permute.xlu0 %588
      %592 = vset.pattern.permute.xlu0 0
      %593 = vperm.xlu0 %592, %v571
      %v594 = vpop.permute.xlu0 %593
      %597 = vset.pattern.permute.xlu0 0
      %598 = vperm.xlu0 %597, %v572
      %v599 = vpop.permute.xlu0 %598
      %602 = vset.pattern.permute.xlu0 0
      %603 = vperm.xlu0 %602, %v573
      %v604 = vpop.permute.xlu0 %603
      %607 = vset.pattern.permute.xlu0 0
      %608 = vperm.xlu0 %607, %v574
      %v609 = vpop.permute.xlu0 %608
      %612 = vset.pattern.permute.xlu0 0
      %613 = vperm.xlu0 %612, %v575
      %v614 = vpop.permute.xlu0 %613
      %617 = vset.pattern.permute.xlu0 0
      %618 = vperm.xlu0 %617, %v576
      %v619 = vpop.permute.xlu0 %618
      %622 = vset.pattern.permute.xlu0 0
      %623 = vperm.xlu0 %622, %v577
      %v624 = vpop.permute.xlu0 %623
      %627 = vset.pattern.permute.xlu0 0
      %628 = vperm.xlu0 %627, %v578
      %v629 = vpop.permute.xlu0 %628
      %632 = vset.pattern.permute.xlu0 0
      %633 = vperm.xlu0 %632, %v579
      %v634 = vpop.permute.xlu0 %633
      %637 = vset.pattern.permute.xlu0 0
      %638 = vperm.xlu0 %637, %v580
      %v639 = vpop.permute.xlu0 %638
      %642 = vset.pattern.permute.xlu0 0
      %643 = vperm.xlu0 %642, %v581
      %v644 = vpop.permute.xlu0 %643
      %647 = vset.pattern.permute.xlu0 0
      %648 = vperm.xlu0 %647, %v582
      %v649 = vpop.permute.xlu0 %648
      %652 = vset.pattern.permute.xlu0 0
      %653 = vperm.xlu0 %652, %v583
      %v654 = vpop.permute.xlu0 %653
      %657 = vset.pattern.permute.xlu0 0
      %658 = vperm.xlu0 %657, %v584
      %v659 = vpop.permute.xlu0 %658
      %662 = vset.pattern.permute.xlu0 0
      %663 = vperm.xlu0 %662, %v585
      %v664 = vpop.permute.xlu0 %663
      %v666 = vmul.f32 %v554, %v589
      %v667 = vmul.f32 %v555, %v594
      %v668 = vmul.f32 %v556, %v599
      %v669 = vmul.f32 %v557, %v604
      %v670 = vmul.f32 %v558, %v609
      %v671 = vmul.f32 %v559, %v614
      %v672 = vmul.f32 %v560, %v619
      %v673 = vmul.f32 %v561, %v624
      %v674 = vmul.f32 %v562, %v629
      %v675 = vmul.f32 %v563, %v634
      %v676 = vmul.f32 %v564, %v639
      %v677 = vmul.f32 %v565, %v644
      %v678 = vmul.f32 %v566, %v649
      %v679 = vmul.f32 %v567, %v654
      %v680 = vmul.f32 %v568, %v659
      %v681 = vmul.f32 %v569, %v664
      %v682 = vpack.c.bf16 %v667, %v666
      %v683 = vpack.c.bf16 %v669, %v668
      %v684 = vpack.c.bf16 %v671, %v670
      %v685 = vpack.c.bf16 %v673, %v672
      %v686 = vpack.c.bf16 %v675, %v674
      %v687 = vpack.c.bf16 %v677, %v676
      %v688 = vpack.c.bf16 %v679, %v678
      %v689 = vpack.c.bf16 %v681, %v680
      %v698 = vunpack.c.l.b16 %v682
      %v699 = vunpack.c.h.b16 %v682
      %v700 = vunpack.c.l.b16 %v683
      %v701 = vunpack.c.h.b16 %v683
      %v702 = vunpack.c.l.b16 %v684
      %v703 = vunpack.c.h.b16 %v684
      %v704 = vunpack.c.l.b16 %v685
      %v705 = vunpack.c.h.b16 %v685
      %v706 = vunpack.c.l.b16 %v686
      %v707 = vunpack.c.h.b16 %v686
      %v708 = vunpack.c.l.b16 %v687
      %v709 = vunpack.c.h.b16 %v687
      %v710 = vunpack.c.l.b16 %v688
      %v711 = vunpack.c.h.b16 %v688
      %v712 = vunpack.c.l.b16 %v689
      %v713 = vunpack.c.h.b16 %v689
      %v714 = vpack.c.b16 %v698, %v698
      %v715 = vpack.c.b16 %v699, %v699
      %v716 = vpack.c.b16 %v700, %v700
      %v717 = vpack.c.b16 %v701, %v701
      %v718 = vpack.c.b16 %v702, %v702
      %v719 = vpack.c.b16 %v703, %v703
      %v720 = vpack.c.b16 %v704, %v704
      %v721 = vpack.c.b16 %v705, %v705
      %v722 = vpack.c.b16 %v706, %v706
      %v723 = vpack.c.b16 %v707, %v707
      %v724 = vpack.c.b16 %v708, %v708
      %v725 = vpack.c.b16 %v709, %v709
      %v726 = vpack.c.b16 %v710, %v710
      %v727 = vpack.c.b16 %v711, %v711
      %v728 = vpack.c.b16 %v712, %v712
      %v729 = vpack.c.b16 %v713, %v713
      %746 = vst [vmem:[%s403] sm:$0xf] %v714
      %747 = vst [vmem:[%s403 + $0x4] sm:$0xf] %v715
      %748 = vst [vmem:[%s403 + $0x8] sm:$0xf] %v716
      %749 = vst [vmem:[%s403 + $0xc] sm:$0xf] %v717
      %750 = vst [vmem:[%s403 + $0x10] sm:$0xf] %v718
      %751 = vst [vmem:[%s403 + $0x14] sm:$0xf] %v719
      %752 = vst [vmem:[%s403 + $0x18] sm:$0xf] %v720
      %753 = vst [vmem:[%s403 + $0x1c] sm:$0xf] %v721
      %754 = vst [vmem:[%s403 + $0x20] sm:$0xf] %v722
      %755 = vst [vmem:[%s403 + $0x24] sm:$0xf] %v723
      %756 = vst [vmem:[%s403 + $0x28] sm:$0xf] %v724
      %757 = vst [vmem:[%s403 + $0x2c] sm:$0xf] %v725
      %758 = vst [vmem:[%s403 + $0x30] sm:$0xf] %v726
      %759 = vst [vmem:[%s403 + $0x34] sm:$0xf] %v727
      %760 = vst [vmem:[%s403 + $0x38] sm:$0xf] %v728
      %761 = vst [vmem:[%s403 + $0x3c] sm:$0xf] %v729
      %p762 = scmp.eq.s32.totalorder %s24, 0
      // Predicated region
      $region45: #{split_conv_csa_forward.9} parent=43 // pred_check
        %p763 = pneg %p762
      $region46: #{split_conv_csa_forward.9} parent=43 // pred_check_branch
        %765 = sbr.rel (%p763) target = $region48
      $region47: #{split_conv_csa_forward.9} parent=43 // pred_region
        %766 = vst [vmem:[%s406] sm:$0x1] 0.0
      $region48: #{split_conv_csa_forward.9} parent=43 // pred_fallthru
        _
      %v767 = vld [vmem:[%s406] sm:$0x1]
      %v768 = vadd.f32 %v666, %v667
      %v769 = vadd.f32 %v768, %v668
      %v770 = vadd.f32 %v769, %v669
      %v771 = vadd.f32 %v770, %v670
      %v772 = vadd.f32 %v771, %v671
      %v773 = vadd.f32 %v772, %v672
      %v774 = vadd.f32 %v773, %v673
      %v775 = vadd.f32 %v774, %v674
      %v776 = vadd.f32 %v775, %v675
      %v777 = vadd.f32 %v776, %v676
      %v778 = vadd.f32 %v777, %v677
      %v779 = vadd.f32 %v778, %v678
      %v780 = vadd.f32 %v779, %v679
      %v781 = vadd.f32 %v780, %v680
      %v782 = vadd.f32 %v781, %v681
      %v783 = vrot.slane %v782, 4
      %v784 = vadd.f32 %v782, %v783
      %v785 = vrot.slane %v784, 2
      %v786 = vadd.f32 %v784, %v785
      %v787 = vrot.slane %v786, 1
      %v788 = vadd.f32 %v786, %v787
      %v789 = vadd.f32 %v767, %v788
      %790 = vst [vmem:[%s406] sm:$0x1] %v789
      %p791 = scmp.lt.s32.totalorder %s23, 1
      %s792 = scalar_select %p791, %s23, 1
      %p793 = scmp.lt.s32.totalorder %s24, 7
      %s794 = scalar_select %p793, %s24, 7
      %s795 = smul.addr %s794, 16
      %s796 = smul.addr %s792, 128
      %s797 = sadd.s32 %s795, %s796
      %s798 = smul.addr %s797, 4
      %s799 = scalar_lea.vmem %s6, %s798
      %p800 = scmp.lt.s32.totalorder %s23, 1
      %s801 = scalar_select %p800, %s23, 1
      %s802 = scalar_lea.vmem %s7, %s801
      // Predicated region
      $region49: #{split_conv_csa_forward.9} parent=43 // pred_check
        %p803 = pneg %p211
      $region50: #{split_conv_csa_forward.9} parent=43 // pred_check_branch
        %805 = sbr.rel (%p803) target = $region52
      $region51: #{split_conv_csa_forward.9} parent=43 // pred_region
        _
      $region52: #{split_conv_csa_forward.9} parent=43 // pred_fallthru
        _
      // Predicated region
      $region53: #{split_conv_csa_forward.9} parent=43 // pred_check
        %p806 = pneg %p237
      $region54: #{split_conv_csa_forward.9} parent=43 // pred_check_branch
        %808 = sbr.rel (%p806) target = $region56
      $region55: #{split_conv_csa_forward.9} parent=43 // pred_region
        _
      $region56: #{split_conv_csa_forward.9} parent=43 // pred_fallthru
        _
    $region44: #{split_conv_csa_forward.9} parent=5 // pred_fallthru
      _
    %p809 = scmp.le.s32.totalorder 2, %s14
    // Predicated region
    $region57: #{split_conv_csa_forward.9} parent=5 // pred_check
      %p810 = pneg %p809
    $region58: #{split_conv_csa_forward.9} parent=5 // pred_check_branch
      %812 = sbr.rel (%p810) target = $region60
    $region59: #{split_conv_csa_forward.9} parent=5 // pred_region
      %s813 = ssub.s32 %s14, 2
      // Predicated region
      $region61: #{split_conv_csa_forward.9} parent=59 // pred_check
        %p814 = pneg %p217
      $region62: #{split_conv_csa_forward.9} parent=59 // pred_check_branch
        %816 = sbr.rel (%p814) target = $region64
      $region63: #{split_conv_csa_forward.9} parent=59 // pred_region
        %p817 = scmp.lt.s32.totalorder %s25, 1
        %s818 = scalar_select %p817, %s25, 1
        %p819 = scmp.lt.s32.totalorder %s26, 7
        %s820 = scalar_select %p819, %s26, 7
        %s821 = smul.addr %s820, 16
        %s822 = smul.addr %s818, 128
        %s823 = sadd.s32 %s821, %s822
        %s824 = smul.addr %s823, 4
        %s825 = scalar_lea.vmem %s6, %s824
      $region64: #{split_conv_csa_forward.9} parent=59 // pred_fallthru
        _
      // Predicated region
      $region65: #{split_conv_csa_forward.9} parent=59 // pred_check
        %p826 = pneg %p243
      $region66: #{split_conv_csa_forward.9} parent=59 // pred_check_branch
        %828 = sbr.rel (%p826) target = $region68
      $region67: #{split_conv_csa_forward.9} parent=59 // pred_region
        %p829 = scmp.lt.s32.totalorder %s25, 1
        %s830 = scalar_select %p829, %s25, 1
        %s831 = scalar_lea.vmem %s7, %s830
      $region68: #{split_conv_csa_forward.9} parent=59 // pred_fallthru
        _
    $region60: #{split_conv_csa_forward.9} parent=5 // pred_fallthru
      _
  $region6: #{split_conv_csa_forward.9} parent=0 // loop_footer
    %s18 = sadd.s32 1, %s14
  $region7: #{split_conv_csa_forward.9} parent=0 // loop_footer_branch
    %13 = sbr.rel target = $region3
  $region8: #{split_conv_csa_forward.9} parent=0 // loop_exit
    _

// kernel: split_conv_csa_forward.8
$region0: #{split_conv_csa_forward.8}
  #allocation0 [shape = 'u32[]', space=smem, size = 0x4, offset = 0x4, fixed_abs, tag = 'smem constant byte address 0x4 - core index']
  #allocation1 [shape = 'u32[144,128]{1,0:T(1,128)}', space=vmem, size = 0x12000, scoped, tag = 'internal scratch']
  %s0 = inlined_call_operand.vmem [shape: bf16[2,10,128,128], index: 0, kind: input, shape index: {}, may-alias: {0,1,2}]
  %s1 = inlined_call_operand.vmem [shape: bf16[2,10,128,128], index: 1, kind: input, shape index: {}, may-alias: {0,1,2}]
  %s2 = inlined_call_operand.vmem [shape: bf16[2,10,128,128], index: 2, kind: input, shape index: {}, may-alias: {0,1,2}]
  %s3 = inlined_call_operand.vmem [shape: bf16[27,128,128], index: 3, kind: input, shape index: {}]
  %s4 = inlined_call_operand.vmem [shape: f32[10,128,1], index: 4, kind: input, shape index: {}]
  %s5 = inlined_call_operand.vmem [shape: f32[2,8,128,128], index: 5, kind: output, shape index: {0}]
  %s6 = inlined_call_operand.vmem [shape: f32[2,1,128], index: 6, kind: output, shape index: {1}]
  %s7 = inlined_call_operand.vmem [shape: f32[2,1,128], index: 7, kind: output, shape index: {2}]
  %8 = xla_tuple %s5, %s6, %s7
  %s9 = sld [smem:[#allocation0]]
  $region73: #{split_conv_csa_forward.8} parent=0
    _
  %s11 = ssub.s32 1, %s9
  %s12 = scalar_select 0, %s11, %s9
  loop: start=0, step=1, limit=18
  $region2: #{split_conv_csa_forward.8} parent=0 // loop_pre_header
    _
  $region3: #{split_conv_csa_forward.8} parent=0 // loop_header
    %s14 = sphi 0, %s18
    %p15 = scmp.ge.s32.totalorder %s14, 18
    %s21 = sphi 0, %s33
    %s22 = sphi 0, %s29
    %s23 = sphi 0, %s21
    %s24 = sphi 0, %s22
    %s25 = sphi 0, %s23
    %s26 = sphi 0, %s24
    %s38 = sphi 0, %s40
    %s41 = sphi 0, %s38
    %s42 = sphi 0, %s41
    %s58 = sphi 0, %s42
    %s68 = sphi 0, %s70
    %s71 = sphi 0, %s68
    %s72 = sphi 0, %s71
    %s88 = sphi 0, %s72
    %s98 = sphi 0, %s100
    %s101 = sphi 0, %s98
    %s102 = sphi 0, %s101
    %s118 = sphi 0, %s102
    %s122 = sphi 0, %s122
    %s124 = sphi 0, %s122
    %s125 = sphi 0, %s124
    %s139 = sphi 0, %s125
    %s147 = sphi 0, %s149
    %s150 = sphi 0, %s147
    %s151 = sphi 0, %s150
    %s167 = sphi 0, %s151
    %s175 = sphi 0, %s177
    %s178 = sphi 0, %s175
    %s179 = sphi 0, %s178
    %s195 = sphi 0, %s179
    %s201 = sphi 0, %s203
    %s204 = sphi 0, %s201
    %s205 = sphi 0, %s204
    %s221 = sphi 0, %s205
    %s227 = sphi 0, %s229
    %s230 = sphi 0, %s227
    %s231 = sphi 0, %s230
    %s247 = sphi 0, %s231
  $region4: #{split_conv_csa_forward.8} parent=0 // loop_header_branch
    %17 = sbr.rel (%p15) target = $region8
  $region5: #{split_conv_csa_forward.8} parent=0 // loop_body
    %s19 = ssub.s32 %s14, 1
    %s20 = ssub.s32 %s14, 2
    %s27 = sadd.s32 1, %s22
    %p28 = scmp.ge.s32.totalorder %s27, 8
    %s29 = scalar_select %p28, 0, %s27
    %s30 = sadd.s32 1, %s21
    %s31 = scalar_select %p28, %s30, %s21
    %p32 = scmp.ge.s32.totalorder %s31, 2
    %s33 = scalar_select %p32, 0, %s31
    %s34 = ssub.s32 %s21, %s33
    %s35 = ssub.s32 %s22, %s29
    %s36 = sor.u32 %s34, %s35
    %p37 = scmp.eq.s32.totalorder %s36, 0
    %s39 = sadd.s32 %s38, 1
    %s40 = scalar_select %p37, %s38, %s39
    %p43 = pneg %p37
    %p44 = scmp.eq.s32.totalorder %s14, 15
    %p45 = por %p43, %p44
    %p46 = scmp.ne.s32.totalorder %s38, %s41
    %p47 = scmp.eq.s32.totalorder %s14, 0
    %p48 = por %p46, %p47
    %p49 = scmp.ne.s32.totalorder %s38, %s41
    %p50 = scmp.eq.s32.totalorder %s19, 15
    %p51 = por %p49, %p50
    %p52 = scmp.ne.s32.totalorder %s41, %s42
    %p53 = scmp.eq.s32.totalorder %s19, 0
    %p54 = por %p52, %p53
    %p55 = scmp.ne.s32.totalorder %s41, %s42
    %p56 = scmp.eq.s32.totalorder %s20, 15
    %p57 = por %p55, %p56
    %p59 = scmp.ne.s32.totalorder %s42, %s58
    %p60 = scmp.eq.s32.totalorder %s20, 0
    %p61 = por %p59, %p60
    %s62 = sadd.s32 %s22, 1
    %s63 = sadd.s32 %s29, 1
    %s64 = ssub.s32 %s21, %s33
    %s65 = ssub.s32 %s62, %s63
    %s66 = sor.u32 %s64, %s65
    %p67 = scmp.eq.s32.totalorder %s66, 0
    %s69 = sadd.s32 %s68, 1
    %s70 = scalar_select %p67, %s68, %s69
    %p73 = pneg %p67
    %p74 = scmp.eq.s32.totalorder %s14, 15
    %p75 = por %p73, %p74
    %p76 = scmp.ne.s32.totalorder %s68, %s71
    %p77 = scmp.eq.s32.totalorder %s14, 0
    %p78 = por %p76, %p77
    %p79 = scmp.ne.s32.totalorder %s68, %s71
    %p80 = scmp.eq.s32.totalorder %s19, 15
    %p81 = por %p79, %p80
    %p82 = scmp.ne.s32.totalorder %s71, %s72
    %p83 = scmp.eq.s32.totalorder %s19, 0
    %p84 = por %p82, %p83
    %p85 = scmp.ne.s32.totalorder %s71, %s72
    %p86 = scmp.eq.s32.totalorder %s20, 15
    %p87 = por %p85, %p86
    %p89 = scmp.ne.s32.totalorder %s72, %s88
    %p90 = scmp.eq.s32.totalorder %s20, 0
    %p91 = por %p89, %p90
    %s92 = sadd.s32 %s22, 2
    %s93 = sadd.s32 %s29, 2
    %s94 = ssub.s32 %s21, %s33
    %s95 = ssub.s32 %s92, %s93
    %s96 = sor.u32 %s94, %s95
    %p97 = scmp.eq.s32.totalorder %s96, 0
    %s99 = sadd.s32 %s98, 1
    %s100 = scalar_select %p97, %s98, %s99
    %p103 = pneg %p97
    %p104 = scmp.eq.s32.totalorder %s14, 15
    %p105 = por %p103, %p104
    %p106 = scmp.ne.s32.totalorder %s98, %s101
    %p107 = scmp.eq.s32.totalorder %s14, 0
    %p108 = por %p106, %p107
    %p109 = scmp.ne.s32.totalorder %s98, %s101
    %p110 = scmp.eq.s32.totalorder %s19, 15
    %p111 = por %p109, %p110
    %p112 = scmp.ne.s32.totalorder %s101, %s102
    %p113 = scmp.eq.s32.totalorder %s19, 0
    %p114 = por %p112, %p113
    %p115 = scmp.ne.s32.totalorder %s101, %s102
    %p116 = scmp.eq.s32.totalorder %s20, 15
    %p117 = por %p115, %p116
    %p119 = scmp.ne.s32.totalorder %s102, %s118
    %p120 = scmp.eq.s32.totalorder %s20, 0
    %p121 = por %p119, %p120
    %s123 = sadd.s32 %s122, 1
    %p126 = scmp.eq.s32.totalorder %s14, 15
    %p127 = scmp.ne.s32.totalorder %s122, %s124
    %p128 = scmp.eq.s32.totalorder %s14, 0
    %p129 = por %p127, %p128
    %p130 = scmp.ne.s32.totalorder %s122, %s124
    %p131 = scmp.eq.s32.totalorder %s19, 15
    %p132 = por %p130, %p131
    %p133 = scmp.ne.s32.totalorder %s124, %s125
    %p134 = scmp.eq.s32.totalorder %s19, 0
    %p135 = por %p133, %p134
    %p136 = scmp.ne.s32.totalorder %s124, %s125
    %p137 = scmp.eq.s32.totalorder %s20, 15
    %p138 = por %p136, %p137
    %p140 = scmp.ne.s32.totalorder %s125, %s139
    %p141 = scmp.eq.s32.totalorder %s20, 0
    %p142 = por %p140, %p141
    %s143 = sadd.s32 %s22, 1
    %s144 = sadd.s32 %s29, 1
    %s145 = ssub.s32 %s143, %s144
    %p146 = scmp.eq.s32.totalorder %s145, 0
    %s148 = sadd.s32 %s147, 1
    %s149 = scalar_select %p146, %s147, %s148
    %p152 = pneg %p146
    %p153 = scmp.eq.s32.totalorder %s14, 15
    %p154 = por %p152, %p153
    %p155 = scmp.ne.s32.totalorder %s147, %s150
    %p156 = scmp.eq.s32.totalorder %s14, 0
    %p157 = por %p155, %p156
    %p158 = scmp.ne.s32.totalorder %s147, %s150
    %p159 = scmp.eq.s32.totalorder %s19, 15
    %p160 = por %p158, %p159
    %p161 = scmp.ne.s32.totalorder %s150, %s151
    %p162 = scmp.eq.s32.totalorder %s19, 0
    %p163 = por %p161, %p162
    %p164 = scmp.ne.s32.totalorder %s150, %s151
    %p165 = scmp.eq.s32.totalorder %s20, 15
    %p166 = por %p164, %p165
    %p168 = scmp.ne.s32.totalorder %s151, %s167
    %p169 = scmp.eq.s32.totalorder %s20, 0
    %p170 = por %p168, %p169
    %s171 = ssub.s32 %s21, %s33
    %s172 = ssub.s32 %s22, %s29
    %s173 = sor.u32 %s171, %s172
    %p174 = scmp.eq.s32.totalorder %s173, 0
    %s176 = sadd.s32 %s175, 1
    %s177 = scalar_select %p174, %s175, %s176
    %p180 = pneg %p174
    %p181 = scmp.eq.s32.totalorder %s14, 15
    %p182 = por %p180, %p181
    %p183 = scmp.ne.s32.totalorder %s175, %s178
    %p184 = scmp.eq.s32.totalorder %s14, 0
    %p185 = por %p183, %p184
    %p186 = scmp.ne.s32.totalorder %s175, %s178
    %p187 = scmp.eq.s32.totalorder %s19, 15
    %p188 = por %p186, %p187
    %p189 = scmp.ne.s32.totalorder %s178, %s179
    %p190 = scmp.eq.s32.totalorder %s19, 0
    %p191 = por %p189, %p190
    %p192 = scmp.ne.s32.totalorder %s178, %s179
    %p193 = scmp.eq.s32.totalorder %s20, 15
    %p194 = por %p192, %p193
    %p196 = scmp.ne.s32.totalorder %s179, %s195
    %p197 = scmp.eq.s32.totalorder %s20, 0
    %p198 = por %p196, %p197
    %s199 = ssub.s32 %s21, %s33
    %p200 = scmp.eq.s32.totalorder %s199, 0
    %s202 = sadd.s32 %s201, 1
    %s203 = scalar_select %p200, %s201, %s202
    %p206 = pneg %p200
    %p207 = scmp.eq.s32.totalorder %s14, 15
    %p208 = por %p206, %p207
    %p209 = scmp.ne.s32.totalorder %s201, %s204
    %p210 = scmp.eq.s32.totalorder %s14, 0
    %p211 = por %p209, %p210
    %p212 = scmp.ne.s32.totalorder %s201, %s204
    %p213 = scmp.eq.s32.totalorder %s19, 15
    %p214 = por %p212, %p213
    %p215 = scmp.ne.s32.totalorder %s204, %s205
    %p216 = scmp.eq.s32.totalorder %s19, 0
    %p217 = por %p215, %p216
    %p218 = scmp.ne.s32.totalorder %s204, %s205
    %p219 = scmp.eq.s32.totalorder %s20, 15
    %p220 = por %p218, %p219
    %p222 = scmp.ne.s32.totalorder %s205, %s221
    %p223 = scmp.eq.s32.totalorder %s20, 0
    %p224 = por %p222, %p223
    %s225 = ssub.s32 %s21, %s33
    %p226 = scmp.eq.s32.totalorder %s225, 0
    %s228 = sadd.s32 %s227, 1
    %s229 = scalar_select %p226, %s227, %s228
    %p232 = pneg %p226
    %p233 = scmp.eq.s32.totalorder %s14, 15
    %p234 = por %p232, %p233
    %p235 = scmp.ne.s32.totalorder %s227, %s230
    %p236 = scmp.eq.s32.totalorder %s14, 0
    %p237 = por %p235, %p236
    %p238 = scmp.ne.s32.totalorder %s227, %s230
    %p239 = scmp.eq.s32.totalorder %s19, 15
    %p240 = por %p238, %p239
    %p241 = scmp.ne.s32.totalorder %s230, %s231
    %p242 = scmp.eq.s32.totalorder %s19, 0
    %p243 = por %p241, %p242
    %p244 = scmp.ne.s32.totalorder %s230, %s231
    %p245 = scmp.eq.s32.totalorder %s20, 15
    %p246 = por %p244, %p245
    %p248 = scmp.ne.s32.totalorder %s231, %s247
    %p249 = scmp.eq.s32.totalorder %s20, 0
    %p250 = por %p248, %p249
    %p251 = scmp.le.s32.totalorder 1, %s14
    %p252 = scmp.lt.s32.totalorder %s14, 17
    %p253 = pnand %p251, %p252
    %p254 = pneg %p253
    // Predicated region
    $region9: #{split_conv_csa_forward.8} parent=5 // pred_check
      _
    $region10: #{split_conv_csa_forward.8} parent=5 // pred_check_branch
      %256 = sbr.rel (%p253) target = $region12
    $region11: #{split_conv_csa_forward.8} parent=5 // pred_region
      %s257 = ssub.s32 %s14, 1
      // Predicated region
      $region13: #{split_conv_csa_forward.8} parent=11 // pred_check
        %p258 = pneg %p135
      $region14: #{split_conv_csa_forward.8} parent=11 // pred_check_branch
        %260 = sbr.rel (%p258) target = $region16
      $region15: #{split_conv_csa_forward.8} parent=11 // pred_region
        _
      $region16: #{split_conv_csa_forward.8} parent=11 // pred_fallthru
        _
    $region12: #{split_conv_csa_forward.8} parent=5 // pred_fallthru
      _
    %p261 = scmp.lt.s32.totalorder %s14, 16
    // Predicated region
    $region17: #{split_conv_csa_forward.8} parent=5 // pred_check
      %p262 = pneg %p261
    $region18: #{split_conv_csa_forward.8} parent=5 // pred_check_branch
      %264 = sbr.rel (%p262) target = $region20
    $region19: #{split_conv_csa_forward.8} parent=5 // pred_region
      // Predicated region
      $region21: #{split_conv_csa_forward.8} parent=19 // pred_check
        %p265 = pneg %p48
      $region22: #{split_conv_csa_forward.8} parent=19 // pred_check_branch
        %267 = sbr.rel (%p265) target = $region24
      $region23: #{split_conv_csa_forward.8} parent=19 // pred_region
        %p268 = scmp.lt.s32.totalorder %s21, 1
        %s269 = scalar_select %p268, %s21, 1
        %p270 = scmp.lt.s32.totalorder %s22, 9
        %s271 = scalar_select %p270, %s22, 9
        %s272 = smul.addr %s271, 16
        %s273 = smul.addr %s269, 160
        %s274 = sadd.s32 %s272, %s273
        %s275 = smul.addr %s274, 4
        %s276 = scalar_lea.vmem %s0, %s275
      $region24: #{split_conv_csa_forward.8} parent=19 // pred_fallthru
        _
      // Predicated region
      $region25: #{split_conv_csa_forward.8} parent=19 // pred_check
        %p277 = pneg %p78
      $region26: #{split_conv_csa_forward.8} parent=19 // pred_check_branch
        %279 = sbr.rel (%p277) target = $region28
      $region27: #{split_conv_csa_forward.8} parent=19 // pred_region
        %s280 = sadd.s32 %s22, 1
        %p281 = scmp.lt.s32.totalorder %s21, 1
        %s282 = scalar_select %p281, %s21, 1
        %p283 = scmp.lt.s32.totalorder %s280, 9
        %s284 = scalar_select %p283, %s280, 9
        %s285 = smul.addr %s284, 16
        %s286 = smul.addr %s282, 160
        %s287 = sadd.s32 %s285, %s286
        %s288 = smul.addr %s287, 4
        %s289 = scalar_lea.vmem %s1, %s288
        %s290 = sadd.s32 %s22, 1
      $region28: #{split_conv_csa_forward.8} parent=19 // pred_fallthru
        _
      // Predicated region
      $region29: #{split_conv_csa_forward.8} parent=19 // pred_check
        %p291 = pneg %p108
      $region30: #{split_conv_csa_forward.8} parent=19 // pred_check_branch
        %293 = sbr.rel (%p291) target = $region32
      $region31: #{split_conv_csa_forward.8} parent=19 // pred_region
        %s294 = sadd.s32 %s22, 2
        %p295 = scmp.lt.s32.totalorder %s21, 1
        %s296 = scalar_select %p295, %s21, 1
        %p297 = scmp.lt.s32.totalorder %s294, 9
        %s298 = scalar_select %p297, %s294, 9
        %s299 = smul.addr %s298, 16
        %s300 = smul.addr %s296, 160
        %s301 = sadd.s32 %s299, %s300
        %s302 = smul.addr %s301, 4
        %s303 = scalar_lea.vmem %s2, %s302
        %s304 = sadd.s32 %s22, 2
      $region32: #{split_conv_csa_forward.8} parent=19 // pred_fallthru
        _
      // Predicated region
      $region33: #{split_conv_csa_forward.8} parent=19 // pred_check
        %p305 = pneg %p157
      $region34: #{split_conv_csa_forward.8} parent=19 // pred_check_branch
        %307 = sbr.rel (%p305) target = $region36
      $region35: #{split_conv_csa_forward.8} parent=19 // pred_region
        %s308 = sadd.s32 %s22, 1
        %p309 = scmp.lt.s32.totalorder %s308, 9
        %s310 = scalar_select %p309, %s308, 9
        %s311 = smul.addr %s310, 16
        %s312 = smul.addr %s311, 8
        %s313 = scalar_lea.vmem %s4, %s312
        %s314 = sadd.s32 %s22, 1
      $region36: #{split_conv_csa_forward.8} parent=19 // pred_fallthru
        _
    $region20: #{split_conv_csa_forward.8} parent=5 // pred_fallthru
      _
    %p315 = scmp.le.s32.totalorder 1, %s14
    %p316 = scmp.lt.s32.totalorder %s14, 17
    %p317 = pnand %p315, %p316
    %p318 = pneg %p317
    // Predicated region
    $region37: #{split_conv_csa_forward.8} parent=5 // pred_check
      _
    $region38: #{split_conv_csa_forward.8} parent=5 // pred_check_branch
      %320 = sbr.rel (%p317) target = $region40
    $region39: #{split_conv_csa_forward.8} parent=5 // pred_region
      %s321 = ssub.s32 %s14, 1
      %p322 = scmp.lt.s32.totalorder %s23, 1
      %s323 = scalar_select %p322, %s23, 1
      %p324 = scmp.lt.s32.totalorder %s24, 9
      %s325 = scalar_select %p324, %s24, 9
      %s326 = smul.addr %s325, 16
      %s327 = smul.addr %s323, 160
      %s328 = sadd.s32 %s326, %s327
      %s329 = smul.addr %s328, 4
      %s330 = scalar_lea.vmem %s0, %s329
      %p331 = pneg %p54
      %p332 = pneg %p51
      %s333 = sadd.s32 %s24, 1
      %p334 = scmp.lt.s32.totalorder %s23, 1
      %s335 = scalar_select %p334, %s23, 1
      %p336 = scmp.lt.s32.totalorder %s333, 9
      %s337 = scalar_select %p336, %s333, 9
      %s338 = smul.addr %s337, 16
      %s339 = smul.addr %s335, 160
      %s340 = sadd.s32 %s338, %s339
      %s341 = smul.addr %s340, 4
      %s342 = scalar_lea.vmem %s1, %s341
      %p343 = pneg %p84
      %p344 = pneg %p81
      %s345 = sadd.s32 %s24, 2
      %p346 = scmp.lt.s32.totalorder %s23, 1
      %s347 = scalar_select %p346, %s23, 1
      %p348 = scmp.lt.s32.totalorder %s345, 9
      %s349 = scalar_select %p348, %s345, 9
      %s350 = smul.addr %s349, 16
      %s351 = smul.addr %s347, 160
      %s352 = sadd.s32 %s350, %s351
      %s353 = smul.addr %s352, 4
      %s354 = scalar_lea.vmem %s2, %s353
      %p355 = pneg %p114
      %p356 = pneg %p111
      %p357 = pneg %p135
      %p358 = pneg %p132
      %s359 = sadd.s32 %s24, 1
      %p360 = scmp.lt.s32.totalorder %s359, 9
      %s361 = scalar_select %p360, %s359, 9
      %s362 = smul.addr %s361, 16
      %s363 = smul.addr %s362, 8
      %s364 = scalar_lea.vmem %s4, %s363
      %p365 = pneg %p163
      %p366 = pneg %p160
      %p367 = pneg %p191
      %p368 = pneg %p188
      %p369 = scmp.lt.s32.totalorder %s23, 1
      %s370 = scalar_select %p369, %s23, 1
      %p371 = scmp.lt.s32.totalorder %s24, 7
      %s372 = scalar_select %p371, %s24, 7
      %s373 = smul.addr %s372, 16
      %s374 = smul.addr %s370, 128
      %s375 = sadd.s32 %s373, %s374
      %s376 = smul.addr %s375, 8
      %s377 = scalar_lea.vmem %s5, %s376
      %p378 = pneg %p217
      %p379 = pneg %p214
      %p380 = scmp.lt.s32.totalorder %s23, 1
      %s381 = scalar_select %p380, %s23, 1
      %s382 = scalar_lea.vmem %s6, %s381
      %p383 = pneg %p243
      %p384 = pneg %p240
      %p385 = scmp.lt.s32.totalorder %s23, 1
      %s386 = scalar_select %p385, %s23, 1
      %s387 = scalar_lea.vmem %s7, %s386
      %p388 = scmp.lt.s32.totalorder %s23, 1
      %s389 = scalar_select %p388, %s23, 1
      %p390 = scmp.lt.s32.totalorder %s24, 9
      %s391 = scalar_select %p390, %s24, 9
      %s392 = smul.addr %s391, 16
      %s393 = smul.addr %s389, 160
      %s394 = sadd.s32 %s392, %s393
      %s395 = smul.addr %s394, 4
      %s396 = scalar_lea.vmem %s0, %s395
      %s397 = sadd.s32 %s24, 1
      %p398 = scmp.lt.s32.totalorder %s23, 1
      %s399 = scalar_select %p398, %s23, 1
      %p400 = scmp.lt.s32.totalorder %s397, 9
      %s401 = scalar_select %p400, %s397, 9
      %s402 = smul.addr %s401, 16
      %s403 = smul.addr %s399, 160
      %s404 = sadd.s32 %s402, %s403
      %s405 = smul.addr %s404, 4
      %s406 = scalar_lea.vmem %s1, %s405
      %s407 = sadd.s32 %s24, 1
      %s408 = sadd.s32 %s24, 2
      %p409 = scmp.lt.s32.totalorder %s23, 1
      %s410 = scalar_select %p409, %s23, 1
      %p411 = scmp.lt.s32.totalorder %s408, 9
      %s412 = scalar_select %p411, %s408, 9
      %s413 = smul.addr %s412, 16
      %s414 = smul.addr %s410, 160
      %s415 = sadd.s32 %s413, %s414
      %s416 = smul.addr %s415, 4
      %s417 = scalar_lea.vmem %s2, %s416
      %s418 = sadd.s32 %s24, 2
      %s419 = sadd.s32 %s24, 1
      %p420 = scmp.lt.s32.totalorder %s419, 9
      %s421 = scalar_select %p420, %s419, 9
      %s422 = smul.addr %s421, 16
      %s423 = smul.addr %s422, 8
      %s424 = scalar_lea.vmem %s4, %s423
      %s425 = sadd.s32 %s24, 1
      %p426 = scmp.lt.s32.totalorder %s23, 1
      %s427 = scalar_select %p426, %s23, 1
      %p428 = scmp.lt.s32.totalorder %s24, 7
      %s429 = scalar_select %p428, %s24, 7
      %s430 = smul.addr %s429, 16
      %s431 = smul.addr %s427, 128
      %s432 = sadd.s32 %s430, %s431
      %s433 = smul.addr %s432, 8
      %s434 = scalar_lea.vmem %s5, %s433
      %p435 = scmp.lt.s32.totalorder %s23, 1
      %s436 = scalar_select %p435, %s23, 1
      %s437 = scalar_lea.vmem %s6, %s436
      %p438 = scmp.lt.s32.totalorder %s23, 1
      %s439 = scalar_select %p438, %s23, 1
      %s440 = scalar_lea.vmem %s7, %s439
      %v442 = vld [vmem:[%s396] sm:$0xf]
      %v443 = vld [vmem:[%s396 + $0x4] sm:$0xf]
      %v444 = vld [vmem:[%s396 + $0x8] sm:$0xf]
      %v445 = vld [vmem:[%s396 + $0xc] sm:$0xf]
      %v446 = vld [vmem:[%s396 + $0x10] sm:$0xf]
      %v447 = vld [vmem:[%s396 + $0x14] sm:$0xf]
      %v448 = vld [vmem:[%s396 + $0x18] sm:$0xf]
      %v449 = vld [vmem:[%s396 + $0x1c] sm:$0xf]
      %v450 = vld [vmem:[%s396 + $0x20] sm:$0xf]
      %v451 = vld [vmem:[%s396 + $0x24] sm:$0xf]
      %v452 = vld [vmem:[%s396 + $0x28] sm:$0xf]
      %v453 = vld [vmem:[%s396 + $0x2c] sm:$0xf]
      %v454 = vld [vmem:[%s396 + $0x30] sm:$0x3]
      %v455 = vld [vmem:[%s3] sm:$0xf]
      %v456 = vld [vmem:[%s3 + $0x4] sm:$0xf]
      %v457 = vld [vmem:[%s3 + $0x8] sm:$0xf]
      %v458 = vld [vmem:[%s3 + $0xc] sm:$0xf]
      %v459 = vld [vmem:[%s3 + $0x10] sm:$0xf]
      %v460 = vld [vmem:[%s3 + $0x14] sm:$0xf]
      %v461 = vld [vmem:[%s3 + $0x18] sm:$0xf]
      %v462 = vld [vmem:[%s3 + $0x1c] sm:$0xf]
      %v463 = vld [vmem:[%s3 + $0x20] sm:$0xf]
      %v464 = vld [vmem:[%s3 + $0x24] sm:$0xf]
      %v465 = vld [vmem:[%s3 + $0x28] sm:$0xf]
      %v466 = vld [vmem:[%s3 + $0x2c] sm:$0xf]
      %v467 = vld [vmem:[%s3 + $0x30] sm:$0xf]
      %v468 = vld [vmem:[%s3 + $0x34] sm:$0xf]
      %v469 = vld [vmem:[%s3 + $0x38] sm:$0xf]
      %v470 = vld [vmem:[%s3 + $0x3c] sm:$0xf]
      %v471 = vld [vmem:[%s396 + $0x30] sm:$0x7]
      %s472 = scalar_lea.vmem %s3, 64
      %v473 = vld [vmem:[%s472] sm:$0xf]
      %v474 = vld [vmem:[%s472 + $0x4] sm:$0xf]
      %v475 = vld [vmem:[%s472 + $0x8] sm:$0xf]
      %v476 = vld [vmem:[%s472 + $0xc] sm:$0xf]
      %v477 = vld [vmem:[%s472 + $0x10] sm:$0xf]
      %v478 = vld [vmem:[%s472 + $0x14] sm:$0xf]
      %v479 = vld [vmem:[%s472 + $0x18] sm:$0xf]
      %v480 = vld [vmem:[%s472 + $0x1c] sm:$0xf]
      %v481 = vld [vmem:[%s472 + $0x20] sm:$0xf]
      %v482 = vld [vmem:[%s472 + $0x24] sm:$0xf]
      %v483 = vld [vmem:[%s472 + $0x28] sm:$0xf]
      %v484 = vld [vmem:[%s472 + $0x2c] sm:$0xf]
      %v485 = vld [vmem:[%s472 + $0x30] sm:$0xf]
      %v486 = vld [vmem:[%s472 + $0x34] sm:$0xf]
      %v487 = vld [vmem:[%s472 + $0x38] sm:$0xf]
      %v488 = vld [vmem:[%s472 + $0x3c] sm:$0xf]
      %v502 = vunpack.c.l.b16 %v442
      %v503 = vunpack.c.l.b16 %v443
      %v504 = vunpack.c.l.b16 %v444
      %v505 = vunpack.c.l.b16 %v445
      %v506 = vunpack.c.l.b16 %v446
      %v507 = vunpack.c.l.b16 %v447
      %v508 = vunpack.c.l.b16 %v448
      %v509 = vunpack.c.l.b16 %v449
      %v510 = vunpack.c.l.b16 %v450
      %v511 = vunpack.c.l.b16 %v451
      %v512 = vunpack.c.l.b16 %v452
      %v513 = vunpack.c.l.b16 %v453
      %v514 = vunpack.c.l.b16 %v471
      %v515 = vpack.c.b16 %v503, %v502
      %v516 = vpack.c.b16 %v505, %v504
      %v517 = vpack.c.b16 %v507, %v506
      %v518 = vpack.c.b16 %v509, %v508
      %v519 = vpack.c.b16 %v511, %v510
      %v520 = vpack.c.b16 %v513, %v512
      %v521 = vpack.c.b16 %v514, %v514
      %vm522 = vsmask.f32 7424
      %v524 = vshrl.u32 %v515, 16
      %v526 = vshll.u32 %v515, 16
      %v528 = vrot.slane %v526, 1
      %v529 = vor.u32 %v524, %v528
      %v531 = vshll.u32 %v516, 16
      %v533 = vrot.slane %v531, 1
      %v534 = vsel %vm522, %v529, %v533
      %v535 = vshrl.u32 %v516, 16
      %v537 = vor.u32 %v535, %v533
      %v539 = vshll.u32 %v517, 16
      %v541 = vrot.slane %v539, 1
      %v542 = vsel %vm522, %v537, %v541
      %v543 = vshrl.u32 %v517, 16
      %v545 = vor.u32 %v543, %v541
      %v547 = vshll.u32 %v518, 16
      %v549 = vrot.slane %v547, 1
      %v550 = vsel %vm522, %v545, %v549
      %v551 = vshrl.u32 %v518, 16
      %v553 = vor.u32 %v551, %v549
      %v555 = vshll.u32 %v519, 16
      %v557 = vrot.slane %v555, 1
      %v558 = vsel %vm522, %v553, %v557
      %v559 = vshrl.u32 %v519, 16
      %v561 = vor.u32 %v559, %v557
      %v563 = vshll.u32 %v520, 16
      %v565 = vrot.slane %v563, 1
      %v566 = vsel %vm522, %v561, %v565
      %v567 = vshrl.u32 %v520, 16
      %v569 = vor.u32 %v567, %v565
      %v571 = vshll.u32 %v521, 16
      %v573 = vrot.slane %v571, 1
      %v574 = vsel %vm522, %v569, %v573
      %v575 = vshrl.u32 %v521, 16
      %v577 = vor.u32 %v575, %v573
      %v601 = vunpack.c.l.b16 %v473
      %v602 = vunpack.c.l.b16 %v474
      %v603 = vunpack.c.l.b16 %v475
      %v604 = vunpack.c.l.b16 %v476
      %v605 = vunpack.c.l.b16 %v477
      %v606 = vunpack.c.l.b16 %v478
      %v607 = vunpack.c.l.b16 %v479
      %v608 = vunpack.c.l.b16 %v480
      %v609 = vunpack.c.l.b16 %v481
      %v610 = vunpack.c.l.b16 %v482
      %v611 = vunpack.c.l.b16 %v483
      %v612 = vunpack.c.l.b16 %v484
      %v613 = vunpack.c.l.b16 %v485
      %v614 = vunpack.c.l.b16 %v486
      %v615 = vunpack.c.l.b16 %v487
      %v616 = vunpack.c.l.b16 %v488
      %v617 = vpack.c.b16 %v602, %v601
      %v618 = vpack.c.b16 %v604, %v603
      %v619 = vpack.c.b16 %v606, %v605
      %v620 = vpack.c.b16 %v608, %v607
      %v621 = vpack.c.b16 %v610, %v609
      %v622 = vpack.c.b16 %v612, %v611
      %v623 = vpack.c.b16 %v614, %v613
      %v624 = vpack.c.b16 %v616, %v615
      %633 = vmatprep.subr.bf16.mxu0 0
      %634 = vmatpush1.bf16.msra.mxu0 %v617
      %635 = vmatprep.subr.bf16.mxu0 0
      %636 = vmatpush1.bf16.msra.mxu0 %v618
      %637 = vmatprep.subr.bf16.mxu0 0
      %638 = vmatpush1.bf16.msra.mxu0 %v619
      %639 = vmatprep.subr.bf16.mxu0 0
      %640 = vmatpush1.bf16.msra.mxu0 %v620
      %641 = vmatprep.subr.bf16.mxu0 0
      %642 = vmatpush1.bf16.msra.mxu0 %v621
      %643 = vmatprep.subr.bf16.mxu0 0
      %644 = vmatpush1.bf16.msra.mxu0 %v622
      %645 = vmatprep.subr.bf16.mxu0 0
      %646 = vmatpush1.bf16.msra.mxu0 %v623
      %647 = vmatprep.subr.bf16.mxu0 0
      %648 = vmatpush1.bf16.msra.mxu0 %v624
      %649 = vmatprep.subr.bf16.mxu0 0
      %650 = vmatpush1.bf16.msra.mxu0 0
      %651 = vmatprep.subr.bf16.mxu0 0
      %652 = vmatpush1.bf16.msra.mxu0 0
      %653 = vmatprep.subr.bf16.mxu0 0
      %654 = vmatpush1.bf16.msra.mxu0 0
      %655 = vmatprep.subr.bf16.mxu0 0
      %656 = vmatpush1.bf16.msra.mxu0 0
      %657 = vmatprep.subr.bf16.mxu0 0
      %658 = vmatpush1.bf16.msra.mxu0 0
      %659 = vmatprep.subr.bf16.mxu0 0
      %660 = vmatpush1.bf16.msra.mxu0 0
      %661 = vmatprep.subr.bf16.mxu0 0
      %662 = vmatpush1.bf16.msra.mxu0 0
      %663 = vmatprep.subr.bf16.mxu0 0
      %664 = vmatpush1.bf16.msra.mxu0 0
      %665 = vmatprep.mubr.bf16.mxu0 0
      %666 = vmatmul.mubr.bf16.gmra.mrb[0].mxu0 %v534
      %v667 = vpop.f32.mrb[0].mxu0
      %v668 = vadd.f32 0.0, %v667
      %v669 = vpop.f32.mrb[0].mxu0
      %v670 = vpop.f32.mrb[0].mxu0
      %v671 = vadd.f32 0.0, %v670
      %v672 = vpop.f32.mrb[0].mxu0
      %673 = vmatprep.mubr.bf16.mxu0 0
      %674 = vmatmul.mubr.bf16.gmra.mrb[0].mxu0 %v542
      %v675 = vpop.f32.mrb[0].mxu0
      %v676 = vadd.f32 0.0, %v675
      %v677 = vpop.f32.mrb[0].mxu0
      %v678 = vpop.f32.mrb[0].mxu0
      %v679 = vadd.f32 0.0, %v678
      %v680 = vpop.f32.mrb[0].mxu0
      %681 = vmatprep.mubr.bf16.mxu0 0
      %682 = vmatmul.mubr.bf16.gmra.mrb[0].mxu0 %v550
      %v683 = vpop.f32.mrb[0].mxu0
      %v684 = vadd.f32 0.0, %v683
      %v685 = vpop.f32.mrb[0].mxu0
      %v686 = vpop.f32.mrb[0].mxu0
      %v687 = vadd.f32 0.0, %v686
      %v688 = vpop.f32.mrb[0].mxu0
      %689 = vmatprep.mubr.bf16.mxu0 0
      %690 = vmatmul.mubr.bf16.gmra.mrb[0].mxu0 %v558
      %v691 = vpop.f32.mrb[0].mxu0
      %v692 = vadd.f32 0.0, %v691
      %v693 = vpop.f32.mrb[0].mxu0
      %v694 = vpop.f32.mrb[0].mxu0
      %v695 = vadd.f32 0.0, %v694
      %v696 = vpop.f32.mrb[0].mxu0
      %697 = vmatprep.mubr.bf16.mxu0 0
      %698 = vmatmul.mubr.bf16.gmra.mrb[0].mxu0 %v566
      %v699 = vpop.f32.mrb[0].mxu0
      %v700 = vadd.f32 0.0, %v699
      %v701 = vpop.f32.mrb[0].mxu0
      %v702 = vpop.f32.mrb[0].mxu0
      %v703 = vadd.f32 0.0, %v702
      %v704 = vpop.f32.mrb[0].mxu0
      %705 = vmatprep.mubr.bf16.mxu0 0
      %706 = vmatmul.mubr.bf16.gmra.mrb[0].mxu0 %v574
      %v707 = vpop.f32.mrb[0].mxu0
      %v708 = vadd.f32 0.0, %v707
      %v709 = vpop.f32.mrb[0].mxu0
      %v710 = vpop.f32.mrb[0].mxu0
      %v711 = vadd.f32 0.0, %v710
      %v712 = vpop.f32.mrb[0].mxu0
      %713 = vmatprep.mubr.bf16.mxu0 0
      %714 = vmatmul.mubr.bf16.gmra.mrb[0].mxu0 %v577
      %v715 = vpop.f32.mrb[0].mxu0
      %v716 = vadd.f32 0.0, %v715
      %v717 = vpop.f32.mrb[0].mxu0
      %v718 = vpop.f32.mrb[0].mxu0
      %v719 = vpop.f32.mrb[0].mxu0
      %720 = vdwg.mxu0
      %v722 = vunpack.c.l.b16 %v454
      %v723 = vpack.c.b16 %v722, %v722
      %v747 = vunpack.c.l.b16 %v455
      %v748 = vunpack.c.l.b16 %v456
      %v749 = vunpack.c.l.b16 %v457
      %v750 = vunpack.c.l.b16 %v458
      %v751 = vunpack.c.l.b16 %v459
      %v752 = vunpack.c.l.b16 %v460
      %v753 = vunpack.c.l.b16 %v461
      %v754 = vunpack.c.l.b16 %v462
      %v755 = vunpack.c.l.b16 %v463
      %v756 = vunpack.c.l.b16 %v464
      %v757 = vunpack.c.l.b16 %v465
      %v758 = vunpack.c.l.b16 %v466
      %v759 = vunpack.c.l.b16 %v467
      %v760 = vunpack.c.l.b16 %v468
      %v761 = vunpack.c.l.b16 %v469
      %v762 = vunpack.c.l.b16 %v470
      %v763 = vpack.c.b16 %v748, %v747
      %v764 = vpack.c.b16 %v750, %v749
      %v765 = vpack.c.b16 %v752, %v751
      %v766 = vpack.c.b16 %v754, %v753
      %v767 = vpack.c.b16 %v756, %v755
      %v768 = vpack.c.b16 %v758, %v757
      %v769 = vpack.c.b16 %v760, %v759
      %v770 = vpack.c.b16 %v762, %v761
      %779 = vmatprep.subr.bf16.mxu0 0
      %780 = vmatpush1.bf16.msra.mxu0 %v763
      %781 = vmatprep.subr.bf16.mxu0 0
      %782 = vmatpush1.bf16.msra.mxu0 %v764
      %783 = vmatprep.subr.bf16.mxu0 0
      %784 = vmatpush1.bf16.msra.mxu0 %v765
      %785 = vmatprep.subr.bf16.mxu0 0
      %786 = vmatpush1.bf16.msra.mxu0 %v766
      %787 = vmatprep.subr.bf16.mxu0 0
      %788 = vmatpush1.bf16.msra.mxu0 %v767
      %789 = vmatprep.subr.bf16.mxu0 0
      %790 = vmatpush1.bf16.msra.mxu0 %v768
      %791 = vmatprep.subr.bf16.mxu0 0
      %792 = vmatpush1.bf16.msra.mxu0 %v769
      %793 = vmatprep.subr.bf16.mxu0 0
      %794 = vmatpush1.bf16.msra.mxu0 %v770
      %795 = vmatprep.subr.bf16.mxu0 0
      %796 = vmatpush1.bf16.msra.mxu0 0
      %797 = vmatprep.subr.bf16.mxu0 0
      %798 = vmatpush1.bf16.msra.mxu0 0
      %799 = vmatprep.subr.bf16.mxu0 0
      %800 = vmatpush1.bf16.msra.mxu0 0
      %801 = vmatprep.subr.bf16.mxu0 0
      %802 = vmatpush1.bf16.msra.mxu0 0
      %803 = vmatprep.subr.bf16.mxu0 0
      %804 = vmatpush1.bf16.msra.mxu0 0
      %805 = vmatprep.subr.bf16.mxu0 0
      %806 = vmatpush1.bf16.msra.mxu0 0
      %807 = vmatprep.subr.bf16.mxu0 0
      %808 = vmatpush1.bf16.msra.mxu0 0
      %809 = vmatprep.subr.bf16.mxu0 0
      %810 = vmatpush1.bf16.msra.mxu0 0
      %811 = vmatprep.mubr.bf16.mxu0 0
      %812 = vmatmul.mubr.bf16.gmra.mrb[0].mxu0 %v515
      %v813 = vpop.f32.mrb[0].mxu0
      %v814 = vadd.f32 %v668, %v813
      %v815 = vpop.f32.mrb[0].mxu0
      %v816 = vpop.f32.mrb[0].mxu0
      %v817 = vadd.f32 %v671, %v816
      %v818 = vpop.f32.mrb[0].mxu0
      %819 = vmatprep.mubr.bf16.mxu0 0
      %820 = vmatmul.mubr.bf16.gmra.mrb[0].mxu0 %v516
      %v821 = vpop.f32.mrb[0].mxu0
      %v822 = vadd.f32 %v676, %v821
      %v823 = vpop.f32.mrb[0].mxu0
      %v824 = vpop.f32.mrb[0].mxu0
      %v825 = vadd.f32 %v679, %v824
      %v826 = vpop.f32.mrb[0].mxu0
      %827 = vmatprep.mubr.bf16.mxu0 0
      %828 = vmatmul.mubr.bf16.gmra.mrb[0].mxu0 %v517
      %v829 = vpop.f32.mrb[0].mxu0
      %v830 = vadd.f32 %v684, %v829
      %v831 = vpop.f32.mrb[0].mxu0
      %v832 = vpop.f32.mrb[0].mxu0
      %v833 = vadd.f32 %v687, %v832
      %v834 = vpop.f32.mrb[0].mxu0
      %835 = vmatprep.mubr.bf16.mxu0 0
      %836 = vmatmul.mubr.bf16.gmra.mrb[0].mxu0 %v518
      %v837 = vpop.f32.mrb[0].mxu0
      %v838 = vadd.f32 %v692, %v837
      %v839 = vpop.f32.mrb[0].mxu0
      %v840 = vpop.f32.mrb[0].mxu0
      %v841 = vadd.f32 %v695, %v840
      %v842 = vpop.f32.mrb[0].mxu0
      %843 = vmatprep.mubr.bf16.mxu0 0
      %844 = vmatmul.mubr.bf16.gmra.mrb[0].mxu0 %v519
      %v845 = vpop.f32.mrb[0].mxu0
      %v846 = vadd.f32 %v700, %v845
      %v847 = vpop.f32.mrb[0].mxu0
      %v848 = vpop.f32.mrb[0].mxu0
      %v849 = vadd.f32 %v703, %v848
      %v850 = vpop.f32.mrb[0].mxu0
      %851 = vmatprep.mubr.bf16.mxu0 0
      %852 = vmatmul.mubr.bf16.gmra.mrb[0].mxu0 %v520
      %v853 = vpop.f32.mrb[0].mxu0
      %v854 = vadd.f32 %v708, %v853
      %v855 = vpop.f32.mrb[0].mxu0
      %v856 = vpop.f32.mrb[0].mxu0
      %v857 = vadd.f32 %v711, %v856
      %v858 = vpop.f32.mrb[0].mxu0
      %859 = vmatprep.mubr.bf16.mxu0 0
      %860 = vmatmul.mubr.bf16.gmra.mrb[0].mxu0 %v723
      %v861 = vpop.f32.mrb[0].mxu0
      %v862 = vadd.f32 %v716, %v861
      %v863 = vpop.f32.mrb[0].mxu0
      %v864 = vpop.f32.mrb[0].mxu0
      %v865 = vpop.f32.mrb[0].mxu0
      %866 = vdwg.mxu0
      %v867 = vld [vmem:[%s396] sm:$0xe]
      %s868 = scalar_lea.vmem %s3, 128
      %v869 = vld [vmem:[%s868] sm:$0xf]
      %v870 = vld [vmem:[%s868 + $0x4] sm:$0xf]
      %v871 = vld [vmem:[%s868 + $0x8] sm:$0xf]
      %v872 = vld [vmem:[%s868 + $0xc] sm:$0xf]
      %v873 = vld [vmem:[%s868 + $0x10] sm:$0xf]
      %v874 = vld [vmem:[%s868 + $0x14] sm:$0xf]
      %v875 = vld [vmem:[%s868 + $0x18] sm:$0xf]
      %v876 = vld [vmem:[%s868 + $0x1c] sm:$0xf]
      %v877 = vld [vmem:[%s868 + $0x20] sm:$0xf]
      %v878 = vld [vmem:[%s868 + $0x24] sm:$0xf]
      %v879 = vld [vmem:[%s868 + $0x28] sm:$0xf]
      %v880 = vld [vmem:[%s868 + $0x2c] sm:$0xf]
      %v881 = vld [vmem:[%s868 + $0x30] sm:$0xf]
      %v882 = vld [vmem:[%s868 + $0x34] sm:$0xf]
      %v883 = vld [vmem:[%s868 + $0x38] sm:$0xf]
      %v884 = vld [vmem:[%s868 + $0x3c] sm:$0xf]
      %v886 = vunpack.c.l.b16 %v867
      %v887 = vpack.c.b16 %v503, %v886
      %vm888 = vcmask 1046528
      %v889 = vrot.slane %v887, 1
      %v890 = vrot.slane %v516, 1
      %v891 = vsel %vm888, %v889, %v890
      %v892 = vrot.slane %v517, 1
      %v893 = vsel %vm888, %v890, %v892
      %v894 = vrot.slane %v518, 1
      %v895 = vsel %vm888, %v892, %v894
      %v896 = vrot.slane %v519, 1
      %v897 = vsel %vm888, %v894, %v896
      %v898 = vrot.slane %v520, 1
      %v899 = vsel %vm888, %v896, %v898
      %v900 = vrot.slane %v521, 1
      %v901 = vsel %vm888, %v898, %v900
      %v925 = vunpack.c.l.b16 %v869
      %v926 = vunpack.c.l.b16 %v870
      %v927 = vunpack.c.l.b16 %v871
      %v928 = vunpack.c.l.b16 %v872
      %v929 = vunpack.c.l.b16 %v873
      %v930 = vunpack.c.l.b16 %v874
      %v931 = vunpack.c.l.b16 %v875
      %v932 = vunpack.c.l.b16 %v876
      %v933 = vunpack.c.l.b16 %v877
      %v934 = vunpack.c.l.b16 %v878
      %v935 = vunpack.c.l.b16 %v879
      %v936 = vunpack.c.l.b16 %v880
      %v937 = vunpack.c.l.b16 %v881
      %v938 = vunpack.c.l.b16 %v882
      %v939 = vunpack.c.l.b16 %v883
      %v940 = vunpack.c.l.b16 %v884
      %v941 = vpack.c.b16 %v926, %v925
      %v942 = vpack.c.b16 %v928, %v927
      %v943 = vpack.c.b16 %v930, %v929
      %v944 = vpack.c.b16 %v932, %v931
      %v945 = vpack.c.b16 %v934, %v933
      %v946 = vpack.c.b16 %v936, %v935
      %v947 = vpack.c.b16 %v938, %v937
      %v948 = vpack.c.b16 %v940, %v939
      %957 = vmatprep.subr.bf16.mxu0 0
      %958 = vmatpush1.bf16.msra.mxu0 %v941
      %959 = vmatprep.subr.bf16.mxu0 0
      %960 = vmatpush1.bf16.msra.mxu0 %v942
      %961 = vmatprep.subr.bf16.mxu0 0
      %962 = vmatpush1.bf16.msra.mxu0 %v943
      %963 = vmatprep.subr.bf16.mxu0 0
      %964 = vmatpush1.bf16.msra.mxu0 %v944
      %965 = vmatprep.subr.bf16.mxu0 0
      %966 = vmatpush1.bf16.msra.mxu0 %v945
      %967 = vmatprep.subr.bf16.mxu0 0
      %968 = vmatpush1.bf16.msra.mxu0 %v946
      %969 = vmatprep.subr.bf16.mxu0 0
      %970 = vmatpush1.bf16.msra.mxu0 %v947
      %971 = vmatprep.subr.bf16.mxu0 0
      %972 = vmatpush1.bf16.msra.mxu0 %v948
      %973 = vmatprep.subr.bf16.mxu0 0
      %974 = vmatpush1.bf16.msra.mxu0 0
      %975 = vmatprep.subr.bf16.mxu0 0
      %976 = vmatpush1.bf16.msra.mxu0 0
      %977 = vmatprep.subr.bf16.mxu0 0
      %978 = vmatpush1.bf16.msra.mxu0 0
      %979 = vmatprep.subr.bf16.mxu0 0
      %980 = vmatpush1.bf16.msra.mxu0 0
      %981 = vmatprep.subr.bf16.mxu0 0
      %982 = vmatpush1.bf16.msra.mxu0 0
      %983 = vmatprep.subr.bf16.mxu0 0
      %984 = vmatpush1.bf16.msra.mxu0 0
      %985 = vmatprep.subr.bf16.mxu0 0
      %986 = vmatpush1.bf16.msra.mxu0 0
      %987 = vmatprep.subr.bf16.mxu0 0
      %988 = vmatpush1.bf16.msra.mxu0 0
      %989 = vmatprep.mubr.bf16.mxu0 0
      %990 = vmatmul.mubr.bf16.gmra.mrb[0].mxu0 %v891
      %v991 = vpop.f32.mrb[0].mxu0
      %v992 = vadd.f32 0.0, %v991
      %v993 = vpop.f32.mrb[0].mxu0
      %v994 = vpop.f32.mrb[0].mxu0
      %v995 = vadd.f32 0.0, %v994
      %v996 = vpop.f32.mrb[0].mxu0
      %997 = vmatprep.mubr.bf16.mxu0 0
      %998 = vmatmul.mubr.bf16.gmra.mrb[0].mxu0 %v893
      %v999 = vpop.f32.mrb[0].mxu0
      %v1000 = vadd.f32 0.0, %v999
      %v1001 = vpop.f32.mrb[0].mxu0
      %v1002 = vpop.f32.mrb[0].mxu0
      %v1003 = vadd.f32 0.0, %v1002
      %v1004 = vpop.f32.mrb[0].mxu0
      %1005 = vmatprep.mubr.bf16.mxu0 0
      %1006 = vmatmul.mubr.bf16.gmra.mrb[0].mxu0 %v895
      %v1007 = vpop.f32.mrb[0].mxu0
      %v1008 = vadd.f32 0.0, %v1007
      %v1009 = vpop.f32.mrb[0].mxu0
      %v1010 = vpop.f32.mrb[0].mxu0
      %v1011 = vadd.f32 0.0, %v1010
      %v1012 = vpop.f32.mrb[0].mxu0
      %1013 = vmatprep.mubr.bf16.mxu0 0
      %1014 = vmatmul.mubr.bf16.gmra.mrb[0].mxu0 %v897
      %v1015 = vpop.f32.mrb[0].mxu0
      %v1016 = vadd.f32 0.0, %v1015
      %v1017 = vpop.f32.mrb[0].mxu0
      %v1018 = vpop.f32.mrb[0].mxu0
      %v1019 = vadd.f32 0.0, %v1018
      %v1020 = vpop.f32.mrb[0].mxu0
      %1021 = vmatprep.mubr.bf16.mxu0 0
      %1022 = vmatmul.mubr.bf16.gmra.mrb[0].mxu0 %v899
      %v1023 = vpop.f32.mrb[0].mxu0
      %v1024 = vadd.f32 0.0, %v1023
      %v1025 = vpop.f32.mrb[0].mxu0
      %v1026 = vpop.f32.mrb[0].mxu0
      %v1027 = vadd.f32 0.0, %v1026
      %v1028 = vpop.f32.mrb[0].mxu0
      %1029 = vmatprep.mubr.bf16.mxu0 0
      %1030 = vmatmul.mubr.bf16.gmra.mrb[0].mxu0 %v901
      %v1031 = vpop.f32.mrb[0].mxu0
      %v1032 = vadd.f32 0.0, %v1031
      %v1033 = vpop.f32.mrb[0].mxu0
      %v1034 = vpop.f32.mrb[0].mxu0
      %v1035 = vadd.f32 0.0, %v1034
      %v1036 = vpop.f32.mrb[0].mxu0
      %1037 = vmatprep.mubr.bf16.mxu0 0
      %1038 = vmatmul.mubr.bf16.gmra.mrb[0].mxu0 %v900
      %v1039 = vpop.f32.mrb[0].mxu0
      %v1040 = vadd.f32 0.0, %v1039
      %v1041 = vpop.f32.mrb[0].mxu0
      %v1042 = vpop.f32.mrb[0].mxu0
      %v1043 = vpop.f32.mrb[0].mxu0
      %1044 = vdwg.mxu0
      %v1045 = vadd.f32 %v814, %v992
      %v1046 = vadd.f32 %v817, %v995
      %v1047 = vadd.f32 %v822, %v1000
      %v1048 = vadd.f32 %v825, %v1003
      %v1049 = vadd.f32 %v830, %v1008
      %v1050 = vadd.f32 %v833, %v1011
      %v1051 = vadd.f32 %v838, %v1016
      %v1052 = vadd.f32 %v841, %v1019
      %v1053 = vadd.f32 %v846, %v1024
      %v1054 = vadd.f32 %v849, %v1027
      %v1055 = vadd.f32 %v854, %v1032
      %v1056 = vadd.f32 %v857, %v1035
      %v1057 = vadd.f32 %v862, %v1040
      %v1058 = vld [vmem:[%s396 + $0x4] sm:$0xe]
      %v1059 = vld [vmem:[%s396 + $0x8] sm:$0xf]
      %v1060 = vld [vmem:[%s396 + $0xc] sm:$0xf]
      %v1061 = vld [vmem:[%s396 + $0x10] sm:$0xf]
      %v1062 = vld [vmem:[%s396 + $0x14] sm:$0xf]
      %v1063 = vld [vmem:[%s396 + $0x18] sm:$0xf]
      %v1064 = vld [vmem:[%s396 + $0x1c] sm:$0xf]
      %v1065 = vld [vmem:[%s396 + $0x20] sm:$0xf]
      %v1066 = vld [vmem:[%s396 + $0x24] sm:$0xf]
      %v1067 = vld [vmem:[%s396 + $0x28] sm:$0xf]
      %v1068 = vld [vmem:[%s396 + $0x2c] sm:$0xf]
      %v1069 = vld [vmem:[%s396 + $0x30] sm:$0xf]
      %v1070 = vld [vmem:[%s396 + $0x34] sm:$0x7]
      %s1071 = scalar_lea.vmem %s3, 192
      %v1072 = vld [vmem:[%s1071] sm:$0xf]
      %v1073 = vld [vmem:[%s1071 + $0x4] sm:$0xf]
      %v1074 = vld [vmem:[%s1071 + $0x8] sm:$0xf]
      %v1075 = vld [vmem:[%s1071 + $0xc] sm:$0xf]
      %v1076 = vld [vmem:[%s1071 + $0x10] sm:$0xf]
      %v1077 = vld [vmem:[%s1071 + $0x14] sm:$0xf]
      %v1078 = vld [vmem:[%s1071 + $0x18] sm:$0xf]
      %v1079 = vld [vmem:[%s1071 + $0x1c] sm:$0xf]
      %v1080 = vld [vmem:[%s1071 + $0x20] sm:$0xf]
      %v1081 = vld [vmem:[%s1071 + $0x24] sm:$0xf]
      %v1082 = vld [vmem:[%s1071 + $0x28] sm:$0xf]
      %v1083 = vld [vmem:[%s1071 + $0x2c] sm:$0xf]
      %v1084 = vld [vmem:[%s1071 + $0x30] sm:$0xf]
      %v1085 = vld [vmem:[%s1071 + $0x34] sm:$0xf]
      %v1086 = vld [vmem:[%s1071 + $0x38] sm:$0xf]
      %v1087 = vld [vmem:[%s1071 + $0x3c] sm:$0xf]
      %v1101 = vunpack.c.l.b16 %v1058
      %v1102 = vunpack.c.l.b16 %v1059
      %v1103 = vunpack.c.l.b16 %v1060
      %v1104 = vunpack.c.l.b16 %v1061
      %v1105 = vunpack.c.l.b16 %v1062
      %v1106 = vunpack.c.l.b16 %v1063
      %v1107 = vunpack.c.l.b16 %v1064
      %v1108 = vunpack.c.l.b16 %v1065
      %v1109 = vunpack.c.l.b16 %v1066
      %v1110 = vunpack.c.l.b16 %v1067
      %v1111 = vunpack.c.l.b16 %v1068
      %v1112 = vunpack.c.l.b16 %v1069
      %v1113 = vunpack.c.l.b16 %v1070
      %v1114 = vpack.c.b16 %v1102, %v1101
      %v1115 = vpack.c.b16 %v1104, %v1103
      %v1116 = vpack.c.b16 %v1106, %v1105
      %v1117 = vpack.c.b16 %v1108, %v1107
      %v1118 = vpack.c.b16 %v1110, %v1109
      %v1119 = vpack.c.b16 %v1112, %v1111
      %v1120 = vpack.c.b16 %v1113, %v1113
      %v1121 = vrot.slane %v1114, 1
      %v1122 = vrot.slane %v1115, 1
      %v1123 = vsel %vm888, %v1121, %v1122
      %v1124 = vrot.slane %v1116, 1
      %v1125 = vsel %vm888, %v1122, %v1124
      %v1126 = vrot.slane %v1117, 1
      %v1127 = vsel %vm888, %v1124, %v1126
      %v1128 = vrot.slane %v1118, 1
      %v1129 = vsel %vm888, %v1126, %v1128
      %v1130 = vrot.slane %v1119, 1
      %v1131 = vsel %vm888, %v1128, %v1130
      %v1132 = vrot.slane %v1120, 1
      %v1133 = vsel %vm888, %v1130, %v1132
      %v1157 = vunpack.c.l.b16 %v1072
      %v1158 = vunpack.c.l.b16 %v1073
      %v1159 = vunpack.c.l.b16 %v1074
      %v1160 = vunpack.c.l.b16 %v1075
      %v1161 = vunpack.c.l.b16 %v1076
      %v1162 = vunpack.c.l.b16 %v1077
      %v1163 = vunpack.c.l.b16 %v1078
      %v1164 = vunpack.c.l.b16 %v1079
      %v1165 = vunpack.c.l.b16 %v1080
      %v1166 = vunpack.c.l.b16 %v1081
      %v1167 = vunpack.c.l.b16 %v1082
      %v1168 = vunpack.c.l.b16 %v1083
      %v1169 = vunpack.c.l.b16 %v1084
      %v1170 = vunpack.c.l.b16 %v1085
      %v1171 = vunpack.c.l.b16 %v1086
      %v1172 = vunpack.c.l.b16 %v1087
      %v1173 = vpack.c.b16 %v1158, %v1157
      %v1174 = vpack.c.b16 %v1160, %v1159
      %v1175 = vpack.c.b16 %v1162, %v1161
      %v1176 = vpack.c.b16 %v1164, %v1163
      %v1177 = vpack.c.b16 %v1166, %v1165
      %v1178 = vpack.c.b16 %v1168, %v1167
      %v1179 = vpack.c.b16 %v1170, %v1169
      %v1180 = vpack.c.b16 %v1172, %v1171
      %1189 = vmatprep.subr.bf16.mxu0 0
      %1190 = vmatpush1.bf16.msra.mxu0 %v1173
      %1191 = vmatprep.subr.bf16.mxu0 0
      %1192 = vmatpush1.bf16.msra.mxu0 %v1174
      %1193 = vmatprep.subr.bf16.mxu0 0
      %1194 = vmatpush1.bf16.msra.mxu0 %v1175
      %1195 = vmatprep.subr.bf16.mxu0 0
      %1196 = vmatpush1.bf16.msra.mxu0 %v1176
      %1197 = vmatprep.subr.bf16.mxu0 0
      %1198 = vmatpush1.bf16.msra.mxu0 %v1177
      %1199 = vmatprep.subr.bf16.mxu0 0
      %1200 = vmatpush1.bf16.msra.mxu0 %v1178
      %1201 = vmatprep.subr.bf16.mxu0 0
      %1202 = vmatpush1.bf16.msra.mxu0 %v1179
      %1203 = vmatprep.subr.bf16.mxu0 0
      %1204 = vmatpush1.bf16.msra.mxu0 %v1180
      %1205 = vmatprep.subr.bf16.mxu0 0
      %1206 = vmatpush1.bf16.msra.mxu0 0
      %1207 = vmatprep.subr.bf16.mxu0 0
      %1208 = vmatpush1.bf16.msra.mxu0 0
      %1209 = vmatprep.subr.bf16.mxu0 0
      %1210 = vmatpush1.bf16.msra.mxu0 0
      %1211 = vmatprep.subr.bf16.mxu0 0
      %1212 = vmatpush1.bf16.msra.mxu0 0
      %1213 = vmatprep.subr.bf16.mxu0 0
      %1214 = vmatpush1.bf16.msra.mxu0 0
      %1215 = vmatprep.subr.bf16.mxu0 0
      %1216 = vmatpush1.bf16.msra.mxu0 0
      %1217 = vmatprep.subr.bf16.mxu0 0
      %1218 = vmatpush1.bf16.msra.mxu0 0
      %1219 = vmatprep.subr.bf16.mxu0 0
      %1220 = vmatpush1.bf16.msra.mxu0 0
      %1221 = vmatprep.mubr.bf16.mxu0 0
      %1222 = vmatmul.mubr.bf16.gmra.mrb[0].mxu0 %v1123
      %v1223 = vpop.f32.mrb[0].mxu0
      %v1224 = vadd.f32 0.0, %v1223
      %v1225 = vpop.f32.mrb[0].mxu0
      %v1226 = vpop.f32.mrb[0].mxu0
      %v1227 = vadd.f32 0.0, %v1226
      %v1228 = vpop.f32.mrb[0].mxu0
      %1229 = vmatprep.mubr.bf16.mxu0 0
      %1230 = vmatmul.mubr.bf16.gmra.mrb[0].mxu0 %v1125
      %v1231 = vpop.f32.mrb[0].mxu0
      %v1232 = vadd.f32 0.0, %v1231
      %v1233 = vpop.f32.mrb[0].mxu0
      %v1234 = vpop.f32.mrb[0].mxu0
      %v1235 = vadd.f32 0.0, %v1234
      %v1236 = vpop.f32.mrb[0].mxu0
      %1237 = vmatprep.mubr.bf16.mxu0 0
      %1238 = vmatmul.mubr.bf16.gmra.mrb[0].mxu0 %v1127
      %v1239 = vpop.f32.mrb[0].mxu0
      %v1240 = vadd.f32 0.0, %v1239
      %v1241 = vpop.f32.mrb[0].mxu0
      %v1242 = vpop.f32.mrb[0].mxu0
      %v1243 = vadd.f32 0.0, %v1242
      %v1244 = vpop.f32.mrb[0].mxu0
      %1245 = vmatprep.mubr.bf16.mxu0 0
      %1246 = vmatmul.mubr.bf16.gmra.mrb[0].mxu0 %v1129
      %v1247 = vpop.f32.mrb[0].mxu0
      %v1248 = vadd.f32 0.0, %v1247
      %v1249 = vpop.f32.mrb[0].mxu0
      %v1250 = vpop.f32.mrb[0].mxu0
      %v1251 = vadd.f32 0.0, %v1250
      %v1252 = vpop.f32.mrb[0].mxu0
      %1253 = vmatprep.mubr.bf16.mxu0 0
      %1254 = vmatmul.mubr.bf16.gmra.mrb[0].mxu0 %v1131
      %v1255 = vpop.f32.mrb[0].mxu0
      %v1256 = vadd.f32 0.0, %v1255
      %v1257 = vpop.f32.mrb[0].mxu0
      %v1258 = vpop.f32.mrb[0].mxu0
      %v1259 = vadd.f32 0.0, %v1258
      %v1260 = vpop.f32.mrb[0].mxu0
      %1261 = vmatprep.mubr.bf16.mxu0 0
      %1262 = vmatmul.mubr.bf16.gmra.mrb[0].mxu0 %v1133
      %v1263 = vpop.f32.mrb[0].mxu0
      %v1264 = vadd.f32 0.0, %v1263
      %v1265 = vpop.f32.mrb[0].mxu0
      %v1266 = vpop.f32.mrb[0].mxu0
      %v1267 = vadd.f32 0.0, %v1266
      %v1268 = vpop.f32.mrb[0].mxu0
      %1269 = vmatprep.mubr.bf16.mxu0 0
      %1270 = vmatmul.mubr.bf16.gmra.mrb[0].mxu0 %v1132
      %v1271 = vpop.f32.mrb[0].mxu0
      %v1272 = vadd.f32 0.0, %v1271
      %v1273 = vpop.f32.mrb[0].mxu0
      %v1274 = vpop.f32.mrb[0].mxu0
      %v1275 = vpop.f32.mrb[0].mxu0
      %1276 = vdwg.mxu0
      %v1277 = vadd.f32 %v1045, %v1224
      %v1278 = vadd.f32 %v1046, %v1227
      %v1279 = vadd.f32 %v1047, %v1232
      %v1280 = vadd.f32 %v1048, %v1235
      %v1281 = vadd.f32 %v1049, %v1240
      %v1282 = vadd.f32 %v1050, %v1243
      %v1283 = vadd.f32 %v1051, %v1248
      %v1284 = vadd.f32 %v1052, %v1251
      %v1285 = vadd.f32 %v1053, %v1256
      %v1286 = vadd.f32 %v1054, %v1259
      %v1287 = vadd.f32 %v1055, %v1264
      %v1288 = vadd.f32 %v1056, %v1267
      %v1289 = vadd.f32 %v1057, %v1272
      %v1290 = vld [vmem:[%s396 + $0x34] sm:$0xf]
      %s1291 = scalar_lea.vmem %s3, 256
      %v1292 = vld [vmem:[%s1291] sm:$0xf]
      %v1293 = vld [vmem:[%s1291 + $0x4] sm:$0xf]
      %v1294 = vld [vmem:[%s1291 + $0x8] sm:$0xf]
      %v1295 = vld [vmem:[%s1291 + $0xc] sm:$0xf]
      %v1296 = vld [vmem:[%s1291 + $0x10] sm:$0xf]
      %v1297 = vld [vmem:[%s1291 + $0x14] sm:$0xf]
      %v1298 = vld [vmem:[%s1291 + $0x18] sm:$0xf]
      %v1299 = vld [vmem:[%s1291 + $0x1c] sm:$0xf]
      %v1300 = vld [vmem:[%s1291 + $0x20] sm:$0xf]
      %v1301 = vld [vmem:[%s1291 + $0x24] sm:$0xf]
      %v1302 = vld [vmem:[%s1291 + $0x28] sm:$0xf]
      %v1303 = vld [vmem:[%s1291 + $0x2c] sm:$0xf]
      %v1304 = vld [vmem:[%s1291 + $0x30] sm:$0xf]
      %v1305 = vld [vmem:[%s1291 + $0x34] sm:$0xf]
      %v1306 = vld [vmem:[%s1291 + $0x38] sm:$0xf]
      %v1307 = vld [vmem:[%s1291 + $0x3c] sm:$0xf]
      %v1309 = vunpack.c.l.b16 %v1290
      %v1310 = vpack.c.b16 %v1309, %v1309
      %vm1311 = vsmask.f32 6400
      %v1313 = vshrl.u32 %v1114, 16
      %v1315 = vrot.slane %v1313, 1
      %v1316 = vshll.u32 %v1114, 16
      %v1318 = vrot.slane %v1316, 2
      %v1319 = vor.u32 %v1315, %v1318
      %v1321 = vshrl.u32 %v1115, 16
      %v1323 = vrot.slane %v1321, 1
      %v1324 = vshll.u32 %v1115, 16
      %v1326 = vrot.slane %v1324, 2
      %v1327 = vor.u32 %v1323, %v1326
      %v1328 = vsel %vm1311, %v1319, %v1327
      %v1330 = vshrl.u32 %v1116, 16
      %v1332 = vrot.slane %v1330, 1
      %v1333 = vshll.u32 %v1116, 16
      %v1335 = vrot.slane %v1333, 2
      %v1336 = vor.u32 %v1332, %v1335
      %v1337 = vsel %vm1311, %v1327, %v1336
      %v1339 = vshrl.u32 %v1117, 16
      %v1341 = vrot.slane %v1339, 1
      %v1342 = vshll.u32 %v1117, 16
      %v1344 = vrot.slane %v1342, 2
      %v1345 = vor.u32 %v1341, %v1344
      %v1346 = vsel %vm1311, %v1336, %v1345
      %v1348 = vshrl.u32 %v1118, 16
      %v1350 = vrot.slane %v1348, 1
      %v1351 = vshll.u32 %v1118, 16
      %v1353 = vrot.slane %v1351, 2
      %v1354 = vor.u32 %v1350, %v1353
      %v1355 = vsel %vm1311, %v1345, %v1354
      %v1357 = vshrl.u32 %v1119, 16
      %v1359 = vrot.slane %v1357, 1
      %v1360 = vshll.u32 %v1119, 16
      %v1362 = vrot.slane %v1360, 2
      %v1363 = vor.u32 %v1359, %v1362
      %v1364 = vsel %vm1311, %v1354, %v1363
      %v1366 = vshrl.u32 %v1310, 16
      %v1368 = vrot.slane %v1366, 1
      %v1369 = vshll.u32 %v1310, 16
      %v1371 = vrot.slane %v1369, 2
      %v1372 = vor.u32 %v1368, %v1371
      %v1373 = vsel %vm1311, %v1363, %v1372
      %v1397 = vunpack.c.l.b16 %v1292
      %v1398 = vunpack.c.l.b16 %v1293
      %v1399 = vunpack.c.l.b16 %v1294
      %v1400 = vunpack.c.l.b16 %v1295
      %v1401 = vunpack.c.l.b16 %v1296
      %v1402 = vunpack.c.l.b16 %v1297
      %v1403 = vunpack.c.l.b16 %v1298
      %v1404 = vunpack.c.l.b16 %v1299
      %v1405 = vunpack.c.l.b16 %v1300
      %v1406 = vunpack.c.l.b16 %v1301
      %v1407 = vunpack.c.l.b16 %v1302
      %v1408 = vunpack.c.l.b16 %v1303
      %v1409 = vunpack.c.l.b16 %v1304
      %v1410 = vunpack.c.l.b16 %v1305
      %v1411 = vunpack.c.l.b16 %v1306
      %v1412 = vunpack.c.l.b16 %v1307
      %v1413 = vpack.c.b16 %v1398, %v1397
      %v1414 = vpack.c.b16 %v1400, %v1399
      %v1415 = vpack.c.b16 %v1402, %v1401
      %v1416 = vpack.c.b16 %v1404, %v1403
      %v1417 = vpack.c.b16 %v1406, %v1405
      %v1418 = vpack.c.b16 %v1408, %v1407
      %v1419 = vpack.c.b16 %v1410, %v1409
      %v1420 = vpack.c.b16 %v1412, %v1411
      %1429 = vmatprep.subr.bf16.mxu0 0
      %1430 = vmatpush1.bf16.msra.mxu0 %v1413
      %1431 = vmatprep.subr.bf16.mxu0 0
      %1432 = vmatpush1.bf16.msra.mxu0 %v1414
      %1433 = vmatprep.subr.bf16.mxu0 0
      %1434 = vmatpush1.bf16.msra.mxu0 %v1415
      %1435 = vmatprep.subr.bf16.mxu0 0
      %1436 = vmatpush1.bf16.msra.mxu0 %v1416
      %1437 = vmatprep.subr.bf16.mxu0 0
      %1438 = vmatpush1.bf16.msra.mxu0 %v1417
      %1439 = vmatprep.subr.bf16.mxu0 0
      %1440 = vmatpush1.bf16.msra.mxu0 %v1418
      %1441 = vmatprep.subr.bf16.mxu0 0
      %1442 = vmatpush1.bf16.msra.mxu0 %v1419
      %1443 = vmatprep.subr.bf16.mxu0 0
      %1444 = vmatpush1.bf16.msra.mxu0 %v1420
      %1445 = vmatprep.subr.bf16.mxu0 0
      %1446 = vmatpush1.bf16.msra.mxu0 0
      %1447 = vmatprep.subr.bf16.mxu0 0
      %1448 = vmatpush1.bf16.msra.mxu0 0
      %1449 = vmatprep.subr.bf16.mxu0 0
      %1450 = vmatpush1.bf16.msra.mxu0 0
      %1451 = vmatprep.subr.bf16.mxu0 0
      %1452 = vmatpush1.bf16.msra.mxu0 0
      %1453 = vmatprep.subr.bf16.mxu0 0
      %1454 = vmatpush1.bf16.msra.mxu0 0
      %1455 = vmatprep.subr.bf16.mxu0 0
      %1456 = vmatpush1.bf16.msra.mxu0 0
      %1457 = vmatprep.subr.bf16.mxu0 0
      %1458 = vmatpush1.bf16.msra.mxu0 0
      %1459 = vmatprep.subr.bf16.mxu0 0
      %1460 = vmatpush1.bf16.msra.mxu0 0
      %1461 = vmatprep.mubr.bf16.mxu0 0
      %1462 = vmatmul.mubr.bf16.gmra.mrb[0].mxu0 %v1328
      %v1463 = vpop.f32.mrb[0].mxu0
      %v1464 = vadd.f32 0.0, %v1463
      %v1465 = vpop.f32.mrb[0].mxu0
      %v1466 = vpop.f32.mrb[0].mxu0
      %v1467 = vadd.f32 0.0, %v1466
      %v1468 = vpop.f32.mrb[0].mxu0
      %1469 = vmatprep.mubr.bf16.mxu0 0
      %1470 = vmatmul.mubr.bf16.gmra.mrb[0].mxu0 %v1337
      %v1471 = vpop.f32.mrb[0].mxu0
      %v1472 = vadd.f32 0.0, %v1471
      %v1473 = vpop.f32.mrb[0].mxu0
      %v1474 = vpop.f32.mrb[0].mxu0
      %v1475 = vadd.f32 0.0, %v1474
      %v1476 = vpop.f32.mrb[0].mxu0
      %1477 = vmatprep.mubr.bf16.mxu0 0
      %1478 = vmatmul.mubr.bf16.gmra.mrb[0].mxu0 %v1346
      %v1479 = vpop.f32.mrb[0].mxu0
      %v1480 = vadd.f32 0.0, %v1479
      %v1481 = vpop.f32.mrb[0].mxu0
      %v1482 = vpop.f32.mrb[0].mxu0
      %v1483 = vadd.f32 0.0, %v1482
      %v1484 = vpop.f32.mrb[0].mxu0
      %1485 = vmatprep.mubr.bf16.mxu0 0
      %1486 = vmatmul.mubr.bf16.gmra.mrb[0].mxu0 %v1355
      %v1487 = vpop.f32.mrb[0].mxu0
      %v1488 = vadd.f32 0.0, %v1487
      %v1489 = vpop.f32.mrb[0].mxu0
      %v1490 = vpop.f32.mrb[0].mxu0
      %v1491 = vadd.f32 0.0, %v1490
      %v1492 = vpop.f32.mrb[0].mxu0
      %1493 = vmatprep.mubr.bf16.mxu0 0
      %1494 = vmatmul.mubr.bf16.gmra.mrb[0].mxu0 %v1364
      %v1495 = vpop.f32.mrb[0].mxu0
      %v1496 = vadd.f32 0.0, %v1495
      %v1497 = vpop.f32.mrb[0].mxu0
      %v1498 = vpop.f32.mrb[0].mxu0
      %v1499 = vadd.f32 0.0, %v1498
      %v1500 = vpop.f32.mrb[0].mxu0
      %1501 = vmatprep.mubr.bf16.mxu0 0
      %1502 = vmatmul.mubr.bf16.gmra.mrb[0].mxu0 %v1373
      %v1503 = vpop.f32.mrb[0].mxu0
      %v1504 = vadd.f32 0.0, %v1503
      %v1505 = vpop.f32.mrb[0].mxu0
      %v1506 = vpop.f32.mrb[0].mxu0
      %v1507 = vadd.f32 0.0, %v1506
      %v1508 = vpop.f32.mrb[0].mxu0
      %1509 = vmatprep.mubr.bf16.mxu0 0
      %1510 = vmatmul.mubr.bf16.gmra.mrb[0].mxu0 %v1372
      %v1511 = vpop.f32.mrb[0].mxu0
      %v1512 = vadd.f32 0.0, %v1511
      %v1513 = vpop.f32.mrb[0].mxu0
      %v1514 = vpop.f32.mrb[0].mxu0
      %v1515 = vpop.f32.mrb[0].mxu0
      %1516 = vdwg.mxu0
      %v1517 = vadd.f32 %v1277, %v1464
      %v1518 = vadd.f32 %v1278, %v1467
      %v1519 = vadd.f32 %v1279, %v1472
      %v1520 = vadd.f32 %v1280, %v1475
      %v1521 = vadd.f32 %v1281, %v1480
      %v1522 = vadd.f32 %v1282, %v1483
      %v1523 = vadd.f32 %v1283, %v1488
      %v1524 = vadd.f32 %v1284, %v1491
      %v1525 = vadd.f32 %v1285, %v1496
      %v1526 = vadd.f32 %v1286, %v1499
      %v1527 = vadd.f32 %v1287, %v1504
      %v1528 = vadd.f32 %v1288, %v1507
      %v1529 = vadd.f32 %v1289, %v1512
      %v1530 = vld [vmem:[%s396 + $0x4] sm:$0xc]
      %s1531 = scalar_lea.vmem %s3, 320
      %v1532 = vld [vmem:[%s1531] sm:$0xf]
      %v1533 = vld [vmem:[%s1531 + $0x4] sm:$0xf]
      %v1534 = vld [vmem:[%s1531 + $0x8] sm:$0xf]
      %v1535 = vld [vmem:[%s1531 + $0xc] sm:$0xf]
      %v1536 = vld [vmem:[%s1531 + $0x10] sm:$0xf]
      %v1537 = vld [vmem:[%s1531 + $0x14] sm:$0xf]
      %v1538 = vld [vmem:[%s1531 + $0x18] sm:$0xf]
      %v1539 = vld [vmem:[%s1531 + $0x1c] sm:$0xf]
      %v1540 = vld [vmem:[%s1531 + $0x20] sm:$0xf]
      %v1541 = vld [vmem:[%s1531 + $0x24] sm:$0xf]
      %v1542 = vld [vmem:[%s1531 + $0x28] sm:$0xf]
      %v1543 = vld [vmem:[%s1531 + $0x2c] sm:$0xf]
      %v1544 = vld [vmem:[%s1531 + $0x30] sm:$0xf]
      %v1545 = vld [vmem:[%s1531 + $0x34] sm:$0xf]
      %v1546 = vld [vmem:[%s1531 + $0x38] sm:$0xf]
      %v1547 = vld [vmem:[%s1531 + $0x3c] sm:$0xf]
      %v1549 = vunpack.c.l.b16 %v1530
      %v1550 = vpack.c.b16 %v1102, %v1549
      %vm1551 = vcmask 1045504
      %v1552 = vrot.slane %v1550, 2
      %v1553 = vrot.slane %v1115, 2
      %v1554 = vsel %vm1551, %v1552, %v1553
      %v1555 = vrot.slane %v1116, 2
      %v1556 = vsel %vm1551, %v1553, %v1555
      %v1557 = vrot.slane %v1117, 2
      %v1558 = vsel %vm1551, %v1555, %v1557
      %v1559 = vrot.slane %v1118, 2
      %v1560 = vsel %vm1551, %v1557, %v1559
      %v1561 = vrot.slane %v1119, 2
      %v1562 = vsel %vm1551, %v1559, %v1561
      %v1563 = vrot.slane %v1310, 2
      %v1564 = vsel %vm1551, %v1561, %v1563
      %v1588 = vunpack.c.l.b16 %v1532
      %v1589 = vunpack.c.l.b16 %v1533
      %v1590 = vunpack.c.l.b16 %v1534
      %v1591 = vunpack.c.l.b16 %v1535
      %v1592 = vunpack.c.l.b16 %v1536
      %v1593 = vunpack.c.l.b16 %v1537
      %v1594 = vunpack.c.l.b16 %v1538
      %v1595 = vunpack.c.l.b16 %v1539
      %v1596 = vunpack.c.l.b16 %v1540
      %v1597 = vunpack.c.l.b16 %v1541
      %v1598 = vunpack.c.l.b16 %v1542
      %v1599 = vunpack.c.l.b16 %v1543
      %v1600 = vunpack.c.l.b16 %v1544
      %v1601 = vunpack.c.l.b16 %v1545
      %v1602 = vunpack.c.l.b16 %v1546
      %v1603 = vunpack.c.l.b16 %v1547
      %v1604 = vpack.c.b16 %v1589, %v1588
      %v1605 = vpack.c.b16 %v1591, %v1590
      %v1606 = vpack.c.b16 %v1593, %v1592
      %v1607 = vpack.c.b16 %v1595, %v1594
      %v1608 = vpack.c.b16 %v1597, %v1596
      %v1609 = vpack.c.b16 %v1599, %v1598
      %v1610 = vpack.c.b16 %v1601, %v1600
      %v1611 = vpack.c.b16 %v1603, %v1602
      %1620 = vmatprep.subr.bf16.mxu0 0
      %1621 = vmatpush1.bf16.msra.mxu0 %v1604
      %1622 = vmatprep.subr.bf16.mxu0 0
      %1623 = vmatpush1.bf16.msra.mxu0 %v1605
      %1624 = vmatprep.subr.bf16.mxu0 0
      %1625 = vmatpush1.bf16.msra.mxu0 %v1606
      %1626 = vmatprep.subr.bf16.mxu0 0
      %1627 = vmatpush1.bf16.msra.mxu0 %v1607
      %1628 = vmatprep.subr.bf16.mxu0 0
      %1629 = vmatpush1.bf16.msra.mxu0 %v1608
      %1630 = vmatprep.subr.bf16.mxu0 0
      %1631 = vmatpush1.bf16.msra.mxu0 %v1609
      %1632 = vmatprep.subr.bf16.mxu0 0
      %1633 = vmatpush1.bf16.msra.mxu0 %v1610
      %1634 = vmatprep.subr.bf16.mxu0 0
      %1635 = vmatpush1.bf16.msra.mxu0 %v1611
      %1636 = vmatprep.subr.bf16.mxu0 0
      %1637 = vmatpush1.bf16.msra.mxu0 0
      %1638 = vmatprep.subr.bf16.mxu0 0
      %1639 = vmatpush1.bf16.msra.mxu0 0
      %1640 = vmatprep.subr.bf16.mxu0 0
      %1641 = vmatpush1.bf16.msra.mxu0 0
      %1642 = vmatprep.subr.bf16.mxu0 0
      %1643 = vmatpush1.bf16.msra.mxu0 0
      %1644 = vmatprep.subr.bf16.mxu0 0
      %1645 = vmatpush1.bf16.msra.mxu0 0
      %1646 = vmatprep.subr.bf16.mxu0 0
      %1647 = vmatpush1.bf16.msra.mxu0 0
      %1648 = vmatprep.subr.bf16.mxu0 0
      %1649 = vmatpush1.bf16.msra.mxu0 0
      %1650 = vmatprep.subr.bf16.mxu0 0
      %1651 = vmatpush1.bf16.msra.mxu0 0
      %1652 = vmatprep.mubr.bf16.mxu0 0
      %1653 = vmatmul.mubr.bf16.gmra.mrb[0].mxu0 %v1554
      %v1654 = vpop.f32.mrb[0].mxu0
      %v1655 = vadd.f32 0.0, %v1654
      %v1656 = vpop.f32.mrb[0].mxu0
      %v1657 = vpop.f32.mrb[0].mxu0
      %v1658 = vadd.f32 0.0, %v1657
      %v1659 = vpop.f32.mrb[0].mxu0
      %1660 = vmatprep.mubr.bf16.mxu0 0
      %1661 = vmatmul.mubr.bf16.gmra.mrb[0].mxu0 %v1556
      %v1662 = vpop.f32.mrb[0].mxu0
      %v1663 = vadd.f32 0.0, %v1662
      %v1664 = vpop.f32.mrb[0].mxu0
      %v1665 = vpop.f32.mrb[0].mxu0
      %v1666 = vadd.f32 0.0, %v1665
      %v1667 = vpop.f32.mrb[0].mxu0
      %1668 = vmatprep.mubr.bf16.mxu0 0
      %1669 = vmatmul.mubr.bf16.gmra.mrb[0].mxu0 %v1558
      %v1670 = vpop.f32.mrb[0].mxu0
      %v1671 = vadd.f32 0.0, %v1670
      %v1672 = vpop.f32.mrb[0].mxu0
      %v1673 = vpop.f32.mrb[0].mxu0
      %v1674 = vadd.f32 0.0, %v1673
      %v1675 = vpop.f32.mrb[0].mxu0
      %1676 = vmatprep.mubr.bf16.mxu0 0
      %1677 = vmatmul.mubr.bf16.gmra.mrb[0].mxu0 %v1560
      %v1678 = vpop.f32.mrb[0].mxu0
      %v1679 = vadd.f32 0.0, %v1678
      %v1680 = vpop.f32.mrb[0].mxu0
      %v1681 = vpop.f32.mrb[0].mxu0
      %v1682 = vadd.f32 0.0, %v1681
      %v1683 = vpop.f32.mrb[0].mxu0
      %1684 = vmatprep.mubr.bf16.mxu0 0
      %1685 = vmatmul.mubr.bf16.gmra.mrb[0].mxu0 %v1562
      %v1686 = vpop.f32.mrb[0].mxu0
      %v1687 = vadd.f32 0.0, %v1686
      %v1688 = vpop.f32.mrb[0].mxu0
      %v1689 = vpop.f32.mrb[0].mxu0
      %v1690 = vadd.f32 0.0, %v1689
      %v1691 = vpop.f32.mrb[0].mxu0
      %1692 = vmatprep.mubr.bf16.mxu0 0
      %1693 = vmatmul.mubr.bf16.gmra.mrb[0].mxu0 %v1564
      %v1694 = vpop.f32.mrb[0].mxu0
      %v1695 = vadd.f32 0.0, %v1694
      %v1696 = vpop.f32.mrb[0].mxu0
      %v1697 = vpop.f32.mrb[0].mxu0
      %v1698 = vadd.f32 0.0, %v1697
      %v1699 = vpop.f32.mrb[0].mxu0
      %1700 = vmatprep.mubr.bf16.mxu0 0
      %1701 = vmatmul.mubr.bf16.gmra.mrb[0].mxu0 %v1563
      %v1702 = vpop.f32.mrb[0].mxu0
      %v1703 = vadd.f32 0.0, %v1702
      %v1704 = vpop.f32.mrb[0].mxu0
      %v1705 = vpop.f32.mrb[0].mxu0
      %v1706 = vpop.f32.mrb[0].mxu0
      %1707 = vdwg.mxu0
      %v1708 = vadd.f32 %v1517, %v1655
      %v1709 = vadd.f32 %v1518, %v1658
      %v1710 = vadd.f32 %v1519, %v1663
      %v1711 = vadd.f32 %v1520, %v1666
      %v1712 = vadd.f32 %v1521, %v1671
      %v1713 = vadd.f32 %v1522, %v1674
      %v1714 = vadd.f32 %v1523, %v1679
      %v1715 = vadd.f32 %v1524, %v1682
      %v1716 = vadd.f32 %v1525, %v1687
      %v1717 = vadd.f32 %v1526, %v1690
      %v1718 = vadd.f32 %v1527, %v1695
      %v1719 = vadd.f32 %v1528, %v1698
      %v1720 = vadd.f32 %v1529, %v1703
      %v1721 = vld [vmem:[%s396 + $0x8] sm:$0xc]
      %v1722 = vld [vmem:[%s396 + $0xc] sm:$0xf]
      %v1723 = vld [vmem:[%s396 + $0x10] sm:$0xf]
      %v1724 = vld [vmem:[%s396 + $0x14] sm:$0xf]
      %v1725 = vld [vmem:[%s396 + $0x18] sm:$0xf]
      %v1726 = vld [vmem:[%s396 + $0x1c] sm:$0xf]
      %v1727 = vld [vmem:[%s396 + $0x20] sm:$0xf]
      %v1728 = vld [vmem:[%s396 + $0x24] sm:$0xf]
      %v1729 = vld [vmem:[%s396 + $0x28] sm:$0xf]
      %v1730 = vld [vmem:[%s396 + $0x2c] sm:$0xf]
      %v1731 = vld [vmem:[%s396 + $0x30] sm:$0xf]
      %v1732 = vld [vmem:[%s396 + $0x34] sm:$0xf]
      %v1733 = vld [vmem:[%s396 + $0x38] sm:$0xf]
      %s1734 = scalar_lea.vmem %s3, 384
      %v1735 = vld [vmem:[%s1734] sm:$0xf]
      %v1736 = vld [vmem:[%s1734 + $0x4] sm:$0xf]
      %v1737 = vld [vmem:[%s1734 + $0x8] sm:$0xf]
      %v1738 = vld [vmem:[%s1734 + $0xc] sm:$0xf]
      %v1739 = vld [vmem:[%s1734 + $0x10] sm:$0xf]
      %v1740 = vld [vmem:[%s1734 + $0x14] sm:$0xf]
      %v1741 = vld [vmem:[%s1734 + $0x18] sm:$0xf]
      %v1742 = vld [vmem:[%s1734 + $0x1c] sm:$0xf]
      %v1743 = vld [vmem:[%s1734 + $0x20] sm:$0xf]
      %v1744 = vld [vmem:[%s1734 + $0x24] sm:$0xf]
      %v1745 = vld [vmem:[%s1734 + $0x28] sm:$0xf]
      %v1746 = vld [vmem:[%s1734 + $0x2c] sm:$0xf]
      %v1747 = vld [vmem:[%s1734 + $0x30] sm:$0xf]
      %v1748 = vld [vmem:[%s1734 + $0x34] sm:$0xf]
      %v1749 = vld [vmem:[%s1734 + $0x38] sm:$0xf]
      %v1750 = vld [vmem:[%s1734 + $0x3c] sm:$0xf]
      %v1764 = vunpack.c.l.b16 %v1721
      %v1765 = vunpack.c.l.b16 %v1722
      %v1766 = vunpack.c.l.b16 %v1723
      %v1767 = vunpack.c.l.b16 %v1724
      %v1768 = vunpack.c.l.b16 %v1725
      %v1769 = vunpack.c.l.b16 %v1726
      %v1770 = vunpack.c.l.b16 %v1727
      %v1771 = vunpack.c.l.b16 %v1728
      %v1772 = vunpack.c.l.b16 %v1729
      %v1773 = vunpack.c.l.b16 %v1730
      %v1774 = vunpack.c.l.b16 %v1731
      %v1775 = vunpack.c.l.b16 %v1732
      %v1776 = vunpack.c.l.b16 %v1733
      %v1777 = vpack.c.b16 %v1765, %v1764
      %v1778 = vpack.c.b16 %v1767, %v1766
      %v1779 = vpack.c.b16 %v1769, %v1768
      %v1780 = vpack.c.b16 %v1771, %v1770
      %v1781 = vpack.c.b16 %v1773, %v1772
      %v1782 = vpack.c.b16 %v1775, %v1774
      %v1783 = vpack.c.b16 %v1776, %v1776
      %v1784 = vrot.slane %v1777, 2
      %v1785 = vrot.slane %v1778, 2
      %v1786 = vsel %vm1551, %v1784, %v1785
      %v1787 = vrot.slane %v1779, 2
      %v1788 = vsel %vm1551, %v1785, %v1787
      %v1789 = vrot.slane %v1780, 2
      %v1790 = vsel %vm1551, %v1787, %v1789
      %v1791 = vrot.slane %v1781, 2
      %v1792 = vsel %vm1551, %v1789, %v1791
      %v1793 = vrot.slane %v1782, 2
      %v1794 = vsel %vm1551, %v1791, %v1793
      %v1795 = vrot.slane %v1783, 2
      %v1796 = vsel %vm1551, %v1793, %v1795
      %v1820 = vunpack.c.l.b16 %v1735
      %v1821 = vunpack.c.l.b16 %v1736
      %v1822 = vunpack.c.l.b16 %v1737
      %v1823 = vunpack.c.l.b16 %v1738
      %v1824 = vunpack.c.l.b16 %v1739
      %v1825 = vunpack.c.l.b16 %v1740
      %v1826 = vunpack.c.l.b16 %v1741
      %v1827 = vunpack.c.l.b16 %v1742
      %v1828 = vunpack.c.l.b16 %v1743
      %v1829 = vunpack.c.l.b16 %v1744
      %v1830 = vunpack.c.l.b16 %v1745
      %v1831 = vunpack.c.l.b16 %v1746
      %v1832 = vunpack.c.l.b16 %v1747
      %v1833 = vunpack.c.l.b16 %v1748
      %v1834 = vunpack.c.l.b16 %v1749
      %v1835 = vunpack.c.l.b16 %v1750
      %v1836 = vpack.c.b16 %v1821, %v1820
      %v1837 = vpack.c.b16 %v1823, %v1822
      %v1838 = vpack.c.b16 %v1825, %v1824
      %v1839 = vpack.c.b16 %v1827, %v1826
      %v1840 = vpack.c.b16 %v1829, %v1828
      %v1841 = vpack.c.b16 %v1831, %v1830
      %v1842 = vpack.c.b16 %v1833, %v1832
      %v1843 = vpack.c.b16 %v1835, %v1834
      %1852 = vmatprep.subr.bf16.mxu0 0
      %1853 = vmatpush1.bf16.msra.mxu0 %v1836
      %1854 = vmatprep.subr.bf16.mxu0 0
      %1855 = vmatpush1.bf16.msra.mxu0 %v1837
      %1856 = vmatprep.subr.bf16.mxu0 0
      %1857 = vmatpush1.bf16.msra.mxu0 %v1838
      %1858 = vmatprep.subr.bf16.mxu0 0
      %1859 = vmatpush1.bf16.msra.mxu0 %v1839
      %1860 = vmatprep.subr.bf16.mxu0 0
      %1861 = vmatpush1.bf16.msra.mxu0 %v1840
      %1862 = vmatprep.subr.bf16.mxu0 0
      %1863 = vmatpush1.bf16.msra.mxu0 %v1841
      %1864 = vmatprep.subr.bf16.mxu0 0
      %1865 = vmatpush1.bf16.msra.mxu0 %v1842
      %1866 = vmatprep.subr.bf16.mxu0 0
      %1867 = vmatpush1.bf16.msra.mxu0 %v1843
      %1868 = vmatprep.subr.bf16.mxu0 0
      %1869 = vmatpush1.bf16.msra.mxu0 0
      %1870 = vmatprep.subr.bf16.mxu0 0
      %1871 = vmatpush1.bf16.msra.mxu0 0
      %1872 = vmatprep.subr.bf16.mxu0 0
      %1873 = vmatpush1.bf16.msra.mxu0 0
      %1874 = vmatprep.subr.bf16.mxu0 0
      %1875 = vmatpush1.bf16.msra.mxu0 0
      %1876 = vmatprep.subr.bf16.mxu0 0
      %1877 = vmatpush1.bf16.msra.mxu0 0
      %1878 = vmatprep.subr.bf16.mxu0 0
      %1879 = vmatpush1.bf16.msra.mxu0 0
      %1880 = vmatprep.subr.bf16.mxu0 0
      %1881 = vmatpush1.bf16.msra.mxu0 0
      %1882 = vmatprep.subr.bf16.mxu0 0
      %1883 = vmatpush1.bf16.msra.mxu0 0
      %1884 = vmatprep.mubr.bf16.mxu0 0
      %1885 = vmatmul.mubr.bf16.gmra.mrb[0].mxu0 %v1786
      %v1886 = vpop.f32.mrb[0].mxu0
      %v1887 = vadd.f32 0.0, %v1886
      %v1888 = vpop.f32.mrb[0].mxu0
      %v1889 = vpop.f32.mrb[0].mxu0
      %v1890 = vadd.f32 0.0, %v1889
      %v1891 = vpop.f32.mrb[0].mxu0
      %1892 = vmatprep.mubr.bf16.mxu0 0
      %1893 = vmatmul.mubr.bf16.gmra.mrb[0].mxu0 %v1788
      %v1894 = vpop.f32.mrb[0].mxu0
      %v1895 = vadd.f32 0.0, %v1894
      %v1896 = vpop.f32.mrb[0].mxu0
      %v1897 = vpop.f32.mrb[0].mxu0
      %v1898 = vadd.f32 0.0, %v1897
      %v1899 = vpop.f32.mrb[0].mxu0
      %1900 = vmatprep.mubr.bf16.mxu0 0
      %1901 = vmatmul.mubr.bf16.gmra.mrb[0].mxu0 %v1790
      %v1902 = vpop.f32.mrb[0].mxu0
      %v1903 = vadd.f32 0.0, %v1902
      %v1904 = vpop.f32.mrb[0].mxu0
      %v1905 = vpop.f32.mrb[0].mxu0
      %v1906 = vadd.f32 0.0, %v1905
      %v1907 = vpop.f32.mrb[0].mxu0
      %1908 = vmatprep.mubr.bf16.mxu0 0
      %1909 = vmatmul.mubr.bf16.gmra.mrb[0].mxu0 %v1792
      %v1910 = vpop.f32.mrb[0].mxu0
      %v1911 = vadd.f32 0.0, %v1910
      %v1912 = vpop.f32.mrb[0].mxu0
      %v1913 = vpop.f32.mrb[0].mxu0
      %v1914 = vadd.f32 0.0, %v1913
      %v1915 = vpop.f32.mrb[0].mxu0
      %1916 = vmatprep.mubr.bf16.mxu0 0
      %1917 = vmatmul.mubr.bf16.gmra.mrb[0].mxu0 %v1794
      %v1918 = vpop.f32.mrb[0].mxu0
      %v1919 = vadd.f32 0.0, %v1918
      %v1920 = vpop.f32.mrb[0].mxu0
      %v1921 = vpop.f32.mrb[0].mxu0
      %v1922 = vadd.f32 0.0, %v1921
      %v1923 = vpop.f32.mrb[0].mxu0
      %1924 = vmatprep.mubr.bf16.mxu0 0
      %1925 = vmatmul.mubr.bf16.gmra.mrb[0].mxu0 %v1796
      %v1926 = vpop.f32.mrb[0].mxu0
      %v1927 = vadd.f32 0.0, %v1926
      %v1928 = vpop.f32.mrb[0].mxu0
      %v1929 = vpop.f32.mrb[0].mxu0
      %v1930 = vadd.f32 0.0, %v1929
      %v1931 = vpop.f32.mrb[0].mxu0
      %1932 = vmatprep.mubr.bf16.mxu0 0
      %1933 = vmatmul.mubr.bf16.gmra.mrb[0].mxu0 %v1795
      %v1934 = vpop.f32.mrb[0].mxu0
      %v1935 = vadd.f32 0.0, %v1934
      %v1936 = vpop.f32.mrb[0].mxu0
      %v1937 = vpop.f32.mrb[0].mxu0
      %v1938 = vpop.f32.mrb[0].mxu0
      %1939 = vdwg.mxu0
      %v1940 = vadd.f32 %v1708, %v1887
      %v1941 = vadd.f32 %v1709, %v1890
      %v1942 = vadd.f32 %v1710, %v1895
      %v1943 = vadd.f32 %v1711, %v1898
      %v1944 = vadd.f32 %v1712, %v1903
      %v1945 = vadd.f32 %v1713, %v1906
      %v1946 = vadd.f32 %v1714, %v1911
      %v1947 = vadd.f32 %v1715, %v1914
      %v1948 = vadd.f32 %v1716, %v1919
      %v1949 = vadd.f32 %v1717, %v1922
      %v1950 = vadd.f32 %v1718, %v1927
      %v1951 = vadd.f32 %v1719, %v1930
      %v1952 = vadd.f32 %v1720, %v1935
      %v1953 = vld [vmem:[%s396 + $0x8] sm:$0xc]
      %v1954 = vld [vmem:[%s396 + $0xc] sm:$0xf]
      %v1955 = vld [vmem:[%s396 + $0x10] sm:$0xf]
      %v1956 = vld [vmem:[%s396 + $0x14] sm:$0xf]
      %v1957 = vld [vmem:[%s396 + $0x18] sm:$0xf]
      %v1958 = vld [vmem:[%s396 + $0x1c] sm:$0xf]
      %v1959 = vld [vmem:[%s396 + $0x20] sm:$0xf]
      %v1960 = vld [vmem:[%s396 + $0x24] sm:$0xf]
      %v1961 = vld [vmem:[%s396 + $0x28] sm:$0xf]
      %v1962 = vld [vmem:[%s396 + $0x2c] sm:$0xf]
      %v1963 = vld [vmem:[%s396 + $0x30] sm:$0xf]
      %v1964 = vld [vmem:[%s396 + $0x34] sm:$0xf]
      %v1965 = vld [vmem:[%s396 + $0x38] sm:$0xf]
      %v1966 = vld [vmem:[%s396 + $0x3c] sm:$0x1]
      %s1967 = scalar_lea.vmem %s3, 448
      %v1968 = vld [vmem:[%s1967] sm:$0xf]
      %v1969 = vld [vmem:[%s1967 + $0x4] sm:$0xf]
      %v1970 = vld [vmem:[%s1967 + $0x8] sm:$0xf]
      %v1971 = vld [vmem:[%s1967 + $0xc] sm:$0xf]
      %v1972 = vld [vmem:[%s1967 + $0x10] sm:$0xf]
      %v1973 = vld [vmem:[%s1967 + $0x14] sm:$0xf]
      %v1974 = vld [vmem:[%s1967 + $0x18] sm:$0xf]
      %v1975 = vld [vmem:[%s1967 + $0x1c] sm:$0xf]
      %v1976 = vld [vmem:[%s1967 + $0x20] sm:$0xf]
      %v1977 = vld [vmem:[%s1967 + $0x24] sm:$0xf]
      %v1978 = vld [vmem:[%s1967 + $0x28] sm:$0xf]
      %v1979 = vld [vmem:[%s1967 + $0x2c] sm:$0xf]
      %v1980 = vld [vmem:[%s1967 + $0x30] sm:$0xf]
      %v1981 = vld [vmem:[%s1967 + $0x34] sm:$0xf]
      %v1982 = vld [vmem:[%s1967 + $0x38] sm:$0xf]
      %v1983 = vld [vmem:[%s1967 + $0x3c] sm:$0xf]
      %v1998 = vunpack.c.l.b16 %v1953
      %v1999 = vunpack.c.l.b16 %v1954
      %v2000 = vunpack.c.l.b16 %v1955
      %v2001 = vunpack.c.l.b16 %v1956
      %v2002 = vunpack.c.l.b16 %v1957
      %v2003 = vunpack.c.l.b16 %v1958
      %v2004 = vunpack.c.l.b16 %v1959
      %v2005 = vunpack.c.l.b16 %v1960
      %v2006 = vunpack.c.l.b16 %v1961
      %v2007 = vunpack.c.l.b16 %v1962
      %v2008 = vunpack.c.l.b16 %v1963
      %v2009 = vunpack.c.l.b16 %v1964
      %v2010 = vunpack.c.l.b16 %v1965
      %v2011 = vunpack.c.l.b16 %v1966
      %v2012 = vpack.c.b16 %v1999, %v1998
      %v2013 = vpack.c.b16 %v2001, %v2000
      %v2014 = vpack.c.b16 %v2003, %v2002
      %v2015 = vpack.c.b16 %v2005, %v2004
      %v2016 = vpack.c.b16 %v2007, %v2006
      %v2017 = vpack.c.b16 %v2009, %v2008
      %v2018 = vpack.c.b16 %v2011, %v2010
      %vm2019 = vsmask.f32 5376
      %v2021 = vshrl.u32 %v2012, 16
      %v2023 = vrot.slane %v2021, 2
      %v2024 = vshll.u32 %v2012, 16
      %v2026 = vrot.slane %v2024, 3
      %v2027 = vor.u32 %v2023, %v2026
      %v2029 = vshrl.u32 %v2013, 16
      %v2031 = vrot.slane %v2029, 2
      %v2032 = vshll.u32 %v2013, 16
      %v2034 = vrot.slane %v2032, 3
      %v2035 = vor.u32 %v2031, %v2034
      %v2036 = vsel %vm2019, %v2027, %v2035
      %v2038 = vshrl.u32 %v2014, 16
      %v2040 = vrot.slane %v2038, 2
      %v2041 = vshll.u32 %v2014, 16
      %v2043 = vrot.slane %v2041, 3
      %v2044 = vor.u32 %v2040, %v2043
      %v2045 = vsel %vm2019, %v2035, %v2044
      %v2047 = vshrl.u32 %v2015, 16
      %v2049 = vrot.slane %v2047, 2
      %v2050 = vshll.u32 %v2015, 16
      %v2052 = vrot.slane %v2050, 3
      %v2053 = vor.u32 %v2049, %v2052
      %v2054 = vsel %vm2019, %v2044, %v2053
      %v2056 = vshrl.u32 %v2016, 16
      %v2058 = vrot.slane %v2056, 2
      %v2059 = vshll.u32 %v2016, 16
      %v2061 = vrot.slane %v2059, 3
      %v2062 = vor.u32 %v2058, %v2061
      %v2063 = vsel %vm2019, %v2053, %v2062
      %v2065 = vshrl.u32 %v2017, 16
      %v2067 = vrot.slane %v2065, 2
      %v2068 = vshll.u32 %v2017, 16
      %v2070 = vrot.slane %v2068, 3
      %v2071 = vor.u32 %v2067, %v2070
      %v2072 = vsel %vm2019, %v2062, %v2071
      %v2074 = vshrl.u32 %v2018, 16
      %v2076 = vrot.slane %v2074, 2
      %v2077 = vshll.u32 %v2018, 16
      %v2079 = vrot.slane %v2077, 3
      %v2080 = vor.u32 %v2076, %v2079
      %v2081 = vsel %vm2019, %v2071, %v2080
      %v2105 = vunpack.c.l.b16 %v1968
      %v2106 = vunpack.c.l.b16 %v1969
      %v2107 = vunpack.c.l.b16 %v1970
      %v2108 = vunpack.c.l.b16 %v1971
      %v2109 = vunpack.c.l.b16 %v1972
      %v2110 = vunpack.c.l.b16 %v1973
      %v2111 = vunpack.c.l.b16 %v1974
      %v2112 = vunpack.c.l.b16 %v1975
      %v2113 = vunpack.c.l.b16 %v1976
      %v2114 = vunpack.c.l.b16 %v1977
      %v2115 = vunpack.c.l.b16 %v1978
      %v2116 = vunpack.c.l.b16 %v1979
      %v2117 = vunpack.c.l.b16 %v1980
      %v2118 = vunpack.c.l.b16 %v1981
      %v2119 = vunpack.c.l.b16 %v1982
      %v2120 = vunpack.c.l.b16 %v1983
      %v2121 = vpack.c.b16 %v2106, %v2105
      %v2122 = vpack.c.b16 %v2108, %v2107
      %v2123 = vpack.c.b16 %v2110, %v2109
      %v2124 = vpack.c.b16 %v2112, %v2111
      %v2125 = vpack.c.b16 %v2114, %v2113
      %v2126 = vpack.c.b16 %v2116, %v2115
      %v2127 = vpack.c.b16 %v2118, %v2117
      %v2128 = vpack.c.b16 %v2120, %v2119
      %2137 = vmatprep.subr.bf16.mxu0 0
      %2138 = vmatpush1.bf16.msra.mxu0 %v2121
      %2139 = vmatprep.subr.bf16.mxu0 0
      %2140 = vmatpush1.bf16.msra.mxu0 %v2122
      %2141 = vmatprep.subr.bf16.mxu0 0
      %2142 = vmatpush1.bf16.msra.mxu0 %v2123
      %2143 = vmatprep.subr.bf16.mxu0 0
      %2144 = vmatpush1.bf16.msra.mxu0 %v2124
      %2145 = vmatprep.subr.bf16.mxu0 0
      %2146 = vmatpush1.bf16.msra.mxu0 %v2125
      %2147 = vmatprep.subr.bf16.mxu0 0
      %2148 = vmatpush1.bf16.msra.mxu0 %v2126
      %2149 = vmatprep.subr.bf16.mxu0 0
      %2150 = vmatpush1.bf16.msra.mxu0 %v2127
      %2151 = vmatprep.subr.bf16.mxu0 0
      %2152 = vmatpush1.bf16.msra.mxu0 %v2128
      %2153 = vmatprep.subr.bf16.mxu0 0
      %2154 = vmatpush1.bf16.msra.mxu0 0
      %2155 = vmatprep.subr.bf16.mxu0 0
      %2156 = vmatpush1.bf16.msra.mxu0 0
      %2157 = vmatprep.subr.bf16.mxu0 0
      %2158 = vmatpush1.bf16.msra.mxu0 0
      %2159 = vmatprep.subr.bf16.mxu0 0
      %2160 = vmatpush1.bf16.msra.mxu0 0
      %2161 = vmatprep.subr.bf16.mxu0 0
      %2162 = vmatpush1.bf16.msra.mxu0 0
      %2163 = vmatprep.subr.bf16.mxu0 0
      %2164 = vmatpush1.bf16.msra.mxu0 0
      %2165 = vmatprep.subr.bf16.mxu0 0
      %2166 = vmatpush1.bf16.msra.mxu0 0
      %2167 = vmatprep.subr.bf16.mxu0 0
      %2168 = vmatpush1.bf16.msra.mxu0 0
      %2169 = vmatprep.mubr.bf16.mxu0 0
      %2170 = vmatmul.mubr.bf16.gmra.mrb[0].mxu0 %v2036
      %v2171 = vpop.f32.mrb[0].mxu0
      %v2172 = vadd.f32 0.0, %v2171
      %v2173 = vpop.f32.mrb[0].mxu0
      %v2174 = vpop.f32.mrb[0].mxu0
      %v2175 = vadd.f32 0.0, %v2174
      %v2176 = vpop.f32.mrb[0].mxu0
      %2177 = vmatprep.mubr.bf16.mxu0 0
      %2178 = vmatmul.mubr.bf16.gmra.mrb[0].mxu0 %v2045
      %v2179 = vpop.f32.mrb[0].mxu0
      %v2180 = vadd.f32 0.0, %v2179
      %v2181 = vpop.f32.mrb[0].mxu0
      %v2182 = vpop.f32.mrb[0].mxu0
      %v2183 = vadd.f32 0.0, %v2182
      %v2184 = vpop.f32.mrb[0].mxu0
      %2185 = vmatprep.mubr.bf16.mxu0 0
      %2186 = vmatmul.mubr.bf16.gmra.mrb[0].mxu0 %v2054
      %v2187 = vpop.f32.mrb[0].mxu0
      %v2188 = vadd.f32 0.0, %v2187
      %v2189 = vpop.f32.mrb[0].mxu0
      %v2190 = vpop.f32.mrb[0].mxu0
      %v2191 = vadd.f32 0.0, %v2190
      %v2192 = vpop.f32.mrb[0].mxu0
      %2193 = vmatprep.mubr.bf16.mxu0 0
      %2194 = vmatmul.mubr.bf16.gmra.mrb[0].mxu0 %v2063
      %v2195 = vpop.f32.mrb[0].mxu0
      %v2196 = vadd.f32 0.0, %v2195
      %v2197 = vpop.f32.mrb[0].mxu0
      %v2198 = vpop.f32.mrb[0].mxu0
      %v2199 = vadd.f32 0.0, %v2198
      %v2200 = vpop.f32.mrb[0].mxu0
      %2201 = vmatprep.mubr.bf16.mxu0 0
      %2202 = vmatmul.mubr.bf16.gmra.mrb[0].mxu0 %v2072
      %v2203 = vpop.f32.mrb[0].mxu0
      %v2204 = vadd.f32 0.0, %v2203
      %v2205 = vpop.f32.mrb[0].mxu0
      %v2206 = vpop.f32.mrb[0].mxu0
      %v2207 = vadd.f32 0.0, %v2206
      %v2208 = vpop.f32.mrb[0].mxu0
      %2209 = vmatprep.mubr.bf16.mxu0 0
      %2210 = vmatmul.mubr.bf16.gmra.mrb[0].mxu0 %v2081
      %v2211 = vpop.f32.mrb[0].mxu0
      %v2212 = vadd.f32 0.0, %v2211
      %v2213 = vpop.f32.mrb[0].mxu0
      %v2214 = vpop.f32.mrb[0].mxu0
      %v2215 = vadd.f32 0.0, %v2214
      %v2216 = vpop.f32.mrb[0].mxu0
      %2217 = vmatprep.mubr.bf16.mxu0 0
      %2218 = vmatmul.mubr.bf16.gmra.mrb[0].mxu0 %v2080
      %v2219 = vpop.f32.mrb[0].mxu0
      %v2220 = vadd.f32 0.0, %v2219
      %v2221 = vpop.f32.mrb[0].mxu0
      %v2222 = vpop.f32.mrb[0].mxu0
      %v2223 = vpop.f32.mrb[0].mxu0
      %2224 = vdwg.mxu0
      %v2225 = vadd.f32 %v1940, %v2172
      %v2226 = vadd.f32 %v1941, %v2175
      %v2227 = vadd.f32 %v1942, %v2180
      %v2228 = vadd.f32 %v1943, %v2183
      %v2229 = vadd.f32 %v1944, %v2188
      %v2230 = vadd.f32 %v1945, %v2191
      %v2231 = vadd.f32 %v1946, %v2196
      %v2232 = vadd.f32 %v1947, %v2199
      %v2233 = vadd.f32 %v1948, %v2204
      %v2234 = vadd.f32 %v1949, %v2207
      %v2235 = vadd.f32 %v1950, %v2212
      %v2236 = vadd.f32 %v1951, %v2215
      %v2237 = vadd.f32 %v1952, %v2220
      %v2238 = vld [vmem:[%s396 + $0x8] sm:$0x8]
      %s2239 = scalar_lea.vmem %s3, 512
      %v2240 = vld [vmem:[%s2239] sm:$0xf]
      %v2241 = vld [vmem:[%s2239 + $0x4] sm:$0xf]
      %v2242 = vld [vmem:[%s2239 + $0x8] sm:$0xf]
      %v2243 = vld [vmem:[%s2239 + $0xc] sm:$0xf]
      %v2244 = vld [vmem:[%s2239 + $0x10] sm:$0xf]
      %v2245 = vld [vmem:[%s2239 + $0x14] sm:$0xf]
      %v2246 = vld [vmem:[%s2239 + $0x18] sm:$0xf]
      %v2247 = vld [vmem:[%s2239 + $0x1c] sm:$0xf]
      %v2248 = vld [vmem:[%s2239 + $0x20] sm:$0xf]
      %v2249 = vld [vmem:[%s2239 + $0x24] sm:$0xf]
      %v2250 = vld [vmem:[%s2239 + $0x28] sm:$0xf]
      %v2251 = vld [vmem:[%s2239 + $0x2c] sm:$0xf]
      %v2252 = vld [vmem:[%s2239 + $0x30] sm:$0xf]
      %v2253 = vld [vmem:[%s2239 + $0x34] sm:$0xf]
      %v2254 = vld [vmem:[%s2239 + $0x38] sm:$0xf]
      %v2255 = vld [vmem:[%s2239 + $0x3c] sm:$0xf]
      %v2257 = vunpack.c.l.b16 %v2238
      %v2258 = vpack.c.b16 %v1999, %v2257
      %vm2259 = vcmask 1044480
      %v2260 = vrot.slane %v2258, 3
      %v2261 = vrot.slane %v2013, 3
      %v2262 = vsel %vm2259, %v2260, %v2261
      %v2263 = vrot.slane %v2014, 3
      %v2264 = vsel %vm2259, %v2261, %v2263
      %v2265 = vrot.slane %v2015, 3
      %v2266 = vsel %vm2259, %v2263, %v2265
      %v2267 = vrot.slane %v2016, 3
      %v2268 = vsel %vm2259, %v2265, %v2267
      %v2269 = vrot.slane %v2017, 3
      %v2270 = vsel %vm2259, %v2267, %v2269
      %v2271 = vrot.slane %v2018, 3
      %v2272 = vsel %vm2259, %v2269, %v2271
      %v2296 = vunpack.c.l.b16 %v2240
      %v2297 = vunpack.c.l.b16 %v2241
      %v2298 = vunpack.c.l.b16 %v2242
      %v2299 = vunpack.c.l.b16 %v2243
      %v2300 = vunpack.c.l.b16 %v2244
      %v2301 = vunpack.c.l.b16 %v2245
      %v2302 = vunpack.c.l.b16 %v2246
      %v2303 = vunpack.c.l.b16 %v2247
      %v2304 = vunpack.c.l.b16 %v2248
      %v2305 = vunpack.c.l.b16 %v2249
      %v2306 = vunpack.c.l.b16 %v2250
      %v2307 = vunpack.c.l.b16 %v2251
      %v2308 = vunpack.c.l.b16 %v2252
      %v2309 = vunpack.c.l.b16 %v2253
      %v2310 = vunpack.c.l.b16 %v2254
      %v2311 = vunpack.c.l.b16 %v2255
      %v2312 = vpack.c.b16 %v2297, %v2296
      %v2313 = vpack.c.b16 %v2299, %v2298
      %v2314 = vpack.c.b16 %v2301, %v2300
      %v2315 = vpack.c.b16 %v2303, %v2302
      %v2316 = vpack.c.b16 %v2305, %v2304
      %v2317 = vpack.c.b16 %v2307, %v2306
      %v2318 = vpack.c.b16 %v2309, %v2308
      %v2319 = vpack.c.b16 %v2311, %v2310
      %2328 = vmatprep.subr.bf16.mxu0 0
      %2329 = vmatpush1.bf16.msra.mxu0 %v2312
      %2330 = vmatprep.subr.bf16.mxu0 0
      %2331 = vmatpush1.bf16.msra.mxu0 %v2313
      %2332 = vmatprep.subr.bf16.mxu0 0
      %2333 = vmatpush1.bf16.msra.mxu0 %v2314
      %2334 = vmatprep.subr.bf16.mxu0 0
      %2335 = vmatpush1.bf16.msra.mxu0 %v2315
      %2336 = vmatprep.subr.bf16.mxu0 0
      %2337 = vmatpush1.bf16.msra.mxu0 %v2316
      %2338 = vmatprep.subr.bf16.mxu0 0
      %2339 = vmatpush1.bf16.msra.mxu0 %v2317
      %2340 = vmatprep.subr.bf16.mxu0 0
      %2341 = vmatpush1.bf16.msra.mxu0 %v2318
      %2342 = vmatprep.subr.bf16.mxu0 0
      %2343 = vmatpush1.bf16.msra.mxu0 %v2319
      %2344 = vmatprep.subr.bf16.mxu0 0
      %2345 = vmatpush1.bf16.msra.mxu0 0
      %2346 = vmatprep.subr.bf16.mxu0 0
      %2347 = vmatpush1.bf16.msra.mxu0 0
      %2348 = vmatprep.subr.bf16.mxu0 0
      %2349 = vmatpush1.bf16.msra.mxu0 0
      %2350 = vmatprep.subr.bf16.mxu0 0
      %2351 = vmatpush1.bf16.msra.mxu0 0
      %2352 = vmatprep.subr.bf16.mxu0 0
      %2353 = vmatpush1.bf16.msra.mxu0 0
      %2354 = vmatprep.subr.bf16.mxu0 0
      %2355 = vmatpush1.bf16.msra.mxu0 0
      %2356 = vmatprep.subr.bf16.mxu0 0
      %2357 = vmatpush1.bf16.msra.mxu0 0
      %2358 = vmatprep.subr.bf16.mxu0 0
      %2359 = vmatpush1.bf16.msra.mxu0 0
      %2360 = vmatprep.mubr.bf16.mxu0 0
      %2361 = vmatmul.mubr.bf16.gmra.mrb[0].mxu0 %v2262
      %v2362 = vpop.f32.mrb[0].mxu0
      %v2363 = vadd.f32 0.0, %v2362
      %v2364 = vpop.f32.mrb[0].mxu0
      %v2365 = vpop.f32.mrb[0].mxu0
      %v2366 = vadd.f32 0.0, %v2365
      %v2367 = vpop.f32.mrb[0].mxu0
      %2368 = vmatprep.mubr.bf16.mxu0 0
      %2369 = vmatmul.mubr.bf16.gmra.mrb[0].mxu0 %v2264
      %v2370 = vpop.f32.mrb[0].mxu0
      %v2371 = vadd.f32 0.0, %v2370
      %v2372 = vpop.f32.mrb[0].mxu0
      %v2373 = vpop.f32.mrb[0].mxu0
      %v2374 = vadd.f32 0.0, %v2373
      %v2375 = vpop.f32.mrb[0].mxu0
      %2376 = vmatprep.mubr.bf16.mxu0 0
      %2377 = vmatmul.mubr.bf16.gmra.mrb[0].mxu0 %v2266
      %v2378 = vpop.f32.mrb[0].mxu0
      %v2379 = vadd.f32 0.0, %v2378
      %v2380 = vpop.f32.mrb[0].mxu0
      %v2381 = vpop.f32.mrb[0].mxu0
      %v2382 = vadd.f32 0.0, %v2381
      %v2383 = vpop.f32.mrb[0].mxu0
      %2384 = vmatprep.mubr.bf16.mxu0 0
      %2385 = vmatmul.mubr.bf16.gmra.mrb[0].mxu0 %v2268
      %v2386 = vpop.f32.mrb[0].mxu0
      %v2387 = vadd.f32 0.0, %v2386
      %v2388 = vpop.f32.mrb[0].mxu0
      %v2389 = vpop.f32.mrb[0].mxu0
      %v2390 = vadd.f32 0.0, %v2389
      %v2391 = vpop.f32.mrb[0].mxu0
      %2392 = vmatprep.mubr.bf16.mxu0 0
      %2393 = vmatmul.mubr.bf16.gmra.mrb[0].mxu0 %v2270
      %v2394 = vpop.f32.mrb[0].mxu0
      %v2395 = vadd.f32 0.0, %v2394
      %v2396 = vpop.f32.mrb[0].mxu0
      %v2397 = vpop.f32.mrb[0].mxu0
      %v2398 = vadd.f32 0.0, %v2397
      %v2399 = vpop.f32.mrb[0].mxu0
      %2400 = vmatprep.mubr.bf16.mxu0 0
      %2401 = vmatmul.mubr.bf16.gmra.mrb[0].mxu0 %v2272
      %v2402 = vpop.f32.mrb[0].mxu0
      %v2403 = vadd.f32 0.0, %v2402
      %v2404 = vpop.f32.mrb[0].mxu0
      %v2405 = vpop.f32.mrb[0].mxu0
      %v2406 = vadd.f32 0.0, %v2405
      %v2407 = vpop.f32.mrb[0].mxu0
      %2408 = vmatprep.mubr.bf16.mxu0 0
      %2409 = vmatmul.mubr.bf16.gmra.mrb[0].mxu0 %v2271
      %v2410 = vpop.f32.mrb[0].mxu0
      %v2411 = vadd.f32 0.0, %v2410
      %v2412 = vpop.f32.mrb[0].mxu0
      %v2413 = vpop.f32.mrb[0].mxu0
      %v2414 = vpop.f32.mrb[0].mxu0
      %2415 = vdwg.mxu0
      %v2416 = vadd.f32 %v2225, %v2363
      %v2417 = vadd.f32 %v2226, %v2366
      %v2418 = vadd.f32 %v2227, %v2371
      %v2419 = vadd.f32 %v2228, %v2374
      %v2420 = vadd.f32 %v2229, %v2379
      %v2421 = vadd.f32 %v2230, %v2382
      %v2422 = vadd.f32 %v2231, %v2387
      %v2423 = vadd.f32 %v2232, %v2390
      %v2424 = vadd.f32 %v2233, %v2395
      %v2425 = vadd.f32 %v2234, %v2398
      %v2426 = vadd.f32 %v2235, %v2403
      %v2427 = vadd.f32 %v2236, %v2406
      %v2428 = vadd.f32 %v2237, %v2411
      %v2429 = vld [vmem:[%s406] sm:$0xf]
      %v2430 = vld [vmem:[%s406 + $0x4] sm:$0xf]
      %v2431 = vld [vmem:[%s406 + $0x8] sm:$0xf]
      %v2432 = vld [vmem:[%s406 + $0xc] sm:$0xf]
      %v2433 = vld [vmem:[%s406 + $0x10] sm:$0xf]
      %v2434 = vld [vmem:[%s406 + $0x14] sm:$0xf]
      %v2435 = vld [vmem:[%s406 + $0x18] sm:$0xf]
      %v2436 = vld [vmem:[%s406 + $0x1c] sm:$0xf]
      %v2437 = vld [vmem:[%s406 + $0x20] sm:$0xf]
      %v2438 = vld [vmem:[%s406 + $0x24] sm:$0xf]
      %v2439 = vld [vmem:[%s406 + $0x28] sm:$0xf]
      %v2440 = vld [vmem:[%s406 + $0x2c] sm:$0xf]
      %v2441 = vld [vmem:[%s406 + $0x30] sm:$0x3]
      %s2442 = scalar_lea.vmem %s3, 576
      %v2443 = vld [vmem:[%s2442] sm:$0xf]
      %v2444 = vld [vmem:[%s2442 + $0x4] sm:$0xf]
      %v2445 = vld [vmem:[%s2442 + $0x8] sm:$0xf]
      %v2446 = vld [vmem:[%s2442 + $0xc] sm:$0xf]
      %v2447 = vld [vmem:[%s2442 + $0x10] sm:$0xf]
      %v2448 = vld [vmem:[%s2442 + $0x14] sm:$0xf]
      %v2449 = vld [vmem:[%s2442 + $0x18] sm:$0xf]
      %v2450 = vld [vmem:[%s2442 + $0x1c] sm:$0xf]
      %v2451 = vld [vmem:[%s2442 + $0x20] sm:$0xf]
      %v2452 = vld [vmem:[%s2442 + $0x24] sm:$0xf]
      %v2453 = vld [vmem:[%s2442 + $0x28] sm:$0xf]
      %v2454 = vld [vmem:[%s2442 + $0x2c] sm:$0xf]
      %v2455 = vld [vmem:[%s2442 + $0x30] sm:$0xf]
      %v2456 = vld [vmem:[%s2442 + $0x34] sm:$0xf]
      %v2457 = vld [vmem:[%s2442 + $0x38] sm:$0xf]
      %v2458 = vld [vmem:[%s2442 + $0x3c] sm:$0xf]
      %v2472 = vunpack.c.l.b16 %v2429
      %v2473 = vunpack.c.l.b16 %v2430
      %v2474 = vunpack.c.l.b16 %v2431
      %v2475 = vunpack.c.l.b16 %v2432
      %v2476 = vunpack.c.l.b16 %v2433
      %v2477 = vunpack.c.l.b16 %v2434
      %v2478 = vunpack.c.l.b16 %v2435
      %v2479 = vunpack.c.l.b16 %v2436
      %v2480 = vunpack.c.l.b16 %v2437
      %v2481 = vunpack.c.l.b16 %v2438
      %v2482 = vunpack.c.l.b16 %v2439
      %v2483 = vunpack.c.l.b16 %v2440
      %v2484 = vunpack.c.l.b16 %v2441
      %v2485 = vpack.c.b16 %v2473, %v2472
      %v2486 = vpack.c.b16 %v2475, %v2474
      %v2487 = vpack.c.b16 %v2477, %v2476
      %v2488 = vpack.c.b16 %v2479, %v2478
      %v2489 = vpack.c.b16 %v2481, %v2480
      %v2490 = vpack.c.b16 %v2483, %v2482
      %v2491 = vpack.c.b16 %v2484, %v2484
      %v2515 = vunpack.c.l.b16 %v2443
      %v2516 = vunpack.c.l.b16 %v2444
      %v2517 = vunpack.c.l.b16 %v2445
      %v2518 = vunpack.c.l.b16 %v2446
      %v2519 = vunpack.c.l.b16 %v2447
      %v2520 = vunpack.c.l.b16 %v2448
      %v2521 = vunpack.c.l.b16 %v2449
      %v2522 = vunpack.c.l.b16 %v2450
      %v2523 = vunpack.c.l.b16 %v2451
      %v2524 = vunpack.c.l.b16 %v2452
      %v2525 = vunpack.c.l.b16 %v2453
      %v2526 = vunpack.c.l.b16 %v2454
      %v2527 = vunpack.c.l.b16 %v2455
      %v2528 = vunpack.c.l.b16 %v2456
      %v2529 = vunpack.c.l.b16 %v2457
      %v2530 = vunpack.c.l.b16 %v2458
      %v2531 = vpack.c.b16 %v2516, %v2515
      %v2532 = vpack.c.b16 %v2518, %v2517
      %v2533 = vpack.c.b16 %v2520, %v2519
      %v2534 = vpack.c.b16 %v2522, %v2521
      %v2535 = vpack.c.b16 %v2524, %v2523
      %v2536 = vpack.c.b16 %v2526, %v2525
      %v2537 = vpack.c.b16 %v2528, %v2527
      %v2538 = vpack.c.b16 %v2530, %v2529
      %2547 = vmatprep.subr.bf16.mxu0 0
      %2548 = vmatpush1.bf16.msra.mxu0 %v2531
      %2549 = vmatprep.subr.bf16.mxu0 0
      %2550 = vmatpush1.bf16.msra.mxu0 %v2532
      %2551 = vmatprep.subr.bf16.mxu0 0
      %2552 = vmatpush1.bf16.msra.mxu0 %v2533
      %2553 = vmatprep.subr.bf16.mxu0 0
      %2554 = vmatpush1.bf16.msra.mxu0 %v2534
      %2555 = vmatprep.subr.bf16.mxu0 0
      %2556 = vmatpush1.bf16.msra.mxu0 %v2535
      %2557 = vmatprep.subr.bf16.mxu0 0
      %2558 = vmatpush1.bf16.msra.mxu0 %v2536
      %2559 = vmatprep.subr.bf16.mxu0 0
      %2560 = vmatpush1.bf16.msra.mxu0 %v2537
      %2561 = vmatprep.subr.bf16.mxu0 0
      %2562 = vmatpush1.bf16.msra.mxu0 %v2538
      %2563 = vmatprep.subr.bf16.mxu0 0
      %2564 = vmatpush1.bf16.msra.mxu0 0
      %2565 = vmatprep.subr.bf16.mxu0 0
      %2566 = vmatpush1.bf16.msra.mxu0 0
      %2567 = vmatprep.subr.bf16.mxu0 0
      %2568 = vmatpush1.bf16.msra.mxu0 0
      %2569 = vmatprep.subr.bf16.mxu0 0
      %2570 = vmatpush1.bf16.msra.mxu0 0
      %2571 = vmatprep.subr.bf16.mxu0 0
      %2572 = vmatpush1.bf16.msra.mxu0 0
      %2573 = vmatprep.subr.bf16.mxu0 0
      %2574 = vmatpush1.bf16.msra.mxu0 0
      %2575 = vmatprep.subr.bf16.mxu0 0
      %2576 = vmatpush1.bf16.msra.mxu0 0
      %2577 = vmatprep.subr.bf16.mxu0 0
      %2578 = vmatpush1.bf16.msra.mxu0 0
      %2579 = vmatprep.mubr.bf16.mxu0 0
      %2580 = vmatmul.mubr.bf16.gmra.mrb[0].mxu0 %v2485
      %v2581 = vpop.f32.mrb[0].mxu0
      %v2582 = vadd.f32 0.0, %v2581
      %v2583 = vpop.f32.mrb[0].mxu0
      %v2584 = vpop.f32.mrb[0].mxu0
      %v2585 = vadd.f32 0.0, %v2584
      %v2586 = vpop.f32.mrb[0].mxu0
      %2587 = vmatprep.mubr.bf16.mxu0 0
      %2588 = vmatmul.mubr.bf16.gmra.mrb[0].mxu0 %v2486
      %v2589 = vpop.f32.mrb[0].mxu0
      %v2590 = vadd.f32 0.0, %v2589
      %v2591 = vpop.f32.mrb[0].mxu0
      %v2592 = vpop.f32.mrb[0].mxu0
      %v2593 = vadd.f32 0.0, %v2592
      %v2594 = vpop.f32.mrb[0].mxu0
      %2595 = vmatprep.mubr.bf16.mxu0 0
      %2596 = vmatmul.mubr.bf16.gmra.mrb[0].mxu0 %v2487
      %v2597 = vpop.f32.mrb[0].mxu0
      %v2598 = vadd.f32 0.0, %v2597
      %v2599 = vpop.f32.mrb[0].mxu0
      %v2600 = vpop.f32.mrb[0].mxu0
      %v2601 = vadd.f32 0.0, %v2600
      %v2602 = vpop.f32.mrb[0].mxu0
      %2603 = vmatprep.mubr.bf16.mxu0 0
      %2604 = vmatmul.mubr.bf16.gmra.mrb[0].mxu0 %v2488
      %v2605 = vpop.f32.mrb[0].mxu0
      %v2606 = vadd.f32 0.0, %v2605
      %v2607 = vpop.f32.mrb[0].mxu0
      %v2608 = vpop.f32.mrb[0].mxu0
      %v2609 = vadd.f32 0.0, %v2608
      %v2610 = vpop.f32.mrb[0].mxu0
      %2611 = vmatprep.mubr.bf16.mxu0 0
      %2612 = vmatmul.mubr.bf16.gmra.mrb[0].mxu0 %v2489
      %v2613 = vpop.f32.mrb[0].mxu0
      %v2614 = vadd.f32 0.0, %v2613
      %v2615 = vpop.f32.mrb[0].mxu0
      %v2616 = vpop.f32.mrb[0].mxu0
      %v2617 = vadd.f32 0.0, %v2616
      %v2618 = vpop.f32.mrb[0].mxu0
      %2619 = vmatprep.mubr.bf16.mxu0 0
      %2620 = vmatmul.mubr.bf16.gmra.mrb[0].mxu0 %v2490
      %v2621 = vpop.f32.mrb[0].mxu0
      %v2622 = vadd.f32 0.0, %v2621
      %v2623 = vpop.f32.mrb[0].mxu0
      %v2624 = vpop.f32.mrb[0].mxu0
      %v2625 = vadd.f32 0.0, %v2624
      %v2626 = vpop.f32.mrb[0].mxu0
      %2627 = vmatprep.mubr.bf16.mxu0 0
      %2628 = vmatmul.mubr.bf16.gmra.mrb[0].mxu0 %v2491
      %v2629 = vpop.f32.mrb[0].mxu0
      %v2630 = vadd.f32 0.0, %v2629
      %v2631 = vpop.f32.mrb[0].mxu0
      %v2632 = vpop.f32.mrb[0].mxu0
      %v2633 = vpop.f32.mrb[0].mxu0
      %2634 = vdwg.mxu0
      %v2635 = vadd.f32 %v2416, %v2582
      %v2636 = vadd.f32 %v2417, %v2585
      %v2637 = vadd.f32 %v2418, %v2590
      %v2638 = vadd.f32 %v2419, %v2593
      %v2639 = vadd.f32 %v2420, %v2598
      %v2640 = vadd.f32 %v2421, %v2601
      %v2641 = vadd.f32 %v2422, %v2606
      %v2642 = vadd.f32 %v2423, %v2609
      %v2643 = vadd.f32 %v2424, %v2614
      %v2644 = vadd.f32 %v2425, %v2617
      %v2645 = vadd.f32 %v2426, %v2622
      %v2646 = vadd.f32 %v2427, %v2625
      %v2647 = vadd.f32 %v2428, %v2630
      %v2648 = vld [vmem:[%s406 + $0x30] sm:$0x7]
      %s2649 = scalar_lea.vmem %s3, 640
      %v2650 = vld [vmem:[%s2649] sm:$0xf]
      %v2651 = vld [vmem:[%s2649 + $0x4] sm:$0xf]
      %v2652 = vld [vmem:[%s2649 + $0x8] sm:$0xf]
      %v2653 = vld [vmem:[%s2649 + $0xc] sm:$0xf]
      %v2654 = vld [vmem:[%s2649 + $0x10] sm:$0xf]
      %v2655 = vld [vmem:[%s2649 + $0x14] sm:$0xf]
      %v2656 = vld [vmem:[%s2649 + $0x18] sm:$0xf]
      %v2657 = vld [vmem:[%s2649 + $0x1c] sm:$0xf]
      %v2658 = vld [vmem:[%s2649 + $0x20] sm:$0xf]
      %v2659 = vld [vmem:[%s2649 + $0x24] sm:$0xf]
      %v2660 = vld [vmem:[%s2649 + $0x28] sm:$0xf]
      %v2661 = vld [vmem:[%s2649 + $0x2c] sm:$0xf]
      %v2662 = vld [vmem:[%s2649 + $0x30] sm:$0xf]
      %v2663 = vld [vmem:[%s2649 + $0x34] sm:$0xf]
      %v2664 = vld [vmem:[%s2649 + $0x38] sm:$0xf]
      %v2665 = vld [vmem:[%s2649 + $0x3c] sm:$0xf]
      %v2667 = vunpack.c.l.b16 %v2648
      %v2668 = vpack.c.b16 %v2667, %v2667
      %v2670 = vshrl.u32 %v2485, 16
      %v2672 = vshll.u32 %v2485, 16
      %v2674 = vrot.slane %v2672, 1
      %v2675 = vor.u32 %v2670, %v2674
      %v2677 = vshll.u32 %v2486, 16
      %v2679 = vrot.slane %v2677, 1
      %v2680 = vsel %vm522, %v2675, %v2679
      %v2681 = vshrl.u32 %v2486, 16
      %v2683 = vor.u32 %v2681, %v2679
      %v2685 = vshll.u32 %v2487, 16
      %v2687 = vrot.slane %v2685, 1
      %v2688 = vsel %vm522, %v2683, %v2687
      %v2689 = vshrl.u32 %v2487, 16
      %v2691 = vor.u32 %v2689, %v2687
      %v2693 = vshll.u32 %v2488, 16
      %v2695 = vrot.slane %v2693, 1
      %v2696 = vsel %vm522, %v2691, %v2695
      %v2697 = vshrl.u32 %v2488, 16
      %v2699 = vor.u32 %v2697, %v2695
      %v2701 = vshll.u32 %v2489, 16
      %v2703 = vrot.slane %v2701, 1
      %v2704 = vsel %vm522, %v2699, %v2703
      %v2705 = vshrl.u32 %v2489, 16
      %v2707 = vor.u32 %v2705, %v2703
      %v2709 = vshll.u32 %v2490, 16
      %v2711 = vrot.slane %v2709, 1
      %v2712 = vsel %vm522, %v2707, %v2711
      %v2713 = vshrl.u32 %v2490, 16
      %v2715 = vor.u32 %v2713, %v2711
      %v2717 = vshll.u32 %v2668, 16
      %v2719 = vrot.slane %v2717, 1
      %v2720 = vsel %vm522, %v2715, %v2719
      %v2721 = vshrl.u32 %v2668, 16
      %v2723 = vor.u32 %v2721, %v2719
      %v2747 = vunpack.c.l.b16 %v2650
      %v2748 = vunpack.c.l.b16 %v2651
      %v2749 = vunpack.c.l.b16 %v2652
      %v2750 = vunpack.c.l.b16 %v2653
      %v2751 = vunpack.c.l.b16 %v2654
      %v2752 = vunpack.c.l.b16 %v2655
      %v2753 = vunpack.c.l.b16 %v2656
      %v2754 = vunpack.c.l.b16 %v2657
      %v2755 = vunpack.c.l.b16 %v2658
      %v2756 = vunpack.c.l.b16 %v2659
      %v2757 = vunpack.c.l.b16 %v2660
      %v2758 = vunpack.c.l.b16 %v2661
      %v2759 = vunpack.c.l.b16 %v2662
      %v2760 = vunpack.c.l.b16 %v2663
      %v2761 = vunpack.c.l.b16 %v2664
      %v2762 = vunpack.c.l.b16 %v2665
      %v2763 = vpack.c.b16 %v2748, %v2747
      %v2764 = vpack.c.b16 %v2750, %v2749
      %v2765 = vpack.c.b16 %v2752, %v2751
      %v2766 = vpack.c.b16 %v2754, %v2753
      %v2767 = vpack.c.b16 %v2756, %v2755
      %v2768 = vpack.c.b16 %v2758, %v2757
      %v2769 = vpack.c.b16 %v2760, %v2759
      %v2770 = vpack.c.b16 %v2762, %v2761
      %2779 = vmatprep.subr.bf16.mxu0 0
      %2780 = vmatpush1.bf16.msra.mxu0 %v2763
      %2781 = vmatprep.subr.bf16.mxu0 0
      %2782 = vmatpush1.bf16.msra.mxu0 %v2764
      %2783 = vmatprep.subr.bf16.mxu0 0
      %2784 = vmatpush1.bf16.msra.mxu0 %v2765
      %2785 = vmatprep.subr.bf16.mxu0 0
      %2786 = vmatpush1.bf16.msra.mxu0 %v2766
      %2787 = vmatprep.subr.bf16.mxu0 0
      %2788 = vmatpush1.bf16.msra.mxu0 %v2767
      %2789 = vmatprep.subr.bf16.mxu0 0
      %2790 = vmatpush1.bf16.msra.mxu0 %v2768
      %2791 = vmatprep.subr.bf16.mxu0 0
      %2792 = vmatpush1.bf16.msra.mxu0 %v2769
      %2793 = vmatprep.subr.bf16.mxu0 0
      %2794 = vmatpush1.bf16.msra.mxu0 %v2770
      %2795 = vmatprep.subr.bf16.mxu0 0
      %2796 = vmatpush1.bf16.msra.mxu0 0
      %2797 = vmatprep.subr.bf16.mxu0 0
      %2798 = vmatpush1.bf16.msra.mxu0 0
      %2799 = vmatprep.subr.bf16.mxu0 0
      %2800 = vmatpush1.bf16.msra.mxu0 0
      %2801 = vmatprep.subr.bf16.mxu0 0
      %2802 = vmatpush1.bf16.msra.mxu0 0
      %2803 = vmatprep.subr.bf16.mxu0 0
      %2804 = vmatpush1.bf16.msra.mxu0 0
      %2805 = vmatprep.subr.bf16.mxu0 0
      %2806 = vmatpush1.bf16.msra.mxu0 0
      %2807 = vmatprep.subr.bf16.mxu0 0
      %2808 = vmatpush1.bf16.msra.mxu0 0
      %2809 = vmatprep.subr.bf16.mxu0 0
      %2810 = vmatpush1.bf16.msra.mxu0 0
      %2811 = vmatprep.mubr.bf16.mxu0 0
      %2812 = vmatmul.mubr.bf16.gmra.mrb[0].mxu0 %v2680
      %v2813 = vpop.f32.mrb[0].mxu0
      %v2814 = vadd.f32 0.0, %v2813
      %v2815 = vpop.f32.mrb[0].mxu0
      %v2816 = vpop.f32.mrb[0].mxu0
      %v2817 = vadd.f32 0.0, %v2816
      %v2818 = vpop.f32.mrb[0].mxu0
      %2819 = vmatprep.mubr.bf16.mxu0 0
      %2820 = vmatmul.mubr.bf16.gmra.mrb[0].mxu0 %v2688
      %v2821 = vpop.f32.mrb[0].mxu0
      %v2822 = vadd.f32 0.0, %v2821
      %v2823 = vpop.f32.mrb[0].mxu0
      %v2824 = vpop.f32.mrb[0].mxu0
      %v2825 = vadd.f32 0.0, %v2824
      %v2826 = vpop.f32.mrb[0].mxu0
      %2827 = vmatprep.mubr.bf16.mxu0 0
      %2828 = vmatmul.mubr.bf16.gmra.mrb[0].mxu0 %v2696
      %v2829 = vpop.f32.mrb[0].mxu0
      %v2830 = vadd.f32 0.0, %v2829
      %v2831 = vpop.f32.mrb[0].mxu0
      %v2832 = vpop.f32.mrb[0].mxu0
      %v2833 = vadd.f32 0.0, %v2832
      %v2834 = vpop.f32.mrb[0].mxu0
      %2835 = vmatprep.mubr.bf16.mxu0 0
      %2836 = vmatmul.mubr.bf16.gmra.mrb[0].mxu0 %v2704
      %v2837 = vpop.f32.mrb[0].mxu0
      %v2838 = vadd.f32 0.0, %v2837
      %v2839 = vpop.f32.mrb[0].mxu0
      %v2840 = vpop.f32.mrb[0].mxu0
      %v2841 = vadd.f32 0.0, %v2840
      %v2842 = vpop.f32.mrb[0].mxu0
      %2843 = vmatprep.mubr.bf16.mxu0 0
      %2844 = vmatmul.mubr.bf16.gmra.mrb[0].mxu0 %v2712
      %v2845 = vpop.f32.mrb[0].mxu0
      %v2846 = vadd.f32 0.0, %v2845
      %v2847 = vpop.f32.mrb[0].mxu0
      %v2848 = vpop.f32.mrb[0].mxu0
      %v2849 = vadd.f32 0.0, %v2848
      %v2850 = vpop.f32.mrb[0].mxu0
      %2851 = vmatprep.mubr.bf16.mxu0 0
      %2852 = vmatmul.mubr.bf16.gmra.mrb[0].mxu0 %v2720
      %v2853 = vpop.f32.mrb[0].mxu0
      %v2854 = vadd.f32 0.0, %v2853
      %v2855 = vpop.f32.mrb[0].mxu0
      %v2856 = vpop.f32.mrb[0].mxu0
      %v2857 = vadd.f32 0.0, %v2856
      %v2858 = vpop.f32.mrb[0].mxu0
      %2859 = vmatprep.mubr.bf16.mxu0 0
      %2860 = vmatmul.mubr.bf16.gmra.mrb[0].mxu0 %v2723
      %v2861 = vpop.f32.mrb[0].mxu0
      %v2862 = vadd.f32 0.0, %v2861
      %v2863 = vpop.f32.mrb[0].mxu0
      %v2864 = vpop.f32.mrb[0].mxu0
      %v2865 = vpop.f32.mrb[0].mxu0
      %2866 = vdwg.mxu0
      %v2867 = vadd.f32 %v2635, %v2814
      %v2868 = vadd.f32 %v2636, %v2817
      %v2869 = vadd.f32 %v2637, %v2822
      %v2870 = vadd.f32 %v2638, %v2825
      %v2871 = vadd.f32 %v2639, %v2830
      %v2872 = vadd.f32 %v2640, %v2833
      %v2873 = vadd.f32 %v2641, %v2838
      %v2874 = vadd.f32 %v2642, %v2841
      %v2875 = vadd.f32 %v2643, %v2846
      %v2876 = vadd.f32 %v2644, %v2849
      %v2877 = vadd.f32 %v2645, %v2854
      %v2878 = vadd.f32 %v2646, %v2857
      %v2879 = vadd.f32 %v2647, %v2862
      %v2880 = vld [vmem:[%s406] sm:$0xe]
      %s2881 = scalar_lea.vmem %s3, 704
      %v2882 = vld [vmem:[%s2881] sm:$0xf]
      %v2883 = vld [vmem:[%s2881 + $0x4] sm:$0xf]
      %v2884 = vld [vmem:[%s2881 + $0x8] sm:$0xf]
      %v2885 = vld [vmem:[%s2881 + $0xc] sm:$0xf]
      %v2886 = vld [vmem:[%s2881 + $0x10] sm:$0xf]
      %v2887 = vld [vmem:[%s2881 + $0x14] sm:$0xf]
      %v2888 = vld [vmem:[%s2881 + $0x18] sm:$0xf]
      %v2889 = vld [vmem:[%s2881 + $0x1c] sm:$0xf]
      %v2890 = vld [vmem:[%s2881 + $0x20] sm:$0xf]
      %v2891 = vld [vmem:[%s2881 + $0x24] sm:$0xf]
      %v2892 = vld [vmem:[%s2881 + $0x28] sm:$0xf]
      %v2893 = vld [vmem:[%s2881 + $0x2c] sm:$0xf]
      %v2894 = vld [vmem:[%s2881 + $0x30] sm:$0xf]
      %v2895 = vld [vmem:[%s2881 + $0x34] sm:$0xf]
      %v2896 = vld [vmem:[%s2881 + $0x38] sm:$0xf]
      %v2897 = vld [vmem:[%s2881 + $0x3c] sm:$0xf]
      %v2899 = vunpack.c.l.b16 %v2880
      %v2900 = vpack.c.b16 %v2473, %v2899
      %v2901 = vrot.slane %v2900, 1
      %v2902 = vrot.slane %v2486, 1
      %v2903 = vsel %vm888, %v2901, %v2902
      %v2904 = vrot.slane %v2487, 1
      %v2905 = vsel %vm888, %v2902, %v2904
      %v2906 = vrot.slane %v2488, 1
      %v2907 = vsel %vm888, %v2904, %v2906
      %v2908 = vrot.slane %v2489, 1
      %v2909 = vsel %vm888, %v2906, %v2908
      %v2910 = vrot.slane %v2490, 1
      %v2911 = vsel %vm888, %v2908, %v2910
      %v2912 = vrot.slane %v2668, 1
      %v2913 = vsel %vm888, %v2910, %v2912
      %v2937 = vunpack.c.l.b16 %v2882
      %v2938 = vunpack.c.l.b16 %v2883
      %v2939 = vunpack.c.l.b16 %v2884
      %v2940 = vunpack.c.l.b16 %v2885
      %v2941 = vunpack.c.l.b16 %v2886
      %v2942 = vunpack.c.l.b16 %v2887
      %v2943 = vunpack.c.l.b16 %v2888
      %v2944 = vunpack.c.l.b16 %v2889
      %v2945 = vunpack.c.l.b16 %v2890
      %v2946 = vunpack.c.l.b16 %v2891
      %v2947 = vunpack.c.l.b16 %v2892
      %v2948 = vunpack.c.l.b16 %v2893
      %v2949 = vunpack.c.l.b16 %v2894
      %v2950 = vunpack.c.l.b16 %v2895
      %v2951 = vunpack.c.l.b16 %v2896
      %v2952 = vunpack.c.l.b16 %v2897
      %v2953 = vpack.c.b16 %v2938, %v2937
      %v2954 = vpack.c.b16 %v2940, %v2939
      %v2955 = vpack.c.b16 %v2942, %v2941
      %v2956 = vpack.c.b16 %v2944, %v2943
      %v2957 = vpack.c.b16 %v2946, %v2945
      %v2958 = vpack.c.b16 %v2948, %v2947
      %v2959 = vpack.c.b16 %v2950, %v2949
      %v2960 = vpack.c.b16 %v2952, %v2951
      %2969 = vmatprep.subr.bf16.mxu0 0
      %2970 = vmatpush1.bf16.msra.mxu0 %v2953
      %2971 = vmatprep.subr.bf16.mxu0 0
      %2972 = vmatpush1.bf16.msra.mxu0 %v2954
      %2973 = vmatprep.subr.bf16.mxu0 0
      %2974 = vmatpush1.bf16.msra.mxu0 %v2955
      %2975 = vmatprep.subr.bf16.mxu0 0
      %2976 = vmatpush1.bf16.msra.mxu0 %v2956
      %2977 = vmatprep.subr.bf16.mxu0 0
      %2978 = vmatpush1.bf16.msra.mxu0 %v2957
      %2979 = vmatprep.subr.bf16.mxu0 0
      %2980 = vmatpush1.bf16.msra.mxu0 %v2958
      %2981 = vmatprep.subr.bf16.mxu0 0
      %2982 = vmatpush1.bf16.msra.mxu0 %v2959
      %2983 = vmatprep.subr.bf16.mxu0 0
      %2984 = vmatpush1.bf16.msra.mxu0 %v2960
      %2985 = vmatprep.subr.bf16.mxu0 0
      %2986 = vmatpush1.bf16.msra.mxu0 0
      %2987 = vmatprep.subr.bf16.mxu0 0
      %2988 = vmatpush1.bf16.msra.mxu0 0
      %2989 = vmatprep.subr.bf16.mxu0 0
      %2990 = vmatpush1.bf16.msra.mxu0 0
      %2991 = vmatprep.subr.bf16.mxu0 0
      %2992 = vmatpush1.bf16.msra.mxu0 0
      %2993 = vmatprep.subr.bf16.mxu0 0
      %2994 = vmatpush1.bf16.msra.mxu0 0
      %2995 = vmatprep.subr.bf16.mxu0 0
      %2996 = vmatpush1.bf16.msra.mxu0 0
      %2997 = vmatprep.subr.bf16.mxu0 0
      %2998 = vmatpush1.bf16.msra.mxu0 0
      %2999 = vmatprep.subr.bf16.mxu0 0
      %3000 = vmatpush1.bf16.msra.mxu0 0
      %3001 = vmatprep.mubr.bf16.mxu0 0
      %3002 = vmatmul.mubr.bf16.gmra.mrb[0].mxu0 %v2903
      %v3003 = vpop.f32.mrb[0].mxu0
      %v3004 = vadd.f32 0.0, %v3003
      %v3005 = vpop.f32.mrb[0].mxu0
      %v3006 = vpop.f32.mrb[0].mxu0
      %v3007 = vadd.f32 0.0, %v3006
      %v3008 = vpop.f32.mrb[0].mxu0
      %3009 = vmatprep.mubr.bf16.mxu0 0
      %3010 = vmatmul.mubr.bf16.gmra.mrb[0].mxu0 %v2905
      %v3011 = vpop.f32.mrb[0].mxu0
      %v3012 = vadd.f32 0.0, %v3011
      %v3013 = vpop.f32.mrb[0].mxu0
      %v3014 = vpop.f32.mrb[0].mxu0
      %v3015 = vadd.f32 0.0, %v3014
      %v3016 = vpop.f32.mrb[0].mxu0
      %3017 = vmatprep.mubr.bf16.mxu0 0
      %3018 = vmatmul.mubr.bf16.gmra.mrb[0].mxu0 %v2907
      %v3019 = vpop.f32.mrb[0].mxu0
      %v3020 = vadd.f32 0.0, %v3019
      %v3021 = vpop.f32.mrb[0].mxu0
      %v3022 = vpop.f32.mrb[0].mxu0
      %v3023 = vadd.f32 0.0, %v3022
      %v3024 = vpop.f32.mrb[0].mxu0
      %3025 = vmatprep.mubr.bf16.mxu0 0
      %3026 = vmatmul.mubr.bf16.gmra.mrb[0].mxu0 %v2909
      %v3027 = vpop.f32.mrb[0].mxu0
      %v3028 = vadd.f32 0.0, %v3027
      %v3029 = vpop.f32.mrb[0].mxu0
      %v3030 = vpop.f32.mrb[0].mxu0
      %v3031 = vadd.f32 0.0, %v3030
      %v3032 = vpop.f32.mrb[0].mxu0
      %3033 = vmatprep.mubr.bf16.mxu0 0
      %3034 = vmatmul.mubr.bf16.gmra.mrb[0].mxu0 %v2911
      %v3035 = vpop.f32.mrb[0].mxu0
      %v3036 = vadd.f32 0.0, %v3035
      %v3037 = vpop.f32.mrb[0].mxu0
      %v3038 = vpop.f32.mrb[0].mxu0
      %v3039 = vadd.f32 0.0, %v3038
      %v3040 = vpop.f32.mrb[0].mxu0
      %3041 = vmatprep.mubr.bf16.mxu0 0
      %3042 = vmatmul.mubr.bf16.gmra.mrb[0].mxu0 %v2913
      %v3043 = vpop.f32.mrb[0].mxu0
      %v3044 = vadd.f32 0.0, %v3043
      %v3045 = vpop.f32.mrb[0].mxu0
      %v3046 = vpop.f32.mrb[0].mxu0
      %v3047 = vadd.f32 0.0, %v3046
      %v3048 = vpop.f32.mrb[0].mxu0
      %3049 = vmatprep.mubr.bf16.mxu0 0
      %3050 = vmatmul.mubr.bf16.gmra.mrb[0].mxu0 %v2912
      %v3051 = vpop.f32.mrb[0].mxu0
      %v3052 = vadd.f32 0.0, %v3051
      %v3053 = vpop.f32.mrb[0].mxu0
      %v3054 = vpop.f32.mrb[0].mxu0
      %v3055 = vpop.f32.mrb[0].mxu0
      %3056 = vdwg.mxu0
      %v3057 = vadd.f32 %v2867, %v3004
      %v3058 = vadd.f32 %v2868, %v3007
      %v3059 = vadd.f32 %v2869, %v3012
      %v3060 = vadd.f32 %v2870, %v3015
      %v3061 = vadd.f32 %v2871, %v3020
      %v3062 = vadd.f32 %v2872, %v3023
      %v3063 = vadd.f32 %v2873, %v3028
      %v3064 = vadd.f32 %v2874, %v3031
      %v3065 = vadd.f32 %v2875, %v3036
      %v3066 = vadd.f32 %v2876, %v3039
      %v3067 = vadd.f32 %v2877, %v3044
      %v3068 = vadd.f32 %v2878, %v3047
      %v3069 = vadd.f32 %v2879, %v3052
      %v3070 = vld [vmem:[%s406 + $0x4] sm:$0xe]
      %v3071 = vld [vmem:[%s406 + $0x8] sm:$0xf]
      %v3072 = vld [vmem:[%s406 + $0xc] sm:$0xf]
      %v3073 = vld [vmem:[%s406 + $0x10] sm:$0xf]
      %v3074 = vld [vmem:[%s406 + $0x14] sm:$0xf]
      %v3075 = vld [vmem:[%s406 + $0x18] sm:$0xf]
      %v3076 = vld [vmem:[%s406 + $0x1c] sm:$0xf]
      %v3077 = vld [vmem:[%s406 + $0x20] sm:$0xf]
      %v3078 = vld [vmem:[%s406 + $0x24] sm:$0xf]
      %v3079 = vld [vmem:[%s406 + $0x28] sm:$0xf]
      %v3080 = vld [vmem:[%s406 + $0x2c] sm:$0xf]
      %v3081 = vld [vmem:[%s406 + $0x30] sm:$0xf]
      %v3082 = vld [vmem:[%s406 + $0x34] sm:$0x7]
      %s3083 = scalar_lea.vmem %s3, 768
      %v3084 = vld [vmem:[%s3083] sm:$0xf]
      %v3085 = vld [vmem:[%s3083 + $0x4] sm:$0xf]
      %v3086 = vld [vmem:[%s3083 + $0x8] sm:$0xf]
      %v3087 = vld [vmem:[%s3083 + $0xc] sm:$0xf]
      %v3088 = vld [vmem:[%s3083 + $0x10] sm:$0xf]
      %v3089 = vld [vmem:[%s3083 + $0x14] sm:$0xf]
      %v3090 = vld [vmem:[%s3083 + $0x18] sm:$0xf]
      %v3091 = vld [vmem:[%s3083 + $0x1c] sm:$0xf]
      %v3092 = vld [vmem:[%s3083 + $0x20] sm:$0xf]
      %v3093 = vld [vmem:[%s3083 + $0x24] sm:$0xf]
      %v3094 = vld [vmem:[%s3083 + $0x28] sm:$0xf]
      %v3095 = vld [vmem:[%s3083 + $0x2c] sm:$0xf]
      %v3096 = vld [vmem:[%s3083 + $0x30] sm:$0xf]
      %v3097 = vld [vmem:[%s3083 + $0x34] sm:$0xf]
      %v3098 = vld [vmem:[%s3083 + $0x38] sm:$0xf]
      %v3099 = vld [vmem:[%s3083 + $0x3c] sm:$0xf]
      %v3113 = vunpack.c.l.b16 %v3070
      %v3114 = vunpack.c.l.b16 %v3071
      %v3115 = vunpack.c.l.b16 %v3072
      %v3116 = vunpack.c.l.b16 %v3073
      %v3117 = vunpack.c.l.b16 %v3074
      %v3118 = vunpack.c.l.b16 %v3075
      %v3119 = vunpack.c.l.b16 %v3076
      %v3120 = vunpack.c.l.b16 %v3077
      %v3121 = vunpack.c.l.b16 %v3078
      %v3122 = vunpack.c.l.b16 %v3079
      %v3123 = vunpack.c.l.b16 %v3080
      %v3124 = vunpack.c.l.b16 %v3081
      %v3125 = vunpack.c.l.b16 %v3082
      %v3126 = vpack.c.b16 %v3114, %v3113
      %v3127 = vpack.c.b16 %v3116, %v3115
      %v3128 = vpack.c.b16 %v3118, %v3117
      %v3129 = vpack.c.b16 %v3120, %v3119
      %v3130 = vpack.c.b16 %v3122, %v3121
      %v3131 = vpack.c.b16 %v3124, %v3123
      %v3132 = vpack.c.b16 %v3125, %v3125
      %v3133 = vrot.slane %v3126, 1
      %v3134 = vrot.slane %v3127, 1
      %v3135 = vsel %vm888, %v3133, %v3134
      %v3136 = vrot.slane %v3128, 1
      %v3137 = vsel %vm888, %v3134, %v3136
      %v3138 = vrot.slane %v3129, 1
      %v3139 = vsel %vm888, %v3136, %v3138
      %v3140 = vrot.slane %v3130, 1
      %v3141 = vsel %vm888, %v3138, %v3140
      %v3142 = vrot.slane %v3131, 1
      %v3143 = vsel %vm888, %v3140, %v3142
      %v3144 = vrot.slane %v3132, 1
      %v3145 = vsel %vm888, %v3142, %v3144
      %v3169 = vunpack.c.l.b16 %v3084
      %v3170 = vunpack.c.l.b16 %v3085
      %v3171 = vunpack.c.l.b16 %v3086
      %v3172 = vunpack.c.l.b16 %v3087
      %v3173 = vunpack.c.l.b16 %v3088
      %v3174 = vunpack.c.l.b16 %v3089
      %v3175 = vunpack.c.l.b16 %v3090
      %v3176 = vunpack.c.l.b16 %v3091
      %v3177 = vunpack.c.l.b16 %v3092
      %v3178 = vunpack.c.l.b16 %v3093
      %v3179 = vunpack.c.l.b16 %v3094
      %v3180 = vunpack.c.l.b16 %v3095
      %v3181 = vunpack.c.l.b16 %v3096
      %v3182 = vunpack.c.l.b16 %v3097
      %v3183 = vunpack.c.l.b16 %v3098
      %v3184 = vunpack.c.l.b16 %v3099
      %v3185 = vpack.c.b16 %v3170, %v3169
      %v3186 = vpack.c.b16 %v3172, %v3171
      %v3187 = vpack.c.b16 %v3174, %v3173
      %v3188 = vpack.c.b16 %v3176, %v3175
      %v3189 = vpack.c.b16 %v3178, %v3177
      %v3190 = vpack.c.b16 %v3180, %v3179
      %v3191 = vpack.c.b16 %v3182, %v3181
      %v3192 = vpack.c.b16 %v3184, %v3183
      %3201 = vmatprep.subr.bf16.mxu0 0
      %3202 = vmatpush1.bf16.msra.mxu0 %v3185
      %3203 = vmatprep.subr.bf16.mxu0 0
      %3204 = vmatpush1.bf16.msra.mxu0 %v3186
      %3205 = vmatprep.subr.bf16.mxu0 0
      %3206 = vmatpush1.bf16.msra.mxu0 %v3187
      %3207 = vmatprep.subr.bf16.mxu0 0
      %3208 = vmatpush1.bf16.msra.mxu0 %v3188
      %3209 = vmatprep.subr.bf16.mxu0 0
      %3210 = vmatpush1.bf16.msra.mxu0 %v3189
      %3211 = vmatprep.subr.bf16.mxu0 0
      %3212 = vmatpush1.bf16.msra.mxu0 %v3190
      %3213 = vmatprep.subr.bf16.mxu0 0
      %3214 = vmatpush1.bf16.msra.mxu0 %v3191
      %3215 = vmatprep.subr.bf16.mxu0 0
      %3216 = vmatpush1.bf16.msra.mxu0 %v3192
      %3217 = vmatprep.subr.bf16.mxu0 0
      %3218 = vmatpush1.bf16.msra.mxu0 0
      %3219 = vmatprep.subr.bf16.mxu0 0
      %3220 = vmatpush1.bf16.msra.mxu0 0
      %3221 = vmatprep.subr.bf16.mxu0 0
      %3222 = vmatpush1.bf16.msra.mxu0 0
      %3223 = vmatprep.subr.bf16.mxu0 0
      %3224 = vmatpush1.bf16.msra.mxu0 0
      %3225 = vmatprep.subr.bf16.mxu0 0
      %3226 = vmatpush1.bf16.msra.mxu0 0
      %3227 = vmatprep.subr.bf16.mxu0 0
      %3228 = vmatpush1.bf16.msra.mxu0 0
      %3229 = vmatprep.subr.bf16.mxu0 0
      %3230 = vmatpush1.bf16.msra.mxu0 0
      %3231 = vmatprep.subr.bf16.mxu0 0
      %3232 = vmatpush1.bf16.msra.mxu0 0
      %3233 = vmatprep.mubr.bf16.mxu0 0
      %3234 = vmatmul.mubr.bf16.gmra.mrb[0].mxu0 %v3135
      %v3235 = vpop.f32.mrb[0].mxu0
      %v3236 = vadd.f32 0.0, %v3235
      %v3237 = vpop.f32.mrb[0].mxu0
      %v3238 = vpop.f32.mrb[0].mxu0
      %v3239 = vadd.f32 0.0, %v3238
      %v3240 = vpop.f32.mrb[0].mxu0
      %3241 = vmatprep.mubr.bf16.mxu0 0
      %3242 = vmatmul.mubr.bf16.gmra.mrb[0].mxu0 %v3137
      %v3243 = vpop.f32.mrb[0].mxu0
      %v3244 = vadd.f32 0.0, %v3243
      %v3245 = vpop.f32.mrb[0].mxu0
      %v3246 = vpop.f32.mrb[0].mxu0
      %v3247 = vadd.f32 0.0, %v3246
      %v3248 = vpop.f32.mrb[0].mxu0
      %3249 = vmatprep.mubr.bf16.mxu0 0
      %3250 = vmatmul.mubr.bf16.gmra.mrb[0].mxu0 %v3139
      %v3251 = vpop.f32.mrb[0].mxu0
      %v3252 = vadd.f32 0.0, %v3251
      %v3253 = vpop.f32.mrb[0].mxu0
      %v3254 = vpop.f32.mrb[0].mxu0
      %v3255 = vadd.f32 0.0, %v3254
      %v3256 = vpop.f32.mrb[0].mxu0
      %3257 = vmatprep.mubr.bf16.mxu0 0
      %3258 = vmatmul.mubr.bf16.gmra.mrb[0].mxu0 %v3141
      %v3259 = vpop.f32.mrb[0].mxu0
      %v3260 = vadd.f32 0.0, %v3259
      %v3261 = vpop.f32.mrb[0].mxu0
      %v3262 = vpop.f32.mrb[0].mxu0
      %v3263 = vadd.f32 0.0, %v3262
      %v3264 = vpop.f32.mrb[0].mxu0
      %3265 = vmatprep.mubr.bf16.mxu0 0
      %3266 = vmatmul.mubr.bf16.gmra.mrb[0].mxu0 %v3143
      %v3267 = vpop.f32.mrb[0].mxu0
      %v3268 = vadd.f32 0.0, %v3267
      %v3269 = vpop.f32.mrb[0].mxu0
      %v3270 = vpop.f32.mrb[0].mxu0
      %v3271 = vadd.f32 0.0, %v3270
      %v3272 = vpop.f32.mrb[0].mxu0
      %3273 = vmatprep.mubr.bf16.mxu0 0
      %3274 = vmatmul.mubr.bf16.gmra.mrb[0].mxu0 %v3145
      %v3275 = vpop.f32.mrb[0].mxu0
      %v3276 = vadd.f32 0.0, %v3275
      %v3277 = vpop.f32.mrb[0].mxu0
      %v3278 = vpop.f32.mrb[0].mxu0
      %v3279 = vadd.f32 0.0, %v3278
      %v3280 = vpop.f32.mrb[0].mxu0
      %3281 = vmatprep.mubr.bf16.mxu0 0
      %3282 = vmatmul.mubr.bf16.gmra.mrb[0].mxu0 %v3144
      %v3283 = vpop.f32.mrb[0].mxu0
      %v3284 = vadd.f32 0.0, %v3283
      %v3285 = vpop.f32.mrb[0].mxu0
      %v3286 = vpop.f32.mrb[0].mxu0
      %v3287 = vpop.f32.mrb[0].mxu0
      %3288 = vdwg.mxu0
      %v3289 = vadd.f32 %v3057, %v3236
      %v3290 = vadd.f32 %v3058, %v3239
      %v3291 = vadd.f32 %v3059, %v3244
      %v3292 = vadd.f32 %v3060, %v3247
      %v3293 = vadd.f32 %v3061, %v3252
      %v3294 = vadd.f32 %v3062, %v3255
      %v3295 = vadd.f32 %v3063, %v3260
      %v3296 = vadd.f32 %v3064, %v3263
      %v3297 = vadd.f32 %v3065, %v3268
      %v3298 = vadd.f32 %v3066, %v3271
      %v3299 = vadd.f32 %v3067, %v3276
      %v3300 = vadd.f32 %v3068, %v3279
      %v3301 = vadd.f32 %v3069, %v3284
      %v3302 = vld [vmem:[%s406 + $0x34] sm:$0xf]
      %s3303 = scalar_lea.vmem %s3, 832
      %v3304 = vld [vmem:[%s3303] sm:$0xf]
      %v3305 = vld [vmem:[%s3303 + $0x4] sm:$0xf]
      %v3306 = vld [vmem:[%s3303 + $0x8] sm:$0xf]
      %v3307 = vld [vmem:[%s3303 + $0xc] sm:$0xf]
      %v3308 = vld [vmem:[%s3303 + $0x10] sm:$0xf]
      %v3309 = vld [vmem:[%s3303 + $0x14] sm:$0xf]
      %v3310 = vld [vmem:[%s3303 + $0x18] sm:$0xf]
      %v3311 = vld [vmem:[%s3303 + $0x1c] sm:$0xf]
      %v3312 = vld [vmem:[%s3303 + $0x20] sm:$0xf]
      %v3313 = vld [vmem:[%s3303 + $0x24] sm:$0xf]
      %v3314 = vld [vmem:[%s3303 + $0x28] sm:$0xf]
      %v3315 = vld [vmem:[%s3303 + $0x2c] sm:$0xf]
      %v3316 = vld [vmem:[%s3303 + $0x30] sm:$0xf]
      %v3317 = vld [vmem:[%s3303 + $0x34] sm:$0xf]
      %v3318 = vld [vmem:[%s3303 + $0x38] sm:$0xf]
      %v3319 = vld [vmem:[%s3303 + $0x3c] sm:$0xf]
      %v3321 = vunpack.c.l.b16 %v3302
      %v3322 = vpack.c.b16 %v3321, %v3321
      %v3324 = vshrl.u32 %v3126, 16
      %v3326 = vrot.slane %v3324, 1
      %v3327 = vshll.u32 %v3126, 16
      %v3329 = vrot.slane %v3327, 2
      %v3330 = vor.u32 %v3326, %v3329
      %v3332 = vshrl.u32 %v3127, 16
      %v3334 = vrot.slane %v3332, 1
      %v3335 = vshll.u32 %v3127, 16
      %v3337 = vrot.slane %v3335, 2
      %v3338 = vor.u32 %v3334, %v3337
      %v3339 = vsel %vm1311, %v3330, %v3338
      %v3341 = vshrl.u32 %v3128, 16
      %v3343 = vrot.slane %v3341, 1
      %v3344 = vshll.u32 %v3128, 16
      %v3346 = vrot.slane %v3344, 2
      %v3347 = vor.u32 %v3343, %v3346
      %v3348 = vsel %vm1311, %v3338, %v3347
      %v3350 = vshrl.u32 %v3129, 16
      %v3352 = vrot.slane %v3350, 1
      %v3353 = vshll.u32 %v3129, 16
      %v3355 = vrot.slane %v3353, 2
      %v3356 = vor.u32 %v3352, %v3355
      %v3357 = vsel %vm1311, %v3347, %v3356
      %v3359 = vshrl.u32 %v3130, 16
      %v3361 = vrot.slane %v3359, 1
      %v3362 = vshll.u32 %v3130, 16
      %v3364 = vrot.slane %v3362, 2
      %v3365 = vor.u32 %v3361, %v3364
      %v3366 = vsel %vm1311, %v3356, %v3365
      %v3368 = vshrl.u32 %v3131, 16
      %v3370 = vrot.slane %v3368, 1
      %v3371 = vshll.u32 %v3131, 16
      %v3373 = vrot.slane %v3371, 2
      %v3374 = vor.u32 %v3370, %v3373
      %v3375 = vsel %vm1311, %v3365, %v3374
      %v3377 = vshrl.u32 %v3322, 16
      %v3379 = vrot.slane %v3377, 1
      %v3380 = vshll.u32 %v3322, 16
      %v3382 = vrot.slane %v3380, 2
      %v3383 = vor.u32 %v3379, %v3382
      %v3384 = vsel %vm1311, %v3374, %v3383
      %v3408 = vunpack.c.l.b16 %v3304
      %v3409 = vunpack.c.l.b16 %v3305
      %v3410 = vunpack.c.l.b16 %v3306
      %v3411 = vunpack.c.l.b16 %v3307
      %v3412 = vunpack.c.l.b16 %v3308
      %v3413 = vunpack.c.l.b16 %v3309
      %v3414 = vunpack.c.l.b16 %v3310
      %v3415 = vunpack.c.l.b16 %v3311
      %v3416 = vunpack.c.l.b16 %v3312
      %v3417 = vunpack.c.l.b16 %v3313
      %v3418 = vunpack.c.l.b16 %v3314
      %v3419 = vunpack.c.l.b16 %v3315
      %v3420 = vunpack.c.l.b16 %v3316
      %v3421 = vunpack.c.l.b16 %v3317
      %v3422 = vunpack.c.l.b16 %v3318
      %v3423 = vunpack.c.l.b16 %v3319
      %v3424 = vpack.c.b16 %v3409, %v3408
      %v3425 = vpack.c.b16 %v3411, %v3410
      %v3426 = vpack.c.b16 %v3413, %v3412
      %v3427 = vpack.c.b16 %v3415, %v3414
      %v3428 = vpack.c.b16 %v3417, %v3416
      %v3429 = vpack.c.b16 %v3419, %v3418
      %v3430 = vpack.c.b16 %v3421, %v3420
      %v3431 = vpack.c.b16 %v3423, %v3422
      %3440 = vmatprep.subr.bf16.mxu0 0
      %3441 = vmatpush1.bf16.msra.mxu0 %v3424
      %3442 = vmatprep.subr.bf16.mxu0 0
      %3443 = vmatpush1.bf16.msra.mxu0 %v3425
      %3444 = vmatprep.subr.bf16.mxu0 0
      %3445 = vmatpush1.bf16.msra.mxu0 %v3426
      %3446 = vmatprep.subr.bf16.mxu0 0
      %3447 = vmatpush1.bf16.msra.mxu0 %v3427
      %3448 = vmatprep.subr.bf16.mxu0 0
      %3449 = vmatpush1.bf16.msra.mxu0 %v3428
      %3450 = vmatprep.subr.bf16.mxu0 0
      %3451 = vmatpush1.bf16.msra.mxu0 %v3429
      %3452 = vmatprep.subr.bf16.mxu0 0
      %3453 = vmatpush1.bf16.msra.mxu0 %v3430
      %3454 = vmatprep.subr.bf16.mxu0 0
      %3455 = vmatpush1.bf16.msra.mxu0 %v3431
      %3456 = vmatprep.subr.bf16.mxu0 0
      %3457 = vmatpush1.bf16.msra.mxu0 0
      %3458 = vmatprep.subr.bf16.mxu0 0
      %3459 = vmatpush1.bf16.msra.mxu0 0
      %3460 = vmatprep.subr.bf16.mxu0 0
      %3461 = vmatpush1.bf16.msra.mxu0 0
      %3462 = vmatprep.subr.bf16.mxu0 0
      %3463 = vmatpush1.bf16.msra.mxu0 0
      %3464 = vmatprep.subr.bf16.mxu0 0
      %3465 = vmatpush1.bf16.msra.mxu0 0
      %3466 = vmatprep.subr.bf16.mxu0 0
      %3467 = vmatpush1.bf16.msra.mxu0 0
      %3468 = vmatprep.subr.bf16.mxu0 0
      %3469 = vmatpush1.bf16.msra.mxu0 0
      %3470 = vmatprep.subr.bf16.mxu0 0
      %3471 = vmatpush1.bf16.msra.mxu0 0
      %3472 = vmatprep.mubr.bf16.mxu0 0
      %3473 = vmatmul.mubr.bf16.gmra.mrb[0].mxu0 %v3339
      %v3474 = vpop.f32.mrb[0].mxu0
      %v3475 = vadd.f32 0.0, %v3474
      %v3476 = vpop.f32.mrb[0].mxu0
      %v3477 = vpop.f32.mrb[0].mxu0
      %v3478 = vadd.f32 0.0, %v3477
      %v3479 = vpop.f32.mrb[0].mxu0
      %3480 = vmatprep.mubr.bf16.mxu0 0
      %3481 = vmatmul.mubr.bf16.gmra.mrb[0].mxu0 %v3348
      %v3482 = vpop.f32.mrb[0].mxu0
      %v3483 = vadd.f32 0.0, %v3482
      %v3484 = vpop.f32.mrb[0].mxu0
      %v3485 = vpop.f32.mrb[0].mxu0
      %v3486 = vadd.f32 0.0, %v3485
      %v3487 = vpop.f32.mrb[0].mxu0
      %3488 = vmatprep.mubr.bf16.mxu0 0
      %3489 = vmatmul.mubr.bf16.gmra.mrb[0].mxu0 %v3357
      %v3490 = vpop.f32.mrb[0].mxu0
      %v3491 = vadd.f32 0.0, %v3490
      %v3492 = vpop.f32.mrb[0].mxu0
      %v3493 = vpop.f32.mrb[0].mxu0
      %v3494 = vadd.f32 0.0, %v3493
      %v3495 = vpop.f32.mrb[0].mxu0
      %3496 = vmatprep.mubr.bf16.mxu0 0
      %3497 = vmatmul.mubr.bf16.gmra.mrb[0].mxu0 %v3366
      %v3498 = vpop.f32.mrb[0].mxu0
      %v3499 = vadd.f32 0.0, %v3498
      %v3500 = vpop.f32.mrb[0].mxu0
      %v3501 = vpop.f32.mrb[0].mxu0
      %v3502 = vadd.f32 0.0, %v3501
      %v3503 = vpop.f32.mrb[0].mxu0
      %3504 = vmatprep.mubr.bf16.mxu0 0
      %3505 = vmatmul.mubr.bf16.gmra.mrb[0].mxu0 %v3375
      %v3506 = vpop.f32.mrb[0].mxu0
      %v3507 = vadd.f32 0.0, %v3506
      %v3508 = vpop.f32.mrb[0].mxu0
      %v3509 = vpop.f32.mrb[0].mxu0
      %v3510 = vadd.f32 0.0, %v3509
      %v3511 = vpop.f32.mrb[0].mxu0
      %3512 = vmatprep.mubr.bf16.mxu0 0
      %3513 = vmatmul.mubr.bf16.gmra.mrb[0].mxu0 %v3384
      %v3514 = vpop.f32.mrb[0].mxu0
      %v3515 = vadd.f32 0.0, %v3514
      %v3516 = vpop.f32.mrb[0].mxu0
      %v3517 = vpop.f32.mrb[0].mxu0
      %v3518 = vadd.f32 0.0, %v3517
      %v3519 = vpop.f32.mrb[0].mxu0
      %3520 = vmatprep.mubr.bf16.mxu0 0
      %3521 = vmatmul.mubr.bf16.gmra.mrb[0].mxu0 %v3383
      %v3522 = vpop.f32.mrb[0].mxu0
      %v3523 = vadd.f32 0.0, %v3522
      %v3524 = vpop.f32.mrb[0].mxu0
      %v3525 = vpop.f32.mrb[0].mxu0
      %v3526 = vpop.f32.mrb[0].mxu0
      %3527 = vdwg.mxu0
      %v3528 = vadd.f32 %v3289, %v3475
      %v3529 = vadd.f32 %v3290, %v3478
      %v3530 = vadd.f32 %v3291, %v3483
      %v3531 = vadd.f32 %v3292, %v3486
      %v3532 = vadd.f32 %v3293, %v3491
      %v3533 = vadd.f32 %v3294, %v3494
      %v3534 = vadd.f32 %v3295, %v3499
      %v3535 = vadd.f32 %v3296, %v3502
      %v3536 = vadd.f32 %v3297, %v3507
      %v3537 = vadd.f32 %v3298, %v3510
      %v3538 = vadd.f32 %v3299, %v3515
      %v3539 = vadd.f32 %v3300, %v3518
      %v3540 = vadd.f32 %v3301, %v3523
      %v3541 = vld [vmem:[%s406 + $0x4] sm:$0xc]
      %s3542 = scalar_lea.vmem %s3, 896
      %v3543 = vld [vmem:[%s3542] sm:$0xf]
      %v3544 = vld [vmem:[%s3542 + $0x4] sm:$0xf]
      %v3545 = vld [vmem:[%s3542 + $0x8] sm:$0xf]
      %v3546 = vld [vmem:[%s3542 + $0xc] sm:$0xf]
      %v3547 = vld [vmem:[%s3542 + $0x10] sm:$0xf]
      %v3548 = vld [vmem:[%s3542 + $0x14] sm:$0xf]
      %v3549 = vld [vmem:[%s3542 + $0x18] sm:$0xf]
      %v3550 = vld [vmem:[%s3542 + $0x1c] sm:$0xf]
      %v3551 = vld [vmem:[%s3542 + $0x20] sm:$0xf]
      %v3552 = vld [vmem:[%s3542 + $0x24] sm:$0xf]
      %v3553 = vld [vmem:[%s3542 + $0x28] sm:$0xf]
      %v3554 = vld [vmem:[%s3542 + $0x2c] sm:$0xf]
      %v3555 = vld [vmem:[%s3542 + $0x30] sm:$0xf]
      %v3556 = vld [vmem:[%s3542 + $0x34] sm:$0xf]
      %v3557 = vld [vmem:[%s3542 + $0x38] sm:$0xf]
      %v3558 = vld [vmem:[%s3542 + $0x3c] sm:$0xf]
      %v3560 = vunpack.c.l.b16 %v3541
      %v3561 = vpack.c.b16 %v3114, %v3560
      %v3562 = vrot.slane %v3561, 2
      %v3563 = vrot.slane %v3127, 2
      %v3564 = vsel %vm1551, %v3562, %v3563
      %v3565 = vrot.slane %v3128, 2
      %v3566 = vsel %vm1551, %v3563, %v3565
      %v3567 = vrot.slane %v3129, 2
      %v3568 = vsel %vm1551, %v3565, %v3567
      %v3569 = vrot.slane %v3130, 2
      %v3570 = vsel %vm1551, %v3567, %v3569
      %v3571 = vrot.slane %v3131, 2
      %v3572 = vsel %vm1551, %v3569, %v3571
      %v3573 = vrot.slane %v3322, 2
      %v3574 = vsel %vm1551, %v3571, %v3573
      %v3598 = vunpack.c.l.b16 %v3543
      %v3599 = vunpack.c.l.b16 %v3544
      %v3600 = vunpack.c.l.b16 %v3545
      %v3601 = vunpack.c.l.b16 %v3546
      %v3602 = vunpack.c.l.b16 %v3547
      %v3603 = vunpack.c.l.b16 %v3548
      %v3604 = vunpack.c.l.b16 %v3549
      %v3605 = vunpack.c.l.b16 %v3550
      %v3606 = vunpack.c.l.b16 %v3551
      %v3607 = vunpack.c.l.b16 %v3552
      %v3608 = vunpack.c.l.b16 %v3553
      %v3609 = vunpack.c.l.b16 %v3554
      %v3610 = vunpack.c.l.b16 %v3555
      %v3611 = vunpack.c.l.b16 %v3556
      %v3612 = vunpack.c.l.b16 %v3557
      %v3613 = vunpack.c.l.b16 %v3558
      %v3614 = vpack.c.b16 %v3599, %v3598
      %v3615 = vpack.c.b16 %v3601, %v3600
      %v3616 = vpack.c.b16 %v3603, %v3602
      %v3617 = vpack.c.b16 %v3605, %v3604
      %v3618 = vpack.c.b16 %v3607, %v3606
      %v3619 = vpack.c.b16 %v3609, %v3608
      %v3620 = vpack.c.b16 %v3611, %v3610
      %v3621 = vpack.c.b16 %v3613, %v3612
      %3630 = vmatprep.subr.bf16.mxu0 0
      %3631 = vmatpush1.bf16.msra.mxu0 %v3614
      %3632 = vmatprep.subr.bf16.mxu0 0
      %3633 = vmatpush1.bf16.msra.mxu0 %v3615
      %3634 = vmatprep.subr.bf16.mxu0 0
      %3635 = vmatpush1.bf16.msra.mxu0 %v3616
      %3636 = vmatprep.subr.bf16.mxu0 0
      %3637 = vmatpush1.bf16.msra.mxu0 %v3617
      %3638 = vmatprep.subr.bf16.mxu0 0
      %3639 = vmatpush1.bf16.msra.mxu0 %v3618
      %3640 = vmatprep.subr.bf16.mxu0 0
      %3641 = vmatpush1.bf16.msra.mxu0 %v3619
      %3642 = vmatprep.subr.bf16.mxu0 0
      %3643 = vmatpush1.bf16.msra.mxu0 %v3620
      %3644 = vmatprep.subr.bf16.mxu0 0
      %3645 = vmatpush1.bf16.msra.mxu0 %v3621
      %3646 = vmatprep.subr.bf16.mxu0 0
      %3647 = vmatpush1.bf16.msra.mxu0 0
      %3648 = vmatprep.subr.bf16.mxu0 0
      %3649 = vmatpush1.bf16.msra.mxu0 0
      %3650 = vmatprep.subr.bf16.mxu0 0
      %3651 = vmatpush1.bf16.msra.mxu0 0
      %3652 = vmatprep.subr.bf16.mxu0 0
      %3653 = vmatpush1.bf16.msra.mxu0 0
      %3654 = vmatprep.subr.bf16.mxu0 0
      %3655 = vmatpush1.bf16.msra.mxu0 0
      %3656 = vmatprep.subr.bf16.mxu0 0
      %3657 = vmatpush1.bf16.msra.mxu0 0
      %3658 = vmatprep.subr.bf16.mxu0 0
      %3659 = vmatpush1.bf16.msra.mxu0 0
      %3660 = vmatprep.subr.bf16.mxu0 0
      %3661 = vmatpush1.bf16.msra.mxu0 0
      %3662 = vmatprep.mubr.bf16.mxu0 0
      %3663 = vmatmul.mubr.bf16.gmra.mrb[0].mxu0 %v3564
      %v3664 = vpop.f32.mrb[0].mxu0
      %v3665 = vadd.f32 0.0, %v3664
      %v3666 = vpop.f32.mrb[0].mxu0
      %v3667 = vpop.f32.mrb[0].mxu0
      %v3668 = vadd.f32 0.0, %v3667
      %v3669 = vpop.f32.mrb[0].mxu0
      %3670 = vmatprep.mubr.bf16.mxu0 0
      %3671 = vmatmul.mubr.bf16.gmra.mrb[0].mxu0 %v3566
      %v3672 = vpop.f32.mrb[0].mxu0
      %v3673 = vadd.f32 0.0, %v3672
      %v3674 = vpop.f32.mrb[0].mxu0
      %v3675 = vpop.f32.mrb[0].mxu0
      %v3676 = vadd.f32 0.0, %v3675
      %v3677 = vpop.f32.mrb[0].mxu0
      %3678 = vmatprep.mubr.bf16.mxu0 0
      %3679 = vmatmul.mubr.bf16.gmra.mrb[0].mxu0 %v3568
      %v3680 = vpop.f32.mrb[0].mxu0
      %v3681 = vadd.f32 0.0, %v3680
      %v3682 = vpop.f32.mrb[0].mxu0
      %v3683 = vpop.f32.mrb[0].mxu0
      %v3684 = vadd.f32 0.0, %v3683
      %v3685 = vpop.f32.mrb[0].mxu0
      %3686 = vmatprep.mubr.bf16.mxu0 0
      %3687 = vmatmul.mubr.bf16.gmra.mrb[0].mxu0 %v3570
      %v3688 = vpop.f32.mrb[0].mxu0
      %v3689 = vadd.f32 0.0, %v3688
      %v3690 = vpop.f32.mrb[0].mxu0
      %v3691 = vpop.f32.mrb[0].mxu0
      %v3692 = vadd.f32 0.0, %v3691
      %v3693 = vpop.f32.mrb[0].mxu0
      %3694 = vmatprep.mubr.bf16.mxu0 0
      %3695 = vmatmul.mubr.bf16.gmra.mrb[0].mxu0 %v3572
      %v3696 = vpop.f32.mrb[0].mxu0
      %v3697 = vadd.f32 0.0, %v3696
      %v3698 = vpop.f32.mrb[0].mxu0
      %v3699 = vpop.f32.mrb[0].mxu0
      %v3700 = vadd.f32 0.0, %v3699
      %v3701 = vpop.f32.mrb[0].mxu0
      %3702 = vmatprep.mubr.bf16.mxu0 0
      %3703 = vmatmul.mubr.bf16.gmra.mrb[0].mxu0 %v3574
      %v3704 = vpop.f32.mrb[0].mxu0
      %v3705 = vadd.f32 0.0, %v3704
      %v3706 = vpop.f32.mrb[0].mxu0
      %v3707 = vpop.f32.mrb[0].mxu0
      %v3708 = vadd.f32 0.0, %v3707
      %v3709 = vpop.f32.mrb[0].mxu0
      %3710 = vmatprep.mubr.bf16.mxu0 0
      %3711 = vmatmul.mubr.bf16.gmra.mrb[0].mxu0 %v3573
      %v3712 = vpop.f32.mrb[0].mxu0
      %v3713 = vadd.f32 0.0, %v3712
      %v3714 = vpop.f32.mrb[0].mxu0
      %v3715 = vpop.f32.mrb[0].mxu0
      %v3716 = vpop.f32.mrb[0].mxu0
      %3717 = vdwg.mxu0
      %v3718 = vadd.f32 %v3528, %v3665
      %v3719 = vadd.f32 %v3529, %v3668
      %v3720 = vadd.f32 %v3530, %v3673
      %v3721 = vadd.f32 %v3531, %v3676
      %v3722 = vadd.f32 %v3532, %v3681
      %v3723 = vadd.f32 %v3533, %v3684
      %v3724 = vadd.f32 %v3534, %v3689
      %v3725 = vadd.f32 %v3535, %v3692
      %v3726 = vadd.f32 %v3536, %v3697
      %v3727 = vadd.f32 %v3537, %v3700
      %v3728 = vadd.f32 %v3538, %v3705
      %v3729 = vadd.f32 %v3539, %v3708
      %v3730 = vadd.f32 %v3540, %v3713
      %v3731 = vld [vmem:[%s406 + $0x8] sm:$0xc]
      %v3732 = vld [vmem:[%s406 + $0xc] sm:$0xf]
      %v3733 = vld [vmem:[%s406 + $0x10] sm:$0xf]
      %v3734 = vld [vmem:[%s406 + $0x14] sm:$0xf]
      %v3735 = vld [vmem:[%s406 + $0x18] sm:$0xf]
      %v3736 = vld [vmem:[%s406 + $0x1c] sm:$0xf]
      %v3737 = vld [vmem:[%s406 + $0x20] sm:$0xf]
      %v3738 = vld [vmem:[%s406 + $0x24] sm:$0xf]
      %v3739 = vld [vmem:[%s406 + $0x28] sm:$0xf]
      %v3740 = vld [vmem:[%s406 + $0x2c] sm:$0xf]
      %v3741 = vld [vmem:[%s406 + $0x30] sm:$0xf]
      %v3742 = vld [vmem:[%s406 + $0x34] sm:$0xf]
      %v3743 = vld [vmem:[%s406 + $0x38] sm:$0xf]
      %s3744 = scalar_lea.vmem %s3, 960
      %v3745 = vld [vmem:[%s3744] sm:$0xf]
      %v3746 = vld [vmem:[%s3744 + $0x4] sm:$0xf]
      %v3747 = vld [vmem:[%s3744 + $0x8] sm:$0xf]
      %v3748 = vld [vmem:[%s3744 + $0xc] sm:$0xf]
      %v3749 = vld [vmem:[%s3744 + $0x10] sm:$0xf]
      %v3750 = vld [vmem:[%s3744 + $0x14] sm:$0xf]
      %v3751 = vld [vmem:[%s3744 + $0x18] sm:$0xf]
      %v3752 = vld [vmem:[%s3744 + $0x1c] sm:$0xf]
      %v3753 = vld [vmem:[%s3744 + $0x20] sm:$0xf]
      %v3754 = vld [vmem:[%s3744 + $0x24] sm:$0xf]
      %v3755 = vld [vmem:[%s3744 + $0x28] sm:$0xf]
      %v3756 = vld [vmem:[%s3744 + $0x2c] sm:$0xf]
      %v3757 = vld [vmem:[%s3744 + $0x30] sm:$0xf]
      %v3758 = vld [vmem:[%s3744 + $0x34] sm:$0xf]
      %v3759 = vld [vmem:[%s3744 + $0x38] sm:$0xf]
      %v3760 = vld [vmem:[%s3744 + $0x3c] sm:$0xf]
      %v3774 = vunpack.c.l.b16 %v3731
      %v3775 = vunpack.c.l.b16 %v3732
      %v3776 = vunpack.c.l.b16 %v3733
      %v3777 = vunpack.c.l.b16 %v3734
      %v3778 = vunpack.c.l.b16 %v3735
      %v3779 = vunpack.c.l.b16 %v3736
      %v3780 = vunpack.c.l.b16 %v3737
      %v3781 = vunpack.c.l.b16 %v3738
      %v3782 = vunpack.c.l.b16 %v3739
      %v3783 = vunpack.c.l.b16 %v3740
      %v3784 = vunpack.c.l.b16 %v3741
      %v3785 = vunpack.c.l.b16 %v3742
      %v3786 = vunpack.c.l.b16 %v3743
      %v3787 = vpack.c.b16 %v3775, %v3774
      %v3788 = vpack.c.b16 %v3777, %v3776
      %v3789 = vpack.c.b16 %v3779, %v3778
      %v3790 = vpack.c.b16 %v3781, %v3780
      %v3791 = vpack.c.b16 %v3783, %v3782
      %v3792 = vpack.c.b16 %v3785, %v3784
      %v3793 = vpack.c.b16 %v3786, %v3786
      %v3794 = vrot.slane %v3787, 2
      %v3795 = vrot.slane %v3788, 2
      %v3796 = vsel %vm1551, %v3794, %v3795
      %v3797 = vrot.slane %v3789, 2
      %v3798 = vsel %vm1551, %v3795, %v3797
      %v3799 = vrot.slane %v3790, 2
      %v3800 = vsel %vm1551, %v3797, %v3799
      %v3801 = vrot.slane %v3791, 2
      %v3802 = vsel %vm1551, %v3799, %v3801
      %v3803 = vrot.slane %v3792, 2
      %v3804 = vsel %vm1551, %v3801, %v3803
      %v3805 = vrot.slane %v3793, 2
      %v3806 = vsel %vm1551, %v3803, %v3805
      %v3830 = vunpack.c.l.b16 %v3745
      %v3831 = vunpack.c.l.b16 %v3746
      %v3832 = vunpack.c.l.b16 %v3747
      %v3833 = vunpack.c.l.b16 %v3748
      %v3834 = vunpack.c.l.b16 %v3749
      %v3835 = vunpack.c.l.b16 %v3750
      %v3836 = vunpack.c.l.b16 %v3751
      %v3837 = vunpack.c.l.b16 %v3752
      %v3838 = vunpack.c.l.b16 %v3753
      %v3839 = vunpack.c.l.b16 %v3754
      %v3840 = vunpack.c.l.b16 %v3755
      %v3841 = vunpack.c.l.b16 %v3756
      %v3842 = vunpack.c.l.b16 %v3757
      %v3843 = vunpack.c.l.b16 %v3758
      %v3844 = vunpack.c.l.b16 %v3759
      %v3845 = vunpack.c.l.b16 %v3760
      %v3846 = vpack.c.b16 %v3831, %v3830
      %v3847 = vpack.c.b16 %v3833, %v3832
      %v3848 = vpack.c.b16 %v3835, %v3834
      %v3849 = vpack.c.b16 %v3837, %v3836
      %v3850 = vpack.c.b16 %v3839, %v3838
      %v3851 = vpack.c.b16 %v3841, %v3840
      %v3852 = vpack.c.b16 %v3843, %v3842
      %v3853 = vpack.c.b16 %v3845, %v3844
      %3862 = vmatprep.subr.bf16.mxu0 0
      %3863 = vmatpush1.bf16.msra.mxu0 %v3846
      %3864 = vmatprep.subr.bf16.mxu0 0
      %3865 = vmatpush1.bf16.msra.mxu0 %v3847
      %3866 = vmatprep.subr.bf16.mxu0 0
      %3867 = vmatpush1.bf16.msra.mxu0 %v3848
      %3868 = vmatprep.subr.bf16.mxu0 0
      %3869 = vmatpush1.bf16.msra.mxu0 %v3849
      %3870 = vmatprep.subr.bf16.mxu0 0
      %3871 = vmatpush1.bf16.msra.mxu0 %v3850
      %3872 = vmatprep.subr.bf16.mxu0 0
      %3873 = vmatpush1.bf16.msra.mxu0 %v3851
      %3874 = vmatprep.subr.bf16.mxu0 0
      %3875 = vmatpush1.bf16.msra.mxu0 %v3852
      %3876 = vmatprep.subr.bf16.mxu0 0
      %3877 = vmatpush1.bf16.msra.mxu0 %v3853
      %3878 = vmatprep.subr.bf16.mxu0 0
      %3879 = vmatpush1.bf16.msra.mxu0 0
      %3880 = vmatprep.subr.bf16.mxu0 0
      %3881 = vmatpush1.bf16.msra.mxu0 0
      %3882 = vmatprep.subr.bf16.mxu0 0
      %3883 = vmatpush1.bf16.msra.mxu0 0
      %3884 = vmatprep.subr.bf16.mxu0 0
      %3885 = vmatpush1.bf16.msra.mxu0 0
      %3886 = vmatprep.subr.bf16.mxu0 0
      %3887 = vmatpush1.bf16.msra.mxu0 0
      %3888 = vmatprep.subr.bf16.mxu0 0
      %3889 = vmatpush1.bf16.msra.mxu0 0
      %3890 = vmatprep.subr.bf16.mxu0 0
      %3891 = vmatpush1.bf16.msra.mxu0 0
      %3892 = vmatprep.subr.bf16.mxu0 0
      %3893 = vmatpush1.bf16.msra.mxu0 0
      %3894 = vmatprep.mubr.bf16.mxu0 0
      %3895 = vmatmul.mubr.bf16.gmra.mrb[0].mxu0 %v3796
      %v3896 = vpop.f32.mrb[0].mxu0
      %v3897 = vadd.f32 0.0, %v3896
      %v3898 = vpop.f32.mrb[0].mxu0
      %v3899 = vpop.f32.mrb[0].mxu0
      %v3900 = vadd.f32 0.0, %v3899
      %v3901 = vpop.f32.mrb[0].mxu0
      %3902 = vmatprep.mubr.bf16.mxu0 0
      %3903 = vmatmul.mubr.bf16.gmra.mrb[0].mxu0 %v3798
      %v3904 = vpop.f32.mrb[0].mxu0
      %v3905 = vadd.f32 0.0, %v3904
      %v3906 = vpop.f32.mrb[0].mxu0
      %v3907 = vpop.f32.mrb[0].mxu0
      %v3908 = vadd.f32 0.0, %v3907
      %v3909 = vpop.f32.mrb[0].mxu0
      %3910 = vmatprep.mubr.bf16.mxu0 0
      %3911 = vmatmul.mubr.bf16.gmra.mrb[0].mxu0 %v3800
      %v3912 = vpop.f32.mrb[0].mxu0
      %v3913 = vadd.f32 0.0, %v3912
      %v3914 = vpop.f32.mrb[0].mxu0
      %v3915 = vpop.f32.mrb[0].mxu0
      %v3916 = vadd.f32 0.0, %v3915
      %v3917 = vpop.f32.mrb[0].mxu0
      %3918 = vmatprep.mubr.bf16.mxu0 0
      %3919 = vmatmul.mubr.bf16.gmra.mrb[0].mxu0 %v3802
      %v3920 = vpop.f32.mrb[0].mxu0
      %v3921 = vadd.f32 0.0, %v3920
      %v3922 = vpop.f32.mrb[0].mxu0
      %v3923 = vpop.f32.mrb[0].mxu0
      %v3924 = vadd.f32 0.0, %v3923
      %v3925 = vpop.f32.mrb[0].mxu0
      %3926 = vmatprep.mubr.bf16.mxu0 0
      %3927 = vmatmul.mubr.bf16.gmra.mrb[0].mxu0 %v3804
      %v3928 = vpop.f32.mrb[0].mxu0
      %v3929 = vadd.f32 0.0, %v3928
      %v3930 = vpop.f32.mrb[0].mxu0
      %v3931 = vpop.f32.mrb[0].mxu0
      %v3932 = vadd.f32 0.0, %v3931
      %v3933 = vpop.f32.mrb[0].mxu0
      %3934 = vmatprep.mubr.bf16.mxu0 0
      %3935 = vmatmul.mubr.bf16.gmra.mrb[0].mxu0 %v3806
      %v3936 = vpop.f32.mrb[0].mxu0
      %v3937 = vadd.f32 0.0, %v3936
      %v3938 = vpop.f32.mrb[0].mxu0
      %v3939 = vpop.f32.mrb[0].mxu0
      %v3940 = vadd.f32 0.0, %v3939
      %v3941 = vpop.f32.mrb[0].mxu0
      %3942 = vmatprep.mubr.bf16.mxu0 0
      %3943 = vmatmul.mubr.bf16.gmra.mrb[0].mxu0 %v3805
      %v3944 = vpop.f32.mrb[0].mxu0
      %v3945 = vadd.f32 0.0, %v3944
      %v3946 = vpop.f32.mrb[0].mxu0
      %v3947 = vpop.f32.mrb[0].mxu0
      %v3948 = vpop.f32.mrb[0].mxu0
      %3949 = vdwg.mxu0
      %v3950 = vadd.f32 %v3718, %v3897
      %v3951 = vadd.f32 %v3719, %v3900
      %v3952 = vadd.f32 %v3720, %v3905
      %v3953 = vadd.f32 %v3721, %v3908
      %v3954 = vadd.f32 %v3722, %v3913
      %v3955 = vadd.f32 %v3723, %v3916
      %v3956 = vadd.f32 %v3724, %v3921
      %v3957 = vadd.f32 %v3725, %v3924
      %v3958 = vadd.f32 %v3726, %v3929
      %v3959 = vadd.f32 %v3727, %v3932
      %v3960 = vadd.f32 %v3728, %v3937
      %v3961 = vadd.f32 %v3729, %v3940
      %v3962 = vadd.f32 %v3730, %v3945
      %v3963 = vld [vmem:[%s406 + $0x8] sm:$0xc]
      %v3964 = vld [vmem:[%s406 + $0xc] sm:$0xf]
      %v3965 = vld [vmem:[%s406 + $0x10] sm:$0xf]
      %v3966 = vld [vmem:[%s406 + $0x14] sm:$0xf]
      %v3967 = vld [vmem:[%s406 + $0x18] sm:$0xf]
      %v3968 = vld [vmem:[%s406 + $0x1c] sm:$0xf]
      %v3969 = vld [vmem:[%s406 + $0x20] sm:$0xf]
      %v3970 = vld [vmem:[%s406 + $0x24] sm:$0xf]
      %v3971 = vld [vmem:[%s406 + $0x28] sm:$0xf]
      %v3972 = vld [vmem:[%s406 + $0x2c] sm:$0xf]
      %v3973 = vld [vmem:[%s406 + $0x30] sm:$0xf]
      %v3974 = vld [vmem:[%s406 + $0x34] sm:$0xf]
      %v3975 = vld [vmem:[%s406 + $0x38] sm:$0xf]
      %v3976 = vld [vmem:[%s406 + $0x3c] sm:$0x1]
      %s3977 = scalar_lea.vmem %s3, 1024
      %v3978 = vld [vmem:[%s3977] sm:$0xf]
      %v3979 = vld [vmem:[%s3977 + $0x4] sm:$0xf]
      %v3980 = vld [vmem:[%s3977 + $0x8] sm:$0xf]
      %v3981 = vld [vmem:[%s3977 + $0xc] sm:$0xf]
      %v3982 = vld [vmem:[%s3977 + $0x10] sm:$0xf]
      %v3983 = vld [vmem:[%s3977 + $0x14] sm:$0xf]
      %v3984 = vld [vmem:[%s3977 + $0x18] sm:$0xf]
      %v3985 = vld [vmem:[%s3977 + $0x1c] sm:$0xf]
      %v3986 = vld [vmem:[%s3977 + $0x20] sm:$0xf]
      %v3987 = vld [vmem:[%s3977 + $0x24] sm:$0xf]
      %v3988 = vld [vmem:[%s3977 + $0x28] sm:$0xf]
      %v3989 = vld [vmem:[%s3977 + $0x2c] sm:$0xf]
      %v3990 = vld [vmem:[%s3977 + $0x30] sm:$0xf]
      %v3991 = vld [vmem:[%s3977 + $0x34] sm:$0xf]
      %v3992 = vld [vmem:[%s3977 + $0x38] sm:$0xf]
      %v3993 = vld [vmem:[%s3977 + $0x3c] sm:$0xf]
      %v4008 = vunpack.c.l.b16 %v3963
      %v4009 = vunpack.c.l.b16 %v3964
      %v4010 = vunpack.c.l.b16 %v3965
      %v4011 = vunpack.c.l.b16 %v3966
      %v4012 = vunpack.c.l.b16 %v3967
      %v4013 = vunpack.c.l.b16 %v3968
      %v4014 = vunpack.c.l.b16 %v3969
      %v4015 = vunpack.c.l.b16 %v3970
      %v4016 = vunpack.c.l.b16 %v3971
      %v4017 = vunpack.c.l.b16 %v3972
      %v4018 = vunpack.c.l.b16 %v3973
      %v4019 = vunpack.c.l.b16 %v3974
      %v4020 = vunpack.c.l.b16 %v3975
      %v4021 = vunpack.c.l.b16 %v3976
      %v4022 = vpack.c.b16 %v4009, %v4008
      %v4023 = vpack.c.b16 %v4011, %v4010
      %v4024 = vpack.c.b16 %v4013, %v4012
      %v4025 = vpack.c.b16 %v4015, %v4014
      %v4026 = vpack.c.b16 %v4017, %v4016
      %v4027 = vpack.c.b16 %v4019, %v4018
      %v4028 = vpack.c.b16 %v4021, %v4020
      %v4030 = vshrl.u32 %v4022, 16
      %v4032 = vrot.slane %v4030, 2
      %v4033 = vshll.u32 %v4022, 16
      %v4035 = vrot.slane %v4033, 3
      %v4036 = vor.u32 %v4032, %v4035
      %v4038 = vshrl.u32 %v4023, 16
      %v4040 = vrot.slane %v4038, 2
      %v4041 = vshll.u32 %v4023, 16
      %v4043 = vrot.slane %v4041, 3
      %v4044 = vor.u32 %v4040, %v4043
      %v4045 = vsel %vm2019, %v4036, %v4044
      %v4047 = vshrl.u32 %v4024, 16
      %v4049 = vrot.slane %v4047, 2
      %v4050 = vshll.u32 %v4024, 16
      %v4052 = vrot.slane %v4050, 3
      %v4053 = vor.u32 %v4049, %v4052
      %v4054 = vsel %vm2019, %v4044, %v4053
      %v4056 = vshrl.u32 %v4025, 16
      %v4058 = vrot.slane %v4056, 2
      %v4059 = vshll.u32 %v4025, 16
      %v4061 = vrot.slane %v4059, 3
      %v4062 = vor.u32 %v4058, %v4061
      %v4063 = vsel %vm2019, %v4053, %v4062
      %v4065 = vshrl.u32 %v4026, 16
      %v4067 = vrot.slane %v4065, 2
      %v4068 = vshll.u32 %v4026, 16
      %v4070 = vrot.slane %v4068, 3
      %v4071 = vor.u32 %v4067, %v4070
      %v4072 = vsel %vm2019, %v4062, %v4071
      %v4074 = vshrl.u32 %v4027, 16
      %v4076 = vrot.slane %v4074, 2
      %v4077 = vshll.u32 %v4027, 16
      %v4079 = vrot.slane %v4077, 3
      %v4080 = vor.u32 %v4076, %v4079
      %v4081 = vsel %vm2019, %v4071, %v4080
      %v4083 = vshrl.u32 %v4028, 16
      %v4085 = vrot.slane %v4083, 2
      %v4086 = vshll.u32 %v4028, 16
      %v4088 = vrot.slane %v4086, 3
      %v4089 = vor.u32 %v4085, %v4088
      %v4090 = vsel %vm2019, %v4080, %v4089
      %v4114 = vunpack.c.l.b16 %v3978
      %v4115 = vunpack.c.l.b16 %v3979
      %v4116 = vunpack.c.l.b16 %v3980
      %v4117 = vunpack.c.l.b16 %v3981
      %v4118 = vunpack.c.l.b16 %v3982
      %v4119 = vunpack.c.l.b16 %v3983
      %v4120 = vunpack.c.l.b16 %v3984
      %v4121 = vunpack.c.l.b16 %v3985
      %v4122 = vunpack.c.l.b16 %v3986
      %v4123 = vunpack.c.l.b16 %v3987
      %v4124 = vunpack.c.l.b16 %v3988
      %v4125 = vunpack.c.l.b16 %v3989
      %v4126 = vunpack.c.l.b16 %v3990
      %v4127 = vunpack.c.l.b16 %v3991
      %v4128 = vunpack.c.l.b16 %v3992
      %v4129 = vunpack.c.l.b16 %v3993
      %v4130 = vpack.c.b16 %v4115, %v4114
      %v4131 = vpack.c.b16 %v4117, %v4116
      %v4132 = vpack.c.b16 %v4119, %v4118
      %v4133 = vpack.c.b16 %v4121, %v4120
      %v4134 = vpack.c.b16 %v4123, %v4122
      %v4135 = vpack.c.b16 %v4125, %v4124
      %v4136 = vpack.c.b16 %v4127, %v4126
      %v4137 = vpack.c.b16 %v4129, %v4128
      %4146 = vmatprep.subr.bf16.mxu0 0
      %4147 = vmatpush1.bf16.msra.mxu0 %v4130
      %4148 = vmatprep.subr.bf16.mxu0 0
      %4149 = vmatpush1.bf16.msra.mxu0 %v4131
      %4150 = vmatprep.subr.bf16.mxu0 0
      %4151 = vmatpush1.bf16.msra.mxu0 %v4132
      %4152 = vmatprep.subr.bf16.mxu0 0
      %4153 = vmatpush1.bf16.msra.mxu0 %v4133
      %4154 = vmatprep.subr.bf16.mxu0 0
      %4155 = vmatpush1.bf16.msra.mxu0 %v4134
      %4156 = vmatprep.subr.bf16.mxu0 0
      %4157 = vmatpush1.bf16.msra.mxu0 %v4135
      %4158 = vmatprep.subr.bf16.mxu0 0
      %4159 = vmatpush1.bf16.msra.mxu0 %v4136
      %4160 = vmatprep.subr.bf16.mxu0 0
      %4161 = vmatpush1.bf16.msra.mxu0 %v4137
      %4162 = vmatprep.subr.bf16.mxu0 0
      %4163 = vmatpush1.bf16.msra.mxu0 0
      %4164 = vmatprep.subr.bf16.mxu0 0
      %4165 = vmatpush1.bf16.msra.mxu0 0
      %4166 = vmatprep.subr.bf16.mxu0 0
      %4167 = vmatpush1.bf16.msra.mxu0 0
      %4168 = vmatprep.subr.bf16.mxu0 0
      %4169 = vmatpush1.bf16.msra.mxu0 0
      %4170 = vmatprep.subr.bf16.mxu0 0
      %4171 = vmatpush1.bf16.msra.mxu0 0
      %4172 = vmatprep.subr.bf16.mxu0 0
      %4173 = vmatpush1.bf16.msra.mxu0 0
      %4174 = vmatprep.subr.bf16.mxu0 0
      %4175 = vmatpush1.bf16.msra.mxu0 0
      %4176 = vmatprep.subr.bf16.mxu0 0
      %4177 = vmatpush1.bf16.msra.mxu0 0
      %4178 = vmatprep.mubr.bf16.mxu0 0
      %4179 = vmatmul.mubr.bf16.gmra.mrb[0].mxu0 %v4045
      %v4180 = vpop.f32.mrb[0].mxu0
      %v4181 = vadd.f32 0.0, %v4180
      %v4182 = vpop.f32.mrb[0].mxu0
      %v4183 = vpop.f32.mrb[0].mxu0
      %v4184 = vadd.f32 0.0, %v4183
      %v4185 = vpop.f32.mrb[0].mxu0
      %4186 = vmatprep.mubr.bf16.mxu0 0
      %4187 = vmatmul.mubr.bf16.gmra.mrb[0].mxu0 %v4054
      %v4188 = vpop.f32.mrb[0].mxu0
      %v4189 = vadd.f32 0.0, %v4188
      %v4190 = vpop.f32.mrb[0].mxu0
      %v4191 = vpop.f32.mrb[0].mxu0
      %v4192 = vadd.f32 0.0, %v4191
      %v4193 = vpop.f32.mrb[0].mxu0
      %4194 = vmatprep.mubr.bf16.mxu0 0
      %4195 = vmatmul.mubr.bf16.gmra.mrb[0].mxu0 %v4063
      %v4196 = vpop.f32.mrb[0].mxu0
      %v4197 = vadd.f32 0.0, %v4196
      %v4198 = vpop.f32.mrb[0].mxu0
      %v4199 = vpop.f32.mrb[0].mxu0
      %v4200 = vadd.f32 0.0, %v4199
      %v4201 = vpop.f32.mrb[0].mxu0
      %4202 = vmatprep.mubr.bf16.mxu0 0
      %4203 = vmatmul.mubr.bf16.gmra.mrb[0].mxu0 %v4072
      %v4204 = vpop.f32.mrb[0].mxu0
      %v4205 = vadd.f32 0.0, %v4204
      %v4206 = vpop.f32.mrb[0].mxu0
      %v4207 = vpop.f32.mrb[0].mxu0
      %v4208 = vadd.f32 0.0, %v4207
      %v4209 = vpop.f32.mrb[0].mxu0
      %4210 = vmatprep.mubr.bf16.mxu0 0
      %4211 = vmatmul.mubr.bf16.gmra.mrb[0].mxu0 %v4081
      %v4212 = vpop.f32.mrb[0].mxu0
      %v4213 = vadd.f32 0.0, %v4212
      %v4214 = vpop.f32.mrb[0].mxu0
      %v4215 = vpop.f32.mrb[0].mxu0
      %v4216 = vadd.f32 0.0, %v4215
      %v4217 = vpop.f32.mrb[0].mxu0
      %4218 = vmatprep.mubr.bf16.mxu0 0
      %4219 = vmatmul.mubr.bf16.gmra.mrb[0].mxu0 %v4090
      %v4220 = vpop.f32.mrb[0].mxu0
      %v4221 = vadd.f32 0.0, %v4220
      %v4222 = vpop.f32.mrb[0].mxu0
      %v4223 = vpop.f32.mrb[0].mxu0
      %v4224 = vadd.f32 0.0, %v4223
      %v4225 = vpop.f32.mrb[0].mxu0
      %4226 = vmatprep.mubr.bf16.mxu0 0
      %4227 = vmatmul.mubr.bf16.gmra.mrb[0].mxu0 %v4089
      %v4228 = vpop.f32.mrb[0].mxu0
      %v4229 = vadd.f32 0.0, %v4228
      %v4230 = vpop.f32.mrb[0].mxu0
      %v4231 = vpop.f32.mrb[0].mxu0
      %v4232 = vpop.f32.mrb[0].mxu0
      %4233 = vdwg.mxu0
      %v4234 = vadd.f32 %v3950, %v4181
      %v4235 = vadd.f32 %v3951, %v4184
      %v4236 = vadd.f32 %v3952, %v4189
      %v4237 = vadd.f32 %v3953, %v4192
      %v4238 = vadd.f32 %v3954, %v4197
      %v4239 = vadd.f32 %v3955, %v4200
      %v4240 = vadd.f32 %v3956, %v4205
      %v4241 = vadd.f32 %v3957, %v4208
      %v4242 = vadd.f32 %v3958, %v4213
      %v4243 = vadd.f32 %v3959, %v4216
      %v4244 = vadd.f32 %v3960, %v4221
      %v4245 = vadd.f32 %v3961, %v4224
      %v4246 = vadd.f32 %v3962, %v4229
      %v4247 = vld [vmem:[%s406 + $0x8] sm:$0x8]
      %s4248 = scalar_lea.vmem %s3, 1088
      %v4249 = vld [vmem:[%s4248] sm:$0xf]
      %v4250 = vld [vmem:[%s4248 + $0x4] sm:$0xf]
      %v4251 = vld [vmem:[%s4248 + $0x8] sm:$0xf]
      %v4252 = vld [vmem:[%s4248 + $0xc] sm:$0xf]
      %v4253 = vld [vmem:[%s4248 + $0x10] sm:$0xf]
      %v4254 = vld [vmem:[%s4248 + $0x14] sm:$0xf]
      %v4255 = vld [vmem:[%s4248 + $0x18] sm:$0xf]
      %v4256 = vld [vmem:[%s4248 + $0x1c] sm:$0xf]
      %v4257 = vld [vmem:[%s4248 + $0x20] sm:$0xf]
      %v4258 = vld [vmem:[%s4248 + $0x24] sm:$0xf]
      %v4259 = vld [vmem:[%s4248 + $0x28] sm:$0xf]
      %v4260 = vld [vmem:[%s4248 + $0x2c] sm:$0xf]
      %v4261 = vld [vmem:[%s4248 + $0x30] sm:$0xf]
      %v4262 = vld [vmem:[%s4248 + $0x34] sm:$0xf]
      %v4263 = vld [vmem:[%s4248 + $0x38] sm:$0xf]
      %v4264 = vld [vmem:[%s4248 + $0x3c] sm:$0xf]
      %v4266 = vunpack.c.l.b16 %v4247
      %v4267 = vpack.c.b16 %v4009, %v4266
      %v4268 = vrot.slane %v4267, 3
      %v4269 = vrot.slane %v4023, 3
      %v4270 = vsel %vm2259, %v4268, %v4269
      %v4271 = vrot.slane %v4024, 3
      %v4272 = vsel %vm2259, %v4269, %v4271
      %v4273 = vrot.slane %v4025, 3
      %v4274 = vsel %vm2259, %v4271, %v4273
      %v4275 = vrot.slane %v4026, 3
      %v4276 = vsel %vm2259, %v4273, %v4275
      %v4277 = vrot.slane %v4027, 3
      %v4278 = vsel %vm2259, %v4275, %v4277
      %v4279 = vrot.slane %v4028, 3
      %v4280 = vsel %vm2259, %v4277, %v4279
      %v4304 = vunpack.c.l.b16 %v4249
      %v4305 = vunpack.c.l.b16 %v4250
      %v4306 = vunpack.c.l.b16 %v4251
      %v4307 = vunpack.c.l.b16 %v4252
      %v4308 = vunpack.c.l.b16 %v4253
      %v4309 = vunpack.c.l.b16 %v4254
      %v4310 = vunpack.c.l.b16 %v4255
      %v4311 = vunpack.c.l.b16 %v4256
      %v4312 = vunpack.c.l.b16 %v4257
      %v4313 = vunpack.c.l.b16 %v4258
      %v4314 = vunpack.c.l.b16 %v4259
      %v4315 = vunpack.c.l.b16 %v4260
      %v4316 = vunpack.c.l.b16 %v4261
      %v4317 = vunpack.c.l.b16 %v4262
      %v4318 = vunpack.c.l.b16 %v4263
      %v4319 = vunpack.c.l.b16 %v4264
      %v4320 = vpack.c.b16 %v4305, %v4304
      %v4321 = vpack.c.b16 %v4307, %v4306
      %v4322 = vpack.c.b16 %v4309, %v4308
      %v4323 = vpack.c.b16 %v4311, %v4310
      %v4324 = vpack.c.b16 %v4313, %v4312
      %v4325 = vpack.c.b16 %v4315, %v4314
      %v4326 = vpack.c.b16 %v4317, %v4316
      %v4327 = vpack.c.b16 %v4319, %v4318
      %4336 = vmatprep.subr.bf16.mxu0 0
      %4337 = vmatpush1.bf16.msra.mxu0 %v4320
      %4338 = vmatprep.subr.bf16.mxu0 0
      %4339 = vmatpush1.bf16.msra.mxu0 %v4321
      %4340 = vmatprep.subr.bf16.mxu0 0
      %4341 = vmatpush1.bf16.msra.mxu0 %v4322
      %4342 = vmatprep.subr.bf16.mxu0 0
      %4343 = vmatpush1.bf16.msra.mxu0 %v4323
      %4344 = vmatprep.subr.bf16.mxu0 0
      %4345 = vmatpush1.bf16.msra.mxu0 %v4324
      %4346 = vmatprep.subr.bf16.mxu0 0
      %4347 = vmatpush1.bf16.msra.mxu0 %v4325
      %4348 = vmatprep.subr.bf16.mxu0 0
      %4349 = vmatpush1.bf16.msra.mxu0 %v4326
      %4350 = vmatprep.subr.bf16.mxu0 0
      %4351 = vmatpush1.bf16.msra.mxu0 %v4327
      %4352 = vmatprep.subr.bf16.mxu0 0
      %4353 = vmatpush1.bf16.msra.mxu0 0
      %4354 = vmatprep.subr.bf16.mxu0 0
      %4355 = vmatpush1.bf16.msra.mxu0 0
      %4356 = vmatprep.subr.bf16.mxu0 0
      %4357 = vmatpush1.bf16.msra.mxu0 0
      %4358 = vmatprep.subr.bf16.mxu0 0
      %4359 = vmatpush1.bf16.msra.mxu0 0
      %4360 = vmatprep.subr.bf16.mxu0 0
      %4361 = vmatpush1.bf16.msra.mxu0 0
      %4362 = vmatprep.subr.bf16.mxu0 0
      %4363 = vmatpush1.bf16.msra.mxu0 0
      %4364 = vmatprep.subr.bf16.mxu0 0
      %4365 = vmatpush1.bf16.msra.mxu0 0
      %4366 = vmatprep.subr.bf16.mxu0 0
      %4367 = vmatpush1.bf16.msra.mxu0 0
      %4368 = vmatprep.mubr.bf16.mxu0 0
      %4369 = vmatmul.mubr.bf16.gmra.mrb[0].mxu0 %v4270
      %v4370 = vpop.f32.mrb[0].mxu0
      %v4371 = vadd.f32 0.0, %v4370
      %v4372 = vpop.f32.mrb[0].mxu0
      %v4373 = vpop.f32.mrb[0].mxu0
      %v4374 = vadd.f32 0.0, %v4373
      %v4375 = vpop.f32.mrb[0].mxu0
      %4376 = vmatprep.mubr.bf16.mxu0 0
      %4377 = vmatmul.mubr.bf16.gmra.mrb[0].mxu0 %v4272
      %v4378 = vpop.f32.mrb[0].mxu0
      %v4379 = vadd.f32 0.0, %v4378
      %v4380 = vpop.f32.mrb[0].mxu0
      %v4381 = vpop.f32.mrb[0].mxu0
      %v4382 = vadd.f32 0.0, %v4381
      %v4383 = vpop.f32.mrb[0].mxu0
      %4384 = vmatprep.mubr.bf16.mxu0 0
      %4385 = vmatmul.mubr.bf16.gmra.mrb[0].mxu0 %v4274
      %v4386 = vpop.f32.mrb[0].mxu0
      %v4387 = vadd.f32 0.0, %v4386
      %v4388 = vpop.f32.mrb[0].mxu0
      %v4389 = vpop.f32.mrb[0].mxu0
      %v4390 = vadd.f32 0.0, %v4389
      %v4391 = vpop.f32.mrb[0].mxu0
      %4392 = vmatprep.mubr.bf16.mxu0 0
      %4393 = vmatmul.mubr.bf16.gmra.mrb[0].mxu0 %v4276
      %v4394 = vpop.f32.mrb[0].mxu0
      %v4395 = vadd.f32 0.0, %v4394
      %v4396 = vpop.f32.mrb[0].mxu0
      %v4397 = vpop.f32.mrb[0].mxu0
      %v4398 = vadd.f32 0.0, %v4397
      %v4399 = vpop.f32.mrb[0].mxu0
      %4400 = vmatprep.mubr.bf16.mxu0 0
      %4401 = vmatmul.mubr.bf16.gmra.mrb[0].mxu0 %v4278
      %v4402 = vpop.f32.mrb[0].mxu0
      %v4403 = vadd.f32 0.0, %v4402
      %v4404 = vpop.f32.mrb[0].mxu0
      %v4405 = vpop.f32.mrb[0].mxu0
      %v4406 = vadd.f32 0.0, %v4405
      %v4407 = vpop.f32.mrb[0].mxu0
      %4408 = vmatprep.mubr.bf16.mxu0 0
      %4409 = vmatmul.mubr.bf16.gmra.mrb[0].mxu0 %v4280
      %v4410 = vpop.f32.mrb[0].mxu0
      %v4411 = vadd.f32 0.0, %v4410
      %v4412 = vpop.f32.mrb[0].mxu0
      %v4413 = vpop.f32.mrb[0].mxu0
      %v4414 = vadd.f32 0.0, %v4413
      %v4415 = vpop.f32.mrb[0].mxu0
      %4416 = vmatprep.mubr.bf16.mxu0 0
      %4417 = vmatmul.mubr.bf16.gmra.mrb[0].mxu0 %v4279
      %v4418 = vpop.f32.mrb[0].mxu0
      %v4419 = vadd.f32 0.0, %v4418
      %v4420 = vpop.f32.mrb[0].mxu0
      %v4421 = vpop.f32.mrb[0].mxu0
      %v4422 = vpop.f32.mrb[0].mxu0
      %4423 = vdwg.mxu0
      %v4424 = vadd.f32 %v4234, %v4371
      %v4425 = vadd.f32 %v4235, %v4374
      %v4426 = vadd.f32 %v4236, %v4379
      %v4427 = vadd.f32 %v4237, %v4382
      %v4428 = vadd.f32 %v4238, %v4387
      %v4429 = vadd.f32 %v4239, %v4390
      %v4430 = vadd.f32 %v4240, %v4395
      %v4431 = vadd.f32 %v4241, %v4398
      %v4432 = vadd.f32 %v4242, %v4403
      %v4433 = vadd.f32 %v4243, %v4406
      %v4434 = vadd.f32 %v4244, %v4411
      %v4435 = vadd.f32 %v4245, %v4414
      %v4436 = vadd.f32 %v4246, %v4419
      %v4437 = vld [vmem:[%s417] sm:$0xf]
      %v4438 = vld [vmem:[%s417 + $0x4] sm:$0xf]
      %v4439 = vld [vmem:[%s417 + $0x8] sm:$0xf]
      %v4440 = vld [vmem:[%s417 + $0xc] sm:$0xf]
      %v4441 = vld [vmem:[%s417 + $0x10] sm:$0xf]
      %v4442 = vld [vmem:[%s417 + $0x14] sm:$0xf]
      %v4443 = vld [vmem:[%s417 + $0x18] sm:$0xf]
      %v4444 = vld [vmem:[%s417 + $0x1c] sm:$0xf]
      %v4445 = vld [vmem:[%s417 + $0x20] sm:$0xf]
      %v4446 = vld [vmem:[%s417 + $0x24] sm:$0xf]
      %v4447 = vld [vmem:[%s417 + $0x28] sm:$0xf]
      %v4448 = vld [vmem:[%s417 + $0x2c] sm:$0xf]
      %v4449 = vld [vmem:[%s417 + $0x30] sm:$0x3]
      %s4450 = scalar_lea.vmem %s3, 1152
      %v4451 = vld [vmem:[%s4450] sm:$0xf]
      %v4452 = vld [vmem:[%s4450 + $0x4] sm:$0xf]
      %v4453 = vld [vmem:[%s4450 + $0x8] sm:$0xf]
      %v4454 = vld [vmem:[%s4450 + $0xc] sm:$0xf]
      %v4455 = vld [vmem:[%s4450 + $0x10] sm:$0xf]
      %v4456 = vld [vmem:[%s4450 + $0x14] sm:$0xf]
      %v4457 = vld [vmem:[%s4450 + $0x18] sm:$0xf]
      %v4458 = vld [vmem:[%s4450 + $0x1c] sm:$0xf]
      %v4459 = vld [vmem:[%s4450 + $0x20] sm:$0xf]
      %v4460 = vld [vmem:[%s4450 + $0x24] sm:$0xf]
      %v4461 = vld [vmem:[%s4450 + $0x28] sm:$0xf]
      %v4462 = vld [vmem:[%s4450 + $0x2c] sm:$0xf]
      %v4463 = vld [vmem:[%s4450 + $0x30] sm:$0xf]
      %v4464 = vld [vmem:[%s4450 + $0x34] sm:$0xf]
      %v4465 = vld [vmem:[%s4450 + $0x38] sm:$0xf]
      %v4466 = vld [vmem:[%s4450 + $0x3c] sm:$0xf]
      %v4480 = vunpack.c.l.b16 %v4437
      %v4481 = vunpack.c.l.b16 %v4438
      %v4482 = vunpack.c.l.b16 %v4439
      %v4483 = vunpack.c.l.b16 %v4440
      %v4484 = vunpack.c.l.b16 %v4441
      %v4485 = vunpack.c.l.b16 %v4442
      %v4486 = vunpack.c.l.b16 %v4443
      %v4487 = vunpack.c.l.b16 %v4444
      %v4488 = vunpack.c.l.b16 %v4445
      %v4489 = vunpack.c.l.b16 %v4446
      %v4490 = vunpack.c.l.b16 %v4447
      %v4491 = vunpack.c.l.b16 %v4448
      %v4492 = vunpack.c.l.b16 %v4449
      %v4493 = vpack.c.b16 %v4481, %v4480
      %v4494 = vpack.c.b16 %v4483, %v4482
      %v4495 = vpack.c.b16 %v4485, %v4484
      %v4496 = vpack.c.b16 %v4487, %v4486
      %v4497 = vpack.c.b16 %v4489, %v4488
      %v4498 = vpack.c.b16 %v4491, %v4490
      %v4499 = vpack.c.b16 %v4492, %v4492
      %v4523 = vunpack.c.l.b16 %v4451
      %v4524 = vunpack.c.l.b16 %v4452
      %v4525 = vunpack.c.l.b16 %v4453
      %v4526 = vunpack.c.l.b16 %v4454
      %v4527 = vunpack.c.l.b16 %v4455
      %v4528 = vunpack.c.l.b16 %v4456
      %v4529 = vunpack.c.l.b16 %v4457
      %v4530 = vunpack.c.l.b16 %v4458
      %v4531 = vunpack.c.l.b16 %v4459
      %v4532 = vunpack.c.l.b16 %v4460
      %v4533 = vunpack.c.l.b16 %v4461
      %v4534 = vunpack.c.l.b16 %v4462
      %v4535 = vunpack.c.l.b16 %v4463
      %v4536 = vunpack.c.l.b16 %v4464
      %v4537 = vunpack.c.l.b16 %v4465
      %v4538 = vunpack.c.l.b16 %v4466
      %v4539 = vpack.c.b16 %v4524, %v4523
      %v4540 = vpack.c.b16 %v4526, %v4525
      %v4541 = vpack.c.b16 %v4528, %v4527
      %v4542 = vpack.c.b16 %v4530, %v4529
      %v4543 = vpack.c.b16 %v4532, %v4531
      %v4544 = vpack.c.b16 %v4534, %v4533
      %v4545 = vpack.c.b16 %v4536, %v4535
      %v4546 = vpack.c.b16 %v4538, %v4537
      %4555 = vmatprep.subr.bf16.mxu0 0
      %4556 = vmatpush1.bf16.msra.mxu0 %v4539
      %4557 = vmatprep.subr.bf16.mxu0 0
      %4558 = vmatpush1.bf16.msra.mxu0 %v4540
      %4559 = vmatprep.subr.bf16.mxu0 0
      %4560 = vmatpush1.bf16.msra.mxu0 %v4541
      %4561 = vmatprep.subr.bf16.mxu0 0
      %4562 = vmatpush1.bf16.msra.mxu0 %v4542
      %4563 = vmatprep.subr.bf16.mxu0 0
      %4564 = vmatpush1.bf16.msra.mxu0 %v4543
      %4565 = vmatprep.subr.bf16.mxu0 0
      %4566 = vmatpush1.bf16.msra.mxu0 %v4544
      %4567 = vmatprep.subr.bf16.mxu0 0
      %4568 = vmatpush1.bf16.msra.mxu0 %v4545
      %4569 = vmatprep.subr.bf16.mxu0 0
      %4570 = vmatpush1.bf16.msra.mxu0 %v4546
      %4571 = vmatprep.subr.bf16.mxu0 0
      %4572 = vmatpush1.bf16.msra.mxu0 0
      %4573 = vmatprep.subr.bf16.mxu0 0
      %4574 = vmatpush1.bf16.msra.mxu0 0
      %4575 = vmatprep.subr.bf16.mxu0 0
      %4576 = vmatpush1.bf16.msra.mxu0 0
      %4577 = vmatprep.subr.bf16.mxu0 0
      %4578 = vmatpush1.bf16.msra.mxu0 0
      %4579 = vmatprep.subr.bf16.mxu0 0
      %4580 = vmatpush1.bf16.msra.mxu0 0
      %4581 = vmatprep.subr.bf16.mxu0 0
      %4582 = vmatpush1.bf16.msra.mxu0 0
      %4583 = vmatprep.subr.bf16.mxu0 0
      %4584 = vmatpush1.bf16.msra.mxu0 0
      %4585 = vmatprep.subr.bf16.mxu0 0
      %4586 = vmatpush1.bf16.msra.mxu0 0
      %4587 = vmatprep.mubr.bf16.mxu0 0
      %4588 = vmatmul.mubr.bf16.gmra.mrb[0].mxu0 %v4493
      %v4589 = vpop.f32.mrb[0].mxu0
      %v4590 = vadd.f32 0.0, %v4589
      %v4591 = vpop.f32.mrb[0].mxu0
      %v4592 = vpop.f32.mrb[0].mxu0
      %v4593 = vadd.f32 0.0, %v4592
      %v4594 = vpop.f32.mrb[0].mxu0
      %4595 = vmatprep.mubr.bf16.mxu0 0
      %4596 = vmatmul.mubr.bf16.gmra.mrb[0].mxu0 %v4494
      %v4597 = vpop.f32.mrb[0].mxu0
      %v4598 = vadd.f32 0.0, %v4597
      %v4599 = vpop.f32.mrb[0].mxu0
      %v4600 = vpop.f32.mrb[0].mxu0
      %v4601 = vadd.f32 0.0, %v4600
      %v4602 = vpop.f32.mrb[0].mxu0
      %4603 = vmatprep.mubr.bf16.mxu0 0
      %4604 = vmatmul.mubr.bf16.gmra.mrb[0].mxu0 %v4495
      %v4605 = vpop.f32.mrb[0].mxu0
      %v4606 = vadd.f32 0.0, %v4605
      %v4607 = vpop.f32.mrb[0].mxu0
      %v4608 = vpop.f32.mrb[0].mxu0
      %v4609 = vadd.f32 0.0, %v4608
      %v4610 = vpop.f32.mrb[0].mxu0
      %4611 = vmatprep.mubr.bf16.mxu0 0
      %4612 = vmatmul.mubr.bf16.gmra.mrb[0].mxu0 %v4496
      %v4613 = vpop.f32.mrb[0].mxu0
      %v4614 = vadd.f32 0.0, %v4613
      %v4615 = vpop.f32.mrb[0].mxu0
      %v4616 = vpop.f32.mrb[0].mxu0
      %v4617 = vadd.f32 0.0, %v4616
      %v4618 = vpop.f32.mrb[0].mxu0
      %4619 = vmatprep.mubr.bf16.mxu0 0
      %4620 = vmatmul.mubr.bf16.gmra.mrb[0].mxu0 %v4497
      %v4621 = vpop.f32.mrb[0].mxu0
      %v4622 = vadd.f32 0.0, %v4621
      %v4623 = vpop.f32.mrb[0].mxu0
      %v4624 = vpop.f32.mrb[0].mxu0
      %v4625 = vadd.f32 0.0, %v4624
      %v4626 = vpop.f32.mrb[0].mxu0
      %4627 = vmatprep.mubr.bf16.mxu0 0
      %4628 = vmatmul.mubr.bf16.gmra.mrb[0].mxu0 %v4498
      %v4629 = vpop.f32.mrb[0].mxu0
      %v4630 = vadd.f32 0.0, %v4629
      %v4631 = vpop.f32.mrb[0].mxu0
      %v4632 = vpop.f32.mrb[0].mxu0
      %v4633 = vadd.f32 0.0, %v4632
      %v4634 = vpop.f32.mrb[0].mxu0
      %4635 = vmatprep.mubr.bf16.mxu0 0
      %4636 = vmatmul.mubr.bf16.gmra.mrb[0].mxu0 %v4499
      %v4637 = vpop.f32.mrb[0].mxu0
      %v4638 = vadd.f32 0.0, %v4637
      %v4639 = vpop.f32.mrb[0].mxu0
      %v4640 = vpop.f32.mrb[0].mxu0
      %v4641 = vpop.f32.mrb[0].mxu0
      %4642 = vdwg.mxu0
      %v4643 = vadd.f32 %v4424, %v4590
      %v4644 = vadd.f32 %v4425, %v4593
      %v4645 = vadd.f32 %v4426, %v4598
      %v4646 = vadd.f32 %v4427, %v4601
      %v4647 = vadd.f32 %v4428, %v4606
      %v4648 = vadd.f32 %v4429, %v4609
      %v4649 = vadd.f32 %v4430, %v4614
      %v4650 = vadd.f32 %v4431, %v4617
      %v4651 = vadd.f32 %v4432, %v4622
      %v4652 = vadd.f32 %v4433, %v4625
      %v4653 = vadd.f32 %v4434, %v4630
      %v4654 = vadd.f32 %v4435, %v4633
      %v4655 = vadd.f32 %v4436, %v4638
      %v4656 = vld [vmem:[%s417 + $0x30] sm:$0x7]
      %s4657 = scalar_lea.vmem %s3, 1216
      %v4658 = vld [vmem:[%s4657] sm:$0xf]
      %v4659 = vld [vmem:[%s4657 + $0x4] sm:$0xf]
      %v4660 = vld [vmem:[%s4657 + $0x8] sm:$0xf]
      %v4661 = vld [vmem:[%s4657 + $0xc] sm:$0xf]
      %v4662 = vld [vmem:[%s4657 + $0x10] sm:$0xf]
      %v4663 = vld [vmem:[%s4657 + $0x14] sm:$0xf]
      %v4664 = vld [vmem:[%s4657 + $0x18] sm:$0xf]
      %v4665 = vld [vmem:[%s4657 + $0x1c] sm:$0xf]
      %v4666 = vld [vmem:[%s4657 + $0x20] sm:$0xf]
      %v4667 = vld [vmem:[%s4657 + $0x24] sm:$0xf]
      %v4668 = vld [vmem:[%s4657 + $0x28] sm:$0xf]
      %v4669 = vld [vmem:[%s4657 + $0x2c] sm:$0xf]
      %v4670 = vld [vmem:[%s4657 + $0x30] sm:$0xf]
      %v4671 = vld [vmem:[%s4657 + $0x34] sm:$0xf]
      %v4672 = vld [vmem:[%s4657 + $0x38] sm:$0xf]
      %v4673 = vld [vmem:[%s4657 + $0x3c] sm:$0xf]
      %v4675 = vunpack.c.l.b16 %v4656
      %v4676 = vpack.c.b16 %v4675, %v4675
      %v4678 = vshrl.u32 %v4493, 16
      %v4680 = vshll.u32 %v4493, 16
      %v4682 = vrot.slane %v4680, 1
      %v4683 = vor.u32 %v4678, %v4682
      %v4685 = vshll.u32 %v4494, 16
      %v4687 = vrot.slane %v4685, 1
      %v4688 = vsel %vm522, %v4683, %v4687
      %v4689 = vshrl.u32 %v4494, 16
      %v4691 = vor.u32 %v4689, %v4687
      %v4693 = vshll.u32 %v4495, 16
      %v4695 = vrot.slane %v4693, 1
      %v4696 = vsel %vm522, %v4691, %v4695
      %v4697 = vshrl.u32 %v4495, 16
      %v4699 = vor.u32 %v4697, %v4695
      %v4701 = vshll.u32 %v4496, 16
      %v4703 = vrot.slane %v4701, 1
      %v4704 = vsel %vm522, %v4699, %v4703
      %v4705 = vshrl.u32 %v4496, 16
      %v4707 = vor.u32 %v4705, %v4703
      %v4709 = vshll.u32 %v4497, 16
      %v4711 = vrot.slane %v4709, 1
      %v4712 = vsel %vm522, %v4707, %v4711
      %v4713 = vshrl.u32 %v4497, 16
      %v4715 = vor.u32 %v4713, %v4711
      %v4717 = vshll.u32 %v4498, 16
      %v4719 = vrot.slane %v4717, 1
      %v4720 = vsel %vm522, %v4715, %v4719
      %v4721 = vshrl.u32 %v4498, 16
      %v4723 = vor.u32 %v4721, %v4719
      %v4725 = vshll.u32 %v4676, 16
      %v4727 = vrot.slane %v4725, 1
      %v4728 = vsel %vm522, %v4723, %v4727
      %v4729 = vshrl.u32 %v4676, 16
      %v4731 = vor.u32 %v4729, %v4727
      %v4755 = vunpack.c.l.b16 %v4658
      %v4756 = vunpack.c.l.b16 %v4659
      %v4757 = vunpack.c.l.b16 %v4660
      %v4758 = vunpack.c.l.b16 %v4661
      %v4759 = vunpack.c.l.b16 %v4662
      %v4760 = vunpack.c.l.b16 %v4663
      %v4761 = vunpack.c.l.b16 %v4664
      %v4762 = vunpack.c.l.b16 %v4665
      %v4763 = vunpack.c.l.b16 %v4666
      %v4764 = vunpack.c.l.b16 %v4667
      %v4765 = vunpack.c.l.b16 %v4668
      %v4766 = vunpack.c.l.b16 %v4669
      %v4767 = vunpack.c.l.b16 %v4670
      %v4768 = vunpack.c.l.b16 %v4671
      %v4769 = vunpack.c.l.b16 %v4672
      %v4770 = vunpack.c.l.b16 %v4673
      %v4771 = vpack.c.b16 %v4756, %v4755
      %v4772 = vpack.c.b16 %v4758, %v4757
      %v4773 = vpack.c.b16 %v4760, %v4759
      %v4774 = vpack.c.b16 %v4762, %v4761
      %v4775 = vpack.c.b16 %v4764, %v4763
      %v4776 = vpack.c.b16 %v4766, %v4765
      %v4777 = vpack.c.b16 %v4768, %v4767
      %v4778 = vpack.c.b16 %v4770, %v4769
      %4787 = vmatprep.subr.bf16.mxu0 0
      %4788 = vmatpush1.bf16.msra.mxu0 %v4771
      %4789 = vmatprep.subr.bf16.mxu0 0
      %4790 = vmatpush1.bf16.msra.mxu0 %v4772
      %4791 = vmatprep.subr.bf16.mxu0 0
      %4792 = vmatpush1.bf16.msra.mxu0 %v4773
      %4793 = vmatprep.subr.bf16.mxu0 0
      %4794 = vmatpush1.bf16.msra.mxu0 %v4774
      %4795 = vmatprep.subr.bf16.mxu0 0
      %4796 = vmatpush1.bf16.msra.mxu0 %v4775
      %4797 = vmatprep.subr.bf16.mxu0 0
      %4798 = vmatpush1.bf16.msra.mxu0 %v4776
      %4799 = vmatprep.subr.bf16.mxu0 0
      %4800 = vmatpush1.bf16.msra.mxu0 %v4777
      %4801 = vmatprep.subr.bf16.mxu0 0
      %4802 = vmatpush1.bf16.msra.mxu0 %v4778
      %4803 = vmatprep.subr.bf16.mxu0 0
      %4804 = vmatpush1.bf16.msra.mxu0 0
      %4805 = vmatprep.subr.bf16.mxu0 0
      %4806 = vmatpush1.bf16.msra.mxu0 0
      %4807 = vmatprep.subr.bf16.mxu0 0
      %4808 = vmatpush1.bf16.msra.mxu0 0
      %4809 = vmatprep.subr.bf16.mxu0 0
      %4810 = vmatpush1.bf16.msra.mxu0 0
      %4811 = vmatprep.subr.bf16.mxu0 0
      %4812 = vmatpush1.bf16.msra.mxu0 0
      %4813 = vmatprep.subr.bf16.mxu0 0
      %4814 = vmatpush1.bf16.msra.mxu0 0
      %4815 = vmatprep.subr.bf16.mxu0 0
      %4816 = vmatpush1.bf16.msra.mxu0 0
      %4817 = vmatprep.subr.bf16.mxu0 0
      %4818 = vmatpush1.bf16.msra.mxu0 0
      %4819 = vmatprep.mubr.bf16.mxu0 0
      %4820 = vmatmul.mubr.bf16.gmra.mrb[0].mxu0 %v4688
      %v4821 = vpop.f32.mrb[0].mxu0
      %v4822 = vadd.f32 0.0, %v4821
      %v4823 = vpop.f32.mrb[0].mxu0
      %v4824 = vpop.f32.mrb[0].mxu0
      %v4825 = vadd.f32 0.0, %v4824
      %v4826 = vpop.f32.mrb[0].mxu0
      %4827 = vmatprep.mubr.bf16.mxu0 0
      %4828 = vmatmul.mubr.bf16.gmra.mrb[0].mxu0 %v4696
      %v4829 = vpop.f32.mrb[0].mxu0
      %v4830 = vadd.f32 0.0, %v4829
      %v4831 = vpop.f32.mrb[0].mxu0
      %v4832 = vpop.f32.mrb[0].mxu0
      %v4833 = vadd.f32 0.0, %v4832
      %v4834 = vpop.f32.mrb[0].mxu0
      %4835 = vmatprep.mubr.bf16.mxu0 0
      %4836 = vmatmul.mubr.bf16.gmra.mrb[0].mxu0 %v4704
      %v4837 = vpop.f32.mrb[0].mxu0
      %v4838 = vadd.f32 0.0, %v4837
      %v4839 = vpop.f32.mrb[0].mxu0
      %v4840 = vpop.f32.mrb[0].mxu0
      %v4841 = vadd.f32 0.0, %v4840
      %v4842 = vpop.f32.mrb[0].mxu0
      %4843 = vmatprep.mubr.bf16.mxu0 0
      %4844 = vmatmul.mubr.bf16.gmra.mrb[0].mxu0 %v4712
      %v4845 = vpop.f32.mrb[0].mxu0
      %v4846 = vadd.f32 0.0, %v4845
      %v4847 = vpop.f32.mrb[0].mxu0
      %v4848 = vpop.f32.mrb[0].mxu0
      %v4849 = vadd.f32 0.0, %v4848
      %v4850 = vpop.f32.mrb[0].mxu0
      %4851 = vmatprep.mubr.bf16.mxu0 0
      %4852 = vmatmul.mubr.bf16.gmra.mrb[0].mxu0 %v4720
      %v4853 = vpop.f32.mrb[0].mxu0
      %v4854 = vadd.f32 0.0, %v4853
      %v4855 = vpop.f32.mrb[0].mxu0
      %v4856 = vpop.f32.mrb[0].mxu0
      %v4857 = vadd.f32 0.0, %v4856
      %v4858 = vpop.f32.mrb[0].mxu0
      %4859 = vmatprep.mubr.bf16.mxu0 0
      %4860 = vmatmul.mubr.bf16.gmra.mrb[0].mxu0 %v4728
      %v4861 = vpop.f32.mrb[0].mxu0
      %v4862 = vadd.f32 0.0, %v4861
      %v4863 = vpop.f32.mrb[0].mxu0
      %v4864 = vpop.f32.mrb[0].mxu0
      %v4865 = vadd.f32 0.0, %v4864
      %v4866 = vpop.f32.mrb[0].mxu0
      %4867 = vmatprep.mubr.bf16.mxu0 0
      %4868 = vmatmul.mubr.bf16.gmra.mrb[0].mxu0 %v4731
      %v4869 = vpop.f32.mrb[0].mxu0
      %v4870 = vadd.f32 0.0, %v4869
      %v4871 = vpop.f32.mrb[0].mxu0
      %v4872 = vpop.f32.mrb[0].mxu0
      %v4873 = vpop.f32.mrb[0].mxu0
      %4874 = vdwg.mxu0
      %v4875 = vadd.f32 %v4643, %v4822
      %v4876 = vadd.f32 %v4644, %v4825
      %v4877 = vadd.f32 %v4645, %v4830
      %v4878 = vadd.f32 %v4646, %v4833
      %v4879 = vadd.f32 %v4647, %v4838
      %v4880 = vadd.f32 %v4648, %v4841
      %v4881 = vadd.f32 %v4649, %v4846
      %v4882 = vadd.f32 %v4650, %v4849
      %v4883 = vadd.f32 %v4651, %v4854
      %v4884 = vadd.f32 %v4652, %v4857
      %v4885 = vadd.f32 %v4653, %v4862
      %v4886 = vadd.f32 %v4654, %v4865
      %v4887 = vadd.f32 %v4655, %v4870
      %v4888 = vld [vmem:[%s417] sm:$0xe]
      %s4889 = scalar_lea.vmem %s3, 1280
      %v4890 = vld [vmem:[%s4889] sm:$0xf]
      %v4891 = vld [vmem:[%s4889 + $0x4] sm:$0xf]
      %v4892 = vld [vmem:[%s4889 + $0x8] sm:$0xf]
      %v4893 = vld [vmem:[%s4889 + $0xc] sm:$0xf]
      %v4894 = vld [vmem:[%s4889 + $0x10] sm:$0xf]
      %v4895 = vld [vmem:[%s4889 + $0x14] sm:$0xf]
      %v4896 = vld [vmem:[%s4889 + $0x18] sm:$0xf]
      %v4897 = vld [vmem:[%s4889 + $0x1c] sm:$0xf]
      %v4898 = vld [vmem:[%s4889 + $0x20] sm:$0xf]
      %v4899 = vld [vmem:[%s4889 + $0x24] sm:$0xf]
      %v4900 = vld [vmem:[%s4889 + $0x28] sm:$0xf]
      %v4901 = vld [vmem:[%s4889 + $0x2c] sm:$0xf]
      %v4902 = vld [vmem:[%s4889 + $0x30] sm:$0xf]
      %v4903 = vld [vmem:[%s4889 + $0x34] sm:$0xf]
      %v4904 = vld [vmem:[%s4889 + $0x38] sm:$0xf]
      %v4905 = vld [vmem:[%s4889 + $0x3c] sm:$0xf]
      %v4907 = vunpack.c.l.b16 %v4888
      %v4908 = vpack.c.b16 %v4481, %v4907
      %v4909 = vrot.slane %v4908, 1
      %v4910 = vrot.slane %v4494, 1
      %v4911 = vsel %vm888, %v4909, %v4910
      %v4912 = vrot.slane %v4495, 1
      %v4913 = vsel %vm888, %v4910, %v4912
      %v4914 = vrot.slane %v4496, 1
      %v4915 = vsel %vm888, %v4912, %v4914
      %v4916 = vrot.slane %v4497, 1
      %v4917 = vsel %vm888, %v4914, %v4916
      %v4918 = vrot.slane %v4498, 1
      %v4919 = vsel %vm888, %v4916, %v4918
      %v4920 = vrot.slane %v4676, 1
      %v4921 = vsel %vm888, %v4918, %v4920
      %v4945 = vunpack.c.l.b16 %v4890
      %v4946 = vunpack.c.l.b16 %v4891
      %v4947 = vunpack.c.l.b16 %v4892
      %v4948 = vunpack.c.l.b16 %v4893
      %v4949 = vunpack.c.l.b16 %v4894
      %v4950 = vunpack.c.l.b16 %v4895
      %v4951 = vunpack.c.l.b16 %v4896
      %v4952 = vunpack.c.l.b16 %v4897
      %v4953 = vunpack.c.l.b16 %v4898
      %v4954 = vunpack.c.l.b16 %v4899
      %v4955 = vunpack.c.l.b16 %v4900
      %v4956 = vunpack.c.l.b16 %v4901
      %v4957 = vunpack.c.l.b16 %v4902
      %v4958 = vunpack.c.l.b16 %v4903
      %v4959 = vunpack.c.l.b16 %v4904
      %v4960 = vunpack.c.l.b16 %v4905
      %v4961 = vpack.c.b16 %v4946, %v4945
      %v4962 = vpack.c.b16 %v4948, %v4947
      %v4963 = vpack.c.b16 %v4950, %v4949
      %v4964 = vpack.c.b16 %v4952, %v4951
      %v4965 = vpack.c.b16 %v4954, %v4953
      %v4966 = vpack.c.b16 %v4956, %v4955
      %v4967 = vpack.c.b16 %v4958, %v4957
      %v4968 = vpack.c.b16 %v4960, %v4959
      %4977 = vmatprep.subr.bf16.mxu0 0
      %4978 = vmatpush1.bf16.msra.mxu0 %v4961
      %4979 = vmatprep.subr.bf16.mxu0 0
      %4980 = vmatpush1.bf16.msra.mxu0 %v4962
      %4981 = vmatprep.subr.bf16.mxu0 0
      %4982 = vmatpush1.bf16.msra.mxu0 %v4963
      %4983 = vmatprep.subr.bf16.mxu0 0
      %4984 = vmatpush1.bf16.msra.mxu0 %v4964
      %4985 = vmatprep.subr.bf16.mxu0 0
      %4986 = vmatpush1.bf16.msra.mxu0 %v4965
      %4987 = vmatprep.subr.bf16.mxu0 0
      %4988 = vmatpush1.bf16.msra.mxu0 %v4966
      %4989 = vmatprep.subr.bf16.mxu0 0
      %4990 = vmatpush1.bf16.msra.mxu0 %v4967
      %4991 = vmatprep.subr.bf16.mxu0 0
      %4992 = vmatpush1.bf16.msra.mxu0 %v4968
      %4993 = vmatprep.subr.bf16.mxu0 0
      %4994 = vmatpush1.bf16.msra.mxu0 0
      %4995 = vmatprep.subr.bf16.mxu0 0
      %4996 = vmatpush1.bf16.msra.mxu0 0
      %4997 = vmatprep.subr.bf16.mxu0 0
      %4998 = vmatpush1.bf16.msra.mxu0 0
      %4999 = vmatprep.subr.bf16.mxu0 0
      %5000 = vmatpush1.bf16.msra.mxu0 0
      %5001 = vmatprep.subr.bf16.mxu0 0
      %5002 = vmatpush1.bf16.msra.mxu0 0
      %5003 = vmatprep.subr.bf16.mxu0 0
      %5004 = vmatpush1.bf16.msra.mxu0 0
      %5005 = vmatprep.subr.bf16.mxu0 0
      %5006 = vmatpush1.bf16.msra.mxu0 0
      %5007 = vmatprep.subr.bf16.mxu0 0
      %5008 = vmatpush1.bf16.msra.mxu0 0
      %5009 = vmatprep.mubr.bf16.mxu0 0
      %5010 = vmatmul.mubr.bf16.gmra.mrb[0].mxu0 %v4911
      %v5011 = vpop.f32.mrb[0].mxu0
      %v5012 = vadd.f32 0.0, %v5011
      %v5013 = vpop.f32.mrb[0].mxu0
      %v5014 = vpop.f32.mrb[0].mxu0
      %v5015 = vadd.f32 0.0, %v5014
      %v5016 = vpop.f32.mrb[0].mxu0
      %5017 = vmatprep.mubr.bf16.mxu0 0
      %5018 = vmatmul.mubr.bf16.gmra.mrb[0].mxu0 %v4913
      %v5019 = vpop.f32.mrb[0].mxu0
      %v5020 = vadd.f32 0.0, %v5019
      %v5021 = vpop.f32.mrb[0].mxu0
      %v5022 = vpop.f32.mrb[0].mxu0
      %v5023 = vadd.f32 0.0, %v5022
      %v5024 = vpop.f32.mrb[0].mxu0
      %5025 = vmatprep.mubr.bf16.mxu0 0
      %5026 = vmatmul.mubr.bf16.gmra.mrb[0].mxu0 %v4915
      %v5027 = vpop.f32.mrb[0].mxu0
      %v5028 = vadd.f32 0.0, %v5027
      %v5029 = vpop.f32.mrb[0].mxu0
      %v5030 = vpop.f32.mrb[0].mxu0
      %v5031 = vadd.f32 0.0, %v5030
      %v5032 = vpop.f32.mrb[0].mxu0
      %5033 = vmatprep.mubr.bf16.mxu0 0
      %5034 = vmatmul.mubr.bf16.gmra.mrb[0].mxu0 %v4917
      %v5035 = vpop.f32.mrb[0].mxu0
      %v5036 = vadd.f32 0.0, %v5035
      %v5037 = vpop.f32.mrb[0].mxu0
      %v5038 = vpop.f32.mrb[0].mxu0
      %v5039 = vadd.f32 0.0, %v5038
      %v5040 = vpop.f32.mrb[0].mxu0
      %5041 = vmatprep.mubr.bf16.mxu0 0
      %5042 = vmatmul.mubr.bf16.gmra.mrb[0].mxu0 %v4919
      %v5043 = vpop.f32.mrb[0].mxu0
      %v5044 = vadd.f32 0.0, %v5043
      %v5045 = vpop.f32.mrb[0].mxu0
      %v5046 = vpop.f32.mrb[0].mxu0
      %v5047 = vadd.f32 0.0, %v5046
      %v5048 = vpop.f32.mrb[0].mxu0
      %5049 = vmatprep.mubr.bf16.mxu0 0
      %5050 = vmatmul.mubr.bf16.gmra.mrb[0].mxu0 %v4921
      %v5051 = vpop.f32.mrb[0].mxu0
      %v5052 = vadd.f32 0.0, %v5051
      %v5053 = vpop.f32.mrb[0].mxu0
      %v5054 = vpop.f32.mrb[0].mxu0
      %v5055 = vadd.f32 0.0, %v5054
      %v5056 = vpop.f32.mrb[0].mxu0
      %5057 = vmatprep.mubr.bf16.mxu0 0
      %5058 = vmatmul.mubr.bf16.gmra.mrb[0].mxu0 %v4920
      %v5059 = vpop.f32.mrb[0].mxu0
      %v5060 = vadd.f32 0.0, %v5059
      %v5061 = vpop.f32.mrb[0].mxu0
      %v5062 = vpop.f32.mrb[0].mxu0
      %v5063 = vpop.f32.mrb[0].mxu0
      %5064 = vdwg.mxu0
      %v5065 = vadd.f32 %v4875, %v5012
      %v5066 = vadd.f32 %v4876, %v5015
      %v5067 = vadd.f32 %v4877, %v5020
      %v5068 = vadd.f32 %v4878, %v5023
      %v5069 = vadd.f32 %v4879, %v5028
      %v5070 = vadd.f32 %v4880, %v5031
      %v5071 = vadd.f32 %v4881, %v5036
      %v5072 = vadd.f32 %v4882, %v5039
      %v5073 = vadd.f32 %v4883, %v5044
      %v5074 = vadd.f32 %v4884, %v5047
      %v5075 = vadd.f32 %v4885, %v5052
      %v5076 = vadd.f32 %v4886, %v5055
      %v5077 = vadd.f32 %v4887, %v5060
      %v5078 = vld [vmem:[%s417 + $0x4] sm:$0xe]
      %v5079 = vld [vmem:[%s417 + $0x8] sm:$0xf]
      %v5080 = vld [vmem:[%s417 + $0xc] sm:$0xf]
      %v5081 = vld [vmem:[%s417 + $0x10] sm:$0xf]
      %v5082 = vld [vmem:[%s417 + $0x14] sm:$0xf]
      %v5083 = vld [vmem:[%s417 + $0x18] sm:$0xf]
      %v5084 = vld [vmem:[%s417 + $0x1c] sm:$0xf]
      %v5085 = vld [vmem:[%s417 + $0x20] sm:$0xf]
      %v5086 = vld [vmem:[%s417 + $0x24] sm:$0xf]
      %v5087 = vld [vmem:[%s417 + $0x28] sm:$0xf]
      %v5088 = vld [vmem:[%s417 + $0x2c] sm:$0xf]
      %v5089 = vld [vmem:[%s417 + $0x30] sm:$0xf]
      %v5090 = vld [vmem:[%s417 + $0x34] sm:$0x7]
      %s5091 = scalar_lea.vmem %s3, 1344
      %v5092 = vld [vmem:[%s5091] sm:$0xf]
      %v5093 = vld [vmem:[%s5091 + $0x4] sm:$0xf]
      %v5094 = vld [vmem:[%s5091 + $0x8] sm:$0xf]
      %v5095 = vld [vmem:[%s5091 + $0xc] sm:$0xf]
      %v5096 = vld [vmem:[%s5091 + $0x10] sm:$0xf]
      %v5097 = vld [vmem:[%s5091 + $0x14] sm:$0xf]
      %v5098 = vld [vmem:[%s5091 + $0x18] sm:$0xf]
      %v5099 = vld [vmem:[%s5091 + $0x1c] sm:$0xf]
      %v5100 = vld [vmem:[%s5091 + $0x20] sm:$0xf]
      %v5101 = vld [vmem:[%s5091 + $0x24] sm:$0xf]
      %v5102 = vld [vmem:[%s5091 + $0x28] sm:$0xf]
      %v5103 = vld [vmem:[%s5091 + $0x2c] sm:$0xf]
      %v5104 = vld [vmem:[%s5091 + $0x30] sm:$0xf]
      %v5105 = vld [vmem:[%s5091 + $0x34] sm:$0xf]
      %v5106 = vld [vmem:[%s5091 + $0x38] sm:$0xf]
      %v5107 = vld [vmem:[%s5091 + $0x3c] sm:$0xf]
      %v5121 = vunpack.c.l.b16 %v5078
      %v5122 = vunpack.c.l.b16 %v5079
      %v5123 = vunpack.c.l.b16 %v5080
      %v5124 = vunpack.c.l.b16 %v5081
      %v5125 = vunpack.c.l.b16 %v5082
      %v5126 = vunpack.c.l.b16 %v5083
      %v5127 = vunpack.c.l.b16 %v5084
      %v5128 = vunpack.c.l.b16 %v5085
      %v5129 = vunpack.c.l.b16 %v5086
      %v5130 = vunpack.c.l.b16 %v5087
      %v5131 = vunpack.c.l.b16 %v5088
      %v5132 = vunpack.c.l.b16 %v5089
      %v5133 = vunpack.c.l.b16 %v5090
      %v5134 = vpack.c.b16 %v5122, %v5121
      %v5135 = vpack.c.b16 %v5124, %v5123
      %v5136 = vpack.c.b16 %v5126, %v5125
      %v5137 = vpack.c.b16 %v5128, %v5127
      %v5138 = vpack.c.b16 %v5130, %v5129
      %v5139 = vpack.c.b16 %v5132, %v5131
      %v5140 = vpack.c.b16 %v5133, %v5133
      %v5141 = vrot.slane %v5134, 1
      %v5142 = vrot.slane %v5135, 1
      %v5143 = vsel %vm888, %v5141, %v5142
      %v5144 = vrot.slane %v5136, 1
      %v5145 = vsel %vm888, %v5142, %v5144
      %v5146 = vrot.slane %v5137, 1
      %v5147 = vsel %vm888, %v5144, %v5146
      %v5148 = vrot.slane %v5138, 1
      %v5149 = vsel %vm888, %v5146, %v5148
      %v5150 = vrot.slane %v5139, 1
      %v5151 = vsel %vm888, %v5148, %v5150
      %v5152 = vrot.slane %v5140, 1
      %v5153 = vsel %vm888, %v5150, %v5152
      %v5177 = vunpack.c.l.b16 %v5092
      %v5178 = vunpack.c.l.b16 %v5093
      %v5179 = vunpack.c.l.b16 %v5094
      %v5180 = vunpack.c.l.b16 %v5095
      %v5181 = vunpack.c.l.b16 %v5096
      %v5182 = vunpack.c.l.b16 %v5097
      %v5183 = vunpack.c.l.b16 %v5098
      %v5184 = vunpack.c.l.b16 %v5099
      %v5185 = vunpack.c.l.b16 %v5100
      %v5186 = vunpack.c.l.b16 %v5101
      %v5187 = vunpack.c.l.b16 %v5102
      %v5188 = vunpack.c.l.b16 %v5103
      %v5189 = vunpack.c.l.b16 %v5104
      %v5190 = vunpack.c.l.b16 %v5105
      %v5191 = vunpack.c.l.b16 %v5106
      %v5192 = vunpack.c.l.b16 %v5107
      %v5193 = vpack.c.b16 %v5178, %v5177
      %v5194 = vpack.c.b16 %v5180, %v5179
      %v5195 = vpack.c.b16 %v5182, %v5181
      %v5196 = vpack.c.b16 %v5184, %v5183
      %v5197 = vpack.c.b16 %v5186, %v5185
      %v5198 = vpack.c.b16 %v5188, %v5187
      %v5199 = vpack.c.b16 %v5190, %v5189
      %v5200 = vpack.c.b16 %v5192, %v5191
      %5209 = vmatprep.subr.bf16.mxu0 0
      %5210 = vmatpush1.bf16.msra.mxu0 %v5193
      %5211 = vmatprep.subr.bf16.mxu0 0
      %5212 = vmatpush1.bf16.msra.mxu0 %v5194
      %5213 = vmatprep.subr.bf16.mxu0 0
      %5214 = vmatpush1.bf16.msra.mxu0 %v5195
      %5215 = vmatprep.subr.bf16.mxu0 0
      %5216 = vmatpush1.bf16.msra.mxu0 %v5196
      %5217 = vmatprep.subr.bf16.mxu0 0
      %5218 = vmatpush1.bf16.msra.mxu0 %v5197
      %5219 = vmatprep.subr.bf16.mxu0 0
      %5220 = vmatpush1.bf16.msra.mxu0 %v5198
      %5221 = vmatprep.subr.bf16.mxu0 0
      %5222 = vmatpush1.bf16.msra.mxu0 %v5199
      %5223 = vmatprep.subr.bf16.mxu0 0
      %5224 = vmatpush1.bf16.msra.mxu0 %v5200
      %5225 = vmatprep.subr.bf16.mxu0 0
      %5226 = vmatpush1.bf16.msra.mxu0 0
      %5227 = vmatprep.subr.bf16.mxu0 0
      %5228 = vmatpush1.bf16.msra.mxu0 0
      %5229 = vmatprep.subr.bf16.mxu0 0
      %5230 = vmatpush1.bf16.msra.mxu0 0
      %5231 = vmatprep.subr.bf16.mxu0 0
      %5232 = vmatpush1.bf16.msra.mxu0 0
      %5233 = vmatprep.subr.bf16.mxu0 0
      %5234 = vmatpush1.bf16.msra.mxu0 0
      %5235 = vmatprep.subr.bf16.mxu0 0
      %5236 = vmatpush1.bf16.msra.mxu0 0
      %5237 = vmatprep.subr.bf16.mxu0 0
      %5238 = vmatpush1.bf16.msra.mxu0 0
      %5239 = vmatprep.subr.bf16.mxu0 0
      %5240 = vmatpush1.bf16.msra.mxu0 0
      %5241 = vmatprep.mubr.bf16.mxu0 0
      %5242 = vmatmul.mubr.bf16.gmra.mrb[0].mxu0 %v5143
      %v5243 = vpop.f32.mrb[0].mxu0
      %v5244 = vadd.f32 0.0, %v5243
      %v5245 = vpop.f32.mrb[0].mxu0
      %v5246 = vpop.f32.mrb[0].mxu0
      %v5247 = vadd.f32 0.0, %v5246
      %v5248 = vpop.f32.mrb[0].mxu0
      %5249 = vmatprep.mubr.bf16.mxu0 0
      %5250 = vmatmul.mubr.bf16.gmra.mrb[0].mxu0 %v5145
      %v5251 = vpop.f32.mrb[0].mxu0
      %v5252 = vadd.f32 0.0, %v5251
      %v5253 = vpop.f32.mrb[0].mxu0
      %v5254 = vpop.f32.mrb[0].mxu0
      %v5255 = vadd.f32 0.0, %v5254
      %v5256 = vpop.f32.mrb[0].mxu0
      %5257 = vmatprep.mubr.bf16.mxu0 0
      %5258 = vmatmul.mubr.bf16.gmra.mrb[0].mxu0 %v5147
      %v5259 = vpop.f32.mrb[0].mxu0
      %v5260 = vadd.f32 0.0, %v5259
      %v5261 = vpop.f32.mrb[0].mxu0
      %v5262 = vpop.f32.mrb[0].mxu0
      %v5263 = vadd.f32 0.0, %v5262
      %v5264 = vpop.f32.mrb[0].mxu0
      %5265 = vmatprep.mubr.bf16.mxu0 0
      %5266 = vmatmul.mubr.bf16.gmra.mrb[0].mxu0 %v5149
      %v5267 = vpop.f32.mrb[0].mxu0
      %v5268 = vadd.f32 0.0, %v5267
      %v5269 = vpop.f32.mrb[0].mxu0
      %v5270 = vpop.f32.mrb[0].mxu0
      %v5271 = vadd.f32 0.0, %v5270
      %v5272 = vpop.f32.mrb[0].mxu0
      %5273 = vmatprep.mubr.bf16.mxu0 0
      %5274 = vmatmul.mubr.bf16.gmra.mrb[0].mxu0 %v5151
      %v5275 = vpop.f32.mrb[0].mxu0
      %v5276 = vadd.f32 0.0, %v5275
      %v5277 = vpop.f32.mrb[0].mxu0
      %v5278 = vpop.f32.mrb[0].mxu0
      %v5279 = vadd.f32 0.0, %v5278
      %v5280 = vpop.f32.mrb[0].mxu0
      %5281 = vmatprep.mubr.bf16.mxu0 0
      %5282 = vmatmul.mubr.bf16.gmra.mrb[0].mxu0 %v5153
      %v5283 = vpop.f32.mrb[0].mxu0
      %v5284 = vadd.f32 0.0, %v5283
      %v5285 = vpop.f32.mrb[0].mxu0
      %v5286 = vpop.f32.mrb[0].mxu0
      %v5287 = vadd.f32 0.0, %v5286
      %v5288 = vpop.f32.mrb[0].mxu0
      %5289 = vmatprep.mubr.bf16.mxu0 0
      %5290 = vmatmul.mubr.bf16.gmra.mrb[0].mxu0 %v5152
      %v5291 = vpop.f32.mrb[0].mxu0
      %v5292 = vadd.f32 0.0, %v5291
      %v5293 = vpop.f32.mrb[0].mxu0
      %v5294 = vpop.f32.mrb[0].mxu0
      %v5295 = vpop.f32.mrb[0].mxu0
      %5296 = vdwg.mxu0
      %v5297 = vadd.f32 %v5065, %v5244
      %v5298 = vadd.f32 %v5066, %v5247
      %v5299 = vadd.f32 %v5067, %v5252
      %v5300 = vadd.f32 %v5068, %v5255
      %v5301 = vadd.f32 %v5069, %v5260
      %v5302 = vadd.f32 %v5070, %v5263
      %v5303 = vadd.f32 %v5071, %v5268
      %v5304 = vadd.f32 %v5072, %v5271
      %v5305 = vadd.f32 %v5073, %v5276
      %v5306 = vadd.f32 %v5074, %v5279
      %v5307 = vadd.f32 %v5075, %v5284
      %v5308 = vadd.f32 %v5076, %v5287
      %v5309 = vadd.f32 %v5077, %v5292
      %v5310 = vld [vmem:[%s417 + $0x34] sm:$0xf]
      %s5311 = scalar_lea.vmem %s3, 1408
      %v5312 = vld [vmem:[%s5311] sm:$0xf]
      %v5313 = vld [vmem:[%s5311 + $0x4] sm:$0xf]
      %v5314 = vld [vmem:[%s5311 + $0x8] sm:$0xf]
      %v5315 = vld [vmem:[%s5311 + $0xc] sm:$0xf]
      %v5316 = vld [vmem:[%s5311 + $0x10] sm:$0xf]
      %v5317 = vld [vmem:[%s5311 + $0x14] sm:$0xf]
      %v5318 = vld [vmem:[%s5311 + $0x18] sm:$0xf]
      %v5319 = vld [vmem:[%s5311 + $0x1c] sm:$0xf]
      %v5320 = vld [vmem:[%s5311 + $0x20] sm:$0xf]
      %v5321 = vld [vmem:[%s5311 + $0x24] sm:$0xf]
      %v5322 = vld [vmem:[%s5311 + $0x28] sm:$0xf]
      %v5323 = vld [vmem:[%s5311 + $0x2c] sm:$0xf]
      %v5324 = vld [vmem:[%s5311 + $0x30] sm:$0xf]
      %v5325 = vld [vmem:[%s5311 + $0x34] sm:$0xf]
      %v5326 = vld [vmem:[%s5311 + $0x38] sm:$0xf]
      %v5327 = vld [vmem:[%s5311 + $0x3c] sm:$0xf]
      %v5329 = vunpack.c.l.b16 %v5310
      %v5330 = vpack.c.b16 %v5329, %v5329
      %v5332 = vshrl.u32 %v5134, 16
      %v5334 = vrot.slane %v5332, 1
      %v5335 = vshll.u32 %v5134, 16
      %v5337 = vrot.slane %v5335, 2
      %v5338 = vor.u32 %v5334, %v5337
      %v5340 = vshrl.u32 %v5135, 16
      %v5342 = vrot.slane %v5340, 1
      %v5343 = vshll.u32 %v5135, 16
      %v5345 = vrot.slane %v5343, 2
      %v5346 = vor.u32 %v5342, %v5345
      %v5347 = vsel %vm1311, %v5338, %v5346
      %v5349 = vshrl.u32 %v5136, 16
      %v5351 = vrot.slane %v5349, 1
      %v5352 = vshll.u32 %v5136, 16
      %v5354 = vrot.slane %v5352, 2
      %v5355 = vor.u32 %v5351, %v5354
      %v5356 = vsel %vm1311, %v5346, %v5355
      %v5358 = vshrl.u32 %v5137, 16
      %v5360 = vrot.slane %v5358, 1
      %v5361 = vshll.u32 %v5137, 16
      %v5363 = vrot.slane %v5361, 2
      %v5364 = vor.u32 %v5360, %v5363
      %v5365 = vsel %vm1311, %v5355, %v5364
      %v5367 = vshrl.u32 %v5138, 16
      %v5369 = vrot.slane %v5367, 1
      %v5370 = vshll.u32 %v5138, 16
      %v5372 = vrot.slane %v5370, 2
      %v5373 = vor.u32 %v5369, %v5372
      %v5374 = vsel %vm1311, %v5364, %v5373
      %v5376 = vshrl.u32 %v5139, 16
      %v5378 = vrot.slane %v5376, 1
      %v5379 = vshll.u32 %v5139, 16
      %v5381 = vrot.slane %v5379, 2
      %v5382 = vor.u32 %v5378, %v5381
      %v5383 = vsel %vm1311, %v5373, %v5382
      %v5385 = vshrl.u32 %v5330, 16
      %v5387 = vrot.slane %v5385, 1
      %v5388 = vshll.u32 %v5330, 16
      %v5390 = vrot.slane %v5388, 2
      %v5391 = vor.u32 %v5387, %v5390
      %v5392 = vsel %vm1311, %v5382, %v5391
      %v5416 = vunpack.c.l.b16 %v5312
      %v5417 = vunpack.c.l.b16 %v5313
      %v5418 = vunpack.c.l.b16 %v5314
      %v5419 = vunpack.c.l.b16 %v5315
      %v5420 = vunpack.c.l.b16 %v5316
      %v5421 = vunpack.c.l.b16 %v5317
      %v5422 = vunpack.c.l.b16 %v5318
      %v5423 = vunpack.c.l.b16 %v5319
      %v5424 = vunpack.c.l.b16 %v5320
      %v5425 = vunpack.c.l.b16 %v5321
      %v5426 = vunpack.c.l.b16 %v5322
      %v5427 = vunpack.c.l.b16 %v5323
      %v5428 = vunpack.c.l.b16 %v5324
      %v5429 = vunpack.c.l.b16 %v5325
      %v5430 = vunpack.c.l.b16 %v5326
      %v5431 = vunpack.c.l.b16 %v5327
      %v5432 = vpack.c.b16 %v5417, %v5416
      %v5433 = vpack.c.b16 %v5419, %v5418
      %v5434 = vpack.c.b16 %v5421, %v5420
      %v5435 = vpack.c.b16 %v5423, %v5422
      %v5436 = vpack.c.b16 %v5425, %v5424
      %v5437 = vpack.c.b16 %v5427, %v5426
      %v5438 = vpack.c.b16 %v5429, %v5428
      %v5439 = vpack.c.b16 %v5431, %v5430
      %5448 = vmatprep.subr.bf16.mxu0 0
      %5449 = vmatpush1.bf16.msra.mxu0 %v5432
      %5450 = vmatprep.subr.bf16.mxu0 0
      %5451 = vmatpush1.bf16.msra.mxu0 %v5433
      %5452 = vmatprep.subr.bf16.mxu0 0
      %5453 = vmatpush1.bf16.msra.mxu0 %v5434
      %5454 = vmatprep.subr.bf16.mxu0 0
      %5455 = vmatpush1.bf16.msra.mxu0 %v5435
      %5456 = vmatprep.subr.bf16.mxu0 0
      %5457 = vmatpush1.bf16.msra.mxu0 %v5436
      %5458 = vmatprep.subr.bf16.mxu0 0
      %5459 = vmatpush1.bf16.msra.mxu0 %v5437
      %5460 = vmatprep.subr.bf16.mxu0 0
      %5461 = vmatpush1.bf16.msra.mxu0 %v5438
      %5462 = vmatprep.subr.bf16.mxu0 0
      %5463 = vmatpush1.bf16.msra.mxu0 %v5439
      %5464 = vmatprep.subr.bf16.mxu0 0
      %5465 = vmatpush1.bf16.msra.mxu0 0
      %5466 = vmatprep.subr.bf16.mxu0 0
      %5467 = vmatpush1.bf16.msra.mxu0 0
      %5468 = vmatprep.subr.bf16.mxu0 0
      %5469 = vmatpush1.bf16.msra.mxu0 0
      %5470 = vmatprep.subr.bf16.mxu0 0
      %5471 = vmatpush1.bf16.msra.mxu0 0
      %5472 = vmatprep.subr.bf16.mxu0 0
      %5473 = vmatpush1.bf16.msra.mxu0 0
      %5474 = vmatprep.subr.bf16.mxu0 0
      %5475 = vmatpush1.bf16.msra.mxu0 0
      %5476 = vmatprep.subr.bf16.mxu0 0
      %5477 = vmatpush1.bf16.msra.mxu0 0
      %5478 = vmatprep.subr.bf16.mxu0 0
      %5479 = vmatpush1.bf16.msra.mxu0 0
      %5480 = vmatprep.mubr.bf16.mxu0 0
      %5481 = vmatmul.mubr.bf16.gmra.mrb[0].mxu0 %v5347
      %v5482 = vpop.f32.mrb[0].mxu0
      %v5483 = vadd.f32 0.0, %v5482
      %v5484 = vpop.f32.mrb[0].mxu0
      %v5485 = vpop.f32.mrb[0].mxu0
      %v5486 = vadd.f32 0.0, %v5485
      %v5487 = vpop.f32.mrb[0].mxu0
      %5488 = vmatprep.mubr.bf16.mxu0 0
      %5489 = vmatmul.mubr.bf16.gmra.mrb[0].mxu0 %v5356
      %v5490 = vpop.f32.mrb[0].mxu0
      %v5491 = vadd.f32 0.0, %v5490
      %v5492 = vpop.f32.mrb[0].mxu0
      %v5493 = vpop.f32.mrb[0].mxu0
      %v5494 = vadd.f32 0.0, %v5493
      %v5495 = vpop.f32.mrb[0].mxu0
      %5496 = vmatprep.mubr.bf16.mxu0 0
      %5497 = vmatmul.mubr.bf16.gmra.mrb[0].mxu0 %v5365
      %v5498 = vpop.f32.mrb[0].mxu0
      %v5499 = vadd.f32 0.0, %v5498
      %v5500 = vpop.f32.mrb[0].mxu0
      %v5501 = vpop.f32.mrb[0].mxu0
      %v5502 = vadd.f32 0.0, %v5501
      %v5503 = vpop.f32.mrb[0].mxu0
      %5504 = vmatprep.mubr.bf16.mxu0 0
      %5505 = vmatmul.mubr.bf16.gmra.mrb[0].mxu0 %v5374
      %v5506 = vpop.f32.mrb[0].mxu0
      %v5507 = vadd.f32 0.0, %v5506
      %v5508 = vpop.f32.mrb[0].mxu0
      %v5509 = vpop.f32.mrb[0].mxu0
      %v5510 = vadd.f32 0.0, %v5509
      %v5511 = vpop.f32.mrb[0].mxu0
      %5512 = vmatprep.mubr.bf16.mxu0 0
      %5513 = vmatmul.mubr.bf16.gmra.mrb[0].mxu0 %v5383
      %v5514 = vpop.f32.mrb[0].mxu0
      %v5515 = vadd.f32 0.0, %v5514
      %v5516 = vpop.f32.mrb[0].mxu0
      %v5517 = vpop.f32.mrb[0].mxu0
      %v5518 = vadd.f32 0.0, %v5517
      %v5519 = vpop.f32.mrb[0].mxu0
      %5520 = vmatprep.mubr.bf16.mxu0 0
      %5521 = vmatmul.mubr.bf16.gmra.mrb[0].mxu0 %v5392
      %v5522 = vpop.f32.mrb[0].mxu0
      %v5523 = vadd.f32 0.0, %v5522
      %v5524 = vpop.f32.mrb[0].mxu0
      %v5525 = vpop.f32.mrb[0].mxu0
      %v5526 = vadd.f32 0.0, %v5525
      %v5527 = vpop.f32.mrb[0].mxu0
      %5528 = vmatprep.mubr.bf16.mxu0 0
      %5529 = vmatmul.mubr.bf16.gmra.mrb[0].mxu0 %v5391
      %v5530 = vpop.f32.mrb[0].mxu0
      %v5531 = vadd.f32 0.0, %v5530
      %v5532 = vpop.f32.mrb[0].mxu0
      %v5533 = vpop.f32.mrb[0].mxu0
      %v5534 = vpop.f32.mrb[0].mxu0
      %5535 = vdwg.mxu0
      %v5536 = vadd.f32 %v5297, %v5483
      %v5537 = vadd.f32 %v5298, %v5486
      %v5538 = vadd.f32 %v5299, %v5491
      %v5539 = vadd.f32 %v5300, %v5494
      %v5540 = vadd.f32 %v5301, %v5499
      %v5541 = vadd.f32 %v5302, %v5502
      %v5542 = vadd.f32 %v5303, %v5507
      %v5543 = vadd.f32 %v5304, %v5510
      %v5544 = vadd.f32 %v5305, %v5515
      %v5545 = vadd.f32 %v5306, %v5518
      %v5546 = vadd.f32 %v5307, %v5523
      %v5547 = vadd.f32 %v5308, %v5526
      %v5548 = vadd.f32 %v5309, %v5531
      %v5549 = vld [vmem:[%s417 + $0x4] sm:$0xc]
      %s5550 = scalar_lea.vmem %s3, 1472
      %v5551 = vld [vmem:[%s5550] sm:$0xf]
      %v5552 = vld [vmem:[%s5550 + $0x4] sm:$0xf]
      %v5553 = vld [vmem:[%s5550 + $0x8] sm:$0xf]
      %v5554 = vld [vmem:[%s5550 + $0xc] sm:$0xf]
      %v5555 = vld [vmem:[%s5550 + $0x10] sm:$0xf]
      %v5556 = vld [vmem:[%s5550 + $0x14] sm:$0xf]
      %v5557 = vld [vmem:[%s5550 + $0x18] sm:$0xf]
      %v5558 = vld [vmem:[%s5550 + $0x1c] sm:$0xf]
      %v5559 = vld [vmem:[%s5550 + $0x20] sm:$0xf]
      %v5560 = vld [vmem:[%s5550 + $0x24] sm:$0xf]
      %v5561 = vld [vmem:[%s5550 + $0x28] sm:$0xf]
      %v5562 = vld [vmem:[%s5550 + $0x2c] sm:$0xf]
      %v5563 = vld [vmem:[%s5550 + $0x30] sm:$0xf]
      %v5564 = vld [vmem:[%s5550 + $0x34] sm:$0xf]
      %v5565 = vld [vmem:[%s5550 + $0x38] sm:$0xf]
      %v5566 = vld [vmem:[%s5550 + $0x3c] sm:$0xf]
      %v5568 = vunpack.c.l.b16 %v5549
      %v5569 = vpack.c.b16 %v5122, %v5568
      %v5570 = vrot.slane %v5569, 2
      %v5571 = vrot.slane %v5135, 2
      %v5572 = vsel %vm1551, %v5570, %v5571
      %v5573 = vrot.slane %v5136, 2
      %v5574 = vsel %vm1551, %v5571, %v5573
      %v5575 = vrot.slane %v5137, 2
      %v5576 = vsel %vm1551, %v5573, %v5575
      %v5577 = vrot.slane %v5138, 2
      %v5578 = vsel %vm1551, %v5575, %v5577
      %v5579 = vrot.slane %v5139, 2
      %v5580 = vsel %vm1551, %v5577, %v5579
      %v5581 = vrot.slane %v5330, 2
      %v5582 = vsel %vm1551, %v5579, %v5581
      %v5606 = vunpack.c.l.b16 %v5551
      %v5607 = vunpack.c.l.b16 %v5552
      %v5608 = vunpack.c.l.b16 %v5553
      %v5609 = vunpack.c.l.b16 %v5554
      %v5610 = vunpack.c.l.b16 %v5555
      %v5611 = vunpack.c.l.b16 %v5556
      %v5612 = vunpack.c.l.b16 %v5557
      %v5613 = vunpack.c.l.b16 %v5558
      %v5614 = vunpack.c.l.b16 %v5559
      %v5615 = vunpack.c.l.b16 %v5560
      %v5616 = vunpack.c.l.b16 %v5561
      %v5617 = vunpack.c.l.b16 %v5562
      %v5618 = vunpack.c.l.b16 %v5563
      %v5619 = vunpack.c.l.b16 %v5564
      %v5620 = vunpack.c.l.b16 %v5565
      %v5621 = vunpack.c.l.b16 %v5566
      %v5622 = vpack.c.b16 %v5607, %v5606
      %v5623 = vpack.c.b16 %v5609, %v5608
      %v5624 = vpack.c.b16 %v5611, %v5610
      %v5625 = vpack.c.b16 %v5613, %v5612
      %v5626 = vpack.c.b16 %v5615, %v5614
      %v5627 = vpack.c.b16 %v5617, %v5616
      %v5628 = vpack.c.b16 %v5619, %v5618
      %v5629 = vpack.c.b16 %v5621, %v5620
      %5638 = vmatprep.subr.bf16.mxu0 0
      %5639 = vmatpush1.bf16.msra.mxu0 %v5622
      %5640 = vmatprep.subr.bf16.mxu0 0
      %5641 = vmatpush1.bf16.msra.mxu0 %v5623
      %5642 = vmatprep.subr.bf16.mxu0 0
      %5643 = vmatpush1.bf16.msra.mxu0 %v5624
      %5644 = vmatprep.subr.bf16.mxu0 0
      %5645 = vmatpush1.bf16.msra.mxu0 %v5625
      %5646 = vmatprep.subr.bf16.mxu0 0
      %5647 = vmatpush1.bf16.msra.mxu0 %v5626
      %5648 = vmatprep.subr.bf16.mxu0 0
      %5649 = vmatpush1.bf16.msra.mxu0 %v5627
      %5650 = vmatprep.subr.bf16.mxu0 0
      %5651 = vmatpush1.bf16.msra.mxu0 %v5628
      %5652 = vmatprep.subr.bf16.mxu0 0
      %5653 = vmatpush1.bf16.msra.mxu0 %v5629
      %5654 = vmatprep.subr.bf16.mxu0 0
      %5655 = vmatpush1.bf16.msra.mxu0 0
      %5656 = vmatprep.subr.bf16.mxu0 0
      %5657 = vmatpush1.bf16.msra.mxu0 0
      %5658 = vmatprep.subr.bf16.mxu0 0
      %5659 = vmatpush1.bf16.msra.mxu0 0
      %5660 = vmatprep.subr.bf16.mxu0 0
      %5661 = vmatpush1.bf16.msra.mxu0 0
      %5662 = vmatprep.subr.bf16.mxu0 0
      %5663 = vmatpush1.bf16.msra.mxu0 0
      %5664 = vmatprep.subr.bf16.mxu0 0
      %5665 = vmatpush1.bf16.msra.mxu0 0
      %5666 = vmatprep.subr.bf16.mxu0 0
      %5667 = vmatpush1.bf16.msra.mxu0 0
      %5668 = vmatprep.subr.bf16.mxu0 0
      %5669 = vmatpush1.bf16.msra.mxu0 0
      %5670 = vmatprep.mubr.bf16.mxu0 0
      %5671 = vmatmul.mubr.bf16.gmra.mrb[0].mxu0 %v5572
      %v5672 = vpop.f32.mrb[0].mxu0
      %v5673 = vadd.f32 0.0, %v5672
      %v5674 = vpop.f32.mrb[0].mxu0
      %v5675 = vpop.f32.mrb[0].mxu0
      %v5676 = vadd.f32 0.0, %v5675
      %v5677 = vpop.f32.mrb[0].mxu0
      %5678 = vmatprep.mubr.bf16.mxu0 0
      %5679 = vmatmul.mubr.bf16.gmra.mrb[0].mxu0 %v5574
      %v5680 = vpop.f32.mrb[0].mxu0
      %v5681 = vadd.f32 0.0, %v5680
      %v5682 = vpop.f32.mrb[0].mxu0
      %v5683 = vpop.f32.mrb[0].mxu0
      %v5684 = vadd.f32 0.0, %v5683
      %v5685 = vpop.f32.mrb[0].mxu0
      %5686 = vmatprep.mubr.bf16.mxu0 0
      %5687 = vmatmul.mubr.bf16.gmra.mrb[0].mxu0 %v5576
      %v5688 = vpop.f32.mrb[0].mxu0
      %v5689 = vadd.f32 0.0, %v5688
      %v5690 = vpop.f32.mrb[0].mxu0
      %v5691 = vpop.f32.mrb[0].mxu0
      %v5692 = vadd.f32 0.0, %v5691
      %v5693 = vpop.f32.mrb[0].mxu0
      %5694 = vmatprep.mubr.bf16.mxu0 0
      %5695 = vmatmul.mubr.bf16.gmra.mrb[0].mxu0 %v5578
      %v5696 = vpop.f32.mrb[0].mxu0
      %v5697 = vadd.f32 0.0, %v5696
      %v5698 = vpop.f32.mrb[0].mxu0
      %v5699 = vpop.f32.mrb[0].mxu0
      %v5700 = vadd.f32 0.0, %v5699
      %v5701 = vpop.f32.mrb[0].mxu0
      %5702 = vmatprep.mubr.bf16.mxu0 0
      %5703 = vmatmul.mubr.bf16.gmra.mrb[0].mxu0 %v5580
      %v5704 = vpop.f32.mrb[0].mxu0
      %v5705 = vadd.f32 0.0, %v5704
      %v5706 = vpop.f32.mrb[0].mxu0
      %v5707 = vpop.f32.mrb[0].mxu0
      %v5708 = vadd.f32 0.0, %v5707
      %v5709 = vpop.f32.mrb[0].mxu0
      %5710 = vmatprep.mubr.bf16.mxu0 0
      %5711 = vmatmul.mubr.bf16.gmra.mrb[0].mxu0 %v5582
      %v5712 = vpop.f32.mrb[0].mxu0
      %v5713 = vadd.f32 0.0, %v5712
      %v5714 = vpop.f32.mrb[0].mxu0
      %v5715 = vpop.f32.mrb[0].mxu0
      %v5716 = vadd.f32 0.0, %v5715
      %v5717 = vpop.f32.mrb[0].mxu0
      %5718 = vmatprep.mubr.bf16.mxu0 0
      %5719 = vmatmul.mubr.bf16.gmra.mrb[0].mxu0 %v5581
      %v5720 = vpop.f32.mrb[0].mxu0
      %v5721 = vadd.f32 0.0, %v5720
      %v5722 = vpop.f32.mrb[0].mxu0
      %v5723 = vpop.f32.mrb[0].mxu0
      %v5724 = vpop.f32.mrb[0].mxu0
      %5725 = vdwg.mxu0
      %v5726 = vadd.f32 %v5536, %v5673
      %v5727 = vadd.f32 %v5537, %v5676
      %v5728 = vadd.f32 %v5538, %v5681
      %v5729 = vadd.f32 %v5539, %v5684
      %v5730 = vadd.f32 %v5540, %v5689
      %v5731 = vadd.f32 %v5541, %v5692
      %v5732 = vadd.f32 %v5542, %v5697
      %v5733 = vadd.f32 %v5543, %v5700
      %v5734 = vadd.f32 %v5544, %v5705
      %v5735 = vadd.f32 %v5545, %v5708
      %v5736 = vadd.f32 %v5546, %v5713
      %v5737 = vadd.f32 %v5547, %v5716
      %v5738 = vadd.f32 %v5548, %v5721
      %v5739 = vld [vmem:[%s417 + $0x8] sm:$0xc]
      %v5740 = vld [vmem:[%s417 + $0xc] sm:$0xf]
      %v5741 = vld [vmem:[%s417 + $0x10] sm:$0xf]
      %v5742 = vld [vmem:[%s417 + $0x14] sm:$0xf]
      %v5743 = vld [vmem:[%s417 + $0x18] sm:$0xf]
      %v5744 = vld [vmem:[%s417 + $0x1c] sm:$0xf]
      %v5745 = vld [vmem:[%s417 + $0x20] sm:$0xf]
      %v5746 = vld [vmem:[%s417 + $0x24] sm:$0xf]
      %v5747 = vld [vmem:[%s417 + $0x28] sm:$0xf]
      %v5748 = vld [vmem:[%s417 + $0x2c] sm:$0xf]
      %v5749 = vld [vmem:[%s417 + $0x30] sm:$0xf]
      %v5750 = vld [vmem:[%s417 + $0x34] sm:$0xf]
      %v5751 = vld [vmem:[%s417 + $0x38] sm:$0xf]
      %s5752 = scalar_lea.vmem %s3, 1536
      %v5753 = vld [vmem:[%s5752] sm:$0xf]
      %v5754 = vld [vmem:[%s5752 + $0x4] sm:$0xf]
      %v5755 = vld [vmem:[%s5752 + $0x8] sm:$0xf]
      %v5756 = vld [vmem:[%s5752 + $0xc] sm:$0xf]
      %v5757 = vld [vmem:[%s5752 + $0x10] sm:$0xf]
      %v5758 = vld [vmem:[%s5752 + $0x14] sm:$0xf]
      %v5759 = vld [vmem:[%s5752 + $0x18] sm:$0xf]
      %v5760 = vld [vmem:[%s5752 + $0x1c] sm:$0xf]
      %v5761 = vld [vmem:[%s5752 + $0x20] sm:$0xf]
      %v5762 = vld [vmem:[%s5752 + $0x24] sm:$0xf]
      %v5763 = vld [vmem:[%s5752 + $0x28] sm:$0xf]
      %v5764 = vld [vmem:[%s5752 + $0x2c] sm:$0xf]
      %v5765 = vld [vmem:[%s5752 + $0x30] sm:$0xf]
      %v5766 = vld [vmem:[%s5752 + $0x34] sm:$0xf]
      %v5767 = vld [vmem:[%s5752 + $0x38] sm:$0xf]
      %v5768 = vld [vmem:[%s5752 + $0x3c] sm:$0xf]
      %v5782 = vunpack.c.l.b16 %v5739
      %v5783 = vunpack.c.l.b16 %v5740
      %v5784 = vunpack.c.l.b16 %v5741
      %v5785 = vunpack.c.l.b16 %v5742
      %v5786 = vunpack.c.l.b16 %v5743
      %v5787 = vunpack.c.l.b16 %v5744
      %v5788 = vunpack.c.l.b16 %v5745
      %v5789 = vunpack.c.l.b16 %v5746
      %v5790 = vunpack.c.l.b16 %v5747
      %v5791 = vunpack.c.l.b16 %v5748
      %v5792 = vunpack.c.l.b16 %v5749
      %v5793 = vunpack.c.l.b16 %v5750
      %v5794 = vunpack.c.l.b16 %v5751
      %v5795 = vpack.c.b16 %v5783, %v5782
      %v5796 = vpack.c.b16 %v5785, %v5784
      %v5797 = vpack.c.b16 %v5787, %v5786
      %v5798 = vpack.c.b16 %v5789, %v5788
      %v5799 = vpack.c.b16 %v5791, %v5790
      %v5800 = vpack.c.b16 %v5793, %v5792
      %v5801 = vpack.c.b16 %v5794, %v5794
      %v5802 = vrot.slane %v5795, 2
      %v5803 = vrot.slane %v5796, 2
      %v5804 = vsel %vm1551, %v5802, %v5803
      %v5805 = vrot.slane %v5797, 2
      %v5806 = vsel %vm1551, %v5803, %v5805
      %v5807 = vrot.slane %v5798, 2
      %v5808 = vsel %vm1551, %v5805, %v5807
      %v5809 = vrot.slane %v5799, 2
      %v5810 = vsel %vm1551, %v5807, %v5809
      %v5811 = vrot.slane %v5800, 2
      %v5812 = vsel %vm1551, %v5809, %v5811
      %v5813 = vrot.slane %v5801, 2
      %v5814 = vsel %vm1551, %v5811, %v5813
      %v5838 = vunpack.c.l.b16 %v5753
      %v5839 = vunpack.c.l.b16 %v5754
      %v5840 = vunpack.c.l.b16 %v5755
      %v5841 = vunpack.c.l.b16 %v5756
      %v5842 = vunpack.c.l.b16 %v5757
      %v5843 = vunpack.c.l.b16 %v5758
      %v5844 = vunpack.c.l.b16 %v5759
      %v5845 = vunpack.c.l.b16 %v5760
      %v5846 = vunpack.c.l.b16 %v5761
      %v5847 = vunpack.c.l.b16 %v5762
      %v5848 = vunpack.c.l.b16 %v5763
      %v5849 = vunpack.c.l.b16 %v5764
      %v5850 = vunpack.c.l.b16 %v5765
      %v5851 = vunpack.c.l.b16 %v5766
      %v5852 = vunpack.c.l.b16 %v5767
      %v5853 = vunpack.c.l.b16 %v5768
      %v5854 = vpack.c.b16 %v5839, %v5838
      %v5855 = vpack.c.b16 %v5841, %v5840
      %v5856 = vpack.c.b16 %v5843, %v5842
      %v5857 = vpack.c.b16 %v5845, %v5844
      %v5858 = vpack.c.b16 %v5847, %v5846
      %v5859 = vpack.c.b16 %v5849, %v5848
      %v5860 = vpack.c.b16 %v5851, %v5850
      %v5861 = vpack.c.b16 %v5853, %v5852
      %5870 = vmatprep.subr.bf16.mxu0 0
      %5871 = vmatpush1.bf16.msra.mxu0 %v5854
      %5872 = vmatprep.subr.bf16.mxu0 0
      %5873 = vmatpush1.bf16.msra.mxu0 %v5855
      %5874 = vmatprep.subr.bf16.mxu0 0
      %5875 = vmatpush1.bf16.msra.mxu0 %v5856
      %5876 = vmatprep.subr.bf16.mxu0 0
      %5877 = vmatpush1.bf16.msra.mxu0 %v5857
      %5878 = vmatprep.subr.bf16.mxu0 0
      %5879 = vmatpush1.bf16.msra.mxu0 %v5858
      %5880 = vmatprep.subr.bf16.mxu0 0
      %5881 = vmatpush1.bf16.msra.mxu0 %v5859
      %5882 = vmatprep.subr.bf16.mxu0 0
      %5883 = vmatpush1.bf16.msra.mxu0 %v5860
      %5884 = vmatprep.subr.bf16.mxu0 0
      %5885 = vmatpush1.bf16.msra.mxu0 %v5861
      %5886 = vmatprep.subr.bf16.mxu0 0
      %5887 = vmatpush1.bf16.msra.mxu0 0
      %5888 = vmatprep.subr.bf16.mxu0 0
      %5889 = vmatpush1.bf16.msra.mxu0 0
      %5890 = vmatprep.subr.bf16.mxu0 0
      %5891 = vmatpush1.bf16.msra.mxu0 0
      %5892 = vmatprep.subr.bf16.mxu0 0
      %5893 = vmatpush1.bf16.msra.mxu0 0
      %5894 = vmatprep.subr.bf16.mxu0 0
      %5895 = vmatpush1.bf16.msra.mxu0 0
      %5896 = vmatprep.subr.bf16.mxu0 0
      %5897 = vmatpush1.bf16.msra.mxu0 0
      %5898 = vmatprep.subr.bf16.mxu0 0
      %5899 = vmatpush1.bf16.msra.mxu0 0
      %5900 = vmatprep.subr.bf16.mxu0 0
      %5901 = vmatpush1.bf16.msra.mxu0 0
      %5902 = vmatprep.mubr.bf16.mxu0 0
      %5903 = vmatmul.mubr.bf16.gmra.mrb[0].mxu0 %v5804
      %v5904 = vpop.f32.mrb[0].mxu0
      %v5905 = vadd.f32 0.0, %v5904
      %v5906 = vpop.f32.mrb[0].mxu0
      %v5907 = vpop.f32.mrb[0].mxu0
      %v5908 = vadd.f32 0.0, %v5907
      %v5909 = vpop.f32.mrb[0].mxu0
      %5910 = vmatprep.mubr.bf16.mxu0 0
      %5911 = vmatmul.mubr.bf16.gmra.mrb[0].mxu0 %v5806
      %v5912 = vpop.f32.mrb[0].mxu0
      %v5913 = vadd.f32 0.0, %v5912
      %v5914 = vpop.f32.mrb[0].mxu0
      %v5915 = vpop.f32.mrb[0].mxu0
      %v5916 = vadd.f32 0.0, %v5915
      %v5917 = vpop.f32.mrb[0].mxu0
      %5918 = vmatprep.mubr.bf16.mxu0 0
      %5919 = vmatmul.mubr.bf16.gmra.mrb[0].mxu0 %v5808
      %v5920 = vpop.f32.mrb[0].mxu0
      %v5921 = vadd.f32 0.0, %v5920
      %v5922 = vpop.f32.mrb[0].mxu0
      %v5923 = vpop.f32.mrb[0].mxu0
      %v5924 = vadd.f32 0.0, %v5923
      %v5925 = vpop.f32.mrb[0].mxu0
      %5926 = vmatprep.mubr.bf16.mxu0 0
      %5927 = vmatmul.mubr.bf16.gmra.mrb[0].mxu0 %v5810
      %v5928 = vpop.f32.mrb[0].mxu0
      %v5929 = vadd.f32 0.0, %v5928
      %v5930 = vpop.f32.mrb[0].mxu0
      %v5931 = vpop.f32.mrb[0].mxu0
      %v5932 = vadd.f32 0.0, %v5931
      %v5933 = vpop.f32.mrb[0].mxu0
      %5934 = vmatprep.mubr.bf16.mxu0 0
      %5935 = vmatmul.mubr.bf16.gmra.mrb[0].mxu0 %v5812
      %v5936 = vpop.f32.mrb[0].mxu0
      %v5937 = vadd.f32 0.0, %v5936
      %v5938 = vpop.f32.mrb[0].mxu0
      %v5939 = vpop.f32.mrb[0].mxu0
      %v5940 = vadd.f32 0.0, %v5939
      %v5941 = vpop.f32.mrb[0].mxu0
      %5942 = vmatprep.mubr.bf16.mxu0 0
      %5943 = vmatmul.mubr.bf16.gmra.mrb[0].mxu0 %v5814
      %v5944 = vpop.f32.mrb[0].mxu0
      %v5945 = vadd.f32 0.0, %v5944
      %v5946 = vpop.f32.mrb[0].mxu0
      %v5947 = vpop.f32.mrb[0].mxu0
      %v5948 = vadd.f32 0.0, %v5947
      %v5949 = vpop.f32.mrb[0].mxu0
      %5950 = vmatprep.mubr.bf16.mxu0 0
      %5951 = vmatmul.mubr.bf16.gmra.mrb[0].mxu0 %v5813
      %v5952 = vpop.f32.mrb[0].mxu0
      %v5953 = vadd.f32 0.0, %v5952
      %v5954 = vpop.f32.mrb[0].mxu0
      %v5955 = vpop.f32.mrb[0].mxu0
      %v5956 = vpop.f32.mrb[0].mxu0
      %5957 = vdwg.mxu0
      %v5958 = vadd.f32 %v5726, %v5905
      %v5959 = vadd.f32 %v5727, %v5908
      %v5960 = vadd.f32 %v5728, %v5913
      %v5961 = vadd.f32 %v5729, %v5916
      %v5962 = vadd.f32 %v5730, %v5921
      %v5963 = vadd.f32 %v5731, %v5924
      %v5964 = vadd.f32 %v5732, %v5929
      %v5965 = vadd.f32 %v5733, %v5932
      %v5966 = vadd.f32 %v5734, %v5937
      %v5967 = vadd.f32 %v5735, %v5940
      %v5968 = vadd.f32 %v5736, %v5945
      %v5969 = vadd.f32 %v5737, %v5948
      %v5970 = vadd.f32 %v5738, %v5953
      %v5971 = vld [vmem:[%s417 + $0x8] sm:$0xc]
      %v5972 = vld [vmem:[%s417 + $0xc] sm:$0xf]
      %v5973 = vld [vmem:[%s417 + $0x10] sm:$0xf]
      %v5974 = vld [vmem:[%s417 + $0x14] sm:$0xf]
      %v5975 = vld [vmem:[%s417 + $0x18] sm:$0xf]
      %v5976 = vld [vmem:[%s417 + $0x1c] sm:$0xf]
      %v5977 = vld [vmem:[%s417 + $0x20] sm:$0xf]
      %v5978 = vld [vmem:[%s417 + $0x24] sm:$0xf]
      %v5979 = vld [vmem:[%s417 + $0x28] sm:$0xf]
      %v5980 = vld [vmem:[%s417 + $0x2c] sm:$0xf]
      %v5981 = vld [vmem:[%s417 + $0x30] sm:$0xf]
      %v5982 = vld [vmem:[%s417 + $0x34] sm:$0xf]
      %v5983 = vld [vmem:[%s417 + $0x38] sm:$0xf]
      %v5984 = vld [vmem:[%s417 + $0x3c] sm:$0x1]
      %s5985 = scalar_lea.vmem %s3, 1600
      %v5986 = vld [vmem:[%s5985] sm:$0xf]
      %v5987 = vld [vmem:[%s5985 + $0x4] sm:$0xf]
      %v5988 = vld [vmem:[%s5985 + $0x8] sm:$0xf]
      %v5989 = vld [vmem:[%s5985 + $0xc] sm:$0xf]
      %v5990 = vld [vmem:[%s5985 + $0x10] sm:$0xf]
      %v5991 = vld [vmem:[%s5985 + $0x14] sm:$0xf]
      %v5992 = vld [vmem:[%s5985 + $0x18] sm:$0xf]
      %v5993 = vld [vmem:[%s5985 + $0x1c] sm:$0xf]
      %v5994 = vld [vmem:[%s5985 + $0x20] sm:$0xf]
      %v5995 = vld [vmem:[%s5985 + $0x24] sm:$0xf]
      %v5996 = vld [vmem:[%s5985 + $0x28] sm:$0xf]
      %v5997 = vld [vmem:[%s5985 + $0x2c] sm:$0xf]
      %v5998 = vld [vmem:[%s5985 + $0x30] sm:$0xf]
      %v5999 = vld [vmem:[%s5985 + $0x34] sm:$0xf]
      %v6000 = vld [vmem:[%s5985 + $0x38] sm:$0xf]
      %v6001 = vld [vmem:[%s5985 + $0x3c] sm:$0xf]
      %v6016 = vunpack.c.l.b16 %v5971
      %v6017 = vunpack.c.l.b16 %v5972
      %v6018 = vunpack.c.l.b16 %v5973
      %v6019 = vunpack.c.l.b16 %v5974
      %v6020 = vunpack.c.l.b16 %v5975
      %v6021 = vunpack.c.l.b16 %v5976
      %v6022 = vunpack.c.l.b16 %v5977
      %v6023 = vunpack.c.l.b16 %v5978
      %v6024 = vunpack.c.l.b16 %v5979
      %v6025 = vunpack.c.l.b16 %v5980
      %v6026 = vunpack.c.l.b16 %v5981
      %v6027 = vunpack.c.l.b16 %v5982
      %v6028 = vunpack.c.l.b16 %v5983
      %v6029 = vunpack.c.l.b16 %v5984
      %v6030 = vpack.c.b16 %v6017, %v6016
      %v6031 = vpack.c.b16 %v6019, %v6018
      %v6032 = vpack.c.b16 %v6021, %v6020
      %v6033 = vpack.c.b16 %v6023, %v6022
      %v6034 = vpack.c.b16 %v6025, %v6024
      %v6035 = vpack.c.b16 %v6027, %v6026
      %v6036 = vpack.c.b16 %v6029, %v6028
      %v6038 = vshrl.u32 %v6030, 16
      %v6040 = vrot.slane %v6038, 2
      %v6041 = vshll.u32 %v6030, 16
      %v6043 = vrot.slane %v6041, 3
      %v6044 = vor.u32 %v6040, %v6043
      %v6046 = vshrl.u32 %v6031, 16
      %v6048 = vrot.slane %v6046, 2
      %v6049 = vshll.u32 %v6031, 16
      %v6051 = vrot.slane %v6049, 3
      %v6052 = vor.u32 %v6048, %v6051
      %v6053 = vsel %vm2019, %v6044, %v6052
      %v6055 = vshrl.u32 %v6032, 16
      %v6057 = vrot.slane %v6055, 2
      %v6058 = vshll.u32 %v6032, 16
      %v6060 = vrot.slane %v6058, 3
      %v6061 = vor.u32 %v6057, %v6060
      %v6062 = vsel %vm2019, %v6052, %v6061
      %v6064 = vshrl.u32 %v6033, 16
      %v6066 = vrot.slane %v6064, 2
      %v6067 = vshll.u32 %v6033, 16
      %v6069 = vrot.slane %v6067, 3
      %v6070 = vor.u32 %v6066, %v6069
      %v6071 = vsel %vm2019, %v6061, %v6070
      %v6073 = vshrl.u32 %v6034, 16
      %v6075 = vrot.slane %v6073, 2
      %v6076 = vshll.u32 %v6034, 16
      %v6078 = vrot.slane %v6076, 3
      %v6079 = vor.u32 %v6075, %v6078
      %v6080 = vsel %vm2019, %v6070, %v6079
      %v6082 = vshrl.u32 %v6035, 16
      %v6084 = vrot.slane %v6082, 2
      %v6085 = vshll.u32 %v6035, 16
      %v6087 = vrot.slane %v6085, 3
      %v6088 = vor.u32 %v6084, %v6087
      %v6089 = vsel %vm2019, %v6079, %v6088
      %v6091 = vshrl.u32 %v6036, 16
      %v6093 = vrot.slane %v6091, 2
      %v6094 = vshll.u32 %v6036, 16
      %v6096 = vrot.slane %v6094, 3
      %v6097 = vor.u32 %v6093, %v6096
      %v6098 = vsel %vm2019, %v6088, %v6097
      %v6122 = vunpack.c.l.b16 %v5986
      %v6123 = vunpack.c.l.b16 %v5987
      %v6124 = vunpack.c.l.b16 %v5988
      %v6125 = vunpack.c.l.b16 %v5989
      %v6126 = vunpack.c.l.b16 %v5990
      %v6127 = vunpack.c.l.b16 %v5991
      %v6128 = vunpack.c.l.b16 %v5992
      %v6129 = vunpack.c.l.b16 %v5993
      %v6130 = vunpack.c.l.b16 %v5994
      %v6131 = vunpack.c.l.b16 %v5995
      %v6132 = vunpack.c.l.b16 %v5996
      %v6133 = vunpack.c.l.b16 %v5997
      %v6134 = vunpack.c.l.b16 %v5998
      %v6135 = vunpack.c.l.b16 %v5999
      %v6136 = vunpack.c.l.b16 %v6000
      %v6137 = vunpack.c.l.b16 %v6001
      %v6138 = vpack.c.b16 %v6123, %v6122
      %v6139 = vpack.c.b16 %v6125, %v6124
      %v6140 = vpack.c.b16 %v6127, %v6126
      %v6141 = vpack.c.b16 %v6129, %v6128
      %v6142 = vpack.c.b16 %v6131, %v6130
      %v6143 = vpack.c.b16 %v6133, %v6132
      %v6144 = vpack.c.b16 %v6135, %v6134
      %v6145 = vpack.c.b16 %v6137, %v6136
      %6154 = vmatprep.subr.bf16.mxu0 0
      %6155 = vmatpush1.bf16.msra.mxu0 %v6138
      %6156 = vmatprep.subr.bf16.mxu0 0
      %6157 = vmatpush1.bf16.msra.mxu0 %v6139
      %6158 = vmatprep.subr.bf16.mxu0 0
      %6159 = vmatpush1.bf16.msra.mxu0 %v6140
      %6160 = vmatprep.subr.bf16.mxu0 0
      %6161 = vmatpush1.bf16.msra.mxu0 %v6141
      %6162 = vmatprep.subr.bf16.mxu0 0
      %6163 = vmatpush1.bf16.msra.mxu0 %v6142
      %6164 = vmatprep.subr.bf16.mxu0 0
      %6165 = vmatpush1.bf16.msra.mxu0 %v6143
      %6166 = vmatprep.subr.bf16.mxu0 0
      %6167 = vmatpush1.bf16.msra.mxu0 %v6144
      %6168 = vmatprep.subr.bf16.mxu0 0
      %6169 = vmatpush1.bf16.msra.mxu0 %v6145
      %6170 = vmatprep.subr.bf16.mxu0 0
      %6171 = vmatpush1.bf16.msra.mxu0 0
      %6172 = vmatprep.subr.bf16.mxu0 0
      %6173 = vmatpush1.bf16.msra.mxu0 0
      %6174 = vmatprep.subr.bf16.mxu0 0
      %6175 = vmatpush1.bf16.msra.mxu0 0
      %6176 = vmatprep.subr.bf16.mxu0 0
      %6177 = vmatpush1.bf16.msra.mxu0 0
      %6178 = vmatprep.subr.bf16.mxu0 0
      %6179 = vmatpush1.bf16.msra.mxu0 0
      %6180 = vmatprep.subr.bf16.mxu0 0
      %6181 = vmatpush1.bf16.msra.mxu0 0
      %6182 = vmatprep.subr.bf16.mxu0 0
      %6183 = vmatpush1.bf16.msra.mxu0 0
      %6184 = vmatprep.subr.bf16.mxu0 0
      %6185 = vmatpush1.bf16.msra.mxu0 0
      %6186 = vmatprep.mubr.bf16.mxu0 0
      %6187 = vmatmul.mubr.bf16.gmra.mrb[0].mxu0 %v6053
      %v6188 = vpop.f32.mrb[0].mxu0
      %v6189 = vadd.f32 0.0, %v6188
      %v6190 = vpop.f32.mrb[0].mxu0
      %v6191 = vpop.f32.mrb[0].mxu0
      %v6192 = vadd.f32 0.0, %v6191
      %v6193 = vpop.f32.mrb[0].mxu0
      %6194 = vmatprep.mubr.bf16.mxu0 0
      %6195 = vmatmul.mubr.bf16.gmra.mrb[0].mxu0 %v6062
      %v6196 = vpop.f32.mrb[0].mxu0
      %v6197 = vadd.f32 0.0, %v6196
      %v6198 = vpop.f32.mrb[0].mxu0
      %v6199 = vpop.f32.mrb[0].mxu0
      %v6200 = vadd.f32 0.0, %v6199
      %v6201 = vpop.f32.mrb[0].mxu0
      %6202 = vmatprep.mubr.bf16.mxu0 0
      %6203 = vmatmul.mubr.bf16.gmra.mrb[0].mxu0 %v6071
      %v6204 = vpop.f32.mrb[0].mxu0
      %v6205 = vadd.f32 0.0, %v6204
      %v6206 = vpop.f32.mrb[0].mxu0
      %v6207 = vpop.f32.mrb[0].mxu0
      %v6208 = vadd.f32 0.0, %v6207
      %v6209 = vpop.f32.mrb[0].mxu0
      %6210 = vmatprep.mubr.bf16.mxu0 0
      %6211 = vmatmul.mubr.bf16.gmra.mrb[0].mxu0 %v6080
      %v6212 = vpop.f32.mrb[0].mxu0
      %v6213 = vadd.f32 0.0, %v6212
      %v6214 = vpop.f32.mrb[0].mxu0
      %v6215 = vpop.f32.mrb[0].mxu0
      %v6216 = vadd.f32 0.0, %v6215
      %v6217 = vpop.f32.mrb[0].mxu0
      %6218 = vmatprep.mubr.bf16.mxu0 0
      %6219 = vmatmul.mubr.bf16.gmra.mrb[0].mxu0 %v6089
      %v6220 = vpop.f32.mrb[0].mxu0
      %v6221 = vadd.f32 0.0, %v6220
      %v6222 = vpop.f32.mrb[0].mxu0
      %v6223 = vpop.f32.mrb[0].mxu0
      %v6224 = vadd.f32 0.0, %v6223
      %v6225 = vpop.f32.mrb[0].mxu0
      %6226 = vmatprep.mubr.bf16.mxu0 0
      %6227 = vmatmul.mubr.bf16.gmra.mrb[0].mxu0 %v6098
      %v6228 = vpop.f32.mrb[0].mxu0
      %v6229 = vadd.f32 0.0, %v6228
      %v6230 = vpop.f32.mrb[0].mxu0
      %v6231 = vpop.f32.mrb[0].mxu0
      %v6232 = vadd.f32 0.0, %v6231
      %v6233 = vpop.f32.mrb[0].mxu0
      %6234 = vmatprep.mubr.bf16.mxu0 0
      %6235 = vmatmul.mubr.bf16.gmra.mrb[0].mxu0 %v6097
      %v6236 = vpop.f32.mrb[0].mxu0
      %v6237 = vadd.f32 0.0, %v6236
      %v6238 = vpop.f32.mrb[0].mxu0
      %v6239 = vpop.f32.mrb[0].mxu0
      %v6240 = vpop.f32.mrb[0].mxu0
      %6241 = vdwg.mxu0
      %v6242 = vadd.f32 %v5958, %v6189
      %v6243 = vadd.f32 %v5959, %v6192
      %v6244 = vadd.f32 %v5960, %v6197
      %v6245 = vadd.f32 %v5961, %v6200
      %v6246 = vadd.f32 %v5962, %v6205
      %v6247 = vadd.f32 %v5963, %v6208
      %v6248 = vadd.f32 %v5964, %v6213
      %v6249 = vadd.f32 %v5965, %v6216
      %v6250 = vadd.f32 %v5966, %v6221
      %v6251 = vadd.f32 %v5967, %v6224
      %v6252 = vadd.f32 %v5968, %v6229
      %v6253 = vadd.f32 %v5969, %v6232
      %v6254 = vadd.f32 %v5970, %v6237
      %v6255 = vld [vmem:[%s417 + $0x8] sm:$0x8]
      %s6256 = scalar_lea.vmem %s3, 1664
      %v6257 = vld [vmem:[%s6256] sm:$0xf]
      %v6258 = vld [vmem:[%s6256 + $0x4] sm:$0xf]
      %v6259 = vld [vmem:[%s6256 + $0x8] sm:$0xf]
      %v6260 = vld [vmem:[%s6256 + $0xc] sm:$0xf]
      %v6261 = vld [vmem:[%s6256 + $0x10] sm:$0xf]
      %v6262 = vld [vmem:[%s6256 + $0x14] sm:$0xf]
      %v6263 = vld [vmem:[%s6256 + $0x18] sm:$0xf]
      %v6264 = vld [vmem:[%s6256 + $0x1c] sm:$0xf]
      %v6265 = vld [vmem:[%s6256 + $0x20] sm:$0xf]
      %v6266 = vld [vmem:[%s6256 + $0x24] sm:$0xf]
      %v6267 = vld [vmem:[%s6256 + $0x28] sm:$0xf]
      %v6268 = vld [vmem:[%s6256 + $0x2c] sm:$0xf]
      %v6269 = vld [vmem:[%s6256 + $0x30] sm:$0xf]
      %v6270 = vld [vmem:[%s6256 + $0x34] sm:$0xf]
      %v6271 = vld [vmem:[%s6256 + $0x38] sm:$0xf]
      %v6272 = vld [vmem:[%s6256 + $0x3c] sm:$0xf]
      %v6274 = vunpack.c.l.b16 %v6255
      %v6275 = vpack.c.b16 %v6017, %v6274
      %v6276 = vrot.slane %v6275, 3
      %v6277 = vrot.slane %v6031, 3
      %v6278 = vsel %vm2259, %v6276, %v6277
      %v6279 = vrot.slane %v6032, 3
      %v6280 = vsel %vm2259, %v6277, %v6279
      %v6281 = vrot.slane %v6033, 3
      %v6282 = vsel %vm2259, %v6279, %v6281
      %v6283 = vrot.slane %v6034, 3
      %v6284 = vsel %vm2259, %v6281, %v6283
      %v6285 = vrot.slane %v6035, 3
      %v6286 = vsel %vm2259, %v6283, %v6285
      %v6287 = vrot.slane %v6036, 3
      %v6288 = vsel %vm2259, %v6285, %v6287
      %v6312 = vunpack.c.l.b16 %v6257
      %v6313 = vunpack.c.l.b16 %v6258
      %v6314 = vunpack.c.l.b16 %v6259
      %v6315 = vunpack.c.l.b16 %v6260
      %v6316 = vunpack.c.l.b16 %v6261
      %v6317 = vunpack.c.l.b16 %v6262
      %v6318 = vunpack.c.l.b16 %v6263
      %v6319 = vunpack.c.l.b16 %v6264
      %v6320 = vunpack.c.l.b16 %v6265
      %v6321 = vunpack.c.l.b16 %v6266
      %v6322 = vunpack.c.l.b16 %v6267
      %v6323 = vunpack.c.l.b16 %v6268
      %v6324 = vunpack.c.l.b16 %v6269
      %v6325 = vunpack.c.l.b16 %v6270
      %v6326 = vunpack.c.l.b16 %v6271
      %v6327 = vunpack.c.l.b16 %v6272
      %v6328 = vpack.c.b16 %v6313, %v6312
      %v6329 = vpack.c.b16 %v6315, %v6314
      %v6330 = vpack.c.b16 %v6317, %v6316
      %v6331 = vpack.c.b16 %v6319, %v6318
      %v6332 = vpack.c.b16 %v6321, %v6320
      %v6333 = vpack.c.b16 %v6323, %v6322
      %v6334 = vpack.c.b16 %v6325, %v6324
      %v6335 = vpack.c.b16 %v6327, %v6326
      %6344 = vmatprep.subr.bf16.mxu0 0
      %6345 = vmatpush1.bf16.msra.mxu0 %v6328
      %6346 = vmatprep.subr.bf16.mxu0 0
      %6347 = vmatpush1.bf16.msra.mxu0 %v6329
      %6348 = vmatprep.subr.bf16.mxu0 0
      %6349 = vmatpush1.bf16.msra.mxu0 %v6330
      %6350 = vmatprep.subr.bf16.mxu0 0
      %6351 = vmatpush1.bf16.msra.mxu0 %v6331
      %6352 = vmatprep.subr.bf16.mxu0 0
      %6353 = vmatpush1.bf16.msra.mxu0 %v6332
      %6354 = vmatprep.subr.bf16.mxu0 0
      %6355 = vmatpush1.bf16.msra.mxu0 %v6333
      %6356 = vmatprep.subr.bf16.mxu0 0
      %6357 = vmatpush1.bf16.msra.mxu0 %v6334
      %6358 = vmatprep.subr.bf16.mxu0 0
      %6359 = vmatpush1.bf16.msra.mxu0 %v6335
      %6360 = vmatprep.subr.bf16.mxu0 0
      %6361 = vmatpush1.bf16.msra.mxu0 0
      %6362 = vmatprep.subr.bf16.mxu0 0
      %6363 = vmatpush1.bf16.msra.mxu0 0
      %6364 = vmatprep.subr.bf16.mxu0 0
      %6365 = vmatpush1.bf16.msra.mxu0 0
      %6366 = vmatprep.subr.bf16.mxu0 0
      %6367 = vmatpush1.bf16.msra.mxu0 0
      %6368 = vmatprep.subr.bf16.mxu0 0
      %6369 = vmatpush1.bf16.msra.mxu0 0
      %6370 = vmatprep.subr.bf16.mxu0 0
      %6371 = vmatpush1.bf16.msra.mxu0 0
      %6372 = vmatprep.subr.bf16.mxu0 0
      %6373 = vmatpush1.bf16.msra.mxu0 0
      %6374 = vmatprep.subr.bf16.mxu0 0
      %6375 = vmatpush1.bf16.msra.mxu0 0
      %6376 = vmatprep.mubr.bf16.mxu0 0
      %6377 = vmatmul.mubr.bf16.gmra.mrb[0].mxu0 %v6278
      %v6378 = vpop.f32.mrb[0].mxu0
      %v6379 = vadd.f32 0.0, %v6378
      %v6380 = vpop.f32.mrb[0].mxu0
      %v6381 = vpop.f32.mrb[0].mxu0
      %v6382 = vadd.f32 0.0, %v6381
      %v6383 = vpop.f32.mrb[0].mxu0
      %6384 = vmatprep.mubr.bf16.mxu0 0
      %6385 = vmatmul.mubr.bf16.gmra.mrb[0].mxu0 %v6280
      %v6386 = vpop.f32.mrb[0].mxu0
      %v6387 = vadd.f32 0.0, %v6386
      %v6388 = vpop.f32.mrb[0].mxu0
      %v6389 = vpop.f32.mrb[0].mxu0
      %v6390 = vadd.f32 0.0, %v6389
      %v6391 = vpop.f32.mrb[0].mxu0
      %6392 = vmatprep.mubr.bf16.mxu0 0
      %6393 = vmatmul.mubr.bf16.gmra.mrb[0].mxu0 %v6282
      %v6394 = vpop.f32.mrb[0].mxu0
      %v6395 = vadd.f32 0.0, %v6394
      %v6396 = vpop.f32.mrb[0].mxu0
      %v6397 = vpop.f32.mrb[0].mxu0
      %v6398 = vadd.f32 0.0, %v6397
      %v6399 = vpop.f32.mrb[0].mxu0
      %6400 = vmatprep.mubr.bf16.mxu0 0
      %6401 = vmatmul.mubr.bf16.gmra.mrb[0].mxu0 %v6284
      %v6402 = vpop.f32.mrb[0].mxu0
      %v6403 = vadd.f32 0.0, %v6402
      %v6404 = vpop.f32.mrb[0].mxu0
      %v6405 = vpop.f32.mrb[0].mxu0
      %v6406 = vadd.f32 0.0, %v6405
      %v6407 = vpop.f32.mrb[0].mxu0
      %6408 = vmatprep.mubr.bf16.mxu0 0
      %6409 = vmatmul.mubr.bf16.gmra.mrb[0].mxu0 %v6286
      %v6410 = vpop.f32.mrb[0].mxu0
      %v6411 = vadd.f32 0.0, %v6410
      %v6412 = vpop.f32.mrb[0].mxu0
      %v6413 = vpop.f32.mrb[0].mxu0
      %v6414 = vadd.f32 0.0, %v6413
      %v6415 = vpop.f32.mrb[0].mxu0
      %6416 = vmatprep.mubr.bf16.mxu0 0
      %6417 = vmatmul.mubr.bf16.gmra.mrb[0].mxu0 %v6288
      %v6418 = vpop.f32.mrb[0].mxu0
      %v6419 = vadd.f32 0.0, %v6418
      %v6420 = vpop.f32.mrb[0].mxu0
      %v6421 = vpop.f32.mrb[0].mxu0
      %v6422 = vadd.f32 0.0, %v6421
      %v6423 = vpop.f32.mrb[0].mxu0
      %6424 = vmatprep.mubr.bf16.mxu0 0
      %6425 = vmatmul.mubr.bf16.gmra.mrb[0].mxu0 %v6287
      %v6426 = vpop.f32.mrb[0].mxu0
      %v6427 = vadd.f32 0.0, %v6426
      %v6428 = vpop.f32.mrb[0].mxu0
      %v6429 = vpop.f32.mrb[0].mxu0
      %v6430 = vpop.f32.mrb[0].mxu0
      %6431 = vdwg.mxu0
      %v6432 = vadd.f32 %v6242, %v6379
      %v6433 = vadd.f32 %v6243, %v6382
      %v6434 = vadd.f32 %v6244, %v6387
      %v6435 = vadd.f32 %v6245, %v6390
      %v6436 = vadd.f32 %v6246, %v6395
      %v6437 = vadd.f32 %v6247, %v6398
      %v6438 = vadd.f32 %v6248, %v6403
      %v6439 = vadd.f32 %v6249, %v6406
      %v6440 = vadd.f32 %v6250, %v6411
      %v6441 = vadd.f32 %v6251, %v6414
      %v6442 = vadd.f32 %v6252, %v6419
      %v6443 = vadd.f32 %v6253, %v6422
      %v6444 = vadd.f32 %v6254, %v6427
      %6445 = vst [vmem:[%s434] sm:$0xff] 0.0
      %6446 = vst [vmem:[%s434 + $0x8] sm:$0xff] 0.0
      %6447 = vst [vmem:[%s434 + $0x10] sm:$0xff] 0.0
      %6448 = vst [vmem:[%s434 + $0x18] sm:$0xff] 0.0
      %6449 = vst [vmem:[%s434 + $0x20] sm:$0xff] 0.0
      %6450 = vst [vmem:[%s434 + $0x28] sm:$0xff] 0.0
      %6451 = vst [vmem:[%s434 + $0x30] sm:$0xff] 0.0
      %6452 = vst [vmem:[%s434 + $0x38] sm:$0xff] 0.0
      %6453 = vst [vmem:[%s434 + $0x40] sm:$0xff] 0.0
      %6454 = vst [vmem:[%s434 + $0x48] sm:$0xff] 0.0
      %6455 = vst [vmem:[%s434 + $0x50] sm:$0xff] 0.0
      %6456 = vst [vmem:[%s434 + $0x58] sm:$0xff] 0.0
      %6457 = vst [vmem:[%s434 + $0x60] sm:$0xff] 0.0
      %6458 = vst [vmem:[%s434 + $0x68] sm:$0xff] 0.0
      %6459 = vst [vmem:[%s434 + $0x70] sm:$0xff] 0.0
      %6460 = vst [vmem:[%s434 + $0x78] sm:$0xff] 0.0
      %6461 = vst [vmem:[%s434 + $0xb] sm:$0xff] %v6432
      %6462 = vst [vmem:[%s434 + $0x13] sm:$0xff] %v6433
      %6463 = vst [vmem:[%s434 + $0x1b] sm:$0xff] %v6434
      %6464 = vst [vmem:[%s434 + $0x23] sm:$0xff] %v6435
      %6465 = vst [vmem:[%s434 + $0x2b] sm:$0xff] %v6436
      %6466 = vst [vmem:[%s434 + $0x33] sm:$0xff] %v6437
      %6467 = vst [vmem:[%s434 + $0x3b] sm:$0xff] %v6438
      %6468 = vst [vmem:[%s434 + $0x43] sm:$0xff] %v6439
      %6469 = vst [vmem:[%s434 + $0x4b] sm:$0xff] %v6440
      %6470 = vst [vmem:[%s434 + $0x53] sm:$0xff] %v6441
      %6471 = vst [vmem:[%s434 + $0x5b] sm:$0xff] %v6442
      %6472 = vst [vmem:[%s434 + $0x63] sm:$0xff] %v6443
      %6473 = vst [vmem:[%s434 + $0x6b] sm:$0xf] %v6444
      %v6474 = vld [vmem:[%s424 + $0xb] sm:$0xff]
      %v6475 = vld [vmem:[%s424 + $0x13] sm:$0xff]
      %v6476 = vld [vmem:[%s424 + $0x1b] sm:$0xff]
      %v6477 = vld [vmem:[%s424 + $0x23] sm:$0xff]
      %v6478 = vld [vmem:[%s424 + $0x2b] sm:$0xff]
      %v6479 = vld [vmem:[%s424 + $0x33] sm:$0xff]
      %v6480 = vld [vmem:[%s424 + $0x3b] sm:$0xff]
      %v6481 = vld [vmem:[%s424 + $0x43] sm:$0xff]
      %v6482 = vld [vmem:[%s424 + $0x4b] sm:$0xff]
      %v6483 = vld [vmem:[%s424 + $0x53] sm:$0xff]
      %v6484 = vld [vmem:[%s424 + $0x5b] sm:$0xff]
      %v6485 = vld [vmem:[%s424 + $0x63] sm:$0xff]
      %v6486 = vld [vmem:[%s424 + $0x6b] sm:$0xf]
      %6488 = vset.pattern.permute.xlu0 0
      %6489 = vperm.xlu0 %6488, %v6474
      %v6490 = vpop.permute.xlu0 %6489
      %6493 = vset.pattern.permute.xlu0 0
      %6494 = vperm.xlu0 %6493, %v6475
      %v6495 = vpop.permute.xlu0 %6494
      %6498 = vset.pattern.permute.xlu0 0
      %6499 = vperm.xlu0 %6498, %v6476
      %v6500 = vpop.permute.xlu0 %6499
      %6503 = vset.pattern.permute.xlu0 0
      %6504 = vperm.xlu0 %6503, %v6477
      %v6505 = vpop.permute.xlu0 %6504
      %6508 = vset.pattern.permute.xlu0 0
      %6509 = vperm.xlu0 %6508, %v6478
      %v6510 = vpop.permute.xlu0 %6509
      %6513 = vset.pattern.permute.xlu0 0
      %6514 = vperm.xlu0 %6513, %v6479
      %v6515 = vpop.permute.xlu0 %6514
      %6518 = vset.pattern.permute.xlu0 0
      %6519 = vperm.xlu0 %6518, %v6480
      %v6520 = vpop.permute.xlu0 %6519
      %6523 = vset.pattern.permute.xlu0 0
      %6524 = vperm.xlu0 %6523, %v6481
      %v6525 = vpop.permute.xlu0 %6524
      %6528 = vset.pattern.permute.xlu0 0
      %6529 = vperm.xlu0 %6528, %v6482
      %v6530 = vpop.permute.xlu0 %6529
      %6533 = vset.pattern.permute.xlu0 0
      %6534 = vperm.xlu0 %6533, %v6483
      %v6535 = vpop.permute.xlu0 %6534
      %6538 = vset.pattern.permute.xlu0 0
      %6539 = vperm.xlu0 %6538, %v6484
      %v6540 = vpop.permute.xlu0 %6539
      %6543 = vset.pattern.permute.xlu0 0
      %6544 = vperm.xlu0 %6543, %v6485
      %v6545 = vpop.permute.xlu0 %6544
      %6548 = vset.pattern.permute.xlu0 0
      %6549 = vperm.xlu0 %6548, %v6486
      %v6550 = vpop.permute.xlu0 %6549
      %v6552 = vmul.f32 %v6432, %v6490
      %v6553 = vmul.f32 %v6433, %v6495
      %v6554 = vmul.f32 %v6434, %v6500
      %v6555 = vmul.f32 %v6435, %v6505
      %v6556 = vmul.f32 %v6436, %v6510
      %v6557 = vmul.f32 %v6437, %v6515
      %v6558 = vmul.f32 %v6438, %v6520
      %v6559 = vmul.f32 %v6439, %v6525
      %v6560 = vmul.f32 %v6440, %v6530
      %v6561 = vmul.f32 %v6441, %v6535
      %v6562 = vmul.f32 %v6442, %v6540
      %v6563 = vmul.f32 %v6443, %v6545
      %v6564 = vmul.f32 %v6444, %v6550
      %p6565 = scmp.eq.s32.totalorder %s24, 0
      // Predicated region
      $region41: #{split_conv_csa_forward.8} parent=39 // pred_check
        %p6566 = pneg %p6565
      $region42: #{split_conv_csa_forward.8} parent=39 // pred_check_branch
        %6568 = sbr.rel (%p6566) target = $region44
      $region43: #{split_conv_csa_forward.8} parent=39 // pred_region
        %6569 = vst [vmem:[%s437] sm:$0x1] 0.0
        %6570 = vst [vmem:[%s440] sm:$0x1] 0.0
      $region44: #{split_conv_csa_forward.8} parent=39 // pred_fallthru
        _
      %v6571 = vld [vmem:[%s437] sm:$0x1]
      %v6572 = vadd.f32 %v6552, %v6553
      %v6573 = vadd.f32 %v6572, %v6554
      %v6574 = vadd.f32 %v6573, %v6555
      %v6575 = vadd.f32 %v6574, %v6556
      %v6576 = vadd.f32 %v6575, %v6557
      %v6577 = vadd.f32 %v6576, %v6558
      %v6578 = vadd.f32 %v6577, %v6559
      %v6579 = vadd.f32 %v6578, %v6560
      %v6580 = vadd.f32 %v6579, %v6561
      %v6581 = vadd.f32 %v6580, %v6562
      %v6582 = vadd.f32 %v6581, %v6563
      %vm6583 = vcmask 1043456
      %v6584 = vsel %vm6583, %v6564, 0.0
      %v6585 = vadd.f32 %v6582, %v6584
      %v6586 = vrot.slane %v6585, 4
      %v6587 = vadd.f32 %v6585, %v6586
      %v6588 = vrot.slane %v6587, 2
      %v6589 = vadd.f32 %v6587, %v6588
      %v6590 = vrot.slane %v6589, 1
      %v6591 = vadd.f32 %v6589, %v6590
      %v6592 = vadd.f32 %v6571, %v6591
      %6593 = vst [vmem:[%s437] sm:$0x1] %v6592
      %v6594 = vld [vmem:[%s440] sm:$0x1]
      %v6595 = vmul.f32 %v6432, %v6552
      %v6596 = vmul.f32 %v6433, %v6553
      %v6597 = vmul.f32 %v6434, %v6554
      %v6598 = vmul.f32 %v6435, %v6555
      %v6599 = vmul.f32 %v6436, %v6556
      %v6600 = vmul.f32 %v6437, %v6557
      %v6601 = vmul.f32 %v6438, %v6558
      %v6602 = vmul.f32 %v6439, %v6559
      %v6603 = vmul.f32 %v6440, %v6560
      %v6604 = vmul.f32 %v6441, %v6561
      %v6605 = vmul.f32 %v6442, %v6562
      %v6606 = vmul.f32 %v6443, %v6563
      %v6607 = vmul.f32 %v6444, %v6564
      %v6608 = vadd.f32 %v6595, %v6596
      %v6609 = vadd.f32 %v6608, %v6597
      %v6610 = vadd.f32 %v6609, %v6598
      %v6611 = vadd.f32 %v6610, %v6599
      %v6612 = vadd.f32 %v6611, %v6600
      %v6613 = vadd.f32 %v6612, %v6601
      %v6614 = vadd.f32 %v6613, %v6602
      %v6615 = vadd.f32 %v6614, %v6603
      %v6616 = vadd.f32 %v6615, %v6604
      %v6617 = vadd.f32 %v6616, %v6605
      %v6618 = vadd.f32 %v6617, %v6606
      %v6619 = vsel %vm6583, %v6607, 0.0
      %v6620 = vadd.f32 %v6618, %v6619
      %v6621 = vrot.slane %v6620, 4
      %v6622 = vadd.f32 %v6620, %v6621
      %v6623 = vrot.slane %v6622, 2
      %v6624 = vadd.f32 %v6622, %v6623
      %v6625 = vrot.slane %v6624, 1
      %v6626 = vadd.f32 %v6624, %v6625
      %v6627 = vadd.f32 %v6594, %v6626
      %6628 = vst [vmem:[%s440] sm:$0x1] %v6627
      %p6629 = scmp.lt.s32.totalorder %s23, 1
      %s6630 = scalar_select %p6629, %s23, 1
      %p6631 = scmp.lt.s32.totalorder %s24, 7
      %s6632 = scalar_select %p6631, %s24, 7
      %s6633 = smul.addr %s6632, 16
      %s6634 = smul.addr %s6630, 128
      %s6635 = sadd.s32 %s6633, %s6634
      %s6636 = smul.addr %s6635, 8
      %s6637 = scalar_lea.vmem %s5, %s6636
      %p6638 = scmp.lt.s32.totalorder %s23, 1
      %s6639 = scalar_select %p6638, %s23, 1
      %s6640 = scalar_lea.vmem %s6, %s6639
      %p6641 = scmp.lt.s32.totalorder %s23, 1
      %s6642 = scalar_select %p6641, %s23, 1
      %s6643 = scalar_lea.vmem %s7, %s6642
      // Predicated region
      $region45: #{split_conv_csa_forward.8} parent=39 // pred_check
        %p6644 = pneg %p188
      $region46: #{split_conv_csa_forward.8} parent=39 // pred_check_branch
        %6646 = sbr.rel (%p6644) target = $region48
      $region47: #{split_conv_csa_forward.8} parent=39 // pred_region
        _
      $region48: #{split_conv_csa_forward.8} parent=39 // pred_fallthru
        _
      // Predicated region
      $region49: #{split_conv_csa_forward.8} parent=39 // pred_check
        %p6647 = pneg %p214
      $region50: #{split_conv_csa_forward.8} parent=39 // pred_check_branch
        %6649 = sbr.rel (%p6647) target = $region52
      $region51: #{split_conv_csa_forward.8} parent=39 // pred_region
        _
      $region52: #{split_conv_csa_forward.8} parent=39 // pred_fallthru
        _
      // Predicated region
      $region53: #{split_conv_csa_forward.8} parent=39 // pred_check
        %p6650 = pneg %p240
      $region54: #{split_conv_csa_forward.8} parent=39 // pred_check_branch
        %6652 = sbr.rel (%p6650) target = $region56
      $region55: #{split_conv_csa_forward.8} parent=39 // pred_region
        _
      $region56: #{split_conv_csa_forward.8} parent=39 // pred_fallthru
        _
    $region40: #{split_conv_csa_forward.8} parent=5 // pred_fallthru
      _
    %p6653 = scmp.le.s32.totalorder 2, %s14
    // Predicated region
    $region57: #{split_conv_csa_forward.8} parent=5 // pred_check
      %p6654 = pneg %p6653
    $region58: #{split_conv_csa_forward.8} parent=5 // pred_check_branch
      %6656 = sbr.rel (%p6654) target = $region60
    $region59: #{split_conv_csa_forward.8} parent=5 // pred_region
      %s6657 = ssub.s32 %s14, 2
      // Predicated region
      $region61: #{split_conv_csa_forward.8} parent=59 // pred_check
        %p6658 = pneg %p194
      $region62: #{split_conv_csa_forward.8} parent=59 // pred_check_branch
        %6660 = sbr.rel (%p6658) target = $region64
      $region63: #{split_conv_csa_forward.8} parent=59 // pred_region
        %p6661 = scmp.lt.s32.totalorder %s25, 1
        %s6662 = scalar_select %p6661, %s25, 1
        %p6663 = scmp.lt.s32.totalorder %s26, 7
        %s6664 = scalar_select %p6663, %s26, 7
        %s6665 = smul.addr %s6664, 16
        %s6666 = smul.addr %s6662, 128
        %s6667 = sadd.s32 %s6665, %s6666
        %s6668 = smul.addr %s6667, 8
        %s6669 = scalar_lea.vmem %s5, %s6668
      $region64: #{split_conv_csa_forward.8} parent=59 // pred_fallthru
        _
      // Predicated region
      $region65: #{split_conv_csa_forward.8} parent=59 // pred_check
        %p6670 = pneg %p220
      $region66: #{split_conv_csa_forward.8} parent=59 // pred_check_branch
        %6672 = sbr.rel (%p6670) target = $region68
      $region67: #{split_conv_csa_forward.8} parent=59 // pred_region
        %p6673 = scmp.lt.s32.totalorder %s25, 1
        %s6674 = scalar_select %p6673, %s25, 1
        %s6675 = scalar_lea.vmem %s6, %s6674
      $region68: #{split_conv_csa_forward.8} parent=59 // pred_fallthru
        _
      // Predicated region
      $region69: #{split_conv_csa_forward.8} parent=59 // pred_check
        %p6676 = pneg %p246
      $region70: #{split_conv_csa_forward.8} parent=59 // pred_check_branch
        %6678 = sbr.rel (%p6676) target = $region72
      $region71: #{split_conv_csa_forward.8} parent=59 // pred_region
        %p6679 = scmp.lt.s32.totalorder %s25, 1
        %s6680 = scalar_select %p6679, %s25, 1
        %s6681 = scalar_lea.vmem %s7, %s6680
      $region72: #{split_conv_csa_forward.8} parent=59 // pred_fallthru
        _
    $region60: #{split_conv_csa_forward.8} parent=5 // pred_fallthru
      _
  $region6: #{split_conv_csa_forward.8} parent=0 // loop_footer
    %s18 = sadd.s32 1, %s14
  $region7: #{split_conv_csa_forward.8} parent=0 // loop_footer_branch
    %13 = sbr.rel target = $region3
  $region8: #{split_conv_csa_forward.8} parent=0 // loop_exit
    _

// kernel: split_conv_csa_forward.11
$region0: #{split_conv_csa_forward.11}
  #allocation0 [shape = 'u32[]', space=smem, size = 0x4, offset = 0x4, fixed_abs, tag = 'smem constant byte address 0x4 - core index']
  #allocation1 [shape = 'u32[144,128]{1,0:T(1,128)}', space=vmem, size = 0x12000, scoped, tag = 'internal scratch']
  %s0 = inlined_call_operand.vmem [shape: f32[2,8,128,32], index: 0, kind: input, shape index: {}]
  %s1 = inlined_call_operand.vmem [shape: f32[2,1,32], index: 1, kind: input, shape index: {}]
  %s2 = inlined_call_operand.vmem [shape: f32[2,1,32], index: 2, kind: input, shape index: {}]
  %s3 = inlined_call_operand.vmem [shape: f32[2,1,32], index: 3, kind: input, shape index: {}]
  %s4 = inlined_call_operand.vmem [shape: f32[2,1,32], index: 4, kind: input, shape index: {}]
  %s5 = inlined_call_operand.vmem [shape: f32[10,128,1], index: 5, kind: input, shape index: {}]
  %s6 = inlined_call_operand.vmem [shape: f32[2,8,128,32], index: 6, kind: output, shape index: {}]
  %s7 = sld [smem:[#allocation0]]
  $region57: #{split_conv_csa_forward.11} parent=0
    _
  %s9 = ssub.s32 1, %s7
  %s10 = scalar_select 0, %s9, %s7
  loop: start=0, step=1, limit=18
  $region2: #{split_conv_csa_forward.11} parent=0 // loop_pre_header
    _
  $region3: #{split_conv_csa_forward.11} parent=0 // loop_header
    %s12 = sphi 0, %s16
    %p13 = scmp.ge.s32.totalorder %s12, 18
    %s19 = sphi 0, %s31
    %s20 = sphi 0, %s27
    %s21 = sphi 0, %s19
    %s22 = sphi 0, %s20
    %s23 = sphi 0, %s21
    %s24 = sphi 0, %s22
    %s36 = sphi 0, %s38
    %s39 = sphi 0, %s36
    %s40 = sphi 0, %s39
    %s56 = sphi 0, %s40
    %s62 = sphi 0, %s64
    %s65 = sphi 0, %s62
    %s66 = sphi 0, %s65
    %s82 = sphi 0, %s66
    %s88 = sphi 0, %s90
    %s91 = sphi 0, %s88
    %s92 = sphi 0, %s91
    %s108 = sphi 0, %s92
    %s114 = sphi 0, %s116
    %s117 = sphi 0, %s114
    %s118 = sphi 0, %s117
    %s134 = sphi 0, %s118
    %s140 = sphi 0, %s142
    %s143 = sphi 0, %s140
    %s144 = sphi 0, %s143
    %s160 = sphi 0, %s144
    %s168 = sphi 0, %s170
    %s171 = sphi 0, %s168
    %s172 = sphi 0, %s171
    %s188 = sphi 0, %s172
    %s196 = sphi 0, %s198
    %s199 = sphi 0, %s196
    %s200 = sphi 0, %s199
    %s216 = sphi 0, %s200
  $region4: #{split_conv_csa_forward.11} parent=0 // loop_header_branch
    %15 = sbr.rel (%p13) target = $region8
  $region5: #{split_conv_csa_forward.11} parent=0 // loop_body
    %s17 = ssub.s32 %s12, 1
    %s18 = ssub.s32 %s12, 2
    %s25 = sadd.s32 1, %s20
    %p26 = scmp.ge.s32.totalorder %s25, 8
    %s27 = scalar_select %p26, 0, %s25
    %s28 = sadd.s32 1, %s19
    %s29 = scalar_select %p26, %s28, %s19
    %p30 = scmp.ge.s32.totalorder %s29, 2
    %s31 = scalar_select %p30, 0, %s29
    %s32 = ssub.s32 %s19, %s31
    %s33 = ssub.s32 %s20, %s27
    %s34 = sor.u32 %s32, %s33
    %p35 = scmp.eq.s32.totalorder %s34, 0
    %s37 = sadd.s32 %s36, 1
    %s38 = scalar_select %p35, %s36, %s37
    %p41 = pneg %p35
    %p42 = scmp.eq.s32.totalorder %s12, 15
    %p43 = por %p41, %p42
    %p44 = scmp.ne.s32.totalorder %s36, %s39
    %p45 = scmp.eq.s32.totalorder %s12, 0
    %p46 = por %p44, %p45
    %p47 = scmp.ne.s32.totalorder %s36, %s39
    %p48 = scmp.eq.s32.totalorder %s17, 15
    %p49 = por %p47, %p48
    %p50 = scmp.ne.s32.totalorder %s39, %s40
    %p51 = scmp.eq.s32.totalorder %s17, 0
    %p52 = por %p50, %p51
    %p53 = scmp.ne.s32.totalorder %s39, %s40
    %p54 = scmp.eq.s32.totalorder %s18, 15
    %p55 = por %p53, %p54
    %p57 = scmp.ne.s32.totalorder %s40, %s56
    %p58 = scmp.eq.s32.totalorder %s18, 0
    %p59 = por %p57, %p58
    %s60 = ssub.s32 %s19, %s31
    %p61 = scmp.eq.s32.totalorder %s60, 0
    %s63 = sadd.s32 %s62, 1
    %s64 = scalar_select %p61, %s62, %s63
    %p67 = pneg %p61
    %p68 = scmp.eq.s32.totalorder %s12, 15
    %p69 = por %p67, %p68
    %p70 = scmp.ne.s32.totalorder %s62, %s65
    %p71 = scmp.eq.s32.totalorder %s12, 0
    %p72 = por %p70, %p71
    %p73 = scmp.ne.s32.totalorder %s62, %s65
    %p74 = scmp.eq.s32.totalorder %s17, 15
    %p75 = por %p73, %p74
    %p76 = scmp.ne.s32.totalorder %s65, %s66
    %p77 = scmp.eq.s32.totalorder %s17, 0
    %p78 = por %p76, %p77
    %p79 = scmp.ne.s32.totalorder %s65, %s66
    %p80 = scmp.eq.s32.totalorder %s18, 15
    %p81 = por %p79, %p80
    %p83 = scmp.ne.s32.totalorder %s66, %s82
    %p84 = scmp.eq.s32.totalorder %s18, 0
    %p85 = por %p83, %p84
    %s86 = ssub.s32 %s19, %s31
    %p87 = scmp.eq.s32.totalorder %s86, 0
    %s89 = sadd.s32 %s88, 1
    %s90 = scalar_select %p87, %s88, %s89
    %p93 = pneg %p87
    %p94 = scmp.eq.s32.totalorder %s12, 15
    %p95 = por %p93, %p94
    %p96 = scmp.ne.s32.totalorder %s88, %s91
    %p97 = scmp.eq.s32.totalorder %s12, 0
    %p98 = por %p96, %p97
    %p99 = scmp.ne.s32.totalorder %s88, %s91
    %p100 = scmp.eq.s32.totalorder %s17, 15
    %p101 = por %p99, %p100
    %p102 = scmp.ne.s32.totalorder %s91, %s92
    %p103 = scmp.eq.s32.totalorder %s17, 0
    %p104 = por %p102, %p103
    %p105 = scmp.ne.s32.totalorder %s91, %s92
    %p106 = scmp.eq.s32.totalorder %s18, 15
    %p107 = por %p105, %p106
    %p109 = scmp.ne.s32.totalorder %s92, %s108
    %p110 = scmp.eq.s32.totalorder %s18, 0
    %p111 = por %p109, %p110
    %s112 = ssub.s32 %s19, %s31
    %p113 = scmp.eq.s32.totalorder %s112, 0
    %s115 = sadd.s32 %s114, 1
    %s116 = scalar_select %p113, %s114, %s115
    %p119 = pneg %p113
    %p120 = scmp.eq.s32.totalorder %s12, 15
    %p121 = por %p119, %p120
    %p122 = scmp.ne.s32.totalorder %s114, %s117
    %p123 = scmp.eq.s32.totalorder %s12, 0
    %p124 = por %p122, %p123
    %p125 = scmp.ne.s32.totalorder %s114, %s117
    %p126 = scmp.eq.s32.totalorder %s17, 15
    %p127 = por %p125, %p126
    %p128 = scmp.ne.s32.totalorder %s117, %s118
    %p129 = scmp.eq.s32.totalorder %s17, 0
    %p130 = por %p128, %p129
    %p131 = scmp.ne.s32.totalorder %s117, %s118
    %p132 = scmp.eq.s32.totalorder %s18, 15
    %p133 = por %p131, %p132
    %p135 = scmp.ne.s32.totalorder %s118, %s134
    %p136 = scmp.eq.s32.totalorder %s18, 0
    %p137 = por %p135, %p136
    %s138 = ssub.s32 %s19, %s31
    %p139 = scmp.eq.s32.totalorder %s138, 0
    %s141 = sadd.s32 %s140, 1
    %s142 = scalar_select %p139, %s140, %s141
    %p145 = pneg %p139
    %p146 = scmp.eq.s32.totalorder %s12, 15
    %p147 = por %p145, %p146
    %p148 = scmp.ne.s32.totalorder %s140, %s143
    %p149 = scmp.eq.s32.totalorder %s12, 0
    %p150 = por %p148, %p149
    %p151 = scmp.ne.s32.totalorder %s140, %s143
    %p152 = scmp.eq.s32.totalorder %s17, 15
    %p153 = por %p151, %p152
    %p154 = scmp.ne.s32.totalorder %s143, %s144
    %p155 = scmp.eq.s32.totalorder %s17, 0
    %p156 = por %p154, %p155
    %p157 = scmp.ne.s32.totalorder %s143, %s144
    %p158 = scmp.eq.s32.totalorder %s18, 15
    %p159 = por %p157, %p158
    %p161 = scmp.ne.s32.totalorder %s144, %s160
    %p162 = scmp.eq.s32.totalorder %s18, 0
    %p163 = por %p161, %p162
    %s164 = sadd.s32 %s20, 1
    %s165 = sadd.s32 %s27, 1
    %s166 = ssub.s32 %s164, %s165
    %p167 = scmp.eq.s32.totalorder %s166, 0
    %s169 = sadd.s32 %s168, 1
    %s170 = scalar_select %p167, %s168, %s169
    %p173 = pneg %p167
    %p174 = scmp.eq.s32.totalorder %s12, 15
    %p175 = por %p173, %p174
    %p176 = scmp.ne.s32.totalorder %s168, %s171
    %p177 = scmp.eq.s32.totalorder %s12, 0
    %p178 = por %p176, %p177
    %p179 = scmp.ne.s32.totalorder %s168, %s171
    %p180 = scmp.eq.s32.totalorder %s17, 15
    %p181 = por %p179, %p180
    %p182 = scmp.ne.s32.totalorder %s171, %s172
    %p183 = scmp.eq.s32.totalorder %s17, 0
    %p184 = por %p182, %p183
    %p185 = scmp.ne.s32.totalorder %s171, %s172
    %p186 = scmp.eq.s32.totalorder %s18, 15
    %p187 = por %p185, %p186
    %p189 = scmp.ne.s32.totalorder %s172, %s188
    %p190 = scmp.eq.s32.totalorder %s18, 0
    %p191 = por %p189, %p190
    %s192 = ssub.s32 %s19, %s31
    %s193 = ssub.s32 %s20, %s27
    %s194 = sor.u32 %s192, %s193
    %p195 = scmp.eq.s32.totalorder %s194, 0
    %s197 = sadd.s32 %s196, 1
    %s198 = scalar_select %p195, %s196, %s197
    %p201 = pneg %p195
    %p202 = scmp.eq.s32.totalorder %s12, 15
    %p203 = por %p201, %p202
    %p204 = scmp.ne.s32.totalorder %s196, %s199
    %p205 = scmp.eq.s32.totalorder %s12, 0
    %p206 = por %p204, %p205
    %p207 = scmp.ne.s32.totalorder %s196, %s199
    %p208 = scmp.eq.s32.totalorder %s17, 15
    %p209 = por %p207, %p208
    %p210 = scmp.ne.s32.totalorder %s199, %s200
    %p211 = scmp.eq.s32.totalorder %s17, 0
    %p212 = por %p210, %p211
    %p213 = scmp.ne.s32.totalorder %s199, %s200
    %p214 = scmp.eq.s32.totalorder %s18, 15
    %p215 = por %p213, %p214
    %p217 = scmp.ne.s32.totalorder %s200, %s216
    %p218 = scmp.eq.s32.totalorder %s18, 0
    %p219 = por %p217, %p218
    %p220 = scmp.le.s32.totalorder 1, %s12
    %p221 = scmp.lt.s32.totalorder %s12, 17
    %p222 = pnand %p220, %p221
    %p223 = pneg %p222
    // Predicated region
    $region9: #{split_conv_csa_forward.11} parent=5 // pred_check
      _
    $region10: #{split_conv_csa_forward.11} parent=5 // pred_check_branch
      %225 = sbr.rel (%p222) target = $region12
    $region11: #{split_conv_csa_forward.11} parent=5 // pred_region
      %s226 = ssub.s32 %s12, 1
    $region12: #{split_conv_csa_forward.11} parent=5 // pred_fallthru
      _
    %p227 = scmp.lt.s32.totalorder %s12, 16
    // Predicated region
    $region13: #{split_conv_csa_forward.11} parent=5 // pred_check
      %p228 = pneg %p227
    $region14: #{split_conv_csa_forward.11} parent=5 // pred_check_branch
      %230 = sbr.rel (%p228) target = $region16
    $region15: #{split_conv_csa_forward.11} parent=5 // pred_region
      // Predicated region
      $region17: #{split_conv_csa_forward.11} parent=15 // pred_check
        %p231 = pneg %p46
      $region18: #{split_conv_csa_forward.11} parent=15 // pred_check_branch
        %233 = sbr.rel (%p231) target = $region20
      $region19: #{split_conv_csa_forward.11} parent=15 // pred_region
        %p234 = scmp.lt.s32.totalorder %s19, 1
        %s235 = scalar_select %p234, %s19, 1
        %p236 = scmp.lt.s32.totalorder %s20, 7
        %s237 = scalar_select %p236, %s20, 7
        %s238 = smul.addr %s237, 16
        %s239 = smul.addr %s235, 128
        %s240 = sadd.s32 %s238, %s239
        %s241 = smul.addr %s240, 8
        %s242 = scalar_lea.vmem %s0, %s241
      $region20: #{split_conv_csa_forward.11} parent=15 // pred_fallthru
        _
      // Predicated region
      $region21: #{split_conv_csa_forward.11} parent=15 // pred_check
        %p243 = pneg %p72
      $region22: #{split_conv_csa_forward.11} parent=15 // pred_check_branch
        %245 = sbr.rel (%p243) target = $region24
      $region23: #{split_conv_csa_forward.11} parent=15 // pred_region
        %p246 = scmp.lt.s32.totalorder %s19, 1
        %s247 = scalar_select %p246, %s19, 1
        %s248 = scalar_lea.vmem %s1, %s247
      $region24: #{split_conv_csa_forward.11} parent=15 // pred_fallthru
        _
      // Predicated region
      $region25: #{split_conv_csa_forward.11} parent=15 // pred_check
        %p249 = pneg %p98
      $region26: #{split_conv_csa_forward.11} parent=15 // pred_check_branch
        %251 = sbr.rel (%p249) target = $region28
      $region27: #{split_conv_csa_forward.11} parent=15 // pred_region
        %p252 = scmp.lt.s32.totalorder %s19, 1
        %s253 = scalar_select %p252, %s19, 1
        %s254 = scalar_lea.vmem %s2, %s253
      $region28: #{split_conv_csa_forward.11} parent=15 // pred_fallthru
        _
      // Predicated region
      $region29: #{split_conv_csa_forward.11} parent=15 // pred_check
        %p255 = pneg %p124
      $region30: #{split_conv_csa_forward.11} parent=15 // pred_check_branch
        %257 = sbr.rel (%p255) target = $region32
      $region31: #{split_conv_csa_forward.11} parent=15 // pred_region
        %p258 = scmp.lt.s32.totalorder %s19, 1
        %s259 = scalar_select %p258, %s19, 1
        %s260 = scalar_lea.vmem %s3, %s259
      $region32: #{split_conv_csa_forward.11} parent=15 // pred_fallthru
        _
      // Predicated region
      $region33: #{split_conv_csa_forward.11} parent=15 // pred_check
        %p261 = pneg %p150
      $region34: #{split_conv_csa_forward.11} parent=15 // pred_check_branch
        %263 = sbr.rel (%p261) target = $region36
      $region35: #{split_conv_csa_forward.11} parent=15 // pred_region
        %p264 = scmp.lt.s32.totalorder %s19, 1
        %s265 = scalar_select %p264, %s19, 1
        %s266 = scalar_lea.vmem %s4, %s265
      $region36: #{split_conv_csa_forward.11} parent=15 // pred_fallthru
        _
      // Predicated region
      $region37: #{split_conv_csa_forward.11} parent=15 // pred_check
        %p267 = pneg %p178
      $region38: #{split_conv_csa_forward.11} parent=15 // pred_check_branch
        %269 = sbr.rel (%p267) target = $region40
      $region39: #{split_conv_csa_forward.11} parent=15 // pred_region
        %s270 = sadd.s32 %s20, 1
        %p271 = scmp.lt.s32.totalorder %s270, 9
        %s272 = scalar_select %p271, %s270, 9
        %s273 = smul.addr %s272, 16
        %s274 = smul.addr %s273, 8
        %s275 = scalar_lea.vmem %s5, %s274
        %s276 = sadd.s32 %s20, 1
      $region40: #{split_conv_csa_forward.11} parent=15 // pred_fallthru
        _
    $region16: #{split_conv_csa_forward.11} parent=5 // pred_fallthru
      _
    %p277 = scmp.le.s32.totalorder 1, %s12
    %p278 = scmp.lt.s32.totalorder %s12, 17
    %p279 = pnand %p277, %p278
    %p280 = pneg %p279
    // Predicated region
    $region41: #{split_conv_csa_forward.11} parent=5 // pred_check
      _
    $region42: #{split_conv_csa_forward.11} parent=5 // pred_check_branch
      %282 = sbr.rel (%p279) target = $region44
    $region43: #{split_conv_csa_forward.11} parent=5 // pred_region
      %s283 = ssub.s32 %s12, 1
      %p284 = scmp.lt.s32.totalorder %s21, 1
      %s285 = scalar_select %p284, %s21, 1
      %p286 = scmp.lt.s32.totalorder %s22, 7
      %s287 = scalar_select %p286, %s22, 7
      %s288 = smul.addr %s287, 16
      %s289 = smul.addr %s285, 128
      %s290 = sadd.s32 %s288, %s289
      %s291 = smul.addr %s290, 8
      %s292 = scalar_lea.vmem %s0, %s291
      %p293 = pneg %p52
      %p294 = pneg %p49
      %p295 = scmp.lt.s32.totalorder %s21, 1
      %s296 = scalar_select %p295, %s21, 1
      %s297 = scalar_lea.vmem %s1, %s296
      %p298 = pneg %p78
      %p299 = pneg %p75
      %p300 = scmp.lt.s32.totalorder %s21, 1
      %s301 = scalar_select %p300, %s21, 1
      %s302 = scalar_lea.vmem %s2, %s301
      %p303 = pneg %p104
      %p304 = pneg %p101
      %p305 = scmp.lt.s32.totalorder %s21, 1
      %s306 = scalar_select %p305, %s21, 1
      %s307 = scalar_lea.vmem %s3, %s306
      %p308 = pneg %p130
      %p309 = pneg %p127
      %p310 = scmp.lt.s32.totalorder %s21, 1
      %s311 = scalar_select %p310, %s21, 1
      %s312 = scalar_lea.vmem %s4, %s311
      %p313 = pneg %p156
      %p314 = pneg %p153
      %s315 = sadd.s32 %s22, 1
      %p316 = scmp.lt.s32.totalorder %s315, 9
      %s317 = scalar_select %p316, %s315, 9
      %s318 = smul.addr %s317, 16
      %s319 = smul.addr %s318, 8
      %s320 = scalar_lea.vmem %s5, %s319
      %p321 = pneg %p184
      %p322 = pneg %p181
      %p323 = pneg %p212
      %p324 = pneg %p209
      %p325 = scmp.lt.s32.totalorder %s21, 1
      %s326 = scalar_select %p325, %s21, 1
      %p327 = scmp.lt.s32.totalorder %s22, 7
      %s328 = scalar_select %p327, %s22, 7
      %s329 = smul.addr %s328, 16
      %s330 = smul.addr %s326, 128
      %s331 = sadd.s32 %s329, %s330
      %s332 = smul.addr %s331, 8
      %s333 = scalar_lea.vmem %s6, %s332
      %p334 = scmp.lt.s32.totalorder %s21, 1
      %s335 = scalar_select %p334, %s21, 1
      %p336 = scmp.lt.s32.totalorder %s22, 7
      %s337 = scalar_select %p336, %s22, 7
      %s338 = smul.addr %s337, 16
      %s339 = smul.addr %s335, 128
      %s340 = sadd.s32 %s338, %s339
      %s341 = smul.addr %s340, 8
      %s342 = scalar_lea.vmem %s0, %s341
      %p343 = scmp.lt.s32.totalorder %s21, 1
      %s344 = scalar_select %p343, %s21, 1
      %s345 = scalar_lea.vmem %s1, %s344
      %p346 = scmp.lt.s32.totalorder %s21, 1
      %s347 = scalar_select %p346, %s21, 1
      %s348 = scalar_lea.vmem %s2, %s347
      %p349 = scmp.lt.s32.totalorder %s21, 1
      %s350 = scalar_select %p349, %s21, 1
      %s351 = scalar_lea.vmem %s3, %s350
      %p352 = scmp.lt.s32.totalorder %s21, 1
      %s353 = scalar_select %p352, %s21, 1
      %s354 = scalar_lea.vmem %s4, %s353
      %s355 = sadd.s32 %s22, 1
      %p356 = scmp.lt.s32.totalorder %s355, 9
      %s357 = scalar_select %p356, %s355, 9
      %s358 = smul.addr %s357, 16
      %s359 = smul.addr %s358, 8
      %s360 = scalar_lea.vmem %s5, %s359
      %s361 = sadd.s32 %s22, 1
      %p362 = scmp.lt.s32.totalorder %s21, 1
      %s363 = scalar_select %p362, %s21, 1
      %p364 = scmp.lt.s32.totalorder %s22, 7
      %s365 = scalar_select %p364, %s22, 7
      %s366 = smul.addr %s365, 16
      %s367 = smul.addr %s363, 128
      %s368 = sadd.s32 %s366, %s367
      %s369 = smul.addr %s368, 8
      %s370 = scalar_lea.vmem %s6, %s369
      %v371 = vld [vmem:[%s342] sm:$0xff]
      %v372 = vld [vmem:[%s342 + $0x8] sm:$0xff]
      %v373 = vld [vmem:[%s342 + $0x10] sm:$0xff]
      %v374 = vld [vmem:[%s342 + $0x18] sm:$0xff]
      %v375 = vld [vmem:[%s342 + $0x20] sm:$0xff]
      %v376 = vld [vmem:[%s342 + $0x28] sm:$0xff]
      %v377 = vld [vmem:[%s342 + $0x30] sm:$0xff]
      %v378 = vld [vmem:[%s342 + $0x38] sm:$0xff]
      %v379 = vld [vmem:[%s342 + $0x40] sm:$0xff]
      %v380 = vld [vmem:[%s342 + $0x48] sm:$0xff]
      %v381 = vld [vmem:[%s342 + $0x50] sm:$0xff]
      %v382 = vld [vmem:[%s342 + $0x58] sm:$0xff]
      %v383 = vld [vmem:[%s342 + $0x60] sm:$0xff]
      %v384 = vld [vmem:[%s342 + $0x68] sm:$0xff]
      %v385 = vld [vmem:[%s342 + $0x70] sm:$0xff]
      %v386 = vld [vmem:[%s342 + $0x78] sm:$0xff]
      %v387 = vld [vmem:[%s345] sm:$0x1]
      %v388 = vmul.f32 %v387, 0.001953125
      %v389 = vld [vmem:[%s348] sm:$0x1]
      %v390 = vmul.f32 %v389, 0.001953125
      %v391 = vmul.f32 %v388, %v388
      %v392 = vsub.f32 %v390, %v391
      %v393 = vmax.f32 %v392, 0.0
      %v395 = vlaneseq
      %v396 = vshrl.u32 %v395, 7
      %v397 = vsub.s32 0, %v396
      %v398 = vrot.slane %v388, %v397
      %v400 = vsub.f32 %v371, %v398
      %v401 = vsub.f32 %v372, %v398
      %v402 = vsub.f32 %v373, %v398
      %v403 = vsub.f32 %v374, %v398
      %v404 = vsub.f32 %v375, %v398
      %v405 = vsub.f32 %v376, %v398
      %v406 = vsub.f32 %v377, %v398
      %v407 = vsub.f32 %v378, %v398
      %v408 = vsub.f32 %v379, %v398
      %v409 = vsub.f32 %v380, %v398
      %v410 = vsub.f32 %v381, %v398
      %v411 = vsub.f32 %v382, %v398
      %v412 = vsub.f32 %v383, %v398
      %v413 = vsub.f32 %v384, %v398
      %v414 = vsub.f32 %v385, %v398
      %v415 = vsub.f32 %v386, %v398
      %v416 = vadd.f32 %v393, 1e-05
      %v417 = vrsqrt.pop %v416
      %v419 = vlaneseq
      %v420 = vshrl.u32 %v419, 7
      %v421 = vsub.s32 0, %v420
      %v422 = vrot.slane %v417, %v421
      %v424 = vmul.f32 %v400, %v422
      %v425 = vmul.f32 %v401, %v422
      %v426 = vmul.f32 %v402, %v422
      %v427 = vmul.f32 %v403, %v422
      %v428 = vmul.f32 %v404, %v422
      %v429 = vmul.f32 %v405, %v422
      %v430 = vmul.f32 %v406, %v422
      %v431 = vmul.f32 %v407, %v422
      %v432 = vmul.f32 %v408, %v422
      %v433 = vmul.f32 %v409, %v422
      %v434 = vmul.f32 %v410, %v422
      %v435 = vmul.f32 %v411, %v422
      %v436 = vmul.f32 %v412, %v422
      %v437 = vmul.f32 %v413, %v422
      %v438 = vmul.f32 %v414, %v422
      %v439 = vmul.f32 %v415, %v422
      %v440 = vld [vmem:[%s351] sm:$0x1]
      %v442 = vlaneseq
      %v443 = vshrl.u32 %v442, 7
      %v444 = vsub.s32 0, %v443
      %v445 = vrot.slane %v440, %v444
      %v447 = vmul.f32 %v424, %v445
      %v448 = vmul.f32 %v425, %v445
      %v449 = vmul.f32 %v426, %v445
      %v450 = vmul.f32 %v427, %v445
      %v451 = vmul.f32 %v428, %v445
      %v452 = vmul.f32 %v429, %v445
      %v453 = vmul.f32 %v430, %v445
      %v454 = vmul.f32 %v431, %v445
      %v455 = vmul.f32 %v432, %v445
      %v456 = vmul.f32 %v433, %v445
      %v457 = vmul.f32 %v434, %v445
      %v458 = vmul.f32 %v435, %v445
      %v459 = vmul.f32 %v436, %v445
      %v460 = vmul.f32 %v437, %v445
      %v461 = vmul.f32 %v438, %v445
      %v462 = vmul.f32 %v439, %v445
      %v463 = vld [vmem:[%s354] sm:$0x1]
      %v465 = vlaneseq
      %v466 = vshrl.u32 %v465, 7
      %v467 = vsub.s32 0, %v466
      %v468 = vrot.slane %v463, %v467
      %v470 = vadd.f32 %v447, %v468
      %v471 = vadd.f32 %v448, %v468
      %v472 = vadd.f32 %v449, %v468
      %v473 = vadd.f32 %v450, %v468
      %v474 = vadd.f32 %v451, %v468
      %v475 = vadd.f32 %v452, %v468
      %v476 = vadd.f32 %v453, %v468
      %v477 = vadd.f32 %v454, %v468
      %v478 = vadd.f32 %v455, %v468
      %v479 = vadd.f32 %v456, %v468
      %v480 = vadd.f32 %v457, %v468
      %v481 = vadd.f32 %v458, %v468
      %v482 = vadd.f32 %v459, %v468
      %v483 = vadd.f32 %v460, %v468
      %v484 = vadd.f32 %v461, %v468
      %v485 = vadd.f32 %v462, %v468
      %vm486 = vcmp.gt.f32.partialorder %v470, 0.0
      %vm487 = vcmp.gt.f32.partialorder %v471, 0.0
      %vm488 = vcmp.gt.f32.partialorder %v472, 0.0
      %vm489 = vcmp.gt.f32.partialorder %v473, 0.0
      %vm490 = vcmp.gt.f32.partialorder %v474, 0.0
      %vm491 = vcmp.gt.f32.partialorder %v475, 0.0
      %vm492 = vcmp.gt.f32.partialorder %v476, 0.0
      %vm493 = vcmp.gt.f32.partialorder %v477, 0.0
      %vm494 = vcmp.gt.f32.partialorder %v478, 0.0
      %vm495 = vcmp.gt.f32.partialorder %v479, 0.0
      %vm496 = vcmp.gt.f32.partialorder %v480, 0.0
      %vm497 = vcmp.gt.f32.partialorder %v481, 0.0
      %vm498 = vcmp.gt.f32.partialorder %v482, 0.0
      %vm499 = vcmp.gt.f32.partialorder %v483, 0.0
      %vm500 = vcmp.gt.f32.partialorder %v484, 0.0
      %vm501 = vcmp.gt.f32.partialorder %v485, 0.0
      %v502 = vmul.f32 %v470, 0.01
      %v503 = vmul.f32 %v471, 0.01
      %v504 = vmul.f32 %v472, 0.01
      %v505 = vmul.f32 %v473, 0.01
      %v506 = vmul.f32 %v474, 0.01
      %v507 = vmul.f32 %v475, 0.01
      %v508 = vmul.f32 %v476, 0.01
      %v509 = vmul.f32 %v477, 0.01
      %v510 = vmul.f32 %v478, 0.01
      %v511 = vmul.f32 %v479, 0.01
      %v512 = vmul.f32 %v480, 0.01
      %v513 = vmul.f32 %v481, 0.01
      %v514 = vmul.f32 %v482, 0.01
      %v515 = vmul.f32 %v483, 0.01
      %v516 = vmul.f32 %v484, 0.01
      %v517 = vmul.f32 %v485, 0.01
      %v518 = vsel %vm486, %v470, %v502
      %v519 = vsel %vm487, %v471, %v503
      %v520 = vsel %vm488, %v472, %v504
      %v521 = vsel %vm489, %v473, %v505
      %v522 = vsel %vm490, %v474, %v506
      %v523 = vsel %vm491, %v475, %v507
      %v524 = vsel %vm492, %v476, %v508
      %v525 = vsel %vm493, %v477, %v509
      %v526 = vsel %vm494, %v478, %v510
      %v527 = vsel %vm495, %v479, %v511
      %v528 = vsel %vm496, %v480, %v512
      %v529 = vsel %vm497, %v481, %v513
      %v530 = vsel %vm498, %v482, %v514
      %v531 = vsel %vm499, %v483, %v515
      %v532 = vsel %vm500, %v484, %v516
      %v533 = vsel %vm501, %v485, %v517
      %v534 = vld [vmem:[%s360] sm:$0xff]
      %v535 = vld [vmem:[%s360 + $0x8] sm:$0xff]
      %v536 = vld [vmem:[%s360 + $0x10] sm:$0xff]
      %v537 = vld [vmem:[%s360 + $0x18] sm:$0xff]
      %v538 = vld [vmem:[%s360 + $0x20] sm:$0xff]
      %v539 = vld [vmem:[%s360 + $0x28] sm:$0xff]
      %v540 = vld [vmem:[%s360 + $0x30] sm:$0xff]
      %v541 = vld [vmem:[%s360 + $0x38] sm:$0xff]
      %v542 = vld [vmem:[%s360 + $0x40] sm:$0xff]
      %v543 = vld [vmem:[%s360 + $0x48] sm:$0xff]
      %v544 = vld [vmem:[%s360 + $0x50] sm:$0xff]
      %v545 = vld [vmem:[%s360 + $0x58] sm:$0xff]
      %v546 = vld [vmem:[%s360 + $0x60] sm:$0xff]
      %v547 = vld [vmem:[%s360 + $0x68] sm:$0xff]
      %v548 = vld [vmem:[%s360 + $0x70] sm:$0xff]
      %v549 = vld [vmem:[%s360 + $0x78] sm:$0xff]
      %551 = vset.pattern.permute.xlu0 0
      %552 = vperm.xlu0 %551, %v534
      %v553 = vpop.permute.xlu0 %552
      %556 = vset.pattern.permute.xlu0 0
      %557 = vperm.xlu0 %556, %v535
      %v558 = vpop.permute.xlu0 %557
      %561 = vset.pattern.permute.xlu0 0
      %562 = vperm.xlu0 %561, %v536
      %v563 = vpop.permute.xlu0 %562
      %566 = vset.pattern.permute.xlu0 0
      %567 = vperm.xlu0 %566, %v537
      %v568 = vpop.permute.xlu0 %567
      %571 = vset.pattern.permute.xlu0 0
      %572 = vperm.xlu0 %571, %v538
      %v573 = vpop.permute.xlu0 %572
      %576 = vset.pattern.permute.xlu0 0
      %577 = vperm.xlu0 %576, %v539
      %v578 = vpop.permute.xlu0 %577
      %581 = vset.pattern.permute.xlu0 0
      %582 = vperm.xlu0 %581, %v540
      %v583 = vpop.permute.xlu0 %582
      %586 = vset.pattern.permute.xlu0 0
      %587 = vperm.xlu0 %586, %v541
      %v588 = vpop.permute.xlu0 %587
      %591 = vset.pattern.permute.xlu0 0
      %592 = vperm.xlu0 %591, %v542
      %v593 = vpop.permute.xlu0 %592
      %596 = vset.pattern.permute.xlu0 0
      %597 = vperm.xlu0 %596, %v543
      %v598 = vpop.permute.xlu0 %597
      %601 = vset.pattern.permute.xlu0 0
      %602 = vperm.xlu0 %601, %v544
      %v603 = vpop.permute.xlu0 %602
      %606 = vset.pattern.permute.xlu0 0
      %607 = vperm.xlu0 %606, %v545
      %v608 = vpop.permute.xlu0 %607
      %611 = vset.pattern.permute.xlu0 0
      %612 = vperm.xlu0 %611, %v546
      %v613 = vpop.permute.xlu0 %612
      %616 = vset.pattern.permute.xlu0 0
      %617 = vperm.xlu0 %616, %v547
      %v618 = vpop.permute.xlu0 %617
      %621 = vset.pattern.permute.xlu0 0
      %622 = vperm.xlu0 %621, %v548
      %v623 = vpop.permute.xlu0 %622
      %626 = vset.pattern.permute.xlu0 0
      %627 = vperm.xlu0 %626, %v549
      %v628 = vpop.permute.xlu0 %627
      %v630 = vmul.f32 %v518, %v553
      %v631 = vmul.f32 %v519, %v558
      %v632 = vmul.f32 %v520, %v563
      %v633 = vmul.f32 %v521, %v568
      %v634 = vmul.f32 %v522, %v573
      %v635 = vmul.f32 %v523, %v578
      %v636 = vmul.f32 %v524, %v583
      %v637 = vmul.f32 %v525, %v588
      %v638 = vmul.f32 %v526, %v593
      %v639 = vmul.f32 %v527, %v598
      %v640 = vmul.f32 %v528, %v603
      %v641 = vmul.f32 %v529, %v608
      %v642 = vmul.f32 %v530, %v613
      %v643 = vmul.f32 %v531, %v618
      %v644 = vmul.f32 %v532, %v623
      %v645 = vmul.f32 %v533, %v628
      %vm646 = vcmask 261120
      %647 = vst.msk [vmem:[%s370] sm:$0xff] %vm646, %v630
      %648 = vst.msk [vmem:[%s370 + $0x8] sm:$0xff] %vm646, %v631
      %649 = vst.msk [vmem:[%s370 + $0x10] sm:$0xff] %vm646, %v632
      %650 = vst.msk [vmem:[%s370 + $0x18] sm:$0xff] %vm646, %v633
      %651 = vst.msk [vmem:[%s370 + $0x20] sm:$0xff] %vm646, %v634
      %652 = vst.msk [vmem:[%s370 + $0x28] sm:$0xff] %vm646, %v635
      %653 = vst.msk [vmem:[%s370 + $0x30] sm:$0xff] %vm646, %v636
      %654 = vst.msk [vmem:[%s370 + $0x38] sm:$0xff] %vm646, %v637
      %655 = vst.msk [vmem:[%s370 + $0x40] sm:$0xff] %vm646, %v638
      %656 = vst.msk [vmem:[%s370 + $0x48] sm:$0xff] %vm646, %v639
      %657 = vst.msk [vmem:[%s370 + $0x50] sm:$0xff] %vm646, %v640
      %658 = vst.msk [vmem:[%s370 + $0x58] sm:$0xff] %vm646, %v641
      %659 = vst.msk [vmem:[%s370 + $0x60] sm:$0xff] %vm646, %v642
      %660 = vst.msk [vmem:[%s370 + $0x68] sm:$0xff] %vm646, %v643
      %661 = vst.msk [vmem:[%s370 + $0x70] sm:$0xff] %vm646, %v644
      %662 = vst.msk [vmem:[%s370 + $0x78] sm:$0xff] %vm646, %v645
      %p663 = scmp.lt.s32.totalorder %s21, 1
      %s664 = scalar_select %p663, %s21, 1
      %p665 = scmp.lt.s32.totalorder %s22, 7
      %s666 = scalar_select %p665, %s22, 7
      %s667 = smul.addr %s666, 16
      %s668 = smul.addr %s664, 128
      %s669 = sadd.s32 %s667, %s668
      %s670 = smul.addr %s669, 8
      %s671 = scalar_lea.vmem %s6, %s670
      // Predicated region
      $region45: #{split_conv_csa_forward.11} parent=43 // pred_check
        %p672 = pneg %p209
      $region46: #{split_conv_csa_forward.11} parent=43 // pred_check_branch
        %674 = sbr.rel (%p672) target = $region48
      $region47: #{split_conv_csa_forward.11} parent=43 // pred_region
        _
      $region48: #{split_conv_csa_forward.11} parent=43 // pred_fallthru
        _
    $region44: #{split_conv_csa_forward.11} parent=5 // pred_fallthru
      _
    %p675 = scmp.le.s32.totalorder 2, %s12
    // Predicated region
    $region49: #{split_conv_csa_forward.11} parent=5 // pred_check
      %p676 = pneg %p675
    $region50: #{split_conv_csa_forward.11} parent=5 // pred_check_branch
      %678 = sbr.rel (%p676) target = $region52
    $region51: #{split_conv_csa_forward.11} parent=5 // pred_region
      %s679 = ssub.s32 %s12, 2
      // Predicated region
      $region53: #{split_conv_csa_forward.11} parent=51 // pred_check
        %p680 = pneg %p215
      $region54: #{split_conv_csa_forward.11} parent=51 // pred_check_branch
        %682 = sbr.rel (%p680) target = $region56
      $region55: #{split_conv_csa_forward.11} parent=51 // pred_region
        %p683 = scmp.lt.s32.totalorder %s23, 1
        %s684 = scalar_select %p683, %s23, 1
        %p685 = scmp.lt.s32.totalorder %s24, 7
        %s686 = scalar_select %p685, %s24, 7
        %s687 = smul.addr %s686, 16
        %s688 = smul.addr %s684, 128
        %s689 = sadd.s32 %s687, %s688
        %s690 = smul.addr %s689, 8
        %s691 = scalar_lea.vmem %s6, %s690
      $region56: #{split_conv_csa_forward.11} parent=51 // pred_fallthru
        _
    $region52: #{split_conv_csa_forward.11} parent=5 // pred_fallthru
      _
  $region6: #{split_conv_csa_forward.11} parent=0 // loop_footer
    %s16 = sadd.s32 1, %s12
  $region7: #{split_conv_csa_forward.11} parent=0 // loop_footer_branch
    %11 = sbr.rel target = $region3
  $region8: #{split_conv_csa_forward.11} parent=0 // loop_exit
    _

// kernel: split_conv_csa_forward.10
$region0: #{split_conv_csa_forward.10}
  #allocation0 [shape = 'u32[]', space=smem, size = 0x4, offset = 0x4, fixed_abs, tag = 'smem constant byte address 0x4 - core index']
  #allocation1 [shape = 'u32[144,128]{1,0:T(1,128)}', space=vmem, size = 0x12000, scoped, tag = 'internal scratch']
  %s0 = inlined_call_operand.vmem [shape: bf16[2,8,128,128], index: 0, kind: input, shape index: {}]
  %s1 = inlined_call_operand.vmem [shape: bf16[2,128,32], index: 1, kind: input, shape index: {}]
  %s2 = inlined_call_operand.vmem [shape: f32[10,128,1], index: 2, kind: input, shape index: {}]
  %s3 = inlined_call_operand.vmem [shape: f32[2,8,128,32], index: 3, kind: output, shape index: {0}]
  %s4 = inlined_call_operand.vmem [shape: f32[2,1,32], index: 4, kind: output, shape index: {1}]
  %s5 = inlined_call_operand.vmem [shape: f32[2,1,32], index: 5, kind: output, shape index: {2}]
  %6 = xla_tuple %s3, %s4, %s5
  %s7 = sld [smem:[#allocation0]]
  $region65: #{split_conv_csa_forward.10} parent=0
    _
  %s9 = ssub.s32 1, %s7
  %s10 = scalar_select 0, %s9, %s7
  loop: start=0, step=1, limit=18
  $region2: #{split_conv_csa_forward.10} parent=0 // loop_pre_header
    _
  $region3: #{split_conv_csa_forward.10} parent=0 // loop_header
    %s12 = sphi 0, %s16
    %p13 = scmp.ge.s32.totalorder %s12, 18
    %s19 = sphi 0, %s31
    %s20 = sphi 0, %s27
    %s21 = sphi 0, %s19
    %s22 = sphi 0, %s20
    %s23 = sphi 0, %s21
    %s24 = sphi 0, %s22
    %s36 = sphi 0, %s38
    %s39 = sphi 0, %s36
    %s40 = sphi 0, %s39
    %s56 = sphi 0, %s40
    %s62 = sphi 0, %s64
    %s65 = sphi 0, %s62
    %s66 = sphi 0, %s65
    %s82 = sphi 0, %s66
    %s90 = sphi 0, %s92
    %s93 = sphi 0, %s90
    %s94 = sphi 0, %s93
    %s110 = sphi 0, %s94
    %s118 = sphi 0, %s120
    %s121 = sphi 0, %s118
    %s122 = sphi 0, %s121
    %s138 = sphi 0, %s122
    %s144 = sphi 0, %s146
    %s147 = sphi 0, %s144
    %s148 = sphi 0, %s147
    %s164 = sphi 0, %s148
    %s170 = sphi 0, %s172
    %s173 = sphi 0, %s170
    %s174 = sphi 0, %s173
    %s190 = sphi 0, %s174
  $region4: #{split_conv_csa_forward.10} parent=0 // loop_header_branch
    %15 = sbr.rel (%p13) target = $region8
  $region5: #{split_conv_csa_forward.10} parent=0 // loop_body
    %s17 = ssub.s32 %s12, 1
    %s18 = ssub.s32 %s12, 2
    %s25 = sadd.s32 1, %s20
    %p26 = scmp.ge.s32.totalorder %s25, 8
    %s27 = scalar_select %p26, 0, %s25
    %s28 = sadd.s32 1, %s19
    %s29 = scalar_select %p26, %s28, %s19
    %p30 = scmp.ge.s32.totalorder %s29, 2
    %s31 = scalar_select %p30, 0, %s29
    %s32 = ssub.s32 %s19, %s31
    %s33 = ssub.s32 %s20, %s27
    %s34 = sor.u32 %s32, %s33
    %p35 = scmp.eq.s32.totalorder %s34, 0
    %s37 = sadd.s32 %s36, 1
    %s38 = scalar_select %p35, %s36, %s37
    %p41 = pneg %p35
    %p42 = scmp.eq.s32.totalorder %s12, 15
    %p43 = por %p41, %p42
    %p44 = scmp.ne.s32.totalorder %s36, %s39
    %p45 = scmp.eq.s32.totalorder %s12, 0
    %p46 = por %p44, %p45
    %p47 = scmp.ne.s32.totalorder %s36, %s39
    %p48 = scmp.eq.s32.totalorder %s17, 15
    %p49 = por %p47, %p48
    %p50 = scmp.ne.s32.totalorder %s39, %s40
    %p51 = scmp.eq.s32.totalorder %s17, 0
    %p52 = por %p50, %p51
    %p53 = scmp.ne.s32.totalorder %s39, %s40
    %p54 = scmp.eq.s32.totalorder %s18, 15
    %p55 = por %p53, %p54
    %p57 = scmp.ne.s32.totalorder %s40, %s56
    %p58 = scmp.eq.s32.totalorder %s18, 0
    %p59 = por %p57, %p58
    %s60 = ssub.s32 %s19, %s31
    %p61 = scmp.eq.s32.totalorder %s60, 0
    %s63 = sadd.s32 %s62, 1
    %s64 = scalar_select %p61, %s62, %s63
    %p67 = pneg %p61
    %p68 = scmp.eq.s32.totalorder %s12, 15
    %p69 = por %p67, %p68
    %p70 = scmp.ne.s32.totalorder %s62, %s65
    %p71 = scmp.eq.s32.totalorder %s12, 0
    %p72 = por %p70, %p71
    %p73 = scmp.ne.s32.totalorder %s62, %s65
    %p74 = scmp.eq.s32.totalorder %s17, 15
    %p75 = por %p73, %p74
    %p76 = scmp.ne.s32.totalorder %s65, %s66
    %p77 = scmp.eq.s32.totalorder %s17, 0
    %p78 = por %p76, %p77
    %p79 = scmp.ne.s32.totalorder %s65, %s66
    %p80 = scmp.eq.s32.totalorder %s18, 15
    %p81 = por %p79, %p80
    %p83 = scmp.ne.s32.totalorder %s66, %s82
    %p84 = scmp.eq.s32.totalorder %s18, 0
    %p85 = por %p83, %p84
    %s86 = sadd.s32 %s20, 1
    %s87 = sadd.s32 %s27, 1
    %s88 = ssub.s32 %s86, %s87
    %p89 = scmp.eq.s32.totalorder %s88, 0
    %s91 = sadd.s32 %s90, 1
    %s92 = scalar_select %p89, %s90, %s91
    %p95 = pneg %p89
    %p96 = scmp.eq.s32.totalorder %s12, 15
    %p97 = por %p95, %p96
    %p98 = scmp.ne.s32.totalorder %s90, %s93
    %p99 = scmp.eq.s32.totalorder %s12, 0
    %p100 = por %p98, %p99
    %p101 = scmp.ne.s32.totalorder %s90, %s93
    %p102 = scmp.eq.s32.totalorder %s17, 15
    %p103 = por %p101, %p102
    %p104 = scmp.ne.s32.totalorder %s93, %s94
    %p105 = scmp.eq.s32.totalorder %s17, 0
    %p106 = por %p104, %p105
    %p107 = scmp.ne.s32.totalorder %s93, %s94
    %p108 = scmp.eq.s32.totalorder %s18, 15
    %p109 = por %p107, %p108
    %p111 = scmp.ne.s32.totalorder %s94, %s110
    %p112 = scmp.eq.s32.totalorder %s18, 0
    %p113 = por %p111, %p112
    %s114 = ssub.s32 %s19, %s31
    %s115 = ssub.s32 %s20, %s27
    %s116 = sor.u32 %s114, %s115
    %p117 = scmp.eq.s32.totalorder %s116, 0
    %s119 = sadd.s32 %s118, 1
    %s120 = scalar_select %p117, %s118, %s119
    %p123 = pneg %p117
    %p124 = scmp.eq.s32.totalorder %s12, 15
    %p125 = por %p123, %p124
    %p126 = scmp.ne.s32.totalorder %s118, %s121
    %p127 = scmp.eq.s32.totalorder %s12, 0
    %p128 = por %p126, %p127
    %p129 = scmp.ne.s32.totalorder %s118, %s121
    %p130 = scmp.eq.s32.totalorder %s17, 15
    %p131 = por %p129, %p130
    %p132 = scmp.ne.s32.totalorder %s121, %s122
    %p133 = scmp.eq.s32.totalorder %s17, 0
    %p134 = por %p132, %p133
    %p135 = scmp.ne.s32.totalorder %s121, %s122
    %p136 = scmp.eq.s32.totalorder %s18, 15
    %p137 = por %p135, %p136
    %p139 = scmp.ne.s32.totalorder %s122, %s138
    %p140 = scmp.eq.s32.totalorder %s18, 0
    %p141 = por %p139, %p140
    %s142 = ssub.s32 %s19, %s31
    %p143 = scmp.eq.s32.totalorder %s142, 0
    %s145 = sadd.s32 %s144, 1
    %s146 = scalar_select %p143, %s144, %s145
    %p149 = pneg %p143
    %p150 = scmp.eq.s32.totalorder %s12, 15
    %p151 = por %p149, %p150
    %p152 = scmp.ne.s32.totalorder %s144, %s147
    %p153 = scmp.eq.s32.totalorder %s12, 0
    %p154 = por %p152, %p153
    %p155 = scmp.ne.s32.totalorder %s144, %s147
    %p156 = scmp.eq.s32.totalorder %s17, 15
    %p157 = por %p155, %p156
    %p158 = scmp.ne.s32.totalorder %s147, %s148
    %p159 = scmp.eq.s32.totalorder %s17, 0
    %p160 = por %p158, %p159
    %p161 = scmp.ne.s32.totalorder %s147, %s148
    %p162 = scmp.eq.s32.totalorder %s18, 15
    %p163 = por %p161, %p162
    %p165 = scmp.ne.s32.totalorder %s148, %s164
    %p166 = scmp.eq.s32.totalorder %s18, 0
    %p167 = por %p165, %p166
    %s168 = ssub.s32 %s19, %s31
    %p169 = scmp.eq.s32.totalorder %s168, 0
    %s171 = sadd.s32 %s170, 1
    %s172 = scalar_select %p169, %s170, %s171
    %p175 = pneg %p169
    %p176 = scmp.eq.s32.totalorder %s12, 15
    %p177 = por %p175, %p176
    %p178 = scmp.ne.s32.totalorder %s170, %s173
    %p179 = scmp.eq.s32.totalorder %s12, 0
    %p180 = por %p178, %p179
    %p181 = scmp.ne.s32.totalorder %s170, %s173
    %p182 = scmp.eq.s32.totalorder %s17, 15
    %p183 = por %p181, %p182
    %p184 = scmp.ne.s32.totalorder %s173, %s174
    %p185 = scmp.eq.s32.totalorder %s17, 0
    %p186 = por %p184, %p185
    %p187 = scmp.ne.s32.totalorder %s173, %s174
    %p188 = scmp.eq.s32.totalorder %s18, 15
    %p189 = por %p187, %p188
    %p191 = scmp.ne.s32.totalorder %s174, %s190
    %p192 = scmp.eq.s32.totalorder %s18, 0
    %p193 = por %p191, %p192
    %p194 = scmp.le.s32.totalorder 1, %s12
    %p195 = scmp.lt.s32.totalorder %s12, 17
    %p196 = pnand %p194, %p195
    %p197 = pneg %p196
    // Predicated region
    $region9: #{split_conv_csa_forward.10} parent=5 // pred_check
      _
    $region10: #{split_conv_csa_forward.10} parent=5 // pred_check_branch
      %199 = sbr.rel (%p196) target = $region12
    $region11: #{split_conv_csa_forward.10} parent=5 // pred_region
      %s200 = ssub.s32 %s12, 1
    $region12: #{split_conv_csa_forward.10} parent=5 // pred_fallthru
      _
    %p201 = scmp.lt.s32.totalorder %s12, 16
    // Predicated region
    $region13: #{split_conv_csa_forward.10} parent=5 // pred_check
      %p202 = pneg %p201
    $region14: #{split_conv_csa_forward.10} parent=5 // pred_check_branch
      %204 = sbr.rel (%p202) target = $region16
    $region15: #{split_conv_csa_forward.10} parent=5 // pred_region
      // Predicated region
      $region17: #{split_conv_csa_forward.10} parent=15 // pred_check
        %p205 = pneg %p46
      $region18: #{split_conv_csa_forward.10} parent=15 // pred_check_branch
        %207 = sbr.rel (%p205) target = $region20
      $region19: #{split_conv_csa_forward.10} parent=15 // pred_region
        %p208 = scmp.lt.s32.totalorder %s19, 1
        %s209 = scalar_select %p208, %s19, 1
        %p210 = scmp.lt.s32.totalorder %s20, 7
        %s211 = scalar_select %p210, %s20, 7
        %s212 = smul.addr %s211, 16
        %s213 = smul.addr %s209, 128
        %s214 = sadd.s32 %s212, %s213
        %s215 = smul.addr %s214, 4
        %s216 = scalar_lea.vmem %s0, %s215
      $region20: #{split_conv_csa_forward.10} parent=15 // pred_fallthru
        _
      // Predicated region
      $region21: #{split_conv_csa_forward.10} parent=15 // pred_check
        %p217 = pneg %p72
      $region22: #{split_conv_csa_forward.10} parent=15 // pred_check_branch
        %219 = sbr.rel (%p217) target = $region24
      $region23: #{split_conv_csa_forward.10} parent=15 // pred_region
        %p220 = scmp.lt.s32.totalorder %s19, 1
        %s221 = scalar_select %p220, %s19, 1
        %s222 = smul.addr %s221, 16
        %s223 = smul.addr %s222, 4
        %s224 = scalar_lea.vmem %s1, %s223
      $region24: #{split_conv_csa_forward.10} parent=15 // pred_fallthru
        _
      // Predicated region
      $region25: #{split_conv_csa_forward.10} parent=15 // pred_check
        %p225 = pneg %p100
      $region26: #{split_conv_csa_forward.10} parent=15 // pred_check_branch
        %227 = sbr.rel (%p225) target = $region28
      $region27: #{split_conv_csa_forward.10} parent=15 // pred_region
        %s228 = sadd.s32 %s20, 1
        %p229 = scmp.lt.s32.totalorder %s228, 9
        %s230 = scalar_select %p229, %s228, 9
        %s231 = smul.addr %s230, 16
        %s232 = smul.addr %s231, 8
        %s233 = scalar_lea.vmem %s2, %s232
        %s234 = sadd.s32 %s20, 1
      $region28: #{split_conv_csa_forward.10} parent=15 // pred_fallthru
        _
    $region16: #{split_conv_csa_forward.10} parent=5 // pred_fallthru
      _
    %p235 = scmp.le.s32.totalorder 1, %s12
    %p236 = scmp.lt.s32.totalorder %s12, 17
    %p237 = pnand %p235, %p236
    %p238 = pneg %p237
    // Predicated region
    $region29: #{split_conv_csa_forward.10} parent=5 // pred_check
      _
    $region30: #{split_conv_csa_forward.10} parent=5 // pred_check_branch
      %240 = sbr.rel (%p237) target = $region32
    $region31: #{split_conv_csa_forward.10} parent=5 // pred_region
      %s241 = ssub.s32 %s12, 1
      %p242 = scmp.lt.s32.totalorder %s21, 1
      %s243 = scalar_select %p242, %s21, 1
      %p244 = scmp.lt.s32.totalorder %s22, 7
      %s245 = scalar_select %p244, %s22, 7
      %s246 = smul.addr %s245, 16
      %s247 = smul.addr %s243, 128
      %s248 = sadd.s32 %s246, %s247
      %s249 = smul.addr %s248, 4
      %s250 = scalar_lea.vmem %s0, %s249
      %p251 = pneg %p52
      %p252 = pneg %p49
      %p253 = scmp.lt.s32.totalorder %s21, 1
      %s254 = scalar_select %p253, %s21, 1
      %s255 = smul.addr %s254, 16
      %s256 = smul.addr %s255, 4
      %s257 = scalar_lea.vmem %s1, %s256
      %p258 = pneg %p78
      %p259 = pneg %p75
      %s260 = sadd.s32 %s22, 1
      %p261 = scmp.lt.s32.totalorder %s260, 9
      %s262 = scalar_select %p261, %s260, 9
      %s263 = smul.addr %s262, 16
      %s264 = smul.addr %s263, 8
      %s265 = scalar_lea.vmem %s2, %s264
      %p266 = pneg %p106
      %p267 = pneg %p103
      %p268 = pneg %p134
      %p269 = pneg %p131
      %p270 = scmp.lt.s32.totalorder %s21, 1
      %s271 = scalar_select %p270, %s21, 1
      %p272 = scmp.lt.s32.totalorder %s22, 7
      %s273 = scalar_select %p272, %s22, 7
      %s274 = smul.addr %s273, 16
      %s275 = smul.addr %s271, 128
      %s276 = sadd.s32 %s274, %s275
      %s277 = smul.addr %s276, 8
      %s278 = scalar_lea.vmem %s3, %s277
      %p279 = pneg %p160
      %p280 = pneg %p157
      %p281 = scmp.lt.s32.totalorder %s21, 1
      %s282 = scalar_select %p281, %s21, 1
      %s283 = scalar_lea.vmem %s4, %s282
      %p284 = pneg %p186
      %p285 = pneg %p183
      %p286 = scmp.lt.s32.totalorder %s21, 1
      %s287 = scalar_select %p286, %s21, 1
      %s288 = scalar_lea.vmem %s5, %s287
      %p289 = scmp.lt.s32.totalorder %s21, 1
      %s290 = scalar_select %p289, %s21, 1
      %p291 = scmp.lt.s32.totalorder %s22, 7
      %s292 = scalar_select %p291, %s22, 7
      %s293 = smul.addr %s292, 16
      %s294 = smul.addr %s290, 128
      %s295 = sadd.s32 %s293, %s294
      %s296 = smul.addr %s295, 4
      %s297 = scalar_lea.vmem %s0, %s296
      %p298 = scmp.lt.s32.totalorder %s21, 1
      %s299 = scalar_select %p298, %s21, 1
      %s300 = smul.addr %s299, 16
      %s301 = smul.addr %s300, 4
      %s302 = scalar_lea.vmem %s1, %s301
      %s303 = sadd.s32 %s22, 1
      %p304 = scmp.lt.s32.totalorder %s303, 9
      %s305 = scalar_select %p304, %s303, 9
      %s306 = smul.addr %s305, 16
      %s307 = smul.addr %s306, 8
      %s308 = scalar_lea.vmem %s2, %s307
      %s309 = sadd.s32 %s22, 1
      %p310 = scmp.lt.s32.totalorder %s21, 1
      %s311 = scalar_select %p310, %s21, 1
      %p312 = scmp.lt.s32.totalorder %s22, 7
      %s313 = scalar_select %p312, %s22, 7
      %s314 = smul.addr %s313, 16
      %s315 = smul.addr %s311, 128
      %s316 = sadd.s32 %s314, %s315
      %s317 = smul.addr %s316, 8
      %s318 = scalar_lea.vmem %s3, %s317
      %p319 = scmp.lt.s32.totalorder %s21, 1
      %s320 = scalar_select %p319, %s21, 1
      %s321 = scalar_lea.vmem %s4, %s320
      %p322 = scmp.lt.s32.totalorder %s21, 1
      %s323 = scalar_select %p322, %s21, 1
      %s324 = scalar_lea.vmem %s5, %s323
      %v326 = vld [vmem:[%s297] sm:$0xf]
      %v327 = vld [vmem:[%s297 + $0x4] sm:$0xf]
      %v328 = vld [vmem:[%s297 + $0x8] sm:$0xf]
      %v329 = vld [vmem:[%s297 + $0xc] sm:$0xf]
      %v330 = vld [vmem:[%s297 + $0x10] sm:$0xf]
      %v331 = vld [vmem:[%s297 + $0x14] sm:$0xf]
      %v332 = vld [vmem:[%s297 + $0x18] sm:$0xf]
      %v333 = vld [vmem:[%s297 + $0x1c] sm:$0xf]
      %v334 = vld [vmem:[%s297 + $0x20] sm:$0xf]
      %v335 = vld [vmem:[%s297 + $0x24] sm:$0xf]
      %v336 = vld [vmem:[%s297 + $0x28] sm:$0xf]
      %v337 = vld [vmem:[%s297 + $0x2c] sm:$0xf]
      %v338 = vld [vmem:[%s297 + $0x30] sm:$0xf]
      %v339 = vld [vmem:[%s297 + $0x34] sm:$0xf]
      %v340 = vld [vmem:[%s297 + $0x38] sm:$0xf]
      %v341 = vld [vmem:[%s297 + $0x3c] sm:$0xf]
      %v342 = vld [vmem:[%s302] sm:$0xf]
      %v343 = vld [vmem:[%s302 + $0x4] sm:$0xf]
      %v344 = vld [vmem:[%s302 + $0x8] sm:$0xf]
      %v345 = vld [vmem:[%s302 + $0xc] sm:$0xf]
      %v346 = vld [vmem:[%s302 + $0x10] sm:$0xf]
      %v347 = vld [vmem:[%s302 + $0x14] sm:$0xf]
      %v348 = vld [vmem:[%s302 + $0x18] sm:$0xf]
      %v349 = vld [vmem:[%s302 + $0x1c] sm:$0xf]
      %v350 = vld [vmem:[%s302 + $0x20] sm:$0xf]
      %v351 = vld [vmem:[%s302 + $0x24] sm:$0xf]
      %v352 = vld [vmem:[%s302 + $0x28] sm:$0xf]
      %v353 = vld [vmem:[%s302 + $0x2c] sm:$0xf]
      %v354 = vld [vmem:[%s302 + $0x30] sm:$0xf]
      %v355 = vld [vmem:[%s302 + $0x34] sm:$0xf]
      %v356 = vld [vmem:[%s302 + $0x38] sm:$0xf]
      %v357 = vld [vmem:[%s302 + $0x3c] sm:$0xf]
      %v374 = vunpack.c.l.b16 %v326
      %v375 = vunpack.c.l.b16 %v327
      %v376 = vunpack.c.l.b16 %v328
      %v377 = vunpack.c.l.b16 %v329
      %v378 = vunpack.c.l.b16 %v330
      %v379 = vunpack.c.l.b16 %v331
      %v380 = vunpack.c.l.b16 %v332
      %v381 = vunpack.c.l.b16 %v333
      %v382 = vunpack.c.l.b16 %v334
      %v383 = vunpack.c.l.b16 %v335
      %v384 = vunpack.c.l.b16 %v336
      %v385 = vunpack.c.l.b16 %v337
      %v386 = vunpack.c.l.b16 %v338
      %v387 = vunpack.c.l.b16 %v339
      %v388 = vunpack.c.l.b16 %v340
      %v389 = vunpack.c.l.b16 %v341
      %v390 = vpack.c.b16 %v375, %v374
      %v391 = vpack.c.b16 %v377, %v376
      %v392 = vpack.c.b16 %v379, %v378
      %v393 = vpack.c.b16 %v381, %v380
      %v394 = vpack.c.b16 %v383, %v382
      %v395 = vpack.c.b16 %v385, %v384
      %v396 = vpack.c.b16 %v387, %v386
      %v397 = vpack.c.b16 %v389, %v388
      %v422 = vunpack.c.l.b16 %v342
      %v423 = vunpack.c.l.b16 %v343
      %v424 = vunpack.c.l.b16 %v344
      %v425 = vunpack.c.l.b16 %v345
      %v426 = vunpack.c.l.b16 %v346
      %v427 = vunpack.c.l.b16 %v347
      %v428 = vunpack.c.l.b16 %v348
      %v429 = vunpack.c.l.b16 %v349
      %v430 = vunpack.c.l.b16 %v350
      %v431 = vunpack.c.l.b16 %v351
      %v432 = vunpack.c.l.b16 %v352
      %v433 = vunpack.c.l.b16 %v353
      %v434 = vunpack.c.l.b16 %v354
      %v435 = vunpack.c.l.b16 %v355
      %v436 = vunpack.c.l.b16 %v356
      %v437 = vunpack.c.l.b16 %v357
      %v438 = vpack.c.b16 %v423, %v422
      %v439 = vpack.c.b16 %v425, %v424
      %v440 = vpack.c.b16 %v427, %v426
      %v441 = vpack.c.b16 %v429, %v428
      %v442 = vpack.c.b16 %v431, %v430
      %v443 = vpack.c.b16 %v433, %v432
      %v444 = vpack.c.b16 %v435, %v434
      %v445 = vpack.c.b16 %v437, %v436
      %454 = vmatprep.subr.bf16.mxu0 0
      %455 = vmatpush1.bf16.msra.mxu0 %v438
      %456 = vmatprep.subr.bf16.mxu0 0
      %457 = vmatpush1.bf16.msra.mxu0 %v439
      %458 = vmatprep.subr.bf16.mxu0 0
      %459 = vmatpush1.bf16.msra.mxu0 %v440
      %460 = vmatprep.subr.bf16.mxu0 0
      %461 = vmatpush1.bf16.msra.mxu0 %v441
      %462 = vmatprep.subr.bf16.mxu0 0
      %463 = vmatpush1.bf16.msra.mxu0 %v442
      %464 = vmatprep.subr.bf16.mxu0 0
      %465 = vmatpush1.bf16.msra.mxu0 %v443
      %466 = vmatprep.subr.bf16.mxu0 0
      %467 = vmatpush1.bf16.msra.mxu0 %v444
      %468 = vmatprep.subr.bf16.mxu0 0
      %469 = vmatpush1.bf16.msra.mxu0 %v445
      %470 = vmatprep.subr.bf16.mxu0 0
      %471 = vmatpush1.bf16.msra.mxu0 0
      %472 = vmatprep.subr.bf16.mxu0 0
      %473 = vmatpush1.bf16.msra.mxu0 0
      %474 = vmatprep.subr.bf16.mxu0 0
      %475 = vmatpush1.bf16.msra.mxu0 0
      %476 = vmatprep.subr.bf16.mxu0 0
      %477 = vmatpush1.bf16.msra.mxu0 0
      %478 = vmatprep.subr.bf16.mxu0 0
      %479 = vmatpush1.bf16.msra.mxu0 0
      %480 = vmatprep.subr.bf16.mxu0 0
      %481 = vmatpush1.bf16.msra.mxu0 0
      %482 = vmatprep.subr.bf16.mxu0 0
      %483 = vmatpush1.bf16.msra.mxu0 0
      %484 = vmatprep.subr.bf16.mxu0 0
      %485 = vmatpush1.bf16.msra.mxu0 0
      %486 = vmatprep.mubr.bf16.mxu0 0
      %487 = vmatmul.mubr.bf16.gmra.mrb[0].mxu0 %v390
      %v488 = vpop.f32.mrb[0].mxu0
      %v489 = vadd.f32 0.0, %v488
      %v490 = vpop.f32.mrb[0].mxu0
      %v491 = vpop.f32.mrb[0].mxu0
      %v492 = vadd.f32 0.0, %v491
      %v493 = vpop.f32.mrb[0].mxu0
      %494 = vmatprep.mubr.bf16.mxu0 0
      %495 = vmatmul.mubr.bf16.gmra.mrb[0].mxu0 %v391
      %v496 = vpop.f32.mrb[0].mxu0
      %v497 = vadd.f32 0.0, %v496
      %v498 = vpop.f32.mrb[0].mxu0
      %v499 = vpop.f32.mrb[0].mxu0
      %v500 = vadd.f32 0.0, %v499
      %v501 = vpop.f32.mrb[0].mxu0
      %502 = vmatprep.mubr.bf16.mxu0 0
      %503 = vmatmul.mubr.bf16.gmra.mrb[0].mxu0 %v392
      %v504 = vpop.f32.mrb[0].mxu0
      %v505 = vadd.f32 0.0, %v504
      %v506 = vpop.f32.mrb[0].mxu0
      %v507 = vpop.f32.mrb[0].mxu0
      %v508 = vadd.f32 0.0, %v507
      %v509 = vpop.f32.mrb[0].mxu0
      %510 = vmatprep.mubr.bf16.mxu0 0
      %511 = vmatmul.mubr.bf16.gmra.mrb[0].mxu0 %v393
      %v512 = vpop.f32.mrb[0].mxu0
      %v513 = vadd.f32 0.0, %v512
      %v514 = vpop.f32.mrb[0].mxu0
      %v515 = vpop.f32.mrb[0].mxu0
      %v516 = vadd.f32 0.0, %v515
      %v517 = vpop.f32.mrb[0].mxu0
      %518 = vmatprep.mubr.bf16.mxu0 0
      %519 = vmatmul.mubr.bf16.gmra.mrb[0].mxu0 %v394
      %v520 = vpop.f32.mrb[0].mxu0
      %v521 = vadd.f32 0.0, %v520
      %v522 = vpop.f32.mrb[0].mxu0
      %v523 = vpop.f32.mrb[0].mxu0
      %v524 = vadd.f32 0.0, %v523
      %v525 = vpop.f32.mrb[0].mxu0
      %526 = vmatprep.mubr.bf16.mxu0 0
      %527 = vmatmul.mubr.bf16.gmra.mrb[0].mxu0 %v395
      %v528 = vpop.f32.mrb[0].mxu0
      %v529 = vadd.f32 0.0, %v528
      %v530 = vpop.f32.mrb[0].mxu0
      %v531 = vpop.f32.mrb[0].mxu0
      %v532 = vadd.f32 0.0, %v531
      %v533 = vpop.f32.mrb[0].mxu0
      %534 = vmatprep.mubr.bf16.mxu0 0
      %535 = vmatmul.mubr.bf16.gmra.mrb[0].mxu0 %v396
      %v536 = vpop.f32.mrb[0].mxu0
      %v537 = vadd.f32 0.0, %v536
      %v538 = vpop.f32.mrb[0].mxu0
      %v539 = vpop.f32.mrb[0].mxu0
      %v540 = vadd.f32 0.0, %v539
      %v541 = vpop.f32.mrb[0].mxu0
      %542 = vmatprep.mubr.bf16.mxu0 0
      %543 = vmatmul.mubr.bf16.gmra.mrb[0].mxu0 %v397
      %v544 = vpop.f32.mrb[0].mxu0
      %v545 = vadd.f32 0.0, %v544
      %v546 = vpop.f32.mrb[0].mxu0
      %v547 = vpop.f32.mrb[0].mxu0
      %v548 = vadd.f32 0.0, %v547
      %v549 = vpop.f32.mrb[0].mxu0
      %550 = vdwg.mxu0
      %vm551 = vcmask 261120
      %552 = vst.msk [vmem:[%s318] sm:$0xff] %vm551, %v489
      %553 = vst.msk [vmem:[%s318 + $0x8] sm:$0xff] %vm551, %v492
      %554 = vst.msk [vmem:[%s318 + $0x10] sm:$0xff] %vm551, %v497
      %555 = vst.msk [vmem:[%s318 + $0x18] sm:$0xff] %vm551, %v500
      %556 = vst.msk [vmem:[%s318 + $0x20] sm:$0xff] %vm551, %v505
      %557 = vst.msk [vmem:[%s318 + $0x28] sm:$0xff] %vm551, %v508
      %558 = vst.msk [vmem:[%s318 + $0x30] sm:$0xff] %vm551, %v513
      %559 = vst.msk [vmem:[%s318 + $0x38] sm:$0xff] %vm551, %v516
      %560 = vst.msk [vmem:[%s318 + $0x40] sm:$0xff] %vm551, %v521
      %561 = vst.msk [vmem:[%s318 + $0x48] sm:$0xff] %vm551, %v524
      %562 = vst.msk [vmem:[%s318 + $0x50] sm:$0xff] %vm551, %v529
      %563 = vst.msk [vmem:[%s318 + $0x58] sm:$0xff] %vm551, %v532
      %564 = vst.msk [vmem:[%s318 + $0x60] sm:$0xff] %vm551, %v537
      %565 = vst.msk [vmem:[%s318 + $0x68] sm:$0xff] %vm551, %v540
      %566 = vst.msk [vmem:[%s318 + $0x70] sm:$0xff] %vm551, %v545
      %567 = vst.msk [vmem:[%s318 + $0x78] sm:$0xff] %vm551, %v548
      %v568 = vld [vmem:[%s308] sm:$0xff]
      %v569 = vld [vmem:[%s308 + $0x8] sm:$0xff]
      %v570 = vld [vmem:[%s308 + $0x10] sm:$0xff]
      %v571 = vld [vmem:[%s308 + $0x18] sm:$0xff]
      %v572 = vld [vmem:[%s308 + $0x20] sm:$0xff]
      %v573 = vld [vmem:[%s308 + $0x28] sm:$0xff]
      %v574 = vld [vmem:[%s308 + $0x30] sm:$0xff]
      %v575 = vld [vmem:[%s308 + $0x38] sm:$0xff]
      %v576 = vld [vmem:[%s308 + $0x40] sm:$0xff]
      %v577 = vld [vmem:[%s308 + $0x48] sm:$0xff]
      %v578 = vld [vmem:[%s308 + $0x50] sm:$0xff]
      %v579 = vld [vmem:[%s308 + $0x58] sm:$0xff]
      %v580 = vld [vmem:[%s308 + $0x60] sm:$0xff]
      %v581 = vld [vmem:[%s308 + $0x68] sm:$0xff]
      %v582 = vld [vmem:[%s308 + $0x70] sm:$0xff]
      %v583 = vld [vmem:[%s308 + $0x78] sm:$0xff]
      %585 = vset.pattern.permute.xlu0 0
      %586 = vperm.xlu0 %585, %v568
      %v587 = vpop.permute.xlu0 %586
      %590 = vset.pattern.permute.xlu0 0
      %591 = vperm.xlu0 %590, %v569
      %v592 = vpop.permute.xlu0 %591
      %595 = vset.pattern.permute.xlu0 0
      %596 = vperm.xlu0 %595, %v570
      %v597 = vpop.permute.xlu0 %596
      %600 = vset.pattern.permute.xlu0 0
      %601 = vperm.xlu0 %600, %v571
      %v602 = vpop.permute.xlu0 %601
      %605 = vset.pattern.permute.xlu0 0
      %606 = vperm.xlu0 %605, %v572
      %v607 = vpop.permute.xlu0 %606
      %610 = vset.pattern.permute.xlu0 0
      %611 = vperm.xlu0 %610, %v573
      %v612 = vpop.permute.xlu0 %611
      %615 = vset.pattern.permute.xlu0 0
      %616 = vperm.xlu0 %615, %v574
      %v617 = vpop.permute.xlu0 %616
      %620 = vset.pattern.permute.xlu0 0
      %621 = vperm.xlu0 %620, %v575
      %v622 = vpop.permute.xlu0 %621
      %625 = vset.pattern.permute.xlu0 0
      %626 = vperm.xlu0 %625, %v576
      %v627 = vpop.permute.xlu0 %626
      %630 = vset.pattern.permute.xlu0 0
      %631 = vperm.xlu0 %630, %v577
      %v632 = vpop.permute.xlu0 %631
      %635 = vset.pattern.permute.xlu0 0
      %636 = vperm.xlu0 %635, %v578
      %v637 = vpop.permute.xlu0 %636
      %640 = vset.pattern.permute.xlu0 0
      %641 = vperm.xlu0 %640, %v579
      %v642 = vpop.permute.xlu0 %641
      %645 = vset.pattern.permute.xlu0 0
      %646 = vperm.xlu0 %645, %v580
      %v647 = vpop.permute.xlu0 %646
      %650 = vset.pattern.permute.xlu0 0
      %651 = vperm.xlu0 %650, %v581
      %v652 = vpop.permute.xlu0 %651
      %655 = vset.pattern.permute.xlu0 0
      %656 = vperm.xlu0 %655, %v582
      %v657 = vpop.permute.xlu0 %656
      %660 = vset.pattern.permute.xlu0 0
      %661 = vperm.xlu0 %660, %v583
      %v662 = vpop.permute.xlu0 %661
      %v664 = vmul.f32 %v489, %v587
      %v665 = vmul.f32 %v492, %v592
      %v666 = vmul.f32 %v497, %v597
      %v667 = vmul.f32 %v500, %v602
      %v668 = vmul.f32 %v505, %v607
      %v669 = vmul.f32 %v508, %v612
      %v670 = vmul.f32 %v513, %v617
      %v671 = vmul.f32 %v516, %v622
      %v672 = vmul.f32 %v521, %v627
      %v673 = vmul.f32 %v524, %v632
      %v674 = vmul.f32 %v529, %v637
      %v675 = vmul.f32 %v532, %v642
      %v676 = vmul.f32 %v537, %v647
      %v677 = vmul.f32 %v540, %v652
      %v678 = vmul.f32 %v545, %v657
      %v679 = vmul.f32 %v548, %v662
      %p680 = scmp.eq.s32.totalorder %s22, 0
      // Predicated region
      $region33: #{split_conv_csa_forward.10} parent=31 // pred_check
        %p681 = pneg %p680
      $region34: #{split_conv_csa_forward.10} parent=31 // pred_check_branch
        %683 = sbr.rel (%p681) target = $region36
      $region35: #{split_conv_csa_forward.10} parent=31 // pred_region
        %vm684 = vcmask 253952
        %685 = vst.msk [vmem:[%s321] sm:$0x1] %vm684, 0.0
        %686 = vst.msk [vmem:[%s324] sm:$0x1] %vm684, 0.0
      $region36: #{split_conv_csa_forward.10} parent=31 // pred_fallthru
        _
      %v687 = vld [vmem:[%s321] sm:$0x1]
      %v688 = vsel %vm551, %v664, 0.0
      %v689 = vsel %vm551, %v665, 0.0
      %v690 = vadd.f32 %v688, %v689
      %v691 = vsel %vm551, %v666, 0.0
      %v692 = vadd.f32 %v690, %v691
      %v693 = vsel %vm551, %v667, 0.0
      %v694 = vadd.f32 %v692, %v693
      %v695 = vsel %vm551, %v668, 0.0
      %v696 = vadd.f32 %v694, %v695
      %v697 = vsel %vm551, %v669, 0.0
      %v698 = vadd.f32 %v696, %v697
      %v699 = vsel %vm551, %v670, 0.0
      %v700 = vadd.f32 %v698, %v699
      %v701 = vsel %vm551, %v671, 0.0
      %v702 = vadd.f32 %v700, %v701
      %v703 = vsel %vm551, %v672, 0.0
      %v704 = vadd.f32 %v702, %v703
      %v705 = vsel %vm551, %v673, 0.0
      %v706 = vadd.f32 %v704, %v705
      %v707 = vsel %vm551, %v674, 0.0
      %v708 = vadd.f32 %v706, %v707
      %v709 = vsel %vm551, %v675, 0.0
      %v710 = vadd.f32 %v708, %v709
      %v711 = vsel %vm551, %v676, 0.0
      %v712 = vadd.f32 %v710, %v711
      %v713 = vsel %vm551, %v677, 0.0
      %v714 = vadd.f32 %v712, %v713
      %v715 = vsel %vm551, %v678, 0.0
      %v716 = vadd.f32 %v714, %v715
      %v717 = vsel %vm551, %v679, 0.0
      %v718 = vadd.f32 %v716, %v717
      %v719 = vrot.slane %v718, 4
      %v720 = vadd.f32 %v718, %v719
      %v721 = vrot.slane %v720, 2
      %v722 = vadd.f32 %v720, %v721
      %v723 = vrot.slane %v722, 1
      %v724 = vadd.f32 %v722, %v723
      %v725 = vadd.f32 %v687, %v724
      %vm726 = vcmask 253952
      %727 = vst.msk [vmem:[%s321] sm:$0x1] %vm726, %v725
      %v728 = vld [vmem:[%s324] sm:$0x1]
      %v729 = vmul.f32 %v489, %v664
      %v730 = vmul.f32 %v492, %v665
      %v731 = vmul.f32 %v497, %v666
      %v732 = vmul.f32 %v500, %v667
      %v733 = vmul.f32 %v505, %v668
      %v734 = vmul.f32 %v508, %v669
      %v735 = vmul.f32 %v513, %v670
      %v736 = vmul.f32 %v516, %v671
      %v737 = vmul.f32 %v521, %v672
      %v738 = vmul.f32 %v524, %v673
      %v739 = vmul.f32 %v529, %v674
      %v740 = vmul.f32 %v532, %v675
      %v741 = vmul.f32 %v537, %v676
      %v742 = vmul.f32 %v540, %v677
      %v743 = vmul.f32 %v545, %v678
      %v744 = vmul.f32 %v548, %v679
      %v745 = vsel %vm551, %v729, 0.0
      %v746 = vsel %vm551, %v730, 0.0
      %v747 = vadd.f32 %v745, %v746
      %v748 = vsel %vm551, %v731, 0.0
      %v749 = vadd.f32 %v747, %v748
      %v750 = vsel %vm551, %v732, 0.0
      %v751 = vadd.f32 %v749, %v750
      %v752 = vsel %vm551, %v733, 0.0
      %v753 = vadd.f32 %v751, %v752
      %v754 = vsel %vm551, %v734, 0.0
      %v755 = vadd.f32 %v753, %v754
      %v756 = vsel %vm551, %v735, 0.0
      %v757 = vadd.f32 %v755, %v756
      %v758 = vsel %vm551, %v736, 0.0
      %v759 = vadd.f32 %v757, %v758
      %v760 = vsel %vm551, %v737, 0.0
      %v761 = vadd.f32 %v759, %v760
      %v762 = vsel %vm551, %v738, 0.0
      %v763 = vadd.f32 %v761, %v762
      %v764 = vsel %vm551, %v739, 0.0
      %v765 = vadd.f32 %v763, %v764
      %v766 = vsel %vm551, %v740, 0.0
      %v767 = vadd.f32 %v765, %v766
      %v768 = vsel %vm551, %v741, 0.0
      %v769 = vadd.f32 %v767, %v768
      %v770 = vsel %vm551, %v742, 0.0
      %v771 = vadd.f32 %v769, %v770
      %v772 = vsel %vm551, %v743, 0.0
      %v773 = vadd.f32 %v771, %v772
      %v774 = vsel %vm551, %v744, 0.0
      %v775 = vadd.f32 %v773, %v774
      %v776 = vrot.slane %v775, 4
      %v777 = vadd.f32 %v775, %v776
      %v778 = vrot.slane %v777, 2
      %v779 = vadd.f32 %v777, %v778
      %v780 = vrot.slane %v779, 1
      %v781 = vadd.f32 %v779, %v780
      %v782 = vadd.f32 %v728, %v781
      %783 = vst.msk [vmem:[%s324] sm:$0x1] %vm726, %v782
      %p784 = scmp.lt.s32.totalorder %s21, 1
      %s785 = scalar_select %p784, %s21, 1
      %p786 = scmp.lt.s32.totalorder %s22, 7
      %s787 = scalar_select %p786, %s22, 7
      %s788 = smul.addr %s787, 16
      %s789 = smul.addr %s785, 128
      %s790 = sadd.s32 %s788, %s789
      %s791 = smul.addr %s790, 8
      %s792 = scalar_lea.vmem %s3, %s791
      %p793 = scmp.lt.s32.totalorder %s21, 1
      %s794 = scalar_select %p793, %s21, 1
      %s795 = scalar_lea.vmem %s4, %s794
      %p796 = scmp.lt.s32.totalorder %s21, 1
      %s797 = scalar_select %p796, %s21, 1
      %s798 = scalar_lea.vmem %s5, %s797
      // Predicated region
      $region37: #{split_conv_csa_forward.10} parent=31 // pred_check
        %p799 = pneg %p131
      $region38: #{split_conv_csa_forward.10} parent=31 // pred_check_branch
        %801 = sbr.rel (%p799) target = $region40
      $region39: #{split_conv_csa_forward.10} parent=31 // pred_region
        _
      $region40: #{split_conv_csa_forward.10} parent=31 // pred_fallthru
        _
      // Predicated region
      $region41: #{split_conv_csa_forward.10} parent=31 // pred_check
        %p802 = pneg %p157
      $region42: #{split_conv_csa_forward.10} parent=31 // pred_check_branch
        %804 = sbr.rel (%p802) target = $region44
      $region43: #{split_conv_csa_forward.10} parent=31 // pred_region
        _
      $region44: #{split_conv_csa_forward.10} parent=31 // pred_fallthru
        _
      // Predicated region
      $region45: #{split_conv_csa_forward.10} parent=31 // pred_check
        %p805 = pneg %p183
      $region46: #{split_conv_csa_forward.10} parent=31 // pred_check_branch
        %807 = sbr.rel (%p805) target = $region48
      $region47: #{split_conv_csa_forward.10} parent=31 // pred_region
        _
      $region48: #{split_conv_csa_forward.10} parent=31 // pred_fallthru
        _
    $region32: #{split_conv_csa_forward.10} parent=5 // pred_fallthru
      _
    %p808 = scmp.le.s32.totalorder 2, %s12
    // Predicated region
    $region49: #{split_conv_csa_forward.10} parent=5 // pred_check
      %p809 = pneg %p808
    $region50: #{split_conv_csa_forward.10} parent=5 // pred_check_branch
      %811 = sbr.rel (%p809) target = $region52
    $region51: #{split_conv_csa_forward.10} parent=5 // pred_region
      %s812 = ssub.s32 %s12, 2
      // Predicated region
      $region53: #{split_conv_csa_forward.10} parent=51 // pred_check
        %p813 = pneg %p137
      $region54: #{split_conv_csa_forward.10} parent=51 // pred_check_branch
        %815 = sbr.rel (%p813) target = $region56
      $region55: #{split_conv_csa_forward.10} parent=51 // pred_region
        %p816 = scmp.lt.s32.totalorder %s23, 1
        %s817 = scalar_select %p816, %s23, 1
        %p818 = scmp.lt.s32.totalorder %s24, 7
        %s819 = scalar_select %p818, %s24, 7
        %s820 = smul.addr %s819, 16
        %s821 = smul.addr %s817, 128
        %s822 = sadd.s32 %s820, %s821
        %s823 = smul.addr %s822, 8
        %s824 = scalar_lea.vmem %s3, %s823
      $region56: #{split_conv_csa_forward.10} parent=51 // pred_fallthru
        _
      // Predicated region
      $region57: #{split_conv_csa_forward.10} parent=51 // pred_check
        %p825 = pneg %p163
      $region58: #{split_conv_csa_forward.10} parent=51 // pred_check_branch
        %827 = sbr.rel (%p825) target = $region60
      $region59: #{split_conv_csa_forward.10} parent=51 // pred_region
        %p828 = scmp.lt.s32.totalorder %s23, 1
        %s829 = scalar_select %p828, %s23, 1
        %s830 = scalar_lea.vmem %s4, %s829
      $region60: #{split_conv_csa_forward.10} parent=51 // pred_fallthru
        _
      // Predicated region
      $region61: #{split_conv_csa_forward.10} parent=51 // pred_check
        %p831 = pneg %p189
      $region62: #{split_conv_csa_forward.10} parent=51 // pred_check_branch
        %833 = sbr.rel (%p831) target = $region64
      $region63: #{split_conv_csa_forward.10} parent=51 // pred_region
        %p834 = scmp.lt.s32.totalorder %s23, 1
        %s835 = scalar_select %p834, %s23, 1
        %s836 = scalar_lea.vmem %s5, %s835
      $region64: #{split_conv_csa_forward.10} parent=51 // pred_fallthru
        _
    $region52: #{split_conv_csa_forward.10} parent=5 // pred_fallthru
      _
  $region6: #{split_conv_csa_forward.10} parent=0 // loop_footer
    %s16 = sadd.s32 1, %s12
  $region7: #{split_conv_csa_forward.10} parent=0 // loop_footer_branch
    %11 = sbr.rel target = $region3
  $region8: #{split_conv_csa_forward.10} parent=0 // loop_exit
    _

</llo_original>
